<compile_context>
chip_gen: v6e
topology: v6e:2x2x1
jax: 0.10.0
libtpu: 0.0.40
codegen_flags: <defaults>
</compile_context>

<pallas_src>
import jax
import jax.numpy as jnp
from jax.experimental import pallas as pl
from jax.experimental.pallas import tpu as pltpu

MXU_DTYPE = jnp.bfloat16   # operand dtype for the two big conv dots (f32 acc)


# ----------------------------------------------------------------------------
# The single fused kernel
# ----------------------------------------------------------------------------
def _make_dqn_kernel(batch):
    n_rows = batch * 60            # paired conv1 rows per pool-view (2*5*6 per image)

    def kernel(p1_ref, w1_ref, b1_ref, w2_ref, b2_ref, w3_ref, b3_ref,
               fc1w_ref, fc1b_ref, fc2w_ref, fc2b_ref, fc3w_ref, fc3b_ref,
               o_ref,
               h1_ref, s_ref, p2_ref, p3_ref, flat_ref):
        f32 = jnp.float32

        # ---------------- Stage 1: conv1 + bias + ReLU + 2x2/s2 max-pool ------
        # p1: (4*n_rows, 512) f32, rows ordered (pool_view, b, g, i', J); each
        # row holds TWO adjacent spatial positions (block-diagonal weight).
        p1 = p1_ref[...].astype(w1_ref.dtype)
        y = jnp.dot(p1, w1_ref[...], preferred_element_type=f32)     # (4*n, 128)
        # max over the 4 pooling-window row blocks, THEN shared bias + ReLU.
        y = jnp.maximum(jnp.maximum(y[0:n_rows], y[n_rows:2 * n_rows]),
                        jnp.maximum(y[2 * n_rows:3 * n_rows], y[3 * n_rows:4 * n_rows]))
        y = jnp.maximum(y + b1_ref[...], 0.0)                        # (n, 128)
        # Zero the phantom halves (conv2 zero-padding columns): rows with
        # J == 0 have a phantom left half, rows with J == 5 a phantom right half.
        rid = jax.lax.broadcasted_iota(jnp.int32, (n_rows, 128), 0)
        lid = jax.lax.broadcasted_iota(jnp.int32, (n_rows, 128), 1)
        jcol = rid % 6
        phantom = ((jcol == 0) & (lid < 64)) | ((jcol == 5) & (lid >= 64))
        h1_ref[...] = jnp.where(phantom, 0.0, y)

        # ------- scatter h1 into the zero-padded super-pixel grid S ----------
        # S: (B, 6, 6, 256); lanes = (di, dj, c) within each 2x2 super-pixel of
        # the (12x12) zero-padded h1.  All stores are 128-lane aligned.
        s_ref[...] = jnp.zeros(s_ref.shape, f32)
        for b in range(batch):
            base = b * 60
            for i in range(5):
                # g = 0 (di = 0): super rows 1..5, lanes 0:128
                s_ref[b, 1 + i, :, 0:128] = h1_ref[base + i * 6: base + i * 6 + 6, :]
                # g = 1 (di = 1): super rows 0..4, lanes 128:256
                s_ref[b, i, :, 128:256] = h1_ref[base + 30 + i * 6: base + 30 + i * 6 + 6, :]

        # ------- conv2 im2col: (B*25, 1024) from 256-lane aligned copies ------
        # 4x4/s2 conv over the padded 12x12 grid == 2x2/s1 conv over super-pixels.
        for b in range(batch):
            for t, (ti, tj) in enumerate(((0, 0), (0, 1), (1, 0), (1, 1))):
                for oh in range(5):
                    r = b * 25 + oh * 5
                    p2_ref[r:r + 5, t * 256:(t + 1) * 256] = s_ref[b, oh + ti, tj:tj + 5, :]

        # ---------------- Stage 2: conv2 (ONE dot) + 2x2/s1 max-pool ----------
        z2 = jnp.dot(p2_ref[...].astype(w2_ref.dtype), w2_ref[...],
                     preferred_element_type=f32)                     # (B*25, 128)
        b2 = b2_ref[...]
        for b in range(batch):
            blk = z2[b * 25: b * 25 + 25, :]                          # 5x5 grid
            a = jnp.maximum(blk[0:20, :], blk[5:25, :])               # max over h-neighbours
            for ph in range(4):
                row4 = jnp.maximum(a[ph * 5: ph * 5 + 4, :],
                                   a[ph * 5 + 1: ph * 5 + 5, :])      # (4,128) pooled
                row4 = jnp.maximum(row4 + b2, 0.0)                    # bias+ReLU hoisted
                # write straight into conv3's im2col layout (no h2 round-trip)
                for pw in range(4):
                    pos = (ph // 2) * 2 + (pw // 2)                   # conv3 output position
                    lane = ((ph % 2) * 2 + (pw % 2)) * 128            # conv3 tap block
                    dst = pos * batch + b
                    p3_ref[dst:dst + 1, lane:lane + 128] = row4[pw:pw + 1, :]

        # ---------------- Head: conv3 + flatten + fc1 + fc2 + fc3 (f32) -------
        h3 = jnp.dot(p3_ref[...], w3_ref[...], preferred_element_type=f32)   # (4B,128)
        h3 = jnp.maximum(h3 + b3_ref[...], 0.0)
        for pos in range(4):
            flat_ref[:, pos * 128:(pos + 1) * 128] = h3[pos * batch:(pos + 1) * batch, :]
        z = jnp.dot(flat_ref[...], fc1w_ref[...], preferred_element_type=f32) + fc1b_ref[...]
        z = jnp.maximum(z, 0.0)
        z = jnp.dot(z, fc2w_ref[...], preferred_element_type=f32) + fc2b_ref[...]
        z = jnp.maximum(z, 0.0)
        o_ref[...] = jnp.dot(z, fc3w_ref[...], preferred_element_type=f32) + fc3b_ref[...]

    return kernel


def _full_spec(shape):
    return pl.BlockSpec(shape, lambda i, _n=len(shape): (0,) * _n)


# ----------------------------------------------------------------------------
# Layout-only XLA glue: conv1 im2col in NHWC, feature order (ki, kj, c)
# ----------------------------------------------------------------------------
def _extract_patches_nhwc(x, kh, kw, stride, padding):
    if padding:
        x = jnp.pad(x, ((0, 0), (padding, padding), (padding, padding), (0, 0)))
    _, hp, wp, _ = x.shape
    ho = (hp - kh) // stride + 1
    wo = (wp - kw) // stride + 1
    cols = []
    for ki in range(kh):
        for kj in range(kw):
            cols.append(x[:, ki:ki + stride * (ho - 1) + 1:stride,
                          kj:kj + stride * (wo - 1) + 1:stride, :])
    return jnp.concatenate(cols, axis=-1), ho, wo


# ----------------------------------------------------------------------------
# DQN forward: one Pallas launch
# ----------------------------------------------------------------------------
def dqn_forward(kp, s):
    """s: (B, C, 80, 80) f32 (PyTorch NCHW).  Returns (B, action_dim) f32."""
    batch = s.shape[0]
    x = jnp.transpose(s, (0, 2, 3, 1))                               # NCHW -> NHWC (once)

    # conv1 patches at all 20x20 output positions: (B, 20, 20, 256)
    pat, _, _ = _extract_patches_nhwc(x, 8, 8, 4, 2)

    # Build the stage-1 input: rows ordered (pool_view, b, g, i', J); each row
    # pairs the two h1 positions (h, 2J-1) and (h, 2J) -> 512 features.
    views = []
    for dh in (0, 1):
        for dw in (0, 1):
            vp = pat[:, dh::2, dw::2, :]                              # (B,10,10,256)
            gs = []
            for g in (0, 1):                                          # g=0: h odd, g=1: h even
                sub = vp[:, (1 - g)::2, :, :]                         # (B,5,10,256)
                sub = jnp.pad(sub, ((0, 0), (0, 0), (1, 1), (0, 0)))  # conv2 w-padding
                gs.append(sub.reshape(batch, 5, 6, 512))              # pair (2J-1, 2J)
            views.append(jnp.stack(gs, axis=1))                       # (B,2,5,6,512)
    p1 = jnp.stack(views, axis=0).reshape(4 * batch * 60, 512)

    args = (p1,
            kp["conv1_w"], kp["conv1_b"], kp["conv2_w"], kp["conv2_b"],
            kp["conv3_w"], kp["conv3_b"], kp["fc1_w"], kp["fc1_b"],
            kp["fc2_w"], kp["fc2_b"], kp["fc3_w"], kp["fc3_b"])
    action_dim = kp["fc3_w"].shape[1]

    return pl.pallas_call(
        _make_dqn_kernel(batch),
        out_shape=jax.ShapeDtypeStruct((batch, action_dim), jnp.float32),
        grid=(1,),
        in_specs=[_full_spec(a.shape) for a in args],
        out_specs=_full_spec((batch, action_dim)),
        scratch_shapes=[
            pltpu.VMEM((batch * 60, 128), jnp.float32),   # h1 (paired, lane-dense)
            pltpu.VMEM((batch, 6, 6, 256), jnp.float32),  # padded super-pixel grid
            pltpu.VMEM((batch * 25, 1024), jnp.float32),  # conv2 im2col
            pltpu.VMEM((4 * batch, 512), jnp.float32),    # conv3 im2col
            pltpu.VMEM((batch, 512), jnp.float32),        # flatten for fc1
        ],
        compiler_params=pltpu.CompilerParams(
            dimension_semantics=("arbitrary",),
            vmem_limit_bytes=32 * 1024 * 1024),
    )(*args)


# ----------------------------------------------------------------------------
# Parameters: PyTorch-layout init + one-time kernel-layout transform
# ----------------------------------------------------------------------------
def init_params(key, c, action_dim):
    ks = jax.random.split(key, 12)

    def w(k, shape, fan_in):
        return jax.random.normal(k, shape, jnp.float32) / jnp.sqrt(fan_in)

    return {
        "conv1_w": w(ks[0], (64, c, 8, 8), c * 64),
        "conv1_b": 0.01 * jax.random.normal(ks[1], (64,), jnp.float32),
        "conv2_w": w(ks[2], (128, 64, 4, 4), 64 * 16),
        "conv2_b": 0.01 * jax.random.normal(ks[3], (128,), jnp.float32),
        "conv3_w": w(ks[4], (128, 128, 2, 2), 128 * 4),
        "conv3_b": 0.01 * jax.random.normal(ks[5], (128,), jnp.float32),
        "fc1_w": w(ks[6], (128 * 6, 128 * 4), 128 * 4),
        "fc1_b": 0.01 * jax.random.normal(ks[7], (128 * 6,), jnp.float32),
        "fc2_w": w(ks[8], (32, 128 * 6), 128 * 6),
        "fc2_b": 0.01 * jax.random.normal(ks[9], (32,), jnp.float32),
        "fc3_w": w(ks[10], (action_dim, 32), 32),
        "fc3_b": 0.01 * jax.random.normal(ks[11], (action_dim,), jnp.float32),
    }


def prepare_params(params, mxu_dtype=MXU_DTYPE):
    """One-time transform to kernel-friendly layouts (outside the hot path)."""
    f32 = jnp.float32

    def conv_w_mat(w):           # (O, I, kh, kw) -> (kh*kw*I, O), rows (ki, kj, c)
        o, i, kh, kw = w.shape
        return jnp.transpose(w, (2, 3, 1, 0)).reshape(kh * kw * i, o).astype(f32)

    def bias_row(bv):
        return bv.reshape(1, -1).astype(f32)

    # conv1: block-diagonal (512, 128) so one row computes two adjacent
    # spatial positions -> lane-dense (128-wide) stage-1 output.
    w1 = conv_w_mat(params["conv1_w"])                       # (256, 64)
    k1, n1 = w1.shape
    w1_blk = jnp.zeros((2 * k1, 2 * n1), f32)
    w1_blk = w1_blk.at[:k1, :n1].set(w1).at[k1:, n1:].set(w1)

    # conv2: rows ordered (di_s, dj_s, di, dj, c) so ki = 2*di_s + di,
    # kj = 2*dj_s + dj -> matches the in-kernel super-pixel patch layout.
    w2 = params["conv2_w"]                                   # (128, 64, 4, 4)
    o2, i2, _, _ = w2.shape
    w2 = w2.reshape(o2, i2, 2, 2, 2, 2)                      # (O, I, di_s, di, dj_s, dj)
    w2 = jnp.transpose(w2, (2, 4, 3, 5, 1, 0)).reshape(16 * i2, o2)

    # conv3: rows ordered (ki, kj, c) -> matches p3 lane blocks.
    w3 = conv_w_mat(params["conv3_w"])                       # (512, 128)

    # fc1: PyTorch flatten is (C=128, H=2, W=2); ours is (pos = h*2+w, c).
    fc1 = (params["fc1_w"].reshape(-1, 128, 2, 2)
           .transpose(2, 3, 1, 0).reshape(512, -1).astype(f32))

    b1 = bias_row(params["conv1_b"])
    return {
        "conv1_w": w1_blk.astype(mxu_dtype),
        "conv1_b": jnp.concatenate([b1, b1], axis=-1),        # (1, 128)
        "conv2_w": w2.astype(mxu_dtype),
        "conv2_b": bias_row(params["conv2_b"]),
        "conv3_w": w3,
        "conv3_b": bias_row(params["conv3_b"]),
        "fc1_w": fc1, "fc1_b": bias_row(params["fc1_b"]),
        "fc2_w": params["fc2_w"].T.astype(f32), "fc2_b": bias_row(params["fc2_b"]),
        "fc3_w": params["fc3_w"].T.astype(f32), "fc3_b": bias_row(params["fc3_b"]),
    }


# ----------------------------------------------------------------------------
# Pure-XLA f32 reference of the original PyTorch module (validation only)
# ----------------------------------------------------------------------------
def dqn_forward_reference(params, s):
    def conv(x, w, bv, stride, padding):
        out = jax.lax.conv_general_dilated(
            x, w, window_strides=(stride, stride),
            padding=[(padding, padding), (padding, padding)],
            dimension_numbers=("NCHW", "OIHW", "NCHW"))
        return out + bv.reshape(1, -1, 1, 1)

    def maxpool(x, k, stride):
        return jax.lax.reduce_window(
            x, -jnp.inf, jax.lax.max,
            window_dimensions=(1, 1, k, k),
            window_strides=(1, 1, stride, stride), padding="VALID")

    out = jax.nn.relu(conv(s, params["conv1_w"], params["conv1_b"], 4, 2))
    out = maxpool(out, 2, 2)
    out = jax.nn.relu(conv(out, params["conv2_w"], params["conv2_b"], 2, 1))
    out = maxpool(out, 2, 1)
    out = jax.nn.relu(conv(out, params["conv3_w"], params["conv3_b"], 2, 0))
    out = out.reshape(out.shape[0], -1)
    out = jax.nn.relu(out @ params["fc1_w"].T + params["fc1_b"])
    out = jax.nn.relu(out @ params["fc2_w"].T + params["fc2_b"])
    return out @ params["fc3_w"].T + params["fc3_b"]


if __name__ == "__main__":
    # The conv stack requires 80x80 spatial input to reach the 128*2*2 flatten.
    batch, c, hw, action_dim = 2, 4, 80, 6
    key = jax.random.PRNGKey(0)
    k_x, k_p = jax.random.split(key)
    x = jax.random.normal(k_x, (batch, c, hw, hw), jnp.float32)

    params = init_params(k_p, c, action_dim)      # PyTorch-layout weights
    kparams = prepare_params(params)              # one-time layout transform

    q = jax.jit(dqn_forward)(kparams, x)
    q = jax.block_until_ready(q)

    assert q.shape == (batch, action_dim), q.shape
    assert bool(jnp.all(jnp.isfinite(q)))

    # Validate the fused Pallas path against the f32 XLA reference.
    q_ref = jax.block_until_ready(jax.jit(dqn_forward_reference)(params, x))
    max_err = float(jnp.max(jnp.abs(q - q_ref)))
    assert max_err < 0.2, f"mismatch vs reference: {max_err}"

    print("KERNEL_OK")
</pallas_src>

<mosaic_0001>
module attributes {stable_mosaic.version = 11 : i64} {
  func.func @kernel(%arg0: i32, %arg1: memref<480x512xf32, #tpu.memory_space<vmem>>, %arg2: memref<512x128xbf16, #tpu.memory_space<vmem>>, %arg3: memref<1x128xf32, #tpu.memory_space<vmem>>, %arg4: memref<1024x128xbf16, #tpu.memory_space<vmem>>, %arg5: memref<1x128xf32, #tpu.memory_space<vmem>>, %arg6: memref<512x128xf32, #tpu.memory_space<vmem>>, %arg7: memref<1x128xf32, #tpu.memory_space<vmem>>, %arg8: memref<512x768xf32, #tpu.memory_space<vmem>>, %arg9: memref<1x768xf32, #tpu.memory_space<vmem>>, %arg10: memref<768x32xf32, #tpu.memory_space<vmem>>, %arg11: memref<1x32xf32, #tpu.memory_space<vmem>>, %arg12: memref<32x6xf32, #tpu.memory_space<vmem>>, %arg13: memref<1x6xf32, #tpu.memory_space<vmem>>, %arg14: memref<2x6xf32, #tpu.memory_space<vmem>>, %arg15: memref<120x128xf32, #tpu.memory_space<vmem>>, %arg16: memref<2x6x6x256xf32, #tpu.memory_space<vmem>>, %arg17: memref<50x1024xf32, #tpu.memory_space<vmem>>, %arg18: memref<8x512xf32, #tpu.memory_space<vmem>>, %arg19: memref<2x512xf32, #tpu.memory_space<vmem>>) attributes {dimension_semantics = [#tpu.dimension_semantics<arbitrary>], iteration_bounds = array<i64: 1>, scalar_prefetch = 0 : i64, scratch_operands = 5 : i64, tpu.core_type = #tpu.core_type<tc>, window_params = [{pipeline_mode = #tpu.pipeline_mode<synchronous>, transform_indices = @transform_0, window_bounds = array<i64: 480, 512>}, {pipeline_mode = #tpu.pipeline_mode<synchronous>, transform_indices = @transform_1, window_bounds = array<i64: 512, 128>}, {pipeline_mode = #tpu.pipeline_mode<synchronous>, transform_indices = @transform_2, window_bounds = array<i64: 1, 128>}, {pipeline_mode = #tpu.pipeline_mode<synchronous>, transform_indices = @transform_3, window_bounds = array<i64: 1024, 128>}, {pipeline_mode = #tpu.pipeline_mode<synchronous>, transform_indices = @transform_4, window_bounds = array<i64: 1, 128>}, {pipeline_mode = #tpu.pipeline_mode<synchronous>, transform_indices = @transform_5, window_bounds = array<i64: 512, 128>}, {pipeline_mode = #tpu.pipeline_mode<synchronous>, transform_indices = @transform_6, window_bounds = array<i64: 1, 128>}, {pipeline_mode = #tpu.pipeline_mode<synchronous>, transform_indices = @transform_7, window_bounds = array<i64: 512, 768>}, {pipeline_mode = #tpu.pipeline_mode<synchronous>, transform_indices = @transform_8, window_bounds = array<i64: 1, 768>}, {pipeline_mode = #tpu.pipeline_mode<synchronous>, transform_indices = @transform_9, window_bounds = array<i64: 768, 32>}, {pipeline_mode = #tpu.pipeline_mode<synchronous>, transform_indices = @transform_10, window_bounds = array<i64: 1, 32>}, {pipeline_mode = #tpu.pipeline_mode<synchronous>, transform_indices = @transform_11, window_bounds = array<i64: 32, 6>}, {pipeline_mode = #tpu.pipeline_mode<synchronous>, transform_indices = @transform_12, window_bounds = array<i64: 1, 6>}, {pipeline_mode = #tpu.pipeline_mode<synchronous>, transform_indices = @transform_13, window_bounds = array<i64: 2, 6>}]} {
    %c0 = arith.constant 0 : index
    %c0_0 = arith.constant 0 : index
    %0 = vector.load %arg1[%c0, %c0_0] : memref<480x512xf32, #tpu.memory_space<vmem>>, vector<480x512xf32>
    %1 = arith.truncf %0 : vector<480x512xf32> to vector<480x512xbf16>
    %c0_1 = arith.constant 0 : index
    %c0_2 = arith.constant 0 : index
    %2 = vector.load %arg2[%c0_1, %c0_2] : memref<512x128xbf16, #tpu.memory_space<vmem>>, vector<512x128xbf16>
    %cst = arith.constant dense<0.000000e+00> : vector<480x128xf32>
    %3 = tpu.matmul %1, %2, %cst {dimension_numbers = #tpu.dot_dimension_numbers<[1], [0], [0], [1], [0, 0, 1, 1], [], []>} : vector<480x512xbf16>, vector<512x128xbf16>, vector<480x128xf32> -> vector<480x128xf32>
    %4 = vector.extract_strided_slice %3 {offsets = [0, 0], sizes = [120, 128], strides = [1, 1]} : vector<480x128xf32> to vector<120x128xf32>
    %5 = vector.extract_strided_slice %3 {offsets = [120, 0], sizes = [120, 128], strides = [1, 1]} : vector<480x128xf32> to vector<120x128xf32>
    %6 = arith.maximumf %4, %5 : vector<120x128xf32>
    %7 = vector.extract_strided_slice %3 {offsets = [240, 0], sizes = [120, 128], strides = [1, 1]} : vector<480x128xf32> to vector<120x128xf32>
    %8 = vector.extract_strided_slice %3 {offsets = [360, 0], sizes = [120, 128], strides = [1, 1]} : vector<480x128xf32> to vector<120x128xf32>
    %9 = arith.maximumf %7, %8 : vector<120x128xf32>
    %10 = arith.maximumf %6, %9 : vector<120x128xf32>
    %c0_3 = arith.constant 0 : index
    %c0_4 = arith.constant 0 : index
    %11 = vector.load %arg3[%c0_3, %c0_4] : memref<1x128xf32, #tpu.memory_space<vmem>>, vector<1x128xf32>
    %12 = vector.broadcast %11 : vector<1x128xf32> to vector<120x128xf32>
    %13 = arith.addf %10, %12 : vector<120x128xf32>
    %cst_5 = arith.constant 0.000000e+00 : f32
    %14 = vector.broadcast %cst_5 : f32 to vector<120x128xf32>
    %15 = arith.maximumf %13, %14 : vector<120x128xf32>
    %16 = tpu.iota {dimensions = array<i32: 0>} : vector<120x128xi32>
    %17 = tpu.iota {dimensions = array<i32: 1>} : vector<120x128xi32>
    %c6_i32 = arith.constant 6 : i32
    %c0_i32 = arith.constant 0 : i32
    %18 = arith.cmpi eq, %c6_i32, %c0_i32 : i32
    %c1_i32 = arith.constant 1 : i32
    %19 = arith.select %18, %c1_i32, %c6_i32 : i32
    %20 = vector.broadcast %19 : i32 to vector<120x128xi32>
    %21 = arith.remsi %16, %20 : vector<120x128xi32>
    %c0_i32_6 = arith.constant 0 : i32
    %22 = vector.broadcast %c0_i32_6 : i32 to vector<120x128xi32>
    %23 = arith.cmpi ne, %21, %22 : vector<120x128xi32>
    %c0_i32_7 = arith.constant 0 : i32
    %24 = vector.broadcast %c0_i32_7 : i32 to vector<120x128xi32>
    %25 = arith.cmpi slt, %21, %24 : vector<120x128xi32>
    %c0_i32_8 = arith.constant 0 : i32
    %26 = arith.cmpi slt, %19, %c0_i32_8 : i32
    %27 = vector.broadcast %26 : i1 to vector<120x128xi1>
    %28 = vector.broadcast %27 : vector<120x128xi1> to vector<120x128xi1>
    %29 = arith.xori %25, %28 : vector<120x128xi1>
    %30 = arith.andi %29, %23 : vector<120x128xi1>
    %31 = vector.broadcast %19 : i32 to vector<120x128xi32>
    %32 = arith.addi %21, %31 : vector<120x128xi32>
    %33 = arith.select %30, %32, %21 : vector<120x128xi1>, vector<120x128xi32>
    %c0_i32_9 = arith.constant 0 : i32
    %34 = vector.broadcast %c0_i32_9 : i32 to vector<120x128xi32>
    %35 = arith.cmpi eq, %33, %34 : vector<120x128xi32>
    %c64_i32 = arith.constant 64 : i32
    %36 = vector.broadcast %c64_i32 : i32 to vector<120x128xi32>
    %37 = arith.cmpi slt, %17, %36 : vector<120x128xi32>
    %38 = arith.andi %35, %37 : vector<120x128xi1>
    %c5_i32 = arith.constant 5 : i32
    %39 = vector.broadcast %c5_i32 : i32 to vector<120x128xi32>
    %40 = arith.cmpi eq, %33, %39 : vector<120x128xi32>
    %c64_i32_10 = arith.constant 64 : i32
    %41 = vector.broadcast %c64_i32_10 : i32 to vector<120x128xi32>
    %42 = arith.cmpi sge, %17, %41 : vector<120x128xi32>
    %43 = arith.andi %40, %42 : vector<120x128xi1>
    %44 = arith.ori %38, %43 : vector<120x128xi1>
    %cst_11 = arith.constant 0.000000e+00 : f32
    %45 = vector.broadcast %cst_11 : f32 to vector<120x128xf32>
    %46 = arith.select %44, %45, %15 : vector<120x128xi1>, vector<120x128xf32>
    %c0_12 = arith.constant 0 : index
    %c0_13 = arith.constant 0 : index
    %47 = vector.load %arg15[%c0_12, %c0_13] : memref<120x128xf32, #tpu.memory_space<vmem>>, vector<120x128xf32>
    tpu.vector_store %arg15[%c0_12, %c0_13], %46 {strides = array<i32>} : memref<120x128xf32, #tpu.memory_space<vmem>>, vector<120x128xf32>,
    %cst_14 = arith.constant 0.000000e+00 : f32
    %48 = vector.broadcast %cst_14 : f32 to vector<2x6x6x256xf32>
    %c0_15 = arith.constant 0 : index
    %c0_16 = arith.constant 0 : index
    %c0_17 = arith.constant 0 : index
    %c0_18 = arith.constant 0 : index
    %49 = vector.load %arg16[%c0_15, %c0_16, %c0_17, %c0_18] : memref<2x6x6x256xf32, #tpu.memory_space<vmem>>, vector<2x6x6x256xf32>
    tpu.vector_store %arg16[%c0_15, %c0_16, %c0_17, %c0_18], %48 {strides = array<i32>} : memref<2x6x6x256xf32, #tpu.memory_space<vmem>>, vector<2x6x6x256xf32>,
    %c0_19 = arith.constant 0 : index
    %c0_20 = arith.constant 0 : index
    %50 = vector.load %arg15[%c0_19, %c0_20] : memref<120x128xf32, #tpu.memory_space<vmem>>, vector<6x128xf32>
    %c0_21 = arith.constant 0 : index
    %c1 = arith.constant 1 : index
    %c0_22 = arith.constant 0 : index
    %c0_23 = arith.constant 0 : index
    %51 = vector.load %arg16[%c0_21, %c1, %c0_22, %c0_23] : memref<2x6x6x256xf32, #tpu.memory_space<vmem>>, vector<1x1x6x128xf32>
    %52 = vector.shape_cast %51 : vector<1x1x6x128xf32> to vector<6x128xf32>
    %53 = vector.shape_cast %50 : vector<6x128xf32> to vector<1x1x6x128xf32>
    tpu.vector_store %arg16[%c0_21, %c1, %c0_22, %c0_23], %53 {strides = array<i32>} : memref<2x6x6x256xf32, #tpu.memory_space<vmem>>, vector<1x1x6x128xf32>,
    %c30 = arith.constant 30 : index
    %c0_24 = arith.constant 0 : index
    %54 = vector.load %arg15[%c30, %c0_24] : memref<120x128xf32, #tpu.memory_space<vmem>>, vector<6x128xf32>
    %c0_25 = arith.constant 0 : index
    %c0_26 = arith.constant 0 : index
    %c0_27 = arith.constant 0 : index
    %c128 = arith.constant 128 : index
    %55 = vector.load %arg16[%c0_25, %c0_26, %c0_27, %c128] : memref<2x6x6x256xf32, #tpu.memory_space<vmem>>, vector<1x1x6x128xf32>
    %56 = vector.shape_cast %55 : vector<1x1x6x128xf32> to vector<6x128xf32>
    %57 = vector.shape_cast %54 : vector<6x128xf32> to vector<1x1x6x128xf32>
    tpu.vector_store %arg16[%c0_25, %c0_26, %c0_27, %c128], %57 {strides = array<i32>} : memref<2x6x6x256xf32, #tpu.memory_space<vmem>>, vector<1x1x6x128xf32>,
    %c6 = arith.constant 6 : index
    %c0_28 = arith.constant 0 : index
    %58 = vector.load %arg15[%c6, %c0_28] : memref<120x128xf32, #tpu.memory_space<vmem>>, vector<6x128xf32>
    %c0_29 = arith.constant 0 : index
    %c2 = arith.constant 2 : index
    %c0_30 = arith.constant 0 : index
    %c0_31 = arith.constant 0 : index
    %59 = vector.load %arg16[%c0_29, %c2, %c0_30, %c0_31] : memref<2x6x6x256xf32, #tpu.memory_space<vmem>>, vector<1x1x6x128xf32>
    %60 = vector.shape_cast %59 : vector<1x1x6x128xf32> to vector<6x128xf32>
    %61 = vector.shape_cast %58 : vector<6x128xf32> to vector<1x1x6x128xf32>
    tpu.vector_store %arg16[%c0_29, %c2, %c0_30, %c0_31], %61 {strides = array<i32>} : memref<2x6x6x256xf32, #tpu.memory_space<vmem>>, vector<1x1x6x128xf32>,
    %c36 = arith.constant 36 : index
    %c0_32 = arith.constant 0 : index
    %62 = vector.load %arg15[%c36, %c0_32] : memref<120x128xf32, #tpu.memory_space<vmem>>, vector<6x128xf32>
    %c0_33 = arith.constant 0 : index
    %c1_34 = arith.constant 1 : index
    %c0_35 = arith.constant 0 : index
    %c128_36 = arith.constant 128 : index
    %63 = vector.load %arg16[%c0_33, %c1_34, %c0_35, %c128_36] : memref<2x6x6x256xf32, #tpu.memory_space<vmem>>, vector<1x1x6x128xf32>
    %64 = vector.shape_cast %63 : vector<1x1x6x128xf32> to vector<6x128xf32>
    %65 = vector.shape_cast %62 : vector<6x128xf32> to vector<1x1x6x128xf32>
    tpu.vector_store %arg16[%c0_33, %c1_34, %c0_35, %c128_36], %65 {strides = array<i32>} : memref<2x6x6x256xf32, #tpu.memory_space<vmem>>, vector<1x1x6x128xf32>,
    %c12 = arith.constant 12 : index
    %c0_37 = arith.constant 0 : index
    %66 = vector.load %arg15[%c12, %c0_37] : memref<120x128xf32, #tpu.memory_space<vmem>>, vector<6x128xf32>
    %c0_38 = arith.constant 0 : index
    %c3 = arith.constant 3 : index
    %c0_39 = arith.constant 0 : index
    %c0_40 = arith.constant 0 : index
    %67 = vector.load %arg16[%c0_38, %c3, %c0_39, %c0_40] : memref<2x6x6x256xf32, #tpu.memory_space<vmem>>, vector<1x1x6x128xf32>
    %68 = vector.shape_cast %67 : vector<1x1x6x128xf32> to vector<6x128xf32>
    %69 = vector.shape_cast %66 : vector<6x128xf32> to vector<1x1x6x128xf32>
    tpu.vector_store %arg16[%c0_38, %c3, %c0_39, %c0_40], %69 {strides = array<i32>} : memref<2x6x6x256xf32, #tpu.memory_space<vmem>>, vector<1x1x6x128xf32>,
    %c42 = arith.constant 42 : index
    %c0_41 = arith.constant 0 : index
    %70 = vector.load %arg15[%c42, %c0_41] : memref<120x128xf32, #tpu.memory_space<vmem>>, vector<6x128xf32>
    %c0_42 = arith.constant 0 : index
    %c2_43 = arith.constant 2 : index
    %c0_44 = arith.constant 0 : index
    %c128_45 = arith.constant 128 : index
    %71 = vector.load %arg16[%c0_42, %c2_43, %c0_44, %c128_45] : memref<2x6x6x256xf32, #tpu.memory_space<vmem>>, vector<1x1x6x128xf32>
    %72 = vector.shape_cast %71 : vector<1x1x6x128xf32> to vector<6x128xf32>
    %73 = vector.shape_cast %70 : vector<6x128xf32> to vector<1x1x6x128xf32>
    tpu.vector_store %arg16[%c0_42, %c2_43, %c0_44, %c128_45], %73 {strides = array<i32>} : memref<2x6x6x256xf32, #tpu.memory_space<vmem>>, vector<1x1x6x128xf32>,
    %c18 = arith.constant 18 : index
    %c0_46 = arith.constant 0 : index
    %74 = vector.load %arg15[%c18, %c0_46] : memref<120x128xf32, #tpu.memory_space<vmem>>, vector<6x128xf32>
    %c0_47 = arith.constant 0 : index
    %c4 = arith.constant 4 : index
    %c0_48 = arith.constant 0 : index
    %c0_49 = arith.constant 0 : index
    %75 = vector.load %arg16[%c0_47, %c4, %c0_48, %c0_49] : memref<2x6x6x256xf32, #tpu.memory_space<vmem>>, vector<1x1x6x128xf32>
    %76 = vector.shape_cast %75 : vector<1x1x6x128xf32> to vector<6x128xf32>
    %77 = vector.shape_cast %74 : vector<6x128xf32> to vector<1x1x6x128xf32>
    tpu.vector_store %arg16[%c0_47, %c4, %c0_48, %c0_49], %77 {strides = array<i32>} : memref<2x6x6x256xf32, #tpu.memory_space<vmem>>, vector<1x1x6x128xf32>,
    %c48 = arith.constant 48 : index
    %c0_50 = arith.constant 0 : index
    %78 = vector.load %arg15[%c48, %c0_50] : memref<120x128xf32, #tpu.memory_space<vmem>>, vector<6x128xf32>
    %c0_51 = arith.constant 0 : index
    %c3_52 = arith.constant 3 : index
    %c0_53 = arith.constant 0 : index
    %c128_54 = arith.constant 128 : index
    %79 = vector.load %arg16[%c0_51, %c3_52, %c0_53, %c128_54] : memref<2x6x6x256xf32, #tpu.memory_space<vmem>>, vector<1x1x6x128xf32>
    %80 = vector.shape_cast %79 : vector<1x1x6x128xf32> to vector<6x128xf32>
    %81 = vector.shape_cast %78 : vector<6x128xf32> to vector<1x1x6x128xf32>
    tpu.vector_store %arg16[%c0_51, %c3_52, %c0_53, %c128_54], %81 {strides = array<i32>} : memref<2x6x6x256xf32, #tpu.memory_space<vmem>>, vector<1x1x6x128xf32>,
    %c24 = arith.constant 24 : index
    %c0_55 = arith.constant 0 : index
    %82 = vector.load %arg15[%c24, %c0_55] : memref<120x128xf32, #tpu.memory_space<vmem>>, vector<6x128xf32>
    %c0_56 = arith.constant 0 : index
    %c5 = arith.constant 5 : index
    %c0_57 = arith.constant 0 : index
    %c0_58 = arith.constant 0 : index
    %83 = vector.load %arg16[%c0_56, %c5, %c0_57, %c0_58] : memref<2x6x6x256xf32, #tpu.memory_space<vmem>>, vector<1x1x6x128xf32>
    %84 = vector.shape_cast %83 : vector<1x1x6x128xf32> to vector<6x128xf32>
    %85 = vector.shape_cast %82 : vector<6x128xf32> to vector<1x1x6x128xf32>
    tpu.vector_store %arg16[%c0_56, %c5, %c0_57, %c0_58], %85 {strides = array<i32>} : memref<2x6x6x256xf32, #tpu.memory_space<vmem>>, vector<1x1x6x128xf32>,
    %c54 = arith.constant 54 : index
    %c0_59 = arith.constant 0 : index
    %86 = vector.load %arg15[%c54, %c0_59] : memref<120x128xf32, #tpu.memory_space<vmem>>, vector<6x128xf32>
    %c0_60 = arith.constant 0 : index
    %c4_61 = arith.constant 4 : index
    %c0_62 = arith.constant 0 : index
    %c128_63 = arith.constant 128 : index
    %87 = vector.load %arg16[%c0_60, %c4_61, %c0_62, %c128_63] : memref<2x6x6x256xf32, #tpu.memory_space<vmem>>, vector<1x1x6x128xf32>
    %88 = vector.shape_cast %87 : vector<1x1x6x128xf32> to vector<6x128xf32>
    %89 = vector.shape_cast %86 : vector<6x128xf32> to vector<1x1x6x128xf32>
    tpu.vector_store %arg16[%c0_60, %c4_61, %c0_62, %c128_63], %89 {strides = array<i32>} : memref<2x6x6x256xf32, #tpu.memory_space<vmem>>, vector<1x1x6x128xf32>,
    %c60 = arith.constant 60 : index
    %c0_64 = arith.constant 0 : index
    %90 = vector.load %arg15[%c60, %c0_64] : memref<120x128xf32, #tpu.memory_space<vmem>>, vector<6x128xf32>
    %c1_65 = arith.constant 1 : index
    %c1_66 = arith.constant 1 : index
    %c0_67 = arith.constant 0 : index
    %c0_68 = arith.constant 0 : index
    %91 = vector.load %arg16[%c1_65, %c1_66, %c0_67, %c0_68] : memref<2x6x6x256xf32, #tpu.memory_space<vmem>>, vector<1x1x6x128xf32>
    %92 = vector.shape_cast %91 : vector<1x1x6x128xf32> to vector<6x128xf32>
    %93 = vector.shape_cast %90 : vector<6x128xf32> to vector<1x1x6x128xf32>
    tpu.vector_store %arg16[%c1_65, %c1_66, %c0_67, %c0_68], %93 {strides = array<i32>} : memref<2x6x6x256xf32, #tpu.memory_space<vmem>>, vector<1x1x6x128xf32>,
    %c90 = arith.constant 90 : index
    %c0_69 = arith.constant 0 : index
    %94 = vector.load %arg15[%c90, %c0_69] : memref<120x128xf32, #tpu.memory_space<vmem>>, vector<6x128xf32>
    %c1_70 = arith.constant 1 : index
    %c0_71 = arith.constant 0 : index
    %c0_72 = arith.constant 0 : index
    %c128_73 = arith.constant 128 : index
    %95 = vector.load %arg16[%c1_70, %c0_71, %c0_72, %c128_73] : memref<2x6x6x256xf32, #tpu.memory_space<vmem>>, vector<1x1x6x128xf32>
    %96 = vector.shape_cast %95 : vector<1x1x6x128xf32> to vector<6x128xf32>
    %97 = vector.shape_cast %94 : vector<6x128xf32> to vector<1x1x6x128xf32>
    tpu.vector_store %arg16[%c1_70, %c0_71, %c0_72, %c128_73], %97 {strides = array<i32>} : memref<2x6x6x256xf32, #tpu.memory_space<vmem>>, vector<1x1x6x128xf32>,
    %c66 = arith.constant 66 : index
    %c0_74 = arith.constant 0 : index
    %98 = vector.load %arg15[%c66, %c0_74] : memref<120x128xf32, #tpu.memory_space<vmem>>, vector<6x128xf32>
    %c1_75 = arith.constant 1 : index
    %c2_76 = arith.constant 2 : index
    %c0_77 = arith.constant 0 : index
    %c0_78 = arith.constant 0 : index
    %99 = vector.load %arg16[%c1_75, %c2_76, %c0_77, %c0_78] : memref<2x6x6x256xf32, #tpu.memory_space<vmem>>, vector<1x1x6x128xf32>
    %100 = vector.shape_cast %99 : vector<1x1x6x128xf32> to vector<6x128xf32>
    %101 = vector.shape_cast %98 : vector<6x128xf32> to vector<1x1x6x128xf32>
    tpu.vector_store %arg16[%c1_75, %c2_76, %c0_77, %c0_78], %101 {strides = array<i32>} : memref<2x6x6x256xf32, #tpu.memory_space<vmem>>, vector<1x1x6x128xf32>,
    %c96 = arith.constant 96 : index
    %c0_79 = arith.constant 0 : index
    %102 = vector.load %arg15[%c96, %c0_79] : memref<120x128xf32, #tpu.memory_space<vmem>>, vector<6x128xf32>
    %c1_80 = arith.constant 1 : index
    %c1_81 = arith.constant 1 : index
    %c0_82 = arith.constant 0 : index
    %c128_83 = arith.constant 128 : index
    %103 = vector.load %arg16[%c1_80, %c1_81, %c0_82, %c128_83] : memref<2x6x6x256xf32, #tpu.memory_space<vmem>>, vector<1x1x6x128xf32>
    %104 = vector.shape_cast %103 : vector<1x1x6x128xf32> to vector<6x128xf32>
    %105 = vector.shape_cast %102 : vector<6x128xf32> to vector<1x1x6x128xf32>
    tpu.vector_store %arg16[%c1_80, %c1_81, %c0_82, %c128_83], %105 {strides = array<i32>} : memref<2x6x6x256xf32, #tpu.memory_space<vmem>>, vector<1x1x6x128xf32>,
    %c72 = arith.constant 72 : index
    %c0_84 = arith.constant 0 : index
    %106 = vector.load %arg15[%c72, %c0_84] : memref<120x128xf32, #tpu.memory_space<vmem>>, vector<6x128xf32>
    %c1_85 = arith.constant 1 : index
    %c3_86 = arith.constant 3 : index
    %c0_87 = arith.constant 0 : index
    %c0_88 = arith.constant 0 : index
    %107 = vector.load %arg16[%c1_85, %c3_86, %c0_87, %c0_88] : memref<2x6x6x256xf32, #tpu.memory_space<vmem>>, vector<1x1x6x128xf32>
    %108 = vector.shape_cast %107 : vector<1x1x6x128xf32> to vector<6x128xf32>
    %109 = vector.shape_cast %106 : vector<6x128xf32> to vector<1x1x6x128xf32>
    tpu.vector_store %arg16[%c1_85, %c3_86, %c0_87, %c0_88], %109 {strides = array<i32>} : memref<2x6x6x256xf32, #tpu.memory_space<vmem>>, vector<1x1x6x128xf32>,
    %c102 = arith.constant 102 : index
    %c0_89 = arith.constant 0 : index
    %110 = vector.load %arg15[%c102, %c0_89] : memref<120x128xf32, #tpu.memory_space<vmem>>, vector<6x128xf32>
    %c1_90 = arith.constant 1 : index
    %c2_91 = arith.constant 2 : index
    %c0_92 = arith.constant 0 : index
    %c128_93 = arith.constant 128 : index
    %111 = vector.load %arg16[%c1_90, %c2_91, %c0_92, %c128_93] : memref<2x6x6x256xf32, #tpu.memory_space<vmem>>, vector<1x1x6x128xf32>
    %112 = vector.shape_cast %111 : vector<1x1x6x128xf32> to vector<6x128xf32>
    %113 = vector.shape_cast %110 : vector<6x128xf32> to vector<1x1x6x128xf32>
    tpu.vector_store %arg16[%c1_90, %c2_91, %c0_92, %c128_93], %113 {strides = array<i32>} : memref<2x6x6x256xf32, #tpu.memory_space<vmem>>, vector<1x1x6x128xf32>,
    %c78 = arith.constant 78 : index
    %c0_94 = arith.constant 0 : index
    %114 = vector.load %arg15[%c78, %c0_94] : memref<120x128xf32, #tpu.memory_space<vmem>>, vector<6x128xf32>
    %c1_95 = arith.constant 1 : index
    %c4_96 = arith.constant 4 : index
    %c0_97 = arith.constant 0 : index
    %c0_98 = arith.constant 0 : index
    %115 = vector.load %arg16[%c1_95, %c4_96, %c0_97, %c0_98] : memref<2x6x6x256xf32, #tpu.memory_space<vmem>>, vector<1x1x6x128xf32>
    %116 = vector.shape_cast %115 : vector<1x1x6x128xf32> to vector<6x128xf32>
    %117 = vector.shape_cast %114 : vector<6x128xf32> to vector<1x1x6x128xf32>
    tpu.vector_store %arg16[%c1_95, %c4_96, %c0_97, %c0_98], %117 {strides = array<i32>} : memref<2x6x6x256xf32, #tpu.memory_space<vmem>>, vector<1x1x6x128xf32>,
    %c108 = arith.constant 108 : index
    %c0_99 = arith.constant 0 : index
    %118 = vector.load %arg15[%c108, %c0_99] : memref<120x128xf32, #tpu.memory_space<vmem>>, vector<6x128xf32>
    %c1_100 = arith.constant 1 : index
    %c3_101 = arith.constant 3 : index
    %c0_102 = arith.constant 0 : index
    %c128_103 = arith.constant 128 : index
    %119 = vector.load %arg16[%c1_100, %c3_101, %c0_102, %c128_103] : memref<2x6x6x256xf32, #tpu.memory_space<vmem>>, vector<1x1x6x128xf32>
    %120 = vector.shape_cast %119 : vector<1x1x6x128xf32> to vector<6x128xf32>
    %121 = vector.shape_cast %118 : vector<6x128xf32> to vector<1x1x6x128xf32>
    tpu.vector_store %arg16[%c1_100, %c3_101, %c0_102, %c128_103], %121 {strides = array<i32>} : memref<2x6x6x256xf32, #tpu.memory_space<vmem>>, vector<1x1x6x128xf32>,
    %c84 = arith.constant 84 : index
    %c0_104 = arith.constant 0 : index
    %122 = vector.load %arg15[%c84, %c0_104] : memref<120x128xf32, #tpu.memory_space<vmem>>, vector<6x128xf32>
    %c1_105 = arith.constant 1 : index
    %c5_106 = arith.constant 5 : index
    %c0_107 = arith.constant 0 : index
    %c0_108 = arith.constant 0 : index
    %123 = vector.load %arg16[%c1_105, %c5_106, %c0_107, %c0_108] : memref<2x6x6x256xf32, #tpu.memory_space<vmem>>, vector<1x1x6x128xf32>
    %124 = vector.shape_cast %123 : vector<1x1x6x128xf32> to vector<6x128xf32>
    %125 = vector.shape_cast %122 : vector<6x128xf32> to vector<1x1x6x128xf32>
    tpu.vector_store %arg16[%c1_105, %c5_106, %c0_107, %c0_108], %125 {strides = array<i32>} : memref<2x6x6x256xf32, #tpu.memory_space<vmem>>, vector<1x1x6x128xf32>,
    %c114 = arith.constant 114 : index
    %c0_109 = arith.constant 0 : index
    %126 = vector.load %arg15[%c114, %c0_109] : memref<120x128xf32, #tpu.memory_space<vmem>>, vector<6x128xf32>
    %c1_110 = arith.constant 1 : index
    %c4_111 = arith.constant 4 : index
    %c0_112 = arith.constant 0 : index
    %c128_113 = arith.constant 128 : index
    %127 = vector.load %arg16[%c1_110, %c4_111, %c0_112, %c128_113] : memref<2x6x6x256xf32, #tpu.memory_space<vmem>>, vector<1x1x6x128xf32>
    %128 = vector.shape_cast %127 : vector<1x1x6x128xf32> to vector<6x128xf32>
    %129 = vector.shape_cast %126 : vector<6x128xf32> to vector<1x1x6x128xf32>
    tpu.vector_store %arg16[%c1_110, %c4_111, %c0_112, %c128_113], %129 {strides = array<i32>} : memref<2x6x6x256xf32, #tpu.memory_space<vmem>>, vector<1x1x6x128xf32>,
    %c0_114 = arith.constant 0 : index
    %c0_115 = arith.constant 0 : index
    %c0_116 = arith.constant 0 : index
    %c0_117 = arith.constant 0 : index
    %130 = vector.load %arg16[%c0_114, %c0_115, %c0_116, %c0_117] : memref<2x6x6x256xf32, #tpu.memory_space<vmem>>, vector<1x1x5x256xf32>
    %131 = vector.shape_cast %130 : vector<1x1x5x256xf32> to vector<5x256xf32>
    %c0_118 = arith.constant 0 : index
    %c0_119 = arith.constant 0 : index
    %132 = vector.load %arg17[%c0_118, %c0_119] : memref<50x1024xf32, #tpu.memory_space<vmem>>, vector<5x256xf32>
    tpu.vector_store %arg17[%c0_118, %c0_119], %131 {strides = array<i32>} : memref<50x1024xf32, #tpu.memory_space<vmem>>, vector<5x256xf32>,
    %c0_120 = arith.constant 0 : index
    %c1_121 = arith.constant 1 : index
    %c0_122 = arith.constant 0 : index
    %c0_123 = arith.constant 0 : index
    %133 = vector.load %arg16[%c0_120, %c1_121, %c0_122, %c0_123] : memref<2x6x6x256xf32, #tpu.memory_space<vmem>>, vector<1x1x5x256xf32>
    %134 = vector.shape_cast %133 : vector<1x1x5x256xf32> to vector<5x256xf32>
    %c5_124 = arith.constant 5 : index
    %c0_125 = arith.constant 0 : index
    %135 = vector.load %arg17[%c5_124, %c0_125] : memref<50x1024xf32, #tpu.memory_space<vmem>>, vector<5x256xf32>
    tpu.vector_store %arg17[%c5_124, %c0_125], %134 {strides = array<i32>} : memref<50x1024xf32, #tpu.memory_space<vmem>>, vector<5x256xf32>,
    %c0_126 = arith.constant 0 : index
    %c2_127 = arith.constant 2 : index
    %c0_128 = arith.constant 0 : index
    %c0_129 = arith.constant 0 : index
    %136 = vector.load %arg16[%c0_126, %c2_127, %c0_128, %c0_129] : memref<2x6x6x256xf32, #tpu.memory_space<vmem>>, vector<1x1x5x256xf32>
    %137 = vector.shape_cast %136 : vector<1x1x5x256xf32> to vector<5x256xf32>
    %c10 = arith.constant 10 : index
    %c0_130 = arith.constant 0 : index
    %138 = vector.load %arg17[%c10, %c0_130] : memref<50x1024xf32, #tpu.memory_space<vmem>>, vector<5x256xf32>
    tpu.vector_store %arg17[%c10, %c0_130], %137 {strides = array<i32>} : memref<50x1024xf32, #tpu.memory_space<vmem>>, vector<5x256xf32>,
    %c0_131 = arith.constant 0 : index
    %c3_132 = arith.constant 3 : index
    %c0_133 = arith.constant 0 : index
    %c0_134 = arith.constant 0 : index
    %139 = vector.load %arg16[%c0_131, %c3_132, %c0_133, %c0_134] : memref<2x6x6x256xf32, #tpu.memory_space<vmem>>, vector<1x1x5x256xf32>
    %140 = vector.shape_cast %139 : vector<1x1x5x256xf32> to vector<5x256xf32>
    %c15 = arith.constant 15 : index
    %c0_135 = arith.constant 0 : index
    %141 = vector.load %arg17[%c15, %c0_135] : memref<50x1024xf32, #tpu.memory_space<vmem>>, vector<5x256xf32>
    tpu.vector_store %arg17[%c15, %c0_135], %140 {strides = array<i32>} : memref<50x1024xf32, #tpu.memory_space<vmem>>, vector<5x256xf32>,
    %c0_136 = arith.constant 0 : index
    %c4_137 = arith.constant 4 : index
    %c0_138 = arith.constant 0 : index
    %c0_139 = arith.constant 0 : index
    %142 = vector.load %arg16[%c0_136, %c4_137, %c0_138, %c0_139] : memref<2x6x6x256xf32, #tpu.memory_space<vmem>>, vector<1x1x5x256xf32>
    %143 = vector.shape_cast %142 : vector<1x1x5x256xf32> to vector<5x256xf32>
    %c20 = arith.constant 20 : index
    %c0_140 = arith.constant 0 : index
    %144 = vector.load %arg17[%c20, %c0_140] : memref<50x1024xf32, #tpu.memory_space<vmem>>, vector<5x256xf32>
    tpu.vector_store %arg17[%c20, %c0_140], %143 {strides = array<i32>} : memref<50x1024xf32, #tpu.memory_space<vmem>>, vector<5x256xf32>,
    %c0_141 = arith.constant 0 : index
    %c0_142 = arith.constant 0 : index
    %c1_143 = arith.constant 1 : index
    %c0_144 = arith.constant 0 : index
    %145 = vector.load %arg16[%c0_141, %c0_142, %c1_143, %c0_144] : memref<2x6x6x256xf32, #tpu.memory_space<vmem>>, vector<1x1x5x256xf32>
    %146 = vector.shape_cast %145 : vector<1x1x5x256xf32> to vector<5x256xf32>
    %c0_145 = arith.constant 0 : index
    %c256 = arith.constant 256 : index
    %147 = vector.load %arg17[%c0_145, %c256] : memref<50x1024xf32, #tpu.memory_space<vmem>>, vector<5x256xf32>
    tpu.vector_store %arg17[%c0_145, %c256], %146 {strides = array<i32>} : memref<50x1024xf32, #tpu.memory_space<vmem>>, vector<5x256xf32>,
    %c0_146 = arith.constant 0 : index
    %c1_147 = arith.constant 1 : index
    %c1_148 = arith.constant 1 : index
    %c0_149 = arith.constant 0 : index
    %148 = vector.load %arg16[%c0_146, %c1_147, %c1_148, %c0_149] : memref<2x6x6x256xf32, #tpu.memory_space<vmem>>, vector<1x1x5x256xf32>
    %149 = vector.shape_cast %148 : vector<1x1x5x256xf32> to vector<5x256xf32>
    %c5_150 = arith.constant 5 : index
    %c256_151 = arith.constant 256 : index
    %150 = vector.load %arg17[%c5_150, %c256_151] : memref<50x1024xf32, #tpu.memory_space<vmem>>, vector<5x256xf32>
    tpu.vector_store %arg17[%c5_150, %c256_151], %149 {strides = array<i32>} : memref<50x1024xf32, #tpu.memory_space<vmem>>, vector<5x256xf32>,
    %c0_152 = arith.constant 0 : index
    %c2_153 = arith.constant 2 : index
    %c1_154 = arith.constant 1 : index
    %c0_155 = arith.constant 0 : index
    %151 = vector.load %arg16[%c0_152, %c2_153, %c1_154, %c0_155] : memref<2x6x6x256xf32, #tpu.memory_space<vmem>>, vector<1x1x5x256xf32>
    %152 = vector.shape_cast %151 : vector<1x1x5x256xf32> to vector<5x256xf32>
    %c10_156 = arith.constant 10 : index
    %c256_157 = arith.constant 256 : index
    %153 = vector.load %arg17[%c10_156, %c256_157] : memref<50x1024xf32, #tpu.memory_space<vmem>>, vector<5x256xf32>
    tpu.vector_store %arg17[%c10_156, %c256_157], %152 {strides = array<i32>} : memref<50x1024xf32, #tpu.memory_space<vmem>>, vector<5x256xf32>,
    %c0_158 = arith.constant 0 : index
    %c3_159 = arith.constant 3 : index
    %c1_160 = arith.constant 1 : index
    %c0_161 = arith.constant 0 : index
    %154 = vector.load %arg16[%c0_158, %c3_159, %c1_160, %c0_161] : memref<2x6x6x256xf32, #tpu.memory_space<vmem>>, vector<1x1x5x256xf32>
    %155 = vector.shape_cast %154 : vector<1x1x5x256xf32> to vector<5x256xf32>
    %c15_162 = arith.constant 15 : index
    %c256_163 = arith.constant 256 : index
    %156 = vector.load %arg17[%c15_162, %c256_163] : memref<50x1024xf32, #tpu.memory_space<vmem>>, vector<5x256xf32>
    tpu.vector_store %arg17[%c15_162, %c256_163], %155 {strides = array<i32>} : memref<50x1024xf32, #tpu.memory_space<vmem>>, vector<5x256xf32>,
    %c0_164 = arith.constant 0 : index
    %c4_165 = arith.constant 4 : index
    %c1_166 = arith.constant 1 : index
    %c0_167 = arith.constant 0 : index
    %157 = vector.load %arg16[%c0_164, %c4_165, %c1_166, %c0_167] : memref<2x6x6x256xf32, #tpu.memory_space<vmem>>, vector<1x1x5x256xf32>
    %158 = vector.shape_cast %157 : vector<1x1x5x256xf32> to vector<5x256xf32>
    %c20_168 = arith.constant 20 : index
    %c256_169 = arith.constant 256 : index
    %159 = vector.load %arg17[%c20_168, %c256_169] : memref<50x1024xf32, #tpu.memory_space<vmem>>, vector<5x256xf32>
    tpu.vector_store %arg17[%c20_168, %c256_169], %158 {strides = array<i32>} : memref<50x1024xf32, #tpu.memory_space<vmem>>, vector<5x256xf32>,
    %c0_170 = arith.constant 0 : index
    %c1_171 = arith.constant 1 : index
    %c0_172 = arith.constant 0 : index
    %c0_173 = arith.constant 0 : index
    %160 = vector.load %arg16[%c0_170, %c1_171, %c0_172, %c0_173] : memref<2x6x6x256xf32, #tpu.memory_space<vmem>>, vector<1x1x5x256xf32>
    %161 = vector.shape_cast %160 : vector<1x1x5x256xf32> to vector<5x256xf32>
    %c0_174 = arith.constant 0 : index
    %c512 = arith.constant 512 : index
    %162 = vector.load %arg17[%c0_174, %c512] : memref<50x1024xf32, #tpu.memory_space<vmem>>, vector<5x256xf32>
    tpu.vector_store %arg17[%c0_174, %c512], %161 {strides = array<i32>} : memref<50x1024xf32, #tpu.memory_space<vmem>>, vector<5x256xf32>,
    %c0_175 = arith.constant 0 : index
    %c2_176 = arith.constant 2 : index
    %c0_177 = arith.constant 0 : index
    %c0_178 = arith.constant 0 : index
    %163 = vector.load %arg16[%c0_175, %c2_176, %c0_177, %c0_178] : memref<2x6x6x256xf32, #tpu.memory_space<vmem>>, vector<1x1x5x256xf32>
    %164 = vector.shape_cast %163 : vector<1x1x5x256xf32> to vector<5x256xf32>
    %c5_179 = arith.constant 5 : index
    %c512_180 = arith.constant 512 : index
    %165 = vector.load %arg17[%c5_179, %c512_180] : memref<50x1024xf32, #tpu.memory_space<vmem>>, vector<5x256xf32>
    tpu.vector_store %arg17[%c5_179, %c512_180], %164 {strides = array<i32>} : memref<50x1024xf32, #tpu.memory_space<vmem>>, vector<5x256xf32>,
    %c0_181 = arith.constant 0 : index
    %c3_182 = arith.constant 3 : index
    %c0_183 = arith.constant 0 : index
    %c0_184 = arith.constant 0 : index
    %166 = vector.load %arg16[%c0_181, %c3_182, %c0_183, %c0_184] : memref<2x6x6x256xf32, #tpu.memory_space<vmem>>, vector<1x1x5x256xf32>
    %167 = vector.shape_cast %166 : vector<1x1x5x256xf32> to vector<5x256xf32>
    %c10_185 = arith.constant 10 : index
    %c512_186 = arith.constant 512 : index
    %168 = vector.load %arg17[%c10_185, %c512_186] : memref<50x1024xf32, #tpu.memory_space<vmem>>, vector<5x256xf32>
    tpu.vector_store %arg17[%c10_185, %c512_186], %167 {strides = array<i32>} : memref<50x1024xf32, #tpu.memory_space<vmem>>, vector<5x256xf32>,
    %c0_187 = arith.constant 0 : index
    %c4_188 = arith.constant 4 : index
    %c0_189 = arith.constant 0 : index
    %c0_190 = arith.constant 0 : index
    %169 = vector.load %arg16[%c0_187, %c4_188, %c0_189, %c0_190] : memref<2x6x6x256xf32, #tpu.memory_space<vmem>>, vector<1x1x5x256xf32>
    %170 = vector.shape_cast %169 : vector<1x1x5x256xf32> to vector<5x256xf32>
    %c15_191 = arith.constant 15 : index
    %c512_192 = arith.constant 512 : index
    %171 = vector.load %arg17[%c15_191, %c512_192] : memref<50x1024xf32, #tpu.memory_space<vmem>>, vector<5x256xf32>
    tpu.vector_store %arg17[%c15_191, %c512_192], %170 {strides = array<i32>} : memref<50x1024xf32, #tpu.memory_space<vmem>>, vector<5x256xf32>,
    %c0_193 = arith.constant 0 : index
    %c5_194 = arith.constant 5 : index
    %c0_195 = arith.constant 0 : index
    %c0_196 = arith.constant 0 : index
    %172 = vector.load %arg16[%c0_193, %c5_194, %c0_195, %c0_196] : memref<2x6x6x256xf32, #tpu.memory_space<vmem>>, vector<1x1x5x256xf32>
    %173 = vector.shape_cast %172 : vector<1x1x5x256xf32> to vector<5x256xf32>
    %c20_197 = arith.constant 20 : index
    %c512_198 = arith.constant 512 : index
    %174 = vector.load %arg17[%c20_197, %c512_198] : memref<50x1024xf32, #tpu.memory_space<vmem>>, vector<5x256xf32>
    tpu.vector_store %arg17[%c20_197, %c512_198], %173 {strides = array<i32>} : memref<50x1024xf32, #tpu.memory_space<vmem>>, vector<5x256xf32>,
    %c0_199 = arith.constant 0 : index
    %c1_200 = arith.constant 1 : index
    %c1_201 = arith.constant 1 : index
    %c0_202 = arith.constant 0 : index
    %175 = vector.load %arg16[%c0_199, %c1_200, %c1_201, %c0_202] : memref<2x6x6x256xf32, #tpu.memory_space<vmem>>, vector<1x1x5x256xf32>
    %176 = vector.shape_cast %175 : vector<1x1x5x256xf32> to vector<5x256xf32>
    %c0_203 = arith.constant 0 : index
    %c768 = arith.constant 768 : index
    %177 = vector.load %arg17[%c0_203, %c768] : memref<50x1024xf32, #tpu.memory_space<vmem>>, vector<5x256xf32>
    tpu.vector_store %arg17[%c0_203, %c768], %176 {strides = array<i32>} : memref<50x1024xf32, #tpu.memory_space<vmem>>, vector<5x256xf32>,
    %c0_204 = arith.constant 0 : index
    %c2_205 = arith.constant 2 : index
    %c1_206 = arith.constant 1 : index
    %c0_207 = arith.constant 0 : index
    %178 = vector.load %arg16[%c0_204, %c2_205, %c1_206, %c0_207] : memref<2x6x6x256xf32, #tpu.memory_space<vmem>>, vector<1x1x5x256xf32>
    %179 = vector.shape_cast %178 : vector<1x1x5x256xf32> to vector<5x256xf32>
    %c5_208 = arith.constant 5 : index
    %c768_209 = arith.constant 768 : index
    %180 = vector.load %arg17[%c5_208, %c768_209] : memref<50x1024xf32, #tpu.memory_space<vmem>>, vector<5x256xf32>
    tpu.vector_store %arg17[%c5_208, %c768_209], %179 {strides = array<i32>} : memref<50x1024xf32, #tpu.memory_space<vmem>>, vector<5x256xf32>,
    %c0_210 = arith.constant 0 : index
    %c3_211 = arith.constant 3 : index
    %c1_212 = arith.constant 1 : index
    %c0_213 = arith.constant 0 : index
    %181 = vector.load %arg16[%c0_210, %c3_211, %c1_212, %c0_213] : memref<2x6x6x256xf32, #tpu.memory_space<vmem>>, vector<1x1x5x256xf32>
    %182 = vector.shape_cast %181 : vector<1x1x5x256xf32> to vector<5x256xf32>
    %c10_214 = arith.constant 10 : index
    %c768_215 = arith.constant 768 : index
    %183 = vector.load %arg17[%c10_214, %c768_215] : memref<50x1024xf32, #tpu.memory_space<vmem>>, vector<5x256xf32>
    tpu.vector_store %arg17[%c10_214, %c768_215], %182 {strides = array<i32>} : memref<50x1024xf32, #tpu.memory_space<vmem>>, vector<5x256xf32>,
    %c0_216 = arith.constant 0 : index
    %c4_217 = arith.constant 4 : index
    %c1_218 = arith.constant 1 : index
    %c0_219 = arith.constant 0 : index
    %184 = vector.load %arg16[%c0_216, %c4_217, %c1_218, %c0_219] : memref<2x6x6x256xf32, #tpu.memory_space<vmem>>, vector<1x1x5x256xf32>
    %185 = vector.shape_cast %184 : vector<1x1x5x256xf32> to vector<5x256xf32>
    %c15_220 = arith.constant 15 : index
    %c768_221 = arith.constant 768 : index
    %186 = vector.load %arg17[%c15_220, %c768_221] : memref<50x1024xf32, #tpu.memory_space<vmem>>, vector<5x256xf32>
    tpu.vector_store %arg17[%c15_220, %c768_221], %185 {strides = array<i32>} : memref<50x1024xf32, #tpu.memory_space<vmem>>, vector<5x256xf32>,
    %c0_222 = arith.constant 0 : index
    %c5_223 = arith.constant 5 : index
    %c1_224 = arith.constant 1 : index
    %c0_225 = arith.constant 0 : index
    %187 = vector.load %arg16[%c0_222, %c5_223, %c1_224, %c0_225] : memref<2x6x6x256xf32, #tpu.memory_space<vmem>>, vector<1x1x5x256xf32>
    %188 = vector.shape_cast %187 : vector<1x1x5x256xf32> to vector<5x256xf32>
    %c20_226 = arith.constant 20 : index
    %c768_227 = arith.constant 768 : index
    %189 = vector.load %arg17[%c20_226, %c768_227] : memref<50x1024xf32, #tpu.memory_space<vmem>>, vector<5x256xf32>
    tpu.vector_store %arg17[%c20_226, %c768_227], %188 {strides = array<i32>} : memref<50x1024xf32, #tpu.memory_space<vmem>>, vector<5x256xf32>,
    %c1_228 = arith.constant 1 : index
    %c0_229 = arith.constant 0 : index
    %c0_230 = arith.constant 0 : index
    %c0_231 = arith.constant 0 : index
    %190 = vector.load %arg16[%c1_228, %c0_229, %c0_230, %c0_231] : memref<2x6x6x256xf32, #tpu.memory_space<vmem>>, vector<1x1x5x256xf32>
    %191 = vector.shape_cast %190 : vector<1x1x5x256xf32> to vector<5x256xf32>
    %c25 = arith.constant 25 : index
    %c0_232 = arith.constant 0 : index
    %192 = vector.load %arg17[%c25, %c0_232] : memref<50x1024xf32, #tpu.memory_space<vmem>>, vector<5x256xf32>
    tpu.vector_store %arg17[%c25, %c0_232], %191 {strides = array<i32>} : memref<50x1024xf32, #tpu.memory_space<vmem>>, vector<5x256xf32>,
    %c1_233 = arith.constant 1 : index
    %c1_234 = arith.constant 1 : index
    %c0_235 = arith.constant 0 : index
    %c0_236 = arith.constant 0 : index
    %193 = vector.load %arg16[%c1_233, %c1_234, %c0_235, %c0_236] : memref<2x6x6x256xf32, #tpu.memory_space<vmem>>, vector<1x1x5x256xf32>
    %194 = vector.shape_cast %193 : vector<1x1x5x256xf32> to vector<5x256xf32>
    %c30_237 = arith.constant 30 : index
    %c0_238 = arith.constant 0 : index
    %195 = vector.load %arg17[%c30_237, %c0_238] : memref<50x1024xf32, #tpu.memory_space<vmem>>, vector<5x256xf32>
    tpu.vector_store %arg17[%c30_237, %c0_238], %194 {strides = array<i32>} : memref<50x1024xf32, #tpu.memory_space<vmem>>, vector<5x256xf32>,
    %c1_239 = arith.constant 1 : index
    %c2_240 = arith.constant 2 : index
    %c0_241 = arith.constant 0 : index
    %c0_242 = arith.constant 0 : index
    %196 = vector.load %arg16[%c1_239, %c2_240, %c0_241, %c0_242] : memref<2x6x6x256xf32, #tpu.memory_space<vmem>>, vector<1x1x5x256xf32>
    %197 = vector.shape_cast %196 : vector<1x1x5x256xf32> to vector<5x256xf32>
    %c35 = arith.constant 35 : index
    %c0_243 = arith.constant 0 : index
    %198 = vector.load %arg17[%c35, %c0_243] : memref<50x1024xf32, #tpu.memory_space<vmem>>, vector<5x256xf32>
    tpu.vector_store %arg17[%c35, %c0_243], %197 {strides = array<i32>} : memref<50x1024xf32, #tpu.memory_space<vmem>>, vector<5x256xf32>,
    %c1_244 = arith.constant 1 : index
    %c3_245 = arith.constant 3 : index
    %c0_246 = arith.constant 0 : index
    %c0_247 = arith.constant 0 : index
    %199 = vector.load %arg16[%c1_244, %c3_245, %c0_246, %c0_247] : memref<2x6x6x256xf32, #tpu.memory_space<vmem>>, vector<1x1x5x256xf32>
    %200 = vector.shape_cast %199 : vector<1x1x5x256xf32> to vector<5x256xf32>
    %c40 = arith.constant 40 : index
    %c0_248 = arith.constant 0 : index
    %201 = vector.load %arg17[%c40, %c0_248] : memref<50x1024xf32, #tpu.memory_space<vmem>>, vector<5x256xf32>
    tpu.vector_store %arg17[%c40, %c0_248], %200 {strides = array<i32>} : memref<50x1024xf32, #tpu.memory_space<vmem>>, vector<5x256xf32>,
    %c1_249 = arith.constant 1 : index
    %c4_250 = arith.constant 4 : index
    %c0_251 = arith.constant 0 : index
    %c0_252 = arith.constant 0 : index
    %202 = vector.load %arg16[%c1_249, %c4_250, %c0_251, %c0_252] : memref<2x6x6x256xf32, #tpu.memory_space<vmem>>, vector<1x1x5x256xf32>
    %203 = vector.shape_cast %202 : vector<1x1x5x256xf32> to vector<5x256xf32>
    %c45 = arith.constant 45 : index
    %c0_253 = arith.constant 0 : index
    %204 = vector.load %arg17[%c45, %c0_253] : memref<50x1024xf32, #tpu.memory_space<vmem>>, vector<5x256xf32>
    tpu.vector_store %arg17[%c45, %c0_253], %203 {strides = array<i32>} : memref<50x1024xf32, #tpu.memory_space<vmem>>, vector<5x256xf32>,
    %c1_254 = arith.constant 1 : index
    %c0_255 = arith.constant 0 : index
    %c1_256 = arith.constant 1 : index
    %c0_257 = arith.constant 0 : index
    %205 = vector.load %arg16[%c1_254, %c0_255, %c1_256, %c0_257] : memref<2x6x6x256xf32, #tpu.memory_space<vmem>>, vector<1x1x5x256xf32>
    %206 = vector.shape_cast %205 : vector<1x1x5x256xf32> to vector<5x256xf32>
    %c25_258 = arith.constant 25 : index
    %c256_259 = arith.constant 256 : index
    %207 = vector.load %arg17[%c25_258, %c256_259] : memref<50x1024xf32, #tpu.memory_space<vmem>>, vector<5x256xf32>
    tpu.vector_store %arg17[%c25_258, %c256_259], %206 {strides = array<i32>} : memref<50x1024xf32, #tpu.memory_space<vmem>>, vector<5x256xf32>,
    %c1_260 = arith.constant 1 : index
    %c1_261 = arith.constant 1 : index
    %c1_262 = arith.constant 1 : index
    %c0_263 = arith.constant 0 : index
    %208 = vector.load %arg16[%c1_260, %c1_261, %c1_262, %c0_263] : memref<2x6x6x256xf32, #tpu.memory_space<vmem>>, vector<1x1x5x256xf32>
    %209 = vector.shape_cast %208 : vector<1x1x5x256xf32> to vector<5x256xf32>
    %c30_264 = arith.constant 30 : index
    %c256_265 = arith.constant 256 : index
    %210 = vector.load %arg17[%c30_264, %c256_265] : memref<50x1024xf32, #tpu.memory_space<vmem>>, vector<5x256xf32>
    tpu.vector_store %arg17[%c30_264, %c256_265], %209 {strides = array<i32>} : memref<50x1024xf32, #tpu.memory_space<vmem>>, vector<5x256xf32>,
    %c1_266 = arith.constant 1 : index
    %c2_267 = arith.constant 2 : index
    %c1_268 = arith.constant 1 : index
    %c0_269 = arith.constant 0 : index
    %211 = vector.load %arg16[%c1_266, %c2_267, %c1_268, %c0_269] : memref<2x6x6x256xf32, #tpu.memory_space<vmem>>, vector<1x1x5x256xf32>
    %212 = vector.shape_cast %211 : vector<1x1x5x256xf32> to vector<5x256xf32>
    %c35_270 = arith.constant 35 : index
    %c256_271 = arith.constant 256 : index
    %213 = vector.load %arg17[%c35_270, %c256_271] : memref<50x1024xf32, #tpu.memory_space<vmem>>, vector<5x256xf32>
    tpu.vector_store %arg17[%c35_270, %c256_271], %212 {strides = array<i32>} : memref<50x1024xf32, #tpu.memory_space<vmem>>, vector<5x256xf32>,
    %c1_272 = arith.constant 1 : index
    %c3_273 = arith.constant 3 : index
    %c1_274 = arith.constant 1 : index
    %c0_275 = arith.constant 0 : index
    %214 = vector.load %arg16[%c1_272, %c3_273, %c1_274, %c0_275] : memref<2x6x6x256xf32, #tpu.memory_space<vmem>>, vector<1x1x5x256xf32>
    %215 = vector.shape_cast %214 : vector<1x1x5x256xf32> to vector<5x256xf32>
    %c40_276 = arith.constant 40 : index
    %c256_277 = arith.constant 256 : index
    %216 = vector.load %arg17[%c40_276, %c256_277] : memref<50x1024xf32, #tpu.memory_space<vmem>>, vector<5x256xf32>
    tpu.vector_store %arg17[%c40_276, %c256_277], %215 {strides = array<i32>} : memref<50x1024xf32, #tpu.memory_space<vmem>>, vector<5x256xf32>,
    %c1_278 = arith.constant 1 : index
    %c4_279 = arith.constant 4 : index
    %c1_280 = arith.constant 1 : index
    %c0_281 = arith.constant 0 : index
    %217 = vector.load %arg16[%c1_278, %c4_279, %c1_280, %c0_281] : memref<2x6x6x256xf32, #tpu.memory_space<vmem>>, vector<1x1x5x256xf32>
    %218 = vector.shape_cast %217 : vector<1x1x5x256xf32> to vector<5x256xf32>
    %c45_282 = arith.constant 45 : index
    %c256_283 = arith.constant 256 : index
    %219 = vector.load %arg17[%c45_282, %c256_283] : memref<50x1024xf32, #tpu.memory_space<vmem>>, vector<5x256xf32>
    tpu.vector_store %arg17[%c45_282, %c256_283], %218 {strides = array<i32>} : memref<50x1024xf32, #tpu.memory_space<vmem>>, vector<5x256xf32>,
    %c1_284 = arith.constant 1 : index
    %c1_285 = arith.constant 1 : index
    %c0_286 = arith.constant 0 : index
    %c0_287 = arith.constant 0 : index
    %220 = vector.load %arg16[%c1_284, %c1_285, %c0_286, %c0_287] : memref<2x6x6x256xf32, #tpu.memory_space<vmem>>, vector<1x1x5x256xf32>
    %221 = vector.shape_cast %220 : vector<1x1x5x256xf32> to vector<5x256xf32>
    %c25_288 = arith.constant 25 : index
    %c512_289 = arith.constant 512 : index
    %222 = vector.load %arg17[%c25_288, %c512_289] : memref<50x1024xf32, #tpu.memory_space<vmem>>, vector<5x256xf32>
    tpu.vector_store %arg17[%c25_288, %c512_289], %221 {strides = array<i32>} : memref<50x1024xf32, #tpu.memory_space<vmem>>, vector<5x256xf32>,
    %c1_290 = arith.constant 1 : index
    %c2_291 = arith.constant 2 : index
    %c0_292 = arith.constant 0 : index
    %c0_293 = arith.constant 0 : index
    %223 = vector.load %arg16[%c1_290, %c2_291, %c0_292, %c0_293] : memref<2x6x6x256xf32, #tpu.memory_space<vmem>>, vector<1x1x5x256xf32>
    %224 = vector.shape_cast %223 : vector<1x1x5x256xf32> to vector<5x256xf32>
    %c30_294 = arith.constant 30 : index
    %c512_295 = arith.constant 512 : index
    %225 = vector.load %arg17[%c30_294, %c512_295] : memref<50x1024xf32, #tpu.memory_space<vmem>>, vector<5x256xf32>
    tpu.vector_store %arg17[%c30_294, %c512_295], %224 {strides = array<i32>} : memref<50x1024xf32, #tpu.memory_space<vmem>>, vector<5x256xf32>,
    %c1_296 = arith.constant 1 : index
    %c3_297 = arith.constant 3 : index
    %c0_298 = arith.constant 0 : index
    %c0_299 = arith.constant 0 : index
    %226 = vector.load %arg16[%c1_296, %c3_297, %c0_298, %c0_299] : memref<2x6x6x256xf32, #tpu.memory_space<vmem>>, vector<1x1x5x256xf32>
    %227 = vector.shape_cast %226 : vector<1x1x5x256xf32> to vector<5x256xf32>
    %c35_300 = arith.constant 35 : index
    %c512_301 = arith.constant 512 : index
    %228 = vector.load %arg17[%c35_300, %c512_301] : memref<50x1024xf32, #tpu.memory_space<vmem>>, vector<5x256xf32>
    tpu.vector_store %arg17[%c35_300, %c512_301], %227 {strides = array<i32>} : memref<50x1024xf32, #tpu.memory_space<vmem>>, vector<5x256xf32>,
    %c1_302 = arith.constant 1 : index
    %c4_303 = arith.constant 4 : index
    %c0_304 = arith.constant 0 : index
    %c0_305 = arith.constant 0 : index
    %229 = vector.load %arg16[%c1_302, %c4_303, %c0_304, %c0_305] : memref<2x6x6x256xf32, #tpu.memory_space<vmem>>, vector<1x1x5x256xf32>
    %230 = vector.shape_cast %229 : vector<1x1x5x256xf32> to vector<5x256xf32>
    %c40_306 = arith.constant 40 : index
    %c512_307 = arith.constant 512 : index
    %231 = vector.load %arg17[%c40_306, %c512_307] : memref<50x1024xf32, #tpu.memory_space<vmem>>, vector<5x256xf32>
    tpu.vector_store %arg17[%c40_306, %c512_307], %230 {strides = array<i32>} : memref<50x1024xf32, #tpu.memory_space<vmem>>, vector<5x256xf32>,
    %c1_308 = arith.constant 1 : index
    %c5_309 = arith.constant 5 : index
    %c0_310 = arith.constant 0 : index
    %c0_311 = arith.constant 0 : index
    %232 = vector.load %arg16[%c1_308, %c5_309, %c0_310, %c0_311] : memref<2x6x6x256xf32, #tpu.memory_space<vmem>>, vector<1x1x5x256xf32>
    %233 = vector.shape_cast %232 : vector<1x1x5x256xf32> to vector<5x256xf32>
    %c45_312 = arith.constant 45 : index
    %c512_313 = arith.constant 512 : index
    %234 = vector.load %arg17[%c45_312, %c512_313] : memref<50x1024xf32, #tpu.memory_space<vmem>>, vector<5x256xf32>
    tpu.vector_store %arg17[%c45_312, %c512_313], %233 {strides = array<i32>} : memref<50x1024xf32, #tpu.memory_space<vmem>>, vector<5x256xf32>,
    %c1_314 = arith.constant 1 : index
    %c1_315 = arith.constant 1 : index
    %c1_316 = arith.constant 1 : index
    %c0_317 = arith.constant 0 : index
    %235 = vector.load %arg16[%c1_314, %c1_315, %c1_316, %c0_317] : memref<2x6x6x256xf32, #tpu.memory_space<vmem>>, vector<1x1x5x256xf32>
    %236 = vector.shape_cast %235 : vector<1x1x5x256xf32> to vector<5x256xf32>
    %c25_318 = arith.constant 25 : index
    %c768_319 = arith.constant 768 : index
    %237 = vector.load %arg17[%c25_318, %c768_319] : memref<50x1024xf32, #tpu.memory_space<vmem>>, vector<5x256xf32>
    tpu.vector_store %arg17[%c25_318, %c768_319], %236 {strides = array<i32>} : memref<50x1024xf32, #tpu.memory_space<vmem>>, vector<5x256xf32>,
    %c1_320 = arith.constant 1 : index
    %c2_321 = arith.constant 2 : index
    %c1_322 = arith.constant 1 : index
    %c0_323 = arith.constant 0 : index
    %238 = vector.load %arg16[%c1_320, %c2_321, %c1_322, %c0_323] : memref<2x6x6x256xf32, #tpu.memory_space<vmem>>, vector<1x1x5x256xf32>
    %239 = vector.shape_cast %238 : vector<1x1x5x256xf32> to vector<5x256xf32>
    %c30_324 = arith.constant 30 : index
    %c768_325 = arith.constant 768 : index
    %240 = vector.load %arg17[%c30_324, %c768_325] : memref<50x1024xf32, #tpu.memory_space<vmem>>, vector<5x256xf32>
    tpu.vector_store %arg17[%c30_324, %c768_325], %239 {strides = array<i32>} : memref<50x1024xf32, #tpu.memory_space<vmem>>, vector<5x256xf32>,
    %c1_326 = arith.constant 1 : index
    %c3_327 = arith.constant 3 : index
    %c1_328 = arith.constant 1 : index
    %c0_329 = arith.constant 0 : index
    %241 = vector.load %arg16[%c1_326, %c3_327, %c1_328, %c0_329] : memref<2x6x6x256xf32, #tpu.memory_space<vmem>>, vector<1x1x5x256xf32>
    %242 = vector.shape_cast %241 : vector<1x1x5x256xf32> to vector<5x256xf32>
    %c35_330 = arith.constant 35 : index
    %c768_331 = arith.constant 768 : index
    %243 = vector.load %arg17[%c35_330, %c768_331] : memref<50x1024xf32, #tpu.memory_space<vmem>>, vector<5x256xf32>
    tpu.vector_store %arg17[%c35_330, %c768_331], %242 {strides = array<i32>} : memref<50x1024xf32, #tpu.memory_space<vmem>>, vector<5x256xf32>,
    %c1_332 = arith.constant 1 : index
    %c4_333 = arith.constant 4 : index
    %c1_334 = arith.constant 1 : index
    %c0_335 = arith.constant 0 : index
    %244 = vector.load %arg16[%c1_332, %c4_333, %c1_334, %c0_335] : memref<2x6x6x256xf32, #tpu.memory_space<vmem>>, vector<1x1x5x256xf32>
    %245 = vector.shape_cast %244 : vector<1x1x5x256xf32> to vector<5x256xf32>
    %c40_336 = arith.constant 40 : index
    %c768_337 = arith.constant 768 : index
    %246 = vector.load %arg17[%c40_336, %c768_337] : memref<50x1024xf32, #tpu.memory_space<vmem>>, vector<5x256xf32>
    tpu.vector_store %arg17[%c40_336, %c768_337], %245 {strides = array<i32>} : memref<50x1024xf32, #tpu.memory_space<vmem>>, vector<5x256xf32>,
    %c1_338 = arith.constant 1 : index
    %c5_339 = arith.constant 5 : index
    %c1_340 = arith.constant 1 : index
    %c0_341 = arith.constant 0 : index
    %247 = vector.load %arg16[%c1_338, %c5_339, %c1_340, %c0_341] : memref<2x6x6x256xf32, #tpu.memory_space<vmem>>, vector<1x1x5x256xf32>
    %248 = vector.shape_cast %247 : vector<1x1x5x256xf32> to vector<5x256xf32>
    %c45_342 = arith.constant 45 : index
    %c768_343 = arith.constant 768 : index
    %249 = vector.load %arg17[%c45_342, %c768_343] : memref<50x1024xf32, #tpu.memory_space<vmem>>, vector<5x256xf32>
    tpu.vector_store %arg17[%c45_342, %c768_343], %248 {strides = array<i32>} : memref<50x1024xf32, #tpu.memory_space<vmem>>, vector<5x256xf32>,
    %c0_344 = arith.constant 0 : index
    %c0_345 = arith.constant 0 : index
    %250 = vector.load %arg17[%c0_344, %c0_345] : memref<50x1024xf32, #tpu.memory_space<vmem>>, vector<50x1024xf32>
    %251 = arith.truncf %250 : vector<50x1024xf32> to vector<50x1024xbf16>
    %c0_346 = arith.constant 0 : index
    %c0_347 = arith.constant 0 : index
    %252 = vector.load %arg4[%c0_346, %c0_347] : memref<1024x128xbf16, #tpu.memory_space<vmem>>, vector<1024x128xbf16>
    %cst_348 = arith.constant dense<0.000000e+00> : vector<50x128xf32>
    %253 = tpu.matmul %251, %252, %cst_348 {dimension_numbers = #tpu.dot_dimension_numbers<[1], [0], [0], [1], [0, 0, 1, 1], [], []>} : vector<50x1024xbf16>, vector<1024x128xbf16>, vector<50x128xf32> -> vector<50x128xf32>
    %c0_349 = arith.constant 0 : index
    %c0_350 = arith.constant 0 : index
    %254 = vector.load %arg5[%c0_349, %c0_350] : memref<1x128xf32, #tpu.memory_space<vmem>>, vector<1x128xf32>
    %255 = vector.extract_strided_slice %253 {offsets = [0, 0], sizes = [25, 128], strides = [1, 1]} : vector<50x128xf32> to vector<25x128xf32>
    %256 = vector.extract_strided_slice %255 {offsets = [0, 0], sizes = [20, 128], strides = [1, 1]} : vector<25x128xf32> to vector<20x128xf32>
    %257 = vector.extract_strided_slice %255 {offsets = [5, 0], sizes = [20, 128], strides = [1, 1]} : vector<25x128xf32> to vector<20x128xf32>
    %258 = arith.maximumf %256, %257 : vector<20x128xf32>
    %259 = vector.extract_strided_slice %258 {offsets = [0, 0], sizes = [4, 128], strides = [1, 1]} : vector<20x128xf32> to vector<4x128xf32>
    %260 = vector.extract_strided_slice %258 {offsets = [1, 0], sizes = [4, 128], strides = [1, 1]} : vector<20x128xf32> to vector<4x128xf32>
    %261 = arith.maximumf %259, %260 : vector<4x128xf32>
    %262 = vector.broadcast %254 : vector<1x128xf32> to vector<4x128xf32>
    %263 = arith.addf %261, %262 : vector<4x128xf32>
    %cst_351 = arith.constant 0.000000e+00 : f32
    %264 = vector.broadcast %cst_351 : f32 to vector<4x128xf32>
    %265 = arith.maximumf %263, %264 : vector<4x128xf32>
    %266 = vector.extract_strided_slice %265 {offsets = [0, 0], sizes = [1, 128], strides = [1, 1]} : vector<4x128xf32> to vector<1x128xf32>
    %c0_352 = arith.constant 0 : index
    %c0_353 = arith.constant 0 : index
    %267 = vector.load %arg18[%c0_352, %c0_353] : memref<8x512xf32, #tpu.memory_space<vmem>>, vector<1x128xf32>
    tpu.vector_store %arg18[%c0_352, %c0_353], %266 {strides = array<i32>} : memref<8x512xf32, #tpu.memory_space<vmem>>, vector<1x128xf32>,
    %268 = vector.extract_strided_slice %265 {offsets = [1, 0], sizes = [1, 128], strides = [1, 1]} : vector<4x128xf32> to vector<1x128xf32>
    %c0_354 = arith.constant 0 : index
    %c128_355 = arith.constant 128 : index
    %269 = vector.load %arg18[%c0_354, %c128_355] : memref<8x512xf32, #tpu.memory_space<vmem>>, vector<1x128xf32>
    tpu.vector_store %arg18[%c0_354, %c128_355], %268 {strides = array<i32>} : memref<8x512xf32, #tpu.memory_space<vmem>>, vector<1x128xf32>,
    %270 = vector.extract_strided_slice %265 {offsets = [2, 0], sizes = [1, 128], strides = [1, 1]} : vector<4x128xf32> to vector<1x128xf32>
    %c2_356 = arith.constant 2 : index
    %c0_357 = arith.constant 0 : index
    %271 = vector.load %arg18[%c2_356, %c0_357] : memref<8x512xf32, #tpu.memory_space<vmem>>, vector<1x128xf32>
    tpu.vector_store %arg18[%c2_356, %c0_357], %270 {strides = array<i32>} : memref<8x512xf32, #tpu.memory_space<vmem>>, vector<1x128xf32>,
    %272 = vector.extract_strided_slice %265 {offsets = [3, 0], sizes = [1, 128], strides = [1, 1]} : vector<4x128xf32> to vector<1x128xf32>
    %c2_358 = arith.constant 2 : index
    %c128_359 = arith.constant 128 : index
    %273 = vector.load %arg18[%c2_358, %c128_359] : memref<8x512xf32, #tpu.memory_space<vmem>>, vector<1x128xf32>
    tpu.vector_store %arg18[%c2_358, %c128_359], %272 {strides = array<i32>} : memref<8x512xf32, #tpu.memory_space<vmem>>, vector<1x128xf32>,
    %274 = vector.extract_strided_slice %258 {offsets = [5, 0], sizes = [4, 128], strides = [1, 1]} : vector<20x128xf32> to vector<4x128xf32>
    %275 = vector.extract_strided_slice %258 {offsets = [6, 0], sizes = [4, 128], strides = [1, 1]} : vector<20x128xf32> to vector<4x128xf32>
    %276 = arith.maximumf %274, %275 : vector<4x128xf32>
    %277 = vector.broadcast %254 : vector<1x128xf32> to vector<4x128xf32>
    %278 = arith.addf %276, %277 : vector<4x128xf32>
    %cst_360 = arith.constant 0.000000e+00 : f32
    %279 = vector.broadcast %cst_360 : f32 to vector<4x128xf32>
    %280 = arith.maximumf %278, %279 : vector<4x128xf32>
    %281 = vector.extract_strided_slice %280 {offsets = [0, 0], sizes = [1, 128], strides = [1, 1]} : vector<4x128xf32> to vector<1x128xf32>
    %c0_361 = arith.constant 0 : index
    %c256_362 = arith.constant 256 : index
    %282 = vector.load %arg18[%c0_361, %c256_362] : memref<8x512xf32, #tpu.memory_space<vmem>>, vector<1x128xf32>
    tpu.vector_store %arg18[%c0_361, %c256_362], %281 {strides = array<i32>} : memref<8x512xf32, #tpu.memory_space<vmem>>, vector<1x128xf32>,
    %283 = vector.extract_strided_slice %280 {offsets = [1, 0], sizes = [1, 128], strides = [1, 1]} : vector<4x128xf32> to vector<1x128xf32>
    %c0_363 = arith.constant 0 : index
    %c384 = arith.constant 384 : index
    %284 = vector.load %arg18[%c0_363, %c384] : memref<8x512xf32, #tpu.memory_space<vmem>>, vector<1x128xf32>
    tpu.vector_store %arg18[%c0_363, %c384], %283 {strides = array<i32>} : memref<8x512xf32, #tpu.memory_space<vmem>>, vector<1x128xf32>,
    %285 = vector.extract_strided_slice %280 {offsets = [2, 0], sizes = [1, 128], strides = [1, 1]} : vector<4x128xf32> to vector<1x128xf32>
    %c2_364 = arith.constant 2 : index
    %c256_365 = arith.constant 256 : index
    %286 = vector.load %arg18[%c2_364, %c256_365] : memref<8x512xf32, #tpu.memory_space<vmem>>, vector<1x128xf32>
    tpu.vector_store %arg18[%c2_364, %c256_365], %285 {strides = array<i32>} : memref<8x512xf32, #tpu.memory_space<vmem>>, vector<1x128xf32>,
    %287 = vector.extract_strided_slice %280 {offsets = [3, 0], sizes = [1, 128], strides = [1, 1]} : vector<4x128xf32> to vector<1x128xf32>
    %c2_366 = arith.constant 2 : index
    %c384_367 = arith.constant 384 : index
    %288 = vector.load %arg18[%c2_366, %c384_367] : memref<8x512xf32, #tpu.memory_space<vmem>>, vector<1x128xf32>
    tpu.vector_store %arg18[%c2_366, %c384_367], %287 {strides = array<i32>} : memref<8x512xf32, #tpu.memory_space<vmem>>, vector<1x128xf32>,
    %289 = vector.extract_strided_slice %258 {offsets = [10, 0], sizes = [4, 128], strides = [1, 1]} : vector<20x128xf32> to vector<4x128xf32>
    %290 = vector.extract_strided_slice %258 {offsets = [11, 0], sizes = [4, 128], strides = [1, 1]} : vector<20x128xf32> to vector<4x128xf32>
    %291 = arith.maximumf %289, %290 : vector<4x128xf32>
    %292 = vector.broadcast %254 : vector<1x128xf32> to vector<4x128xf32>
    %293 = arith.addf %291, %292 : vector<4x128xf32>
    %cst_368 = arith.constant 0.000000e+00 : f32
    %294 = vector.broadcast %cst_368 : f32 to vector<4x128xf32>
    %295 = arith.maximumf %293, %294 : vector<4x128xf32>
    %296 = vector.extract_strided_slice %295 {offsets = [0, 0], sizes = [1, 128], strides = [1, 1]} : vector<4x128xf32> to vector<1x128xf32>
    %c4_369 = arith.constant 4 : index
    %c0_370 = arith.constant 0 : index
    %297 = vector.load %arg18[%c4_369, %c0_370] : memref<8x512xf32, #tpu.memory_space<vmem>>, vector<1x128xf32>
    tpu.vector_store %arg18[%c4_369, %c0_370], %296 {strides = array<i32>} : memref<8x512xf32, #tpu.memory_space<vmem>>, vector<1x128xf32>,
    %298 = vector.extract_strided_slice %295 {offsets = [1, 0], sizes = [1, 128], strides = [1, 1]} : vector<4x128xf32> to vector<1x128xf32>
    %c4_371 = arith.constant 4 : index
    %c128_372 = arith.constant 128 : index
    %299 = vector.load %arg18[%c4_371, %c128_372] : memref<8x512xf32, #tpu.memory_space<vmem>>, vector<1x128xf32>
    tpu.vector_store %arg18[%c4_371, %c128_372], %298 {strides = array<i32>} : memref<8x512xf32, #tpu.memory_space<vmem>>, vector<1x128xf32>,
    %300 = vector.extract_strided_slice %295 {offsets = [2, 0], sizes = [1, 128], strides = [1, 1]} : vector<4x128xf32> to vector<1x128xf32>
    %c6_373 = arith.constant 6 : index
    %c0_374 = arith.constant 0 : index
    %301 = vector.load %arg18[%c6_373, %c0_374] : memref<8x512xf32, #tpu.memory_space<vmem>>, vector<1x128xf32>
    tpu.vector_store %arg18[%c6_373, %c0_374], %300 {strides = array<i32>} : memref<8x512xf32, #tpu.memory_space<vmem>>, vector<1x128xf32>,
    %302 = vector.extract_strided_slice %295 {offsets = [3, 0], sizes = [1, 128], strides = [1, 1]} : vector<4x128xf32> to vector<1x128xf32>
    %c6_375 = arith.constant 6 : index
    %c128_376 = arith.constant 128 : index
    %303 = vector.load %arg18[%c6_375, %c128_376] : memref<8x512xf32, #tpu.memory_space<vmem>>, vector<1x128xf32>
    tpu.vector_store %arg18[%c6_375, %c128_376], %302 {strides = array<i32>} : memref<8x512xf32, #tpu.memory_space<vmem>>, vector<1x128xf32>,
    %304 = vector.extract_strided_slice %258 {offsets = [15, 0], sizes = [4, 128], strides = [1, 1]} : vector<20x128xf32> to vector<4x128xf32>
    %305 = vector.extract_strided_slice %258 {offsets = [16, 0], sizes = [4, 128], strides = [1, 1]} : vector<20x128xf32> to vector<4x128xf32>
    %306 = arith.maximumf %304, %305 : vector<4x128xf32>
    %307 = vector.broadcast %254 : vector<1x128xf32> to vector<4x128xf32>
    %308 = arith.addf %306, %307 : vector<4x128xf32>
    %cst_377 = arith.constant 0.000000e+00 : f32
    %309 = vector.broadcast %cst_377 : f32 to vector<4x128xf32>
    %310 = arith.maximumf %308, %309 : vector<4x128xf32>
    %311 = vector.extract_strided_slice %310 {offsets = [0, 0], sizes = [1, 128], strides = [1, 1]} : vector<4x128xf32> to vector<1x128xf32>
    %c4_378 = arith.constant 4 : index
    %c256_379 = arith.constant 256 : index
    %312 = vector.load %arg18[%c4_378, %c256_379] : memref<8x512xf32, #tpu.memory_space<vmem>>, vector<1x128xf32>
    tpu.vector_store %arg18[%c4_378, %c256_379], %311 {strides = array<i32>} : memref<8x512xf32, #tpu.memory_space<vmem>>, vector<1x128xf32>,
    %313 = vector.extract_strided_slice %310 {offsets = [1, 0], sizes = [1, 128], strides = [1, 1]} : vector<4x128xf32> to vector<1x128xf32>
    %c4_380 = arith.constant 4 : index
    %c384_381 = arith.constant 384 : index
    %314 = vector.load %arg18[%c4_380, %c384_381] : memref<8x512xf32, #tpu.memory_space<vmem>>, vector<1x128xf32>
    tpu.vector_store %arg18[%c4_380, %c384_381], %313 {strides = array<i32>} : memref<8x512xf32, #tpu.memory_space<vmem>>, vector<1x128xf32>,
    %315 = vector.extract_strided_slice %310 {offsets = [2, 0], sizes = [1, 128], strides = [1, 1]} : vector<4x128xf32> to vector<1x128xf32>
    %c6_382 = arith.constant 6 : index
    %c256_383 = arith.constant 256 : index
    %316 = vector.load %arg18[%c6_382, %c256_383] : memref<8x512xf32, #tpu.memory_space<vmem>>, vector<1x128xf32>
    tpu.vector_store %arg18[%c6_382, %c256_383], %315 {strides = array<i32>} : memref<8x512xf32, #tpu.memory_space<vmem>>, vector<1x128xf32>,
    %317 = vector.extract_strided_slice %310 {offsets = [3, 0], sizes = [1, 128], strides = [1, 1]} : vector<4x128xf32> to vector<1x128xf32>
    %c6_384 = arith.constant 6 : index
    %c384_385 = arith.constant 384 : index
    %318 = vector.load %arg18[%c6_384, %c384_385] : memref<8x512xf32, #tpu.memory_space<vmem>>, vector<1x128xf32>
    tpu.vector_store %arg18[%c6_384, %c384_385], %317 {strides = array<i32>} : memref<8x512xf32, #tpu.memory_space<vmem>>, vector<1x128xf32>,
    %319 = vector.extract_strided_slice %253 {offsets = [25, 0], sizes = [25, 128], strides = [1, 1]} : vector<50x128xf32> to vector<25x128xf32>
    %320 = vector.extract_strided_slice %319 {offsets = [0, 0], sizes = [20, 128], strides = [1, 1]} : vector<25x128xf32> to vector<20x128xf32>
    %321 = vector.extract_strided_slice %319 {offsets = [5, 0], sizes = [20, 128], strides = [1, 1]} : vector<25x128xf32> to vector<20x128xf32>
    %322 = arith.maximumf %320, %321 : vector<20x128xf32>
    %323 = vector.extract_strided_slice %322 {offsets = [0, 0], sizes = [4, 128], strides = [1, 1]} : vector<20x128xf32> to vector<4x128xf32>
    %324 = vector.extract_strided_slice %322 {offsets = [1, 0], sizes = [4, 128], strides = [1, 1]} : vector<20x128xf32> to vector<4x128xf32>
    %325 = arith.maximumf %323, %324 : vector<4x128xf32>
    %326 = vector.broadcast %254 : vector<1x128xf32> to vector<4x128xf32>
    %327 = arith.addf %325, %326 : vector<4x128xf32>
    %cst_386 = arith.constant 0.000000e+00 : f32
    %328 = vector.broadcast %cst_386 : f32 to vector<4x128xf32>
    %329 = arith.maximumf %327, %328 : vector<4x128xf32>
    %330 = vector.extract_strided_slice %329 {offsets = [0, 0], sizes = [1, 128], strides = [1, 1]} : vector<4x128xf32> to vector<1x128xf32>
    %c1_387 = arith.constant 1 : index
    %c0_388 = arith.constant 0 : index
    %331 = vector.load %arg18[%c1_387, %c0_388] : memref<8x512xf32, #tpu.memory_space<vmem>>, vector<1x128xf32>
    tpu.vector_store %arg18[%c1_387, %c0_388], %330 {strides = array<i32>} : memref<8x512xf32, #tpu.memory_space<vmem>>, vector<1x128xf32>,
    %332 = vector.extract_strided_slice %329 {offsets = [1, 0], sizes = [1, 128], strides = [1, 1]} : vector<4x128xf32> to vector<1x128xf32>
    %c1_389 = arith.constant 1 : index
    %c128_390 = arith.constant 128 : index
    %333 = vector.load %arg18[%c1_389, %c128_390] : memref<8x512xf32, #tpu.memory_space<vmem>>, vector<1x128xf32>
    tpu.vector_store %arg18[%c1_389, %c128_390], %332 {strides = array<i32>} : memref<8x512xf32, #tpu.memory_space<vmem>>, vector<1x128xf32>,
    %334 = vector.extract_strided_slice %329 {offsets = [2, 0], sizes = [1, 128], strides = [1, 1]} : vector<4x128xf32> to vector<1x128xf32>
    %c3_391 = arith.constant 3 : index
    %c0_392 = arith.constant 0 : index
    %335 = vector.load %arg18[%c3_391, %c0_392] : memref<8x512xf32, #tpu.memory_space<vmem>>, vector<1x128xf32>
    tpu.vector_store %arg18[%c3_391, %c0_392], %334 {strides = array<i32>} : memref<8x512xf32, #tpu.memory_space<vmem>>, vector<1x128xf32>,
    %336 = vector.extract_strided_slice %329 {offsets = [3, 0], sizes = [1, 128], strides = [1, 1]} : vector<4x128xf32> to vector<1x128xf32>
    %c3_393 = arith.constant 3 : index
    %c128_394 = arith.constant 128 : index
    %337 = vector.load %arg18[%c3_393, %c128_394] : memref<8x512xf32, #tpu.memory_space<vmem>>, vector<1x128xf32>
    tpu.vector_store %arg18[%c3_393, %c128_394], %336 {strides = array<i32>} : memref<8x512xf32, #tpu.memory_space<vmem>>, vector<1x128xf32>,
    %338 = vector.extract_strided_slice %322 {offsets = [5, 0], sizes = [4, 128], strides = [1, 1]} : vector<20x128xf32> to vector<4x128xf32>
    %339 = vector.extract_strided_slice %322 {offsets = [6, 0], sizes = [4, 128], strides = [1, 1]} : vector<20x128xf32> to vector<4x128xf32>
    %340 = arith.maximumf %338, %339 : vector<4x128xf32>
    %341 = vector.broadcast %254 : vector<1x128xf32> to vector<4x128xf32>
    %342 = arith.addf %340, %341 : vector<4x128xf32>
    %cst_395 = arith.constant 0.000000e+00 : f32
    %343 = vector.broadcast %cst_395 : f32 to vector<4x128xf32>
    %344 = arith.maximumf %342, %343 : vector<4x128xf32>
    %345 = vector.extract_strided_slice %344 {offsets = [0, 0], sizes = [1, 128], strides = [1, 1]} : vector<4x128xf32> to vector<1x128xf32>
    %c1_396 = arith.constant 1 : index
    %c256_397 = arith.constant 256 : index
    %346 = vector.load %arg18[%c1_396, %c256_397] : memref<8x512xf32, #tpu.memory_space<vmem>>, vector<1x128xf32>
    tpu.vector_store %arg18[%c1_396, %c256_397], %345 {strides = array<i32>} : memref<8x512xf32, #tpu.memory_space<vmem>>, vector<1x128xf32>,
    %347 = vector.extract_strided_slice %344 {offsets = [1, 0], sizes = [1, 128], strides = [1, 1]} : vector<4x128xf32> to vector<1x128xf32>
    %c1_398 = arith.constant 1 : index
    %c384_399 = arith.constant 384 : index
    %348 = vector.load %arg18[%c1_398, %c384_399] : memref<8x512xf32, #tpu.memory_space<vmem>>, vector<1x128xf32>
    tpu.vector_store %arg18[%c1_398, %c384_399], %347 {strides = array<i32>} : memref<8x512xf32, #tpu.memory_space<vmem>>, vector<1x128xf32>,
    %349 = vector.extract_strided_slice %344 {offsets = [2, 0], sizes = [1, 128], strides = [1, 1]} : vector<4x128xf32> to vector<1x128xf32>
    %c3_400 = arith.constant 3 : index
    %c256_401 = arith.constant 256 : index
    %350 = vector.load %arg18[%c3_400, %c256_401] : memref<8x512xf32, #tpu.memory_space<vmem>>, vector<1x128xf32>
    tpu.vector_store %arg18[%c3_400, %c256_401], %349 {strides = array<i32>} : memref<8x512xf32, #tpu.memory_space<vmem>>, vector<1x128xf32>,
    %351 = vector.extract_strided_slice %344 {offsets = [3, 0], sizes = [1, 128], strides = [1, 1]} : vector<4x128xf32> to vector<1x128xf32>
    %c3_402 = arith.constant 3 : index
    %c384_403 = arith.constant 384 : index
    %352 = vector.load %arg18[%c3_402, %c384_403] : memref<8x512xf32, #tpu.memory_space<vmem>>, vector<1x128xf32>
    tpu.vector_store %arg18[%c3_402, %c384_403], %351 {strides = array<i32>} : memref<8x512xf32, #tpu.memory_space<vmem>>, vector<1x128xf32>,
    %353 = vector.extract_strided_slice %322 {offsets = [10, 0], sizes = [4, 128], strides = [1, 1]} : vector<20x128xf32> to vector<4x128xf32>
    %354 = vector.extract_strided_slice %322 {offsets = [11, 0], sizes = [4, 128], strides = [1, 1]} : vector<20x128xf32> to vector<4x128xf32>
    %355 = arith.maximumf %353, %354 : vector<4x128xf32>
    %356 = vector.broadcast %254 : vector<1x128xf32> to vector<4x128xf32>
    %357 = arith.addf %355, %356 : vector<4x128xf32>
    %cst_404 = arith.constant 0.000000e+00 : f32
    %358 = vector.broadcast %cst_404 : f32 to vector<4x128xf32>
    %359 = arith.maximumf %357, %358 : vector<4x128xf32>
    %360 = vector.extract_strided_slice %359 {offsets = [0, 0], sizes = [1, 128], strides = [1, 1]} : vector<4x128xf32> to vector<1x128xf32>
    %c5_405 = arith.constant 5 : index
    %c0_406 = arith.constant 0 : index
    %361 = vector.load %arg18[%c5_405, %c0_406] : memref<8x512xf32, #tpu.memory_space<vmem>>, vector<1x128xf32>
    tpu.vector_store %arg18[%c5_405, %c0_406], %360 {strides = array<i32>} : memref<8x512xf32, #tpu.memory_space<vmem>>, vector<1x128xf32>,
    %362 = vector.extract_strided_slice %359 {offsets = [1, 0], sizes = [1, 128], strides = [1, 1]} : vector<4x128xf32> to vector<1x128xf32>
    %c5_407 = arith.constant 5 : index
    %c128_408 = arith.constant 128 : index
    %363 = vector.load %arg18[%c5_407, %c128_408] : memref<8x512xf32, #tpu.memory_space<vmem>>, vector<1x128xf32>
    tpu.vector_store %arg18[%c5_407, %c128_408], %362 {strides = array<i32>} : memref<8x512xf32, #tpu.memory_space<vmem>>, vector<1x128xf32>,
    %364 = vector.extract_strided_slice %359 {offsets = [2, 0], sizes = [1, 128], strides = [1, 1]} : vector<4x128xf32> to vector<1x128xf32>
    %c7 = arith.constant 7 : index
    %c0_409 = arith.constant 0 : index
    %365 = vector.load %arg18[%c7, %c0_409] : memref<8x512xf32, #tpu.memory_space<vmem>>, vector<1x128xf32>
    tpu.vector_store %arg18[%c7, %c0_409], %364 {strides = array<i32>} : memref<8x512xf32, #tpu.memory_space<vmem>>, vector<1x128xf32>,
    %366 = vector.extract_strided_slice %359 {offsets = [3, 0], sizes = [1, 128], strides = [1, 1]} : vector<4x128xf32> to vector<1x128xf32>
    %c7_410 = arith.constant 7 : index
    %c128_411 = arith.constant 128 : index
    %367 = vector.load %arg18[%c7_410, %c128_411] : memref<8x512xf32, #tpu.memory_space<vmem>>, vector<1x128xf32>
    tpu.vector_store %arg18[%c7_410, %c128_411], %366 {strides = array<i32>} : memref<8x512xf32, #tpu.memory_space<vmem>>, vector<1x128xf32>,
    %368 = vector.extract_strided_slice %322 {offsets = [15, 0], sizes = [4, 128], strides = [1, 1]} : vector<20x128xf32> to vector<4x128xf32>
    %369 = vector.extract_strided_slice %322 {offsets = [16, 0], sizes = [4, 128], strides = [1, 1]} : vector<20x128xf32> to vector<4x128xf32>
    %370 = arith.maximumf %368, %369 : vector<4x128xf32>
    %371 = vector.broadcast %254 : vector<1x128xf32> to vector<4x128xf32>
    %372 = arith.addf %370, %371 : vector<4x128xf32>
    %cst_412 = arith.constant 0.000000e+00 : f32
    %373 = vector.broadcast %cst_412 : f32 to vector<4x128xf32>
    %374 = arith.maximumf %372, %373 : vector<4x128xf32>
    %375 = vector.extract_strided_slice %374 {offsets = [0, 0], sizes = [1, 128], strides = [1, 1]} : vector<4x128xf32> to vector<1x128xf32>
    %c5_413 = arith.constant 5 : index
    %c256_414 = arith.constant 256 : index
    %376 = vector.load %arg18[%c5_413, %c256_414] : memref<8x512xf32, #tpu.memory_space<vmem>>, vector<1x128xf32>
    tpu.vector_store %arg18[%c5_413, %c256_414], %375 {strides = array<i32>} : memref<8x512xf32, #tpu.memory_space<vmem>>, vector<1x128xf32>,
    %377 = vector.extract_strided_slice %374 {offsets = [1, 0], sizes = [1, 128], strides = [1, 1]} : vector<4x128xf32> to vector<1x128xf32>
    %c5_415 = arith.constant 5 : index
    %c384_416 = arith.constant 384 : index
    %378 = vector.load %arg18[%c5_415, %c384_416] : memref<8x512xf32, #tpu.memory_space<vmem>>, vector<1x128xf32>
    tpu.vector_store %arg18[%c5_415, %c384_416], %377 {strides = array<i32>} : memref<8x512xf32, #tpu.memory_space<vmem>>, vector<1x128xf32>,
    %379 = vector.extract_strided_slice %374 {offsets = [2, 0], sizes = [1, 128], strides = [1, 1]} : vector<4x128xf32> to vector<1x128xf32>
    %c7_417 = arith.constant 7 : index
    %c256_418 = arith.constant 256 : index
    %380 = vector.load %arg18[%c7_417, %c256_418] : memref<8x512xf32, #tpu.memory_space<vmem>>, vector<1x128xf32>
    tpu.vector_store %arg18[%c7_417, %c256_418], %379 {strides = array<i32>} : memref<8x512xf32, #tpu.memory_space<vmem>>, vector<1x128xf32>,
    %381 = vector.extract_strided_slice %374 {offsets = [3, 0], sizes = [1, 128], strides = [1, 1]} : vector<4x128xf32> to vector<1x128xf32>
    %c7_419 = arith.constant 7 : index
    %c384_420 = arith.constant 384 : index
    %382 = vector.load %arg18[%c7_419, %c384_420] : memref<8x512xf32, #tpu.memory_space<vmem>>, vector<1x128xf32>
    tpu.vector_store %arg18[%c7_419, %c384_420], %381 {strides = array<i32>} : memref<8x512xf32, #tpu.memory_space<vmem>>, vector<1x128xf32>,
    %c0_421 = arith.constant 0 : index
    %c0_422 = arith.constant 0 : index
    %383 = vector.load %arg18[%c0_421, %c0_422] : memref<8x512xf32, #tpu.memory_space<vmem>>, vector<8x512xf32>
    %c0_423 = arith.constant 0 : index
    %c0_424 = arith.constant 0 : index
    %384 = vector.load %arg6[%c0_423, %c0_424] : memref<512x128xf32, #tpu.memory_space<vmem>>, vector<512x128xf32>
    %cst_425 = arith.constant dense<0.000000e+00> : vector<8x128xf32>
    %385 = tpu.matmul %383, %384, %cst_425 {dimension_numbers = #tpu.dot_dimension_numbers<[1], [0], [0], [1], [0, 0, 1, 1], [], []>} : vector<8x512xf32>, vector<512x128xf32>, vector<8x128xf32> -> vector<8x128xf32>
    %c0_426 = arith.constant 0 : index
    %c0_427 = arith.constant 0 : index
    %386 = vector.load %arg7[%c0_426, %c0_427] : memref<1x128xf32, #tpu.memory_space<vmem>>, vector<1x128xf32>
    %387 = vector.broadcast %386 : vector<1x128xf32> to vector<8x128xf32>
    %388 = arith.addf %385, %387 : vector<8x128xf32>
    %cst_428 = arith.constant 0.000000e+00 : f32
    %389 = vector.broadcast %cst_428 : f32 to vector<8x128xf32>
    %390 = arith.maximumf %388, %389 : vector<8x128xf32>
    %391 = vector.extract_strided_slice %390 {offsets = [0, 0], sizes = [2, 128], strides = [1, 1]} : vector<8x128xf32> to vector<2x128xf32>
    %c0_429 = arith.constant 0 : index
    %c0_430 = arith.constant 0 : index
    %392 = vector.load %arg19[%c0_429, %c0_430] : memref<2x512xf32, #tpu.memory_space<vmem>>, vector<2x128xf32>
    tpu.vector_store %arg19[%c0_429, %c0_430], %391 {strides = array<i32>} : memref<2x512xf32, #tpu.memory_space<vmem>>, vector<2x128xf32>,
    %393 = vector.extract_strided_slice %390 {offsets = [2, 0], sizes = [2, 128], strides = [1, 1]} : vector<8x128xf32> to vector<2x128xf32>
    %c0_431 = arith.constant 0 : index
    %c128_432 = arith.constant 128 : index
    %394 = vector.load %arg19[%c0_431, %c128_432] : memref<2x512xf32, #tpu.memory_space<vmem>>, vector<2x128xf32>
    tpu.vector_store %arg19[%c0_431, %c128_432], %393 {strides = array<i32>} : memref<2x512xf32, #tpu.memory_space<vmem>>, vector<2x128xf32>,
    %395 = vector.extract_strided_slice %390 {offsets = [4, 0], sizes = [2, 128], strides = [1, 1]} : vector<8x128xf32> to vector<2x128xf32>
    %c0_433 = arith.constant 0 : index
    %c256_434 = arith.constant 256 : index
    %396 = vector.load %arg19[%c0_433, %c256_434] : memref<2x512xf32, #tpu.memory_space<vmem>>, vector<2x128xf32>
    tpu.vector_store %arg19[%c0_433, %c256_434], %395 {strides = array<i32>} : memref<2x512xf32, #tpu.memory_space<vmem>>, vector<2x128xf32>,
    %397 = vector.extract_strided_slice %390 {offsets = [6, 0], sizes = [2, 128], strides = [1, 1]} : vector<8x128xf32> to vector<2x128xf32>
    %c0_435 = arith.constant 0 : index
    %c384_436 = arith.constant 384 : index
    %398 = vector.load %arg19[%c0_435, %c384_436] : memref<2x512xf32, #tpu.memory_space<vmem>>, vector<2x128xf32>
    tpu.vector_store %arg19[%c0_435, %c384_436], %397 {strides = array<i32>} : memref<2x512xf32, #tpu.memory_space<vmem>>, vector<2x128xf32>,
    %c0_437 = arith.constant 0 : index
    %c0_438 = arith.constant 0 : index
    %399 = vector.load %arg19[%c0_437, %c0_438] : memref<2x512xf32, #tpu.memory_space<vmem>>, vector<2x512xf32>
    %c0_439 = arith.constant 0 : index
    %c0_440 = arith.constant 0 : index
    %400 = vector.load %arg8[%c0_439, %c0_440] : memref<512x768xf32, #tpu.memory_space<vmem>>, vector<512x768xf32>
    %cst_441 = arith.constant dense<0.000000e+00> : vector<2x768xf32>
    %401 = tpu.matmul %399, %400, %cst_441 {dimension_numbers = #tpu.dot_dimension_numbers<[1], [0], [0], [1], [0, 0, 1, 1], [], []>} : vector<2x512xf32>, vector<512x768xf32>, vector<2x768xf32> -> vector<2x768xf32>
    %c0_442 = arith.constant 0 : index
    %c0_443 = arith.constant 0 : index
    %402 = vector.load %arg9[%c0_442, %c0_443] : memref<1x768xf32, #tpu.memory_space<vmem>>, vector<1x768xf32>
    %403 = vector.broadcast %402 : vector<1x768xf32> to vector<2x768xf32>
    %404 = arith.addf %401, %403 : vector<2x768xf32>
    %cst_444 = arith.constant 0.000000e+00 : f32
    %405 = vector.broadcast %cst_444 : f32 to vector<2x768xf32>
    %406 = arith.maximumf %404, %405 : vector<2x768xf32>
    %c0_445 = arith.constant 0 : index
    %c0_446 = arith.constant 0 : index
    %407 = vector.load %arg10[%c0_445, %c0_446] : memref<768x32xf32, #tpu.memory_space<vmem>>, vector<768x32xf32>
    %cst_447 = arith.constant dense<0.000000e+00> : vector<2x32xf32>
    %408 = tpu.matmul %406, %407, %cst_447 {dimension_numbers = #tpu.dot_dimension_numbers<[1], [0], [0], [1], [0, 0, 1, 1], [], []>} : vector<2x768xf32>, vector<768x32xf32>, vector<2x32xf32> -> vector<2x32xf32>
    %c0_448 = arith.constant 0 : index
    %c0_449 = arith.constant 0 : index
    %409 = vector.load %arg11[%c0_448, %c0_449] : memref<1x32xf32, #tpu.memory_space<vmem>>, vector<1x32xf32>
    %410 = vector.broadcast %409 : vector<1x32xf32> to vector<2x32xf32>
    %411 = arith.addf %408, %410 : vector<2x32xf32>
    %cst_450 = arith.constant 0.000000e+00 : f32
    %412 = vector.broadcast %cst_450 : f32 to vector<2x32xf32>
    %413 = arith.maximumf %411, %412 : vector<2x32xf32>
    %c0_451 = arith.constant 0 : index
    %c0_452 = arith.constant 0 : index
    %414 = vector.load %arg12[%c0_451, %c0_452] : memref<32x6xf32, #tpu.memory_space<vmem>>, vector<32x6xf32>
    %cst_453 = arith.constant dense<0.000000e+00> : vector<2x6xf32>
    %415 = tpu.matmul %413, %414, %cst_453 {dimension_numbers = #tpu.dot_dimension_numbers<[1], [0], [0], [1], [0, 0, 1, 1], [], []>} : vector<2x32xf32>, vector<32x6xf32>, vector<2x6xf32> -> vector<2x6xf32>
    %c0_454 = arith.constant 0 : index
    %c0_455 = arith.constant 0 : index
    %416 = vector.load %arg13[%c0_454, %c0_455] : memref<1x6xf32, #tpu.memory_space<vmem>>, vector<1x6xf32>
    %417 = vector.broadcast %416 : vector<1x6xf32> to vector<2x6xf32>
    %418 = arith.addf %415, %417 : vector<2x6xf32>
    %c0_456 = arith.constant 0 : index
    %c0_457 = arith.constant 0 : index
    %419 = vector.load %arg14[%c0_456, %c0_457] : memref<2x6xf32, #tpu.memory_space<vmem>>, vector<2x6xf32>
    tpu.vector_store %arg14[%c0_456, %c0_457], %418 {strides = array<i32>} : memref<2x6xf32, #tpu.memory_space<vmem>>, vector<2x6xf32>,
    return
  }
  func.func @transform_0(%arg0: i32) -> (i32, i32) {
    %c0_i32 = arith.constant 0 : i32
    %c0_i32_0 = arith.constant 0 : i32
    %c0_i32_1 = arith.constant 0 : i32
    return %c0_i32, %c0_i32_0 : i32, i32
  }
  func.func @transform_1(%arg0: i32) -> (i32, i32) {
    %c0_i32 = arith.constant 0 : i32
    %c0_i32_0 = arith.constant 0 : i32
    %c0_i32_1 = arith.constant 0 : i32
    return %c0_i32, %c0_i32_0 : i32, i32
  }
  func.func @transform_2(%arg0: i32) -> (i32, i32) {
    %c0_i32 = arith.constant 0 : i32
    %c0_i32_0 = arith.constant 0 : i32
    %c0_i32_1 = arith.constant 0 : i32
    return %c0_i32, %c0_i32_0 : i32, i32
  }
  func.func @transform_3(%arg0: i32) -> (i32, i32) {
    %c0_i32 = arith.constant 0 : i32
    %c0_i32_0 = arith.constant 0 : i32
    %c0_i32_1 = arith.constant 0 : i32
    return %c0_i32, %c0_i32_0 : i32, i32
  }
  func.func @transform_4(%arg0: i32) -> (i32, i32) {
    %c0_i32 = arith.constant 0 : i32
    %c0_i32_0 = arith.constant 0 : i32
    %c0_i32_1 = arith.constant 0 : i32
    return %c0_i32, %c0_i32_0 : i32, i32
  }
  func.func @transform_5(%arg0: i32) -> (i32, i32) {
    %c0_i32 = arith.constant 0 : i32
    %c0_i32_0 = arith.constant 0 : i32
    %c0_i32_1 = arith.constant 0 : i32
    return %c0_i32, %c0_i32_0 : i32, i32
  }
  func.func @transform_6(%arg0: i32) -> (i32, i32) {
    %c0_i32 = arith.constant 0 : i32
    %c0_i32_0 = arith.constant 0 : i32
    %c0_i32_1 = arith.constant 0 : i32
    return %c0_i32, %c0_i32_0 : i32, i32
  }
  func.func @transform_7(%arg0: i32) -> (i32, i32) {
    %c0_i32 = arith.constant 0 : i32
    %c0_i32_0 = arith.constant 0 : i32
    %c0_i32_1 = arith.constant 0 : i32
    return %c0_i32, %c0_i32_0 : i32, i32
  }
  func.func @transform_8(%arg0: i32) -> (i32, i32) {
    %c0_i32 = arith.constant 0 : i32
    %c0_i32_0 = arith.constant 0 : i32
    %c0_i32_1 = arith.constant 0 : i32
    return %c0_i32, %c0_i32_0 : i32, i32
  }
  func.func @transform_9(%arg0: i32) -> (i32, i32) {
    %c0_i32 = arith.constant 0 : i32
    %c0_i32_0 = arith.constant 0 : i32
    %c0_i32_1 = arith.constant 0 : i32
    return %c0_i32, %c0_i32_0 : i32, i32
  }
  func.func @transform_10(%arg0: i32) -> (i32, i32) {
    %c0_i32 = arith.constant 0 : i32
    %c0_i32_0 = arith.constant 0 : i32
    %c0_i32_1 = arith.constant 0 : i32
    return %c0_i32, %c0_i32_0 : i32, i32
  }
  func.func @transform_11(%arg0: i32) -> (i32, i32) {
    %c0_i32 = arith.constant 0 : i32
    %c0_i32_0 = arith.constant 0 : i32
    %c0_i32_1 = arith.constant 0 : i32
    return %c0_i32, %c0_i32_0 : i32, i32
  }
  func.func @transform_12(%arg0: i32) -> (i32, i32) {
    %c0_i32 = arith.constant 0 : i32
    %c0_i32_0 = arith.constant 0 : i32
    %c0_i32_1 = arith.constant 0 : i32
    return %c0_i32, %c0_i32_0 : i32, i32
  }
  func.func @transform_13(%arg0: i32) -> (i32, i32) {
    %c0_i32 = arith.constant 0 : i32
    %c0_i32_0 = arith.constant 0 : i32
    %c0_i32_1 = arith.constant 0 : i32
    return %c0_i32, %c0_i32_0 : i32, i32
  }
}

</mosaic_0001>

<llo_original>
// kernel: dqn_forward.1
$region0: #{dqn_forward.1}
  #allocation0 [shape = 'u32[]', space=smem, size = 0x4, offset = 0x4, fixed_abs, tag = 'smem constant byte address 0x4 - core index']
  #allocation1 [shape = 'u32[144,128]{1,0:T(1,128)}', space=vmem, size = 0x12000, scoped, tag = 'internal scratch']
  #allocation2 [shape = 'f32[120,128]{1,0:T(8,128)}', space=vmem, size = 0xf000, scoped, tag = 'scratch operand']
  #allocation3 [shape = 'f32[2,6,6,256]{3,2,1,0:T(8,128)}', space=vmem, size = 0x18000, scoped, tag = 'scratch operand']
  #allocation4 [shape = 'f32[50,1024]{1,0:T(8,128)}', space=vmem, size = 0x38000, scoped, tag = 'scratch operand']
  #allocation5 [shape = 'f32[8,512]{1,0:T(8,128)}', space=vmem, size = 0x4000, scoped, tag = 'scratch operand']
  #allocation6 [shape = 'f32[2,512]{1,0:T(2,128)}', space=vmem, size = 0x1000, scoped, tag = 'scratch operand']
  %s0 = inlined_call_operand.vmem [shape: f32[480,512], index: 0, kind: input, shape index: {}]
  %s1 = inlined_call_operand.vmem [shape: bf16[512,128], index: 1, kind: input, shape index: {}]
  %s2 = inlined_call_operand.vmem [shape: f32[1,128], index: 2, kind: input, shape index: {}]
  %s3 = inlined_call_operand.vmem [shape: bf16[1024,128], index: 3, kind: input, shape index: {}]
  %s4 = inlined_call_operand.vmem [shape: f32[1,128], index: 4, kind: input, shape index: {}]
  %s5 = inlined_call_operand.vmem [shape: f32[512,128], index: 5, kind: input, shape index: {}]
  %s6 = inlined_call_operand.vmem [shape: f32[1,128], index: 6, kind: input, shape index: {}]
  %s7 = inlined_call_operand.vmem [shape: f32[512,768], index: 7, kind: input, shape index: {}]
  %s8 = inlined_call_operand.vmem [shape: f32[1,768], index: 8, kind: input, shape index: {}]
  %s9 = inlined_call_operand.vmem [shape: f32[768,32], index: 9, kind: input, shape index: {}]
  %s10 = inlined_call_operand.vmem [shape: f32[1,32], index: 10, kind: input, shape index: {}]
  %s11 = inlined_call_operand.vmem [shape: f32[32,6], index: 11, kind: input, shape index: {}]
  %s12 = inlined_call_operand.vmem [shape: f32[1,6], index: 12, kind: input, shape index: {}]
  %s13 = inlined_call_operand.hbm [shape: f32[2,6], index: 13, kind: output, shape index: {}]
  %s14 = sld [smem:[#allocation0]]
  $region62: #{dqn_forward.1} parent=0
    _
  %s16 = ssub.s32 1, %s14
  %s17 = scalar_select 0, %s16, %s14
  $region1: #{dqn_forward.1} parent=0
    #allocation7 [shape = 'u8[1024]{0}', space=vmem, size = 0x400, scoped, tag = 'output window, operand 0, single buffered']
    #allocation8 [shape = 's32[1]{0}', space=sflag, size = 0x4, scoped, tag = 'scoped memory for dqn_forward.1']
    %18 = vsyncpa [#allocation8], 0
    // Predicated region
    $region2: #{dqn_forward.1} parent=1 // pred_check
      _
    $region3: #{dqn_forward.1} parent=1 // pred_check_branch
      %20 = sbr.rel (0) target = $region5
    $region4: #{dqn_forward.1} parent=1 // pred_region
      _
    $region5: #{dqn_forward.1} parent=1 // pred_fallthru
      _
    // Predicated region
    $region6: #{dqn_forward.1} parent=1 // pred_check
      _
    $region7: #{dqn_forward.1} parent=1 // pred_check_branch
      %22 = sbr.rel (0) target = $region9
    $region8: #{dqn_forward.1} parent=1 // pred_region
      _
    $region9: #{dqn_forward.1} parent=1 // pred_fallthru
      _
    // Predicated region
    $region10: #{dqn_forward.1} parent=1 // pred_check
      _
    $region11: #{dqn_forward.1} parent=1 // pred_check_branch
      %24 = sbr.rel (0) target = $region13
    $region12: #{dqn_forward.1} parent=1 // pred_region
      _
    $region13: #{dqn_forward.1} parent=1 // pred_fallthru
      _
    // Predicated region
    $region14: #{dqn_forward.1} parent=1 // pred_check
      _
    $region15: #{dqn_forward.1} parent=1 // pred_check_branch
      %26 = sbr.rel (0) target = $region17
    $region16: #{dqn_forward.1} parent=1 // pred_region
      _
    $region17: #{dqn_forward.1} parent=1 // pred_fallthru
      _
    // Predicated region
    $region18: #{dqn_forward.1} parent=1 // pred_check
      _
    $region19: #{dqn_forward.1} parent=1 // pred_check_branch
      %28 = sbr.rel (0) target = $region21
    $region20: #{dqn_forward.1} parent=1 // pred_region
      _
    $region21: #{dqn_forward.1} parent=1 // pred_fallthru
      _
    // Predicated region
    $region22: #{dqn_forward.1} parent=1 // pred_check
      _
    $region23: #{dqn_forward.1} parent=1 // pred_check_branch
      %30 = sbr.rel (0) target = $region25
    $region24: #{dqn_forward.1} parent=1 // pred_region
      _
    $region25: #{dqn_forward.1} parent=1 // pred_fallthru
      _
    // Predicated region
    $region26: #{dqn_forward.1} parent=1 // pred_check
      _
    $region27: #{dqn_forward.1} parent=1 // pred_check_branch
      %32 = sbr.rel (0) target = $region29
    $region28: #{dqn_forward.1} parent=1 // pred_region
      _
    $region29: #{dqn_forward.1} parent=1 // pred_fallthru
      _
    // Predicated region
    $region30: #{dqn_forward.1} parent=1 // pred_check
      _
    $region31: #{dqn_forward.1} parent=1 // pred_check_branch
      %34 = sbr.rel (0) target = $region33
    $region32: #{dqn_forward.1} parent=1 // pred_region
      _
    $region33: #{dqn_forward.1} parent=1 // pred_fallthru
      _
    // Predicated region
    $region34: #{dqn_forward.1} parent=1 // pred_check
      _
    $region35: #{dqn_forward.1} parent=1 // pred_check_branch
      %36 = sbr.rel (0) target = $region37
    $region36: #{dqn_forward.1} parent=1 // pred_region
      _
    $region37: #{dqn_forward.1} parent=1 // pred_fallthru
      _
    // Predicated region
    $region38: #{dqn_forward.1} parent=1 // pred_check
      _
    $region39: #{dqn_forward.1} parent=1 // pred_check_branch
      %38 = sbr.rel (0) target = $region41
    $region40: #{dqn_forward.1} parent=1 // pred_region
      _
    $region41: #{dqn_forward.1} parent=1 // pred_fallthru
      _
    // Predicated region
    $region42: #{dqn_forward.1} parent=1 // pred_check
      _
    $region43: #{dqn_forward.1} parent=1 // pred_check_branch
      %40 = sbr.rel (0) target = $region45
    $region44: #{dqn_forward.1} parent=1 // pred_region
      _
    $region45: #{dqn_forward.1} parent=1 // pred_fallthru
      _
    // Predicated region
    $region46: #{dqn_forward.1} parent=1 // pred_check
      _
    $region47: #{dqn_forward.1} parent=1 // pred_check_branch
      %42 = sbr.rel (0) target = $region49
    $region48: #{dqn_forward.1} parent=1 // pred_region
      _
    $region49: #{dqn_forward.1} parent=1 // pred_fallthru
      _
    // Predicated region
    $region50: #{dqn_forward.1} parent=1 // pred_check
      _
    $region51: #{dqn_forward.1} parent=1 // pred_check_branch
      %44 = sbr.rel (0) target = $region53
    $region52: #{dqn_forward.1} parent=1 // pred_region
      _
    $region53: #{dqn_forward.1} parent=1 // pred_fallthru
      _
    %v46 = vld [vmem:[%s0] sm:$0xff]
    %v47 = vld [vmem:[%s0 + $0x8] sm:$0xff]
    %v48 = vld [vmem:[%s0 + $0x10] sm:$0xff]
    %v49 = vld [vmem:[%s0 + $0x18] sm:$0xff]
    %v50 = vld [vmem:[%s0 + $0x20] sm:$0xff]
    %v51 = vld [vmem:[%s0 + $0x28] sm:$0xff]
    %v52 = vld [vmem:[%s0 + $0x30] sm:$0xff]
    %v53 = vld [vmem:[%s0 + $0x38] sm:$0xff]
    %v54 = vld [vmem:[%s0 + $0x40] sm:$0xff]
    %v55 = vld [vmem:[%s0 + $0x48] sm:$0xff]
    %v56 = vld [vmem:[%s0 + $0x50] sm:$0xff]
    %v57 = vld [vmem:[%s0 + $0x58] sm:$0xff]
    %v58 = vld [vmem:[%s0 + $0x60] sm:$0xff]
    %v59 = vld [vmem:[%s0 + $0x68] sm:$0xff]
    %v60 = vld [vmem:[%s0 + $0x70] sm:$0xff]
    %v61 = vld [vmem:[%s0 + $0x78] sm:$0xff]
    %v62 = vld [vmem:[%s0 + $0x80] sm:$0xff]
    %v63 = vld [vmem:[%s0 + $0x88] sm:$0xff]
    %v64 = vld [vmem:[%s0 + $0x90] sm:$0xff]
    %v65 = vld [vmem:[%s0 + $0x98] sm:$0xff]
    %v66 = vld [vmem:[%s0 + $0xa0] sm:$0xff]
    %v67 = vld [vmem:[%s0 + $0xa8] sm:$0xff]
    %v68 = vld [vmem:[%s0 + $0xb0] sm:$0xff]
    %v69 = vld [vmem:[%s0 + $0xb8] sm:$0xff]
    %v70 = vld [vmem:[%s0 + $0xc0] sm:$0xff]
    %v71 = vld [vmem:[%s0 + $0xc8] sm:$0xff]
    %v72 = vld [vmem:[%s0 + $0xd0] sm:$0xff]
    %v73 = vld [vmem:[%s0 + $0xd8] sm:$0xff]
    %v74 = vld [vmem:[%s0 + $0xe0] sm:$0xff]
    %v75 = vld [vmem:[%s0 + $0xe8] sm:$0xff]
    %v76 = vld [vmem:[%s0 + $0xf0] sm:$0xff]
    %v77 = vld [vmem:[%s0 + $0xf8] sm:$0xff]
    %v78 = vld [vmem:[%s0 + $0x100] sm:$0xff]
    %v79 = vld [vmem:[%s0 + $0x108] sm:$0xff]
    %v80 = vld [vmem:[%s0 + $0x110] sm:$0xff]
    %v81 = vld [vmem:[%s0 + $0x118] sm:$0xff]
    %v82 = vld [vmem:[%s0 + $0x120] sm:$0xff]
    %v83 = vld [vmem:[%s0 + $0x128] sm:$0xff]
    %v84 = vld [vmem:[%s0 + $0x130] sm:$0xff]
    %v85 = vld [vmem:[%s0 + $0x138] sm:$0xff]
    %v86 = vld [vmem:[%s0 + $0x140] sm:$0xff]
    %v87 = vld [vmem:[%s0 + $0x148] sm:$0xff]
    %v88 = vld [vmem:[%s0 + $0x150] sm:$0xff]
    %v89 = vld [vmem:[%s0 + $0x158] sm:$0xff]
    %v90 = vld [vmem:[%s0 + $0x160] sm:$0xff]
    %v91 = vld [vmem:[%s0 + $0x168] sm:$0xff]
    %v92 = vld [vmem:[%s0 + $0x170] sm:$0xff]
    %v93 = vld [vmem:[%s0 + $0x178] sm:$0xff]
    %v94 = vld [vmem:[%s0 + $0x180] sm:$0xff]
    %v95 = vld [vmem:[%s0 + $0x188] sm:$0xff]
    %v96 = vld [vmem:[%s0 + $0x190] sm:$0xff]
    %v97 = vld [vmem:[%s0 + $0x198] sm:$0xff]
    %v98 = vld [vmem:[%s0 + $0x1a0] sm:$0xff]
    %v99 = vld [vmem:[%s0 + $0x1a8] sm:$0xff]
    %v100 = vld [vmem:[%s0 + $0x1b0] sm:$0xff]
    %v101 = vld [vmem:[%s0 + $0x1b8] sm:$0xff]
    %v102 = vld [vmem:[%s0 + $0x1c0] sm:$0xff]
    %v103 = vld [vmem:[%s0 + $0x1c8] sm:$0xff]
    %v104 = vld [vmem:[%s0 + $0x1d0] sm:$0xff]
    %v105 = vld [vmem:[%s0 + $0x1d8] sm:$0xff]
    %v106 = vld [vmem:[%s0 + $0x1e0] sm:$0xff]
    %v107 = vld [vmem:[%s0 + $0x1e8] sm:$0xff]
    %v108 = vld [vmem:[%s0 + $0x1f0] sm:$0xff]
    %v109 = vld [vmem:[%s0 + $0x1f8] sm:$0xff]
    %v110 = vld [vmem:[%s0 + $0x200] sm:$0xff]
    %v111 = vld [vmem:[%s0 + $0x208] sm:$0xff]
    %v112 = vld [vmem:[%s0 + $0x210] sm:$0xff]
    %v113 = vld [vmem:[%s0 + $0x218] sm:$0xff]
    %v114 = vld [vmem:[%s0 + $0x220] sm:$0xff]
    %v115 = vld [vmem:[%s0 + $0x228] sm:$0xff]
    %v116 = vld [vmem:[%s0 + $0x230] sm:$0xff]
    %v117 = vld [vmem:[%s0 + $0x238] sm:$0xff]
    %v118 = vld [vmem:[%s0 + $0x240] sm:$0xff]
    %v119 = vld [vmem:[%s0 + $0x248] sm:$0xff]
    %v120 = vld [vmem:[%s0 + $0x250] sm:$0xff]
    %v121 = vld [vmem:[%s0 + $0x258] sm:$0xff]
    %v122 = vld [vmem:[%s0 + $0x260] sm:$0xff]
    %v123 = vld [vmem:[%s0 + $0x268] sm:$0xff]
    %v124 = vld [vmem:[%s0 + $0x270] sm:$0xff]
    %v125 = vld [vmem:[%s0 + $0x278] sm:$0xff]
    %v126 = vld [vmem:[%s0 + $0x280] sm:$0xff]
    %v127 = vld [vmem:[%s0 + $0x288] sm:$0xff]
    %v128 = vld [vmem:[%s0 + $0x290] sm:$0xff]
    %v129 = vld [vmem:[%s0 + $0x298] sm:$0xff]
    %v130 = vld [vmem:[%s0 + $0x2a0] sm:$0xff]
    %v131 = vld [vmem:[%s0 + $0x2a8] sm:$0xff]
    %v132 = vld [vmem:[%s0 + $0x2b0] sm:$0xff]
    %v133 = vld [vmem:[%s0 + $0x2b8] sm:$0xff]
    %v134 = vld [vmem:[%s0 + $0x2c0] sm:$0xff]
    %v135 = vld [vmem:[%s0 + $0x2c8] sm:$0xff]
    %v136 = vld [vmem:[%s0 + $0x2d0] sm:$0xff]
    %v137 = vld [vmem:[%s0 + $0x2d8] sm:$0xff]
    %v138 = vld [vmem:[%s0 + $0x2e0] sm:$0xff]
    %v139 = vld [vmem:[%s0 + $0x2e8] sm:$0xff]
    %v140 = vld [vmem:[%s0 + $0x2f0] sm:$0xff]
    %v141 = vld [vmem:[%s0 + $0x2f8] sm:$0xff]
    %v142 = vld [vmem:[%s0 + $0x300] sm:$0xff]
    %v143 = vld [vmem:[%s0 + $0x308] sm:$0xff]
    %v144 = vld [vmem:[%s0 + $0x310] sm:$0xff]
    %v145 = vld [vmem:[%s0 + $0x318] sm:$0xff]
    %v146 = vld [vmem:[%s0 + $0x320] sm:$0xff]
    %v147 = vld [vmem:[%s0 + $0x328] sm:$0xff]
    %v148 = vld [vmem:[%s0 + $0x330] sm:$0xff]
    %v149 = vld [vmem:[%s0 + $0x338] sm:$0xff]
    %v150 = vld [vmem:[%s0 + $0x340] sm:$0xff]
    %v151 = vld [vmem:[%s0 + $0x348] sm:$0xff]
    %v152 = vld [vmem:[%s0 + $0x350] sm:$0xff]
    %v153 = vld [vmem:[%s0 + $0x358] sm:$0xff]
    %v154 = vld [vmem:[%s0 + $0x360] sm:$0xff]
    %v155 = vld [vmem:[%s0 + $0x368] sm:$0xff]
    %v156 = vld [vmem:[%s0 + $0x370] sm:$0xff]
    %v157 = vld [vmem:[%s0 + $0x378] sm:$0xff]
    %v158 = vld [vmem:[%s0 + $0x380] sm:$0xff]
    %v159 = vld [vmem:[%s0 + $0x388] sm:$0xff]
    %v160 = vld [vmem:[%s0 + $0x390] sm:$0xff]
    %v161 = vld [vmem:[%s0 + $0x398] sm:$0xff]
    %v162 = vld [vmem:[%s0 + $0x3a0] sm:$0xff]
    %v163 = vld [vmem:[%s0 + $0x3a8] sm:$0xff]
    %v164 = vld [vmem:[%s0 + $0x3b0] sm:$0xff]
    %v165 = vld [vmem:[%s0 + $0x3b8] sm:$0xff]
    %v166 = vld [vmem:[%s0 + $0x3c0] sm:$0xff]
    %v167 = vld [vmem:[%s0 + $0x3c8] sm:$0xff]
    %v168 = vld [vmem:[%s0 + $0x3d0] sm:$0xff]
    %v169 = vld [vmem:[%s0 + $0x3d8] sm:$0xff]
    %v170 = vld [vmem:[%s0 + $0x3e0] sm:$0xff]
    %v171 = vld [vmem:[%s0 + $0x3e8] sm:$0xff]
    %v172 = vld [vmem:[%s0 + $0x3f0] sm:$0xff]
    %v173 = vld [vmem:[%s0 + $0x3f8] sm:$0xff]
    %v174 = vld [vmem:[%s0 + $0x400] sm:$0xff]
    %v175 = vld [vmem:[%s0 + $0x408] sm:$0xff]
    %v176 = vld [vmem:[%s0 + $0x410] sm:$0xff]
    %v177 = vld [vmem:[%s0 + $0x418] sm:$0xff]
    %v178 = vld [vmem:[%s0 + $0x420] sm:$0xff]
    %v179 = vld [vmem:[%s0 + $0x428] sm:$0xff]
    %v180 = vld [vmem:[%s0 + $0x430] sm:$0xff]
    %v181 = vld [vmem:[%s0 + $0x438] sm:$0xff]
    %v182 = vld [vmem:[%s0 + $0x440] sm:$0xff]
    %v183 = vld [vmem:[%s0 + $0x448] sm:$0xff]
    %v184 = vld [vmem:[%s0 + $0x450] sm:$0xff]
    %v185 = vld [vmem:[%s0 + $0x458] sm:$0xff]
    %v186 = vld [vmem:[%s0 + $0x460] sm:$0xff]
    %v187 = vld [vmem:[%s0 + $0x468] sm:$0xff]
    %v188 = vld [vmem:[%s0 + $0x470] sm:$0xff]
    %v189 = vld [vmem:[%s0 + $0x478] sm:$0xff]
    %v190 = vld [vmem:[%s0 + $0x480] sm:$0xff]
    %v191 = vld [vmem:[%s0 + $0x488] sm:$0xff]
    %v192 = vld [vmem:[%s0 + $0x490] sm:$0xff]
    %v193 = vld [vmem:[%s0 + $0x498] sm:$0xff]
    %v194 = vld [vmem:[%s0 + $0x4a0] sm:$0xff]
    %v195 = vld [vmem:[%s0 + $0x4a8] sm:$0xff]
    %v196 = vld [vmem:[%s0 + $0x4b0] sm:$0xff]
    %v197 = vld [vmem:[%s0 + $0x4b8] sm:$0xff]
    %v198 = vld [vmem:[%s0 + $0x4c0] sm:$0xff]
    %v199 = vld [vmem:[%s0 + $0x4c8] sm:$0xff]
    %v200 = vld [vmem:[%s0 + $0x4d0] sm:$0xff]
    %v201 = vld [vmem:[%s0 + $0x4d8] sm:$0xff]
    %v202 = vld [vmem:[%s0 + $0x4e0] sm:$0xff]
    %v203 = vld [vmem:[%s0 + $0x4e8] sm:$0xff]
    %v204 = vld [vmem:[%s0 + $0x4f0] sm:$0xff]
    %v205 = vld [vmem:[%s0 + $0x4f8] sm:$0xff]
    %v206 = vld [vmem:[%s0 + $0x500] sm:$0xff]
    %v207 = vld [vmem:[%s0 + $0x508] sm:$0xff]
    %v208 = vld [vmem:[%s0 + $0x510] sm:$0xff]
    %v209 = vld [vmem:[%s0 + $0x518] sm:$0xff]
    %v210 = vld [vmem:[%s0 + $0x520] sm:$0xff]
    %v211 = vld [vmem:[%s0 + $0x528] sm:$0xff]
    %v212 = vld [vmem:[%s0 + $0x530] sm:$0xff]
    %v213 = vld [vmem:[%s0 + $0x538] sm:$0xff]
    %v214 = vld [vmem:[%s0 + $0x540] sm:$0xff]
    %v215 = vld [vmem:[%s0 + $0x548] sm:$0xff]
    %v216 = vld [vmem:[%s0 + $0x550] sm:$0xff]
    %v217 = vld [vmem:[%s0 + $0x558] sm:$0xff]
    %v218 = vld [vmem:[%s0 + $0x560] sm:$0xff]
    %v219 = vld [vmem:[%s0 + $0x568] sm:$0xff]
    %v220 = vld [vmem:[%s0 + $0x570] sm:$0xff]
    %v221 = vld [vmem:[%s0 + $0x578] sm:$0xff]
    %v222 = vld [vmem:[%s0 + $0x580] sm:$0xff]
    %v223 = vld [vmem:[%s0 + $0x588] sm:$0xff]
    %v224 = vld [vmem:[%s0 + $0x590] sm:$0xff]
    %v225 = vld [vmem:[%s0 + $0x598] sm:$0xff]
    %v226 = vld [vmem:[%s0 + $0x5a0] sm:$0xff]
    %v227 = vld [vmem:[%s0 + $0x5a8] sm:$0xff]
    %v228 = vld [vmem:[%s0 + $0x5b0] sm:$0xff]
    %v229 = vld [vmem:[%s0 + $0x5b8] sm:$0xff]
    %v230 = vld [vmem:[%s0 + $0x5c0] sm:$0xff]
    %v231 = vld [vmem:[%s0 + $0x5c8] sm:$0xff]
    %v232 = vld [vmem:[%s0 + $0x5d0] sm:$0xff]
    %v233 = vld [vmem:[%s0 + $0x5d8] sm:$0xff]
    %v234 = vld [vmem:[%s0 + $0x5e0] sm:$0xff]
    %v235 = vld [vmem:[%s0 + $0x5e8] sm:$0xff]
    %v236 = vld [vmem:[%s0 + $0x5f0] sm:$0xff]
    %v237 = vld [vmem:[%s0 + $0x5f8] sm:$0xff]
    %v238 = vld [vmem:[%s0 + $0x600] sm:$0xff]
    %v239 = vld [vmem:[%s0 + $0x608] sm:$0xff]
    %v240 = vld [vmem:[%s0 + $0x610] sm:$0xff]
    %v241 = vld [vmem:[%s0 + $0x618] sm:$0xff]
    %v242 = vld [vmem:[%s0 + $0x620] sm:$0xff]
    %v243 = vld [vmem:[%s0 + $0x628] sm:$0xff]
    %v244 = vld [vmem:[%s0 + $0x630] sm:$0xff]
    %v245 = vld [vmem:[%s0 + $0x638] sm:$0xff]
    %v246 = vld [vmem:[%s0 + $0x640] sm:$0xff]
    %v247 = vld [vmem:[%s0 + $0x648] sm:$0xff]
    %v248 = vld [vmem:[%s0 + $0x650] sm:$0xff]
    %v249 = vld [vmem:[%s0 + $0x658] sm:$0xff]
    %v250 = vld [vmem:[%s0 + $0x660] sm:$0xff]
    %v251 = vld [vmem:[%s0 + $0x668] sm:$0xff]
    %v252 = vld [vmem:[%s0 + $0x670] sm:$0xff]
    %v253 = vld [vmem:[%s0 + $0x678] sm:$0xff]
    %v254 = vld [vmem:[%s0 + $0x680] sm:$0xff]
    %v255 = vld [vmem:[%s0 + $0x688] sm:$0xff]
    %v256 = vld [vmem:[%s0 + $0x690] sm:$0xff]
    %v257 = vld [vmem:[%s0 + $0x698] sm:$0xff]
    %v258 = vld [vmem:[%s0 + $0x6a0] sm:$0xff]
    %v259 = vld [vmem:[%s0 + $0x6a8] sm:$0xff]
    %v260 = vld [vmem:[%s0 + $0x6b0] sm:$0xff]
    %v261 = vld [vmem:[%s0 + $0x6b8] sm:$0xff]
    %v262 = vld [vmem:[%s0 + $0x6c0] sm:$0xff]
    %v263 = vld [vmem:[%s0 + $0x6c8] sm:$0xff]
    %v264 = vld [vmem:[%s0 + $0x6d0] sm:$0xff]
    %v265 = vld [vmem:[%s0 + $0x6d8] sm:$0xff]
    %v266 = vld [vmem:[%s0 + $0x6e0] sm:$0xff]
    %v267 = vld [vmem:[%s0 + $0x6e8] sm:$0xff]
    %v268 = vld [vmem:[%s0 + $0x6f0] sm:$0xff]
    %v269 = vld [vmem:[%s0 + $0x6f8] sm:$0xff]
    %v270 = vld [vmem:[%s0 + $0x700] sm:$0xff]
    %v271 = vld [vmem:[%s0 + $0x708] sm:$0xff]
    %v272 = vld [vmem:[%s0 + $0x710] sm:$0xff]
    %v273 = vld [vmem:[%s0 + $0x718] sm:$0xff]
    %v274 = vld [vmem:[%s0 + $0x720] sm:$0xff]
    %v275 = vld [vmem:[%s0 + $0x728] sm:$0xff]
    %v276 = vld [vmem:[%s0 + $0x730] sm:$0xff]
    %v277 = vld [vmem:[%s0 + $0x738] sm:$0xff]
    %v278 = vld [vmem:[%s0 + $0x740] sm:$0xff]
    %v279 = vld [vmem:[%s0 + $0x748] sm:$0xff]
    %v280 = vld [vmem:[%s0 + $0x750] sm:$0xff]
    %v281 = vld [vmem:[%s0 + $0x758] sm:$0xff]
    %v282 = vld [vmem:[%s0 + $0x760] sm:$0xff]
    %v283 = vld [vmem:[%s0 + $0x768] sm:$0xff]
    %v284 = vld [vmem:[%s0 + $0x770] sm:$0xff]
    %v285 = vld [vmem:[%s0 + $0x778] sm:$0xff]
    %v286 = vpack.c.bf16 %v50, %v46
    %v287 = vpack.c.bf16 %v51, %v47
    %v288 = vpack.c.bf16 %v52, %v48
    %v289 = vpack.c.bf16 %v53, %v49
    %v290 = vpack.c.bf16 %v58, %v54
    %v291 = vpack.c.bf16 %v59, %v55
    %v292 = vpack.c.bf16 %v60, %v56
    %v293 = vpack.c.bf16 %v61, %v57
    %v294 = vpack.c.bf16 %v66, %v62
    %v295 = vpack.c.bf16 %v67, %v63
    %v296 = vpack.c.bf16 %v68, %v64
    %v297 = vpack.c.bf16 %v69, %v65
    %v298 = vpack.c.bf16 %v74, %v70
    %v299 = vpack.c.bf16 %v75, %v71
    %v300 = vpack.c.bf16 %v76, %v72
    %v301 = vpack.c.bf16 %v77, %v73
    %v302 = vpack.c.bf16 %v82, %v78
    %v303 = vpack.c.bf16 %v83, %v79
    %v304 = vpack.c.bf16 %v84, %v80
    %v305 = vpack.c.bf16 %v85, %v81
    %v306 = vpack.c.bf16 %v90, %v86
    %v307 = vpack.c.bf16 %v91, %v87
    %v308 = vpack.c.bf16 %v92, %v88
    %v309 = vpack.c.bf16 %v93, %v89
    %v310 = vpack.c.bf16 %v98, %v94
    %v311 = vpack.c.bf16 %v99, %v95
    %v312 = vpack.c.bf16 %v100, %v96
    %v313 = vpack.c.bf16 %v101, %v97
    %v314 = vpack.c.bf16 %v106, %v102
    %v315 = vpack.c.bf16 %v107, %v103
    %v316 = vpack.c.bf16 %v108, %v104
    %v317 = vpack.c.bf16 %v109, %v105
    %v318 = vpack.c.bf16 %v114, %v110
    %v319 = vpack.c.bf16 %v115, %v111
    %v320 = vpack.c.bf16 %v116, %v112
    %v321 = vpack.c.bf16 %v117, %v113
    %v322 = vpack.c.bf16 %v122, %v118
    %v323 = vpack.c.bf16 %v123, %v119
    %v324 = vpack.c.bf16 %v124, %v120
    %v325 = vpack.c.bf16 %v125, %v121
    %v326 = vpack.c.bf16 %v130, %v126
    %v327 = vpack.c.bf16 %v131, %v127
    %v328 = vpack.c.bf16 %v132, %v128
    %v329 = vpack.c.bf16 %v133, %v129
    %v330 = vpack.c.bf16 %v138, %v134
    %v331 = vpack.c.bf16 %v139, %v135
    %v332 = vpack.c.bf16 %v140, %v136
    %v333 = vpack.c.bf16 %v141, %v137
    %v334 = vpack.c.bf16 %v146, %v142
    %v335 = vpack.c.bf16 %v147, %v143
    %v336 = vpack.c.bf16 %v148, %v144
    %v337 = vpack.c.bf16 %v149, %v145
    %v338 = vpack.c.bf16 %v154, %v150
    %v339 = vpack.c.bf16 %v155, %v151
    %v340 = vpack.c.bf16 %v156, %v152
    %v341 = vpack.c.bf16 %v157, %v153
    %v342 = vpack.c.bf16 %v162, %v158
    %v343 = vpack.c.bf16 %v163, %v159
    %v344 = vpack.c.bf16 %v164, %v160
    %v345 = vpack.c.bf16 %v165, %v161
    %v346 = vpack.c.bf16 %v170, %v166
    %v347 = vpack.c.bf16 %v171, %v167
    %v348 = vpack.c.bf16 %v172, %v168
    %v349 = vpack.c.bf16 %v173, %v169
    %v350 = vpack.c.bf16 %v178, %v174
    %v351 = vpack.c.bf16 %v179, %v175
    %v352 = vpack.c.bf16 %v180, %v176
    %v353 = vpack.c.bf16 %v181, %v177
    %v354 = vpack.c.bf16 %v186, %v182
    %v355 = vpack.c.bf16 %v187, %v183
    %v356 = vpack.c.bf16 %v188, %v184
    %v357 = vpack.c.bf16 %v189, %v185
    %v358 = vpack.c.bf16 %v194, %v190
    %v359 = vpack.c.bf16 %v195, %v191
    %v360 = vpack.c.bf16 %v196, %v192
    %v361 = vpack.c.bf16 %v197, %v193
    %v362 = vpack.c.bf16 %v202, %v198
    %v363 = vpack.c.bf16 %v203, %v199
    %v364 = vpack.c.bf16 %v204, %v200
    %v365 = vpack.c.bf16 %v205, %v201
    %v366 = vpack.c.bf16 %v210, %v206
    %v367 = vpack.c.bf16 %v211, %v207
    %v368 = vpack.c.bf16 %v212, %v208
    %v369 = vpack.c.bf16 %v213, %v209
    %v370 = vpack.c.bf16 %v218, %v214
    %v371 = vpack.c.bf16 %v219, %v215
    %v372 = vpack.c.bf16 %v220, %v216
    %v373 = vpack.c.bf16 %v221, %v217
    %v374 = vpack.c.bf16 %v226, %v222
    %v375 = vpack.c.bf16 %v227, %v223
    %v376 = vpack.c.bf16 %v228, %v224
    %v377 = vpack.c.bf16 %v229, %v225
    %v378 = vpack.c.bf16 %v234, %v230
    %v379 = vpack.c.bf16 %v235, %v231
    %v380 = vpack.c.bf16 %v236, %v232
    %v381 = vpack.c.bf16 %v237, %v233
    %v382 = vpack.c.bf16 %v242, %v238
    %v383 = vpack.c.bf16 %v243, %v239
    %v384 = vpack.c.bf16 %v244, %v240
    %v385 = vpack.c.bf16 %v245, %v241
    %v386 = vpack.c.bf16 %v250, %v246
    %v387 = vpack.c.bf16 %v251, %v247
    %v388 = vpack.c.bf16 %v252, %v248
    %v389 = vpack.c.bf16 %v253, %v249
    %v390 = vpack.c.bf16 %v258, %v254
    %v391 = vpack.c.bf16 %v259, %v255
    %v392 = vpack.c.bf16 %v260, %v256
    %v393 = vpack.c.bf16 %v261, %v257
    %v394 = vpack.c.bf16 %v266, %v262
    %v395 = vpack.c.bf16 %v267, %v263
    %v396 = vpack.c.bf16 %v268, %v264
    %v397 = vpack.c.bf16 %v269, %v265
    %v398 = vpack.c.bf16 %v274, %v270
    %v399 = vpack.c.bf16 %v275, %v271
    %v400 = vpack.c.bf16 %v276, %v272
    %v401 = vpack.c.bf16 %v277, %v273
    %v402 = vpack.c.bf16 %v282, %v278
    %v403 = vpack.c.bf16 %v283, %v279
    %v404 = vpack.c.bf16 %v284, %v280
    %v405 = vpack.c.bf16 %v285, %v281
    %v406 = vld [vmem:[%s1] sm:$0xf]
    %v407 = vld [vmem:[%s1 + $0x4] sm:$0xf]
    %v408 = vld [vmem:[%s1 + $0x8] sm:$0xf]
    %v409 = vld [vmem:[%s1 + $0xc] sm:$0xf]
    %v410 = vld [vmem:[%s1 + $0x10] sm:$0xf]
    %v411 = vld [vmem:[%s1 + $0x14] sm:$0xf]
    %v412 = vld [vmem:[%s1 + $0x18] sm:$0xf]
    %v413 = vld [vmem:[%s1 + $0x1c] sm:$0xf]
    %v414 = vld [vmem:[%s1 + $0x20] sm:$0xf]
    %v415 = vld [vmem:[%s1 + $0x24] sm:$0xf]
    %v416 = vld [vmem:[%s1 + $0x28] sm:$0xf]
    %v417 = vld [vmem:[%s1 + $0x2c] sm:$0xf]
    %v418 = vld [vmem:[%s1 + $0x30] sm:$0xf]
    %v419 = vld [vmem:[%s1 + $0x34] sm:$0xf]
    %v420 = vld [vmem:[%s1 + $0x38] sm:$0xf]
    %v421 = vld [vmem:[%s1 + $0x3c] sm:$0xf]
    %v422 = vld [vmem:[%s1 + $0x40] sm:$0xf]
    %v423 = vld [vmem:[%s1 + $0x44] sm:$0xf]
    %v424 = vld [vmem:[%s1 + $0x48] sm:$0xf]
    %v425 = vld [vmem:[%s1 + $0x4c] sm:$0xf]
    %v426 = vld [vmem:[%s1 + $0x50] sm:$0xf]
    %v427 = vld [vmem:[%s1 + $0x54] sm:$0xf]
    %v428 = vld [vmem:[%s1 + $0x58] sm:$0xf]
    %v429 = vld [vmem:[%s1 + $0x5c] sm:$0xf]
    %v430 = vld [vmem:[%s1 + $0x60] sm:$0xf]
    %v431 = vld [vmem:[%s1 + $0x64] sm:$0xf]
    %v432 = vld [vmem:[%s1 + $0x68] sm:$0xf]
    %v433 = vld [vmem:[%s1 + $0x6c] sm:$0xf]
    %v434 = vld [vmem:[%s1 + $0x70] sm:$0xf]
    %v435 = vld [vmem:[%s1 + $0x74] sm:$0xf]
    %v436 = vld [vmem:[%s1 + $0x78] sm:$0xf]
    %v437 = vld [vmem:[%s1 + $0x7c] sm:$0xf]
    %v438 = vld [vmem:[%s1 + $0x80] sm:$0xf]
    %v439 = vld [vmem:[%s1 + $0x84] sm:$0xf]
    %v440 = vld [vmem:[%s1 + $0x88] sm:$0xf]
    %v441 = vld [vmem:[%s1 + $0x8c] sm:$0xf]
    %v442 = vld [vmem:[%s1 + $0x90] sm:$0xf]
    %v443 = vld [vmem:[%s1 + $0x94] sm:$0xf]
    %v444 = vld [vmem:[%s1 + $0x98] sm:$0xf]
    %v445 = vld [vmem:[%s1 + $0x9c] sm:$0xf]
    %v446 = vld [vmem:[%s1 + $0xa0] sm:$0xf]
    %v447 = vld [vmem:[%s1 + $0xa4] sm:$0xf]
    %v448 = vld [vmem:[%s1 + $0xa8] sm:$0xf]
    %v449 = vld [vmem:[%s1 + $0xac] sm:$0xf]
    %v450 = vld [vmem:[%s1 + $0xb0] sm:$0xf]
    %v451 = vld [vmem:[%s1 + $0xb4] sm:$0xf]
    %v452 = vld [vmem:[%s1 + $0xb8] sm:$0xf]
    %v453 = vld [vmem:[%s1 + $0xbc] sm:$0xf]
    %v454 = vld [vmem:[%s1 + $0xc0] sm:$0xf]
    %v455 = vld [vmem:[%s1 + $0xc4] sm:$0xf]
    %v456 = vld [vmem:[%s1 + $0xc8] sm:$0xf]
    %v457 = vld [vmem:[%s1 + $0xcc] sm:$0xf]
    %v458 = vld [vmem:[%s1 + $0xd0] sm:$0xf]
    %v459 = vld [vmem:[%s1 + $0xd4] sm:$0xf]
    %v460 = vld [vmem:[%s1 + $0xd8] sm:$0xf]
    %v461 = vld [vmem:[%s1 + $0xdc] sm:$0xf]
    %v462 = vld [vmem:[%s1 + $0xe0] sm:$0xf]
    %v463 = vld [vmem:[%s1 + $0xe4] sm:$0xf]
    %v464 = vld [vmem:[%s1 + $0xe8] sm:$0xf]
    %v465 = vld [vmem:[%s1 + $0xec] sm:$0xf]
    %v466 = vld [vmem:[%s1 + $0xf0] sm:$0xf]
    %v467 = vld [vmem:[%s1 + $0xf4] sm:$0xf]
    %v468 = vld [vmem:[%s1 + $0xf8] sm:$0xf]
    %v469 = vld [vmem:[%s1 + $0xfc] sm:$0xf]
    %v534 = vunpack.c.l.b16 %v406
    %v535 = vunpack.c.l.b16 %v407
    %v536 = vunpack.c.l.b16 %v408
    %v537 = vunpack.c.l.b16 %v409
    %v538 = vunpack.c.l.b16 %v410
    %v539 = vunpack.c.l.b16 %v411
    %v540 = vunpack.c.l.b16 %v412
    %v541 = vunpack.c.l.b16 %v413
    %v542 = vunpack.c.l.b16 %v414
    %v543 = vunpack.c.l.b16 %v415
    %v544 = vunpack.c.l.b16 %v416
    %v545 = vunpack.c.l.b16 %v417
    %v546 = vunpack.c.l.b16 %v418
    %v547 = vunpack.c.l.b16 %v419
    %v548 = vunpack.c.l.b16 %v420
    %v549 = vunpack.c.l.b16 %v421
    %v550 = vunpack.c.l.b16 %v422
    %v551 = vunpack.c.l.b16 %v423
    %v552 = vunpack.c.l.b16 %v424
    %v553 = vunpack.c.l.b16 %v425
    %v554 = vunpack.c.l.b16 %v426
    %v555 = vunpack.c.l.b16 %v427
    %v556 = vunpack.c.l.b16 %v428
    %v557 = vunpack.c.l.b16 %v429
    %v558 = vunpack.c.l.b16 %v430
    %v559 = vunpack.c.l.b16 %v431
    %v560 = vunpack.c.l.b16 %v432
    %v561 = vunpack.c.l.b16 %v433
    %v562 = vunpack.c.l.b16 %v434
    %v563 = vunpack.c.l.b16 %v435
    %v564 = vunpack.c.l.b16 %v436
    %v565 = vunpack.c.l.b16 %v437
    %v566 = vunpack.c.l.b16 %v438
    %v567 = vunpack.c.l.b16 %v439
    %v568 = vunpack.c.l.b16 %v440
    %v569 = vunpack.c.l.b16 %v441
    %v570 = vunpack.c.l.b16 %v442
    %v571 = vunpack.c.l.b16 %v443
    %v572 = vunpack.c.l.b16 %v444
    %v573 = vunpack.c.l.b16 %v445
    %v574 = vunpack.c.l.b16 %v446
    %v575 = vunpack.c.l.b16 %v447
    %v576 = vunpack.c.l.b16 %v448
    %v577 = vunpack.c.l.b16 %v449
    %v578 = vunpack.c.l.b16 %v450
    %v579 = vunpack.c.l.b16 %v451
    %v580 = vunpack.c.l.b16 %v452
    %v581 = vunpack.c.l.b16 %v453
    %v582 = vunpack.c.l.b16 %v454
    %v583 = vunpack.c.l.b16 %v455
    %v584 = vunpack.c.l.b16 %v456
    %v585 = vunpack.c.l.b16 %v457
    %v586 = vunpack.c.l.b16 %v458
    %v587 = vunpack.c.l.b16 %v459
    %v588 = vunpack.c.l.b16 %v460
    %v589 = vunpack.c.l.b16 %v461
    %v590 = vunpack.c.l.b16 %v462
    %v591 = vunpack.c.l.b16 %v463
    %v592 = vunpack.c.l.b16 %v464
    %v593 = vunpack.c.l.b16 %v465
    %v594 = vunpack.c.l.b16 %v466
    %v595 = vunpack.c.l.b16 %v467
    %v596 = vunpack.c.l.b16 %v468
    %v597 = vunpack.c.l.b16 %v469
    %v598 = vpack.c.b16 %v535, %v534
    %v599 = vpack.c.b16 %v537, %v536
    %v600 = vpack.c.b16 %v539, %v538
    %v601 = vpack.c.b16 %v541, %v540
    %v602 = vpack.c.b16 %v543, %v542
    %v603 = vpack.c.b16 %v545, %v544
    %v604 = vpack.c.b16 %v547, %v546
    %v605 = vpack.c.b16 %v549, %v548
    %v606 = vpack.c.b16 %v551, %v550
    %v607 = vpack.c.b16 %v553, %v552
    %v608 = vpack.c.b16 %v555, %v554
    %v609 = vpack.c.b16 %v557, %v556
    %v610 = vpack.c.b16 %v559, %v558
    %v611 = vpack.c.b16 %v561, %v560
    %v612 = vpack.c.b16 %v563, %v562
    %v613 = vpack.c.b16 %v565, %v564
    %v614 = vpack.c.b16 %v567, %v566
    %v615 = vpack.c.b16 %v569, %v568
    %v616 = vpack.c.b16 %v571, %v570
    %v617 = vpack.c.b16 %v573, %v572
    %v618 = vpack.c.b16 %v575, %v574
    %v619 = vpack.c.b16 %v577, %v576
    %v620 = vpack.c.b16 %v579, %v578
    %v621 = vpack.c.b16 %v581, %v580
    %v622 = vpack.c.b16 %v583, %v582
    %v623 = vpack.c.b16 %v585, %v584
    %v624 = vpack.c.b16 %v587, %v586
    %v625 = vpack.c.b16 %v589, %v588
    %v626 = vpack.c.b16 %v591, %v590
    %v627 = vpack.c.b16 %v593, %v592
    %v628 = vpack.c.b16 %v595, %v594
    %v629 = vpack.c.b16 %v597, %v596
    %662 = vmatprep.subr.bf16.mxu0 0
    %663 = vmatpush1.bf16.msra.mxu0 %v605
    %664 = vmatprep.subr.bf16.mxu0 0
    %665 = vmatpush1.bf16.msra.mxu0 %v604
    %666 = vmatprep.subr.bf16.mxu0 0
    %667 = vmatpush1.bf16.msra.mxu0 %v603
    %668 = vmatprep.subr.bf16.mxu0 0
    %669 = vmatpush1.bf16.msra.mxu0 %v602
    %670 = vmatprep.subr.bf16.mxu0 0
    %671 = vmatpush1.bf16.msra.mxu0 %v601
    %672 = vmatprep.subr.bf16.mxu0 0
    %673 = vmatpush1.bf16.msra.mxu0 %v600
    %674 = vmatprep.subr.bf16.mxu0 0
    %675 = vmatpush1.bf16.msra.mxu0 %v599
    %676 = vmatprep.subr.bf16.mxu0 0
    %677 = vmatpush1.bf16.msra.mxu0 %v598
    %678 = vmatprep.subr.bf16.mxu0 0
    %679 = vmatpush2.bf16.msra.mxu0 %v613
    %680 = vmatprep.subr.bf16.mxu0 0
    %681 = vmatpush2.bf16.msra.mxu0 %v612
    %682 = vmatprep.subr.bf16.mxu0 0
    %683 = vmatpush2.bf16.msra.mxu0 %v611
    %684 = vmatprep.subr.bf16.mxu0 0
    %685 = vmatpush2.bf16.msra.mxu0 %v610
    %686 = vmatprep.subr.bf16.mxu0 0
    %687 = vmatpush2.bf16.msra.mxu0 %v609
    %688 = vmatprep.subr.bf16.mxu0 0
    %689 = vmatpush2.bf16.msra.mxu0 %v608
    %690 = vmatprep.subr.bf16.mxu0 0
    %691 = vmatpush2.bf16.msra.mxu0 %v607
    %692 = vmatprep.subr.bf16.mxu0 0
    %693 = vmatpush2.bf16.msra.mxu0 %v606
    %694 = vmatprep.mubr.bf16.mxu0 %v287
    %695 = vmatmul.mubr.bf16.gmra.mxu0 %v286
    %v696 = vpop.f32.mrf.mxu0
    %v697 = vadd.f32 0.0, %v696
    %v698 = vpop.f32.mrf.mxu0
    %v699 = vpop.f32.mrf.mxu0
    %v700 = vadd.f32 0.0, %v699
    %v701 = vpop.f32.mrf.mxu0
    %702 = vmatprep.mubr.bf16.mxu0 %v291
    %703 = vmatmul.mubr.bf16.gmra.mxu0 %v290
    %v704 = vpop.f32.mrf.mxu0
    %v705 = vadd.f32 0.0, %v704
    %v706 = vpop.f32.mrf.mxu0
    %v707 = vpop.f32.mrf.mxu0
    %v708 = vadd.f32 0.0, %v707
    %v709 = vpop.f32.mrf.mxu0
    %710 = vmatprep.mubr.bf16.mxu0 %v295
    %711 = vmatmul.mubr.bf16.gmra.mxu0 %v294
    %v712 = vpop.f32.mrf.mxu0
    %v713 = vadd.f32 0.0, %v712
    %v714 = vpop.f32.mrf.mxu0
    %v715 = vpop.f32.mrf.mxu0
    %v716 = vadd.f32 0.0, %v715
    %v717 = vpop.f32.mrf.mxu0
    %718 = vmatprep.mubr.bf16.mxu0 %v299
    %719 = vmatmul.mubr.bf16.gmra.mxu0 %v298
    %v720 = vpop.f32.mrf.mxu0
    %v721 = vadd.f32 0.0, %v720
    %v722 = vpop.f32.mrf.mxu0
    %v723 = vpop.f32.mrf.mxu0
    %v724 = vadd.f32 0.0, %v723
    %v725 = vpop.f32.mrf.mxu0
    %726 = vmatprep.mubr.bf16.mxu0 %v303
    %727 = vmatmul.mubr.bf16.gmra.mxu0 %v302
    %v728 = vpop.f32.mrf.mxu0
    %v729 = vadd.f32 0.0, %v728
    %v730 = vpop.f32.mrf.mxu0
    %v731 = vpop.f32.mrf.mxu0
    %v732 = vadd.f32 0.0, %v731
    %v733 = vpop.f32.mrf.mxu0
    %734 = vmatprep.mubr.bf16.mxu0 %v307
    %735 = vmatmul.mubr.bf16.gmra.mxu0 %v306
    %v736 = vpop.f32.mrf.mxu0
    %v737 = vadd.f32 0.0, %v736
    %v738 = vpop.f32.mrf.mxu0
    %v739 = vpop.f32.mrf.mxu0
    %v740 = vadd.f32 0.0, %v739
    %v741 = vpop.f32.mrf.mxu0
    %742 = vmatprep.mubr.bf16.mxu0 %v311
    %743 = vmatmul.mubr.bf16.gmra.mxu0 %v310
    %v744 = vpop.f32.mrf.mxu0
    %v745 = vadd.f32 0.0, %v744
    %v746 = vpop.f32.mrf.mxu0
    %v747 = vpop.f32.mrf.mxu0
    %v748 = vadd.f32 0.0, %v747
    %v749 = vpop.f32.mrf.mxu0
    %750 = vmatprep.mubr.bf16.mxu0 %v315
    %751 = vmatmul.mubr.bf16.gmra.mxu0 %v314
    %v752 = vpop.f32.mrf.mxu0
    %v753 = vadd.f32 0.0, %v752
    %v754 = vpop.f32.mrf.mxu0
    %v755 = vpop.f32.mrf.mxu0
    %v756 = vadd.f32 0.0, %v755
    %v757 = vpop.f32.mrf.mxu0
    %758 = vmatprep.mubr.bf16.mxu0 %v319
    %759 = vmatmul.mubr.bf16.gmra.mxu0 %v318
    %v760 = vpop.f32.mrf.mxu0
    %v761 = vadd.f32 0.0, %v760
    %v762 = vpop.f32.mrf.mxu0
    %v763 = vpop.f32.mrf.mxu0
    %v764 = vadd.f32 0.0, %v763
    %v765 = vpop.f32.mrf.mxu0
    %766 = vmatprep.mubr.bf16.mxu0 %v323
    %767 = vmatmul.mubr.bf16.gmra.mxu0 %v322
    %v768 = vpop.f32.mrf.mxu0
    %v769 = vadd.f32 0.0, %v768
    %v770 = vpop.f32.mrf.mxu0
    %v771 = vpop.f32.mrf.mxu0
    %v772 = vadd.f32 0.0, %v771
    %v773 = vpop.f32.mrf.mxu0
    %774 = vmatprep.mubr.bf16.mxu0 %v327
    %775 = vmatmul.mubr.bf16.gmra.mxu0 %v326
    %v776 = vpop.f32.mrf.mxu0
    %v777 = vadd.f32 0.0, %v776
    %v778 = vpop.f32.mrf.mxu0
    %v779 = vpop.f32.mrf.mxu0
    %v780 = vadd.f32 0.0, %v779
    %v781 = vpop.f32.mrf.mxu0
    %782 = vmatprep.mubr.bf16.mxu0 %v331
    %783 = vmatmul.mubr.bf16.gmra.mxu0 %v330
    %v784 = vpop.f32.mrf.mxu0
    %v785 = vadd.f32 0.0, %v784
    %v786 = vpop.f32.mrf.mxu0
    %v787 = vpop.f32.mrf.mxu0
    %v788 = vadd.f32 0.0, %v787
    %v789 = vpop.f32.mrf.mxu0
    %790 = vmatprep.mubr.bf16.mxu0 %v335
    %791 = vmatmul.mubr.bf16.gmra.mxu0 %v334
    %v792 = vpop.f32.mrf.mxu0
    %v793 = vadd.f32 0.0, %v792
    %v794 = vpop.f32.mrf.mxu0
    %v795 = vpop.f32.mrf.mxu0
    %v796 = vadd.f32 0.0, %v795
    %v797 = vpop.f32.mrf.mxu0
    %798 = vmatprep.mubr.bf16.mxu0 %v339
    %799 = vmatmul.mubr.bf16.gmra.mxu0 %v338
    %v800 = vpop.f32.mrf.mxu0
    %v801 = vadd.f32 0.0, %v800
    %v802 = vpop.f32.mrf.mxu0
    %v803 = vpop.f32.mrf.mxu0
    %v804 = vadd.f32 0.0, %v803
    %v805 = vpop.f32.mrf.mxu0
    %806 = vmatprep.mubr.bf16.mxu0 %v343
    %807 = vmatmul.mubr.bf16.gmra.mxu0 %v342
    %v808 = vpop.f32.mrf.mxu0
    %v809 = vadd.f32 0.0, %v808
    %v810 = vpop.f32.mrf.mxu0
    %v811 = vpop.f32.mrf.mxu0
    %v812 = vadd.f32 0.0, %v811
    %v813 = vpop.f32.mrf.mxu0
    %814 = vmatprep.mubr.bf16.mxu0 %v347
    %815 = vmatmul.mubr.bf16.gmra.mxu0 %v346
    %v816 = vpop.f32.mrf.mxu0
    %v817 = vadd.f32 0.0, %v816
    %v818 = vpop.f32.mrf.mxu0
    %v819 = vpop.f32.mrf.mxu0
    %v820 = vadd.f32 0.0, %v819
    %v821 = vpop.f32.mrf.mxu0
    %822 = vmatprep.mubr.bf16.mxu0 %v351
    %823 = vmatmul.mubr.bf16.gmra.mxu0 %v350
    %v824 = vpop.f32.mrf.mxu0
    %v825 = vadd.f32 0.0, %v824
    %v826 = vpop.f32.mrf.mxu0
    %v827 = vpop.f32.mrf.mxu0
    %v828 = vadd.f32 0.0, %v827
    %v829 = vpop.f32.mrf.mxu0
    %830 = vmatprep.mubr.bf16.mxu0 %v355
    %831 = vmatmul.mubr.bf16.gmra.mxu0 %v354
    %v832 = vpop.f32.mrf.mxu0
    %v833 = vadd.f32 0.0, %v832
    %v834 = vpop.f32.mrf.mxu0
    %v835 = vpop.f32.mrf.mxu0
    %v836 = vadd.f32 0.0, %v835
    %v837 = vpop.f32.mrf.mxu0
    %838 = vmatprep.mubr.bf16.mxu0 %v359
    %839 = vmatmul.mubr.bf16.gmra.mxu0 %v358
    %v840 = vpop.f32.mrf.mxu0
    %v841 = vadd.f32 0.0, %v840
    %v842 = vpop.f32.mrf.mxu0
    %v843 = vpop.f32.mrf.mxu0
    %v844 = vadd.f32 0.0, %v843
    %v845 = vpop.f32.mrf.mxu0
    %846 = vmatprep.mubr.bf16.mxu0 %v363
    %847 = vmatmul.mubr.bf16.gmra.mxu0 %v362
    %v848 = vpop.f32.mrf.mxu0
    %v849 = vadd.f32 0.0, %v848
    %v850 = vpop.f32.mrf.mxu0
    %v851 = vpop.f32.mrf.mxu0
    %v852 = vadd.f32 0.0, %v851
    %v853 = vpop.f32.mrf.mxu0
    %854 = vmatprep.mubr.bf16.mxu0 %v367
    %855 = vmatmul.mubr.bf16.gmra.mxu0 %v366
    %v856 = vpop.f32.mrf.mxu0
    %v857 = vadd.f32 0.0, %v856
    %v858 = vpop.f32.mrf.mxu0
    %v859 = vpop.f32.mrf.mxu0
    %v860 = vadd.f32 0.0, %v859
    %v861 = vpop.f32.mrf.mxu0
    %862 = vmatprep.mubr.bf16.mxu0 %v371
    %863 = vmatmul.mubr.bf16.gmra.mxu0 %v370
    %v864 = vpop.f32.mrf.mxu0
    %v865 = vadd.f32 0.0, %v864
    %v866 = vpop.f32.mrf.mxu0
    %v867 = vpop.f32.mrf.mxu0
    %v868 = vadd.f32 0.0, %v867
    %v869 = vpop.f32.mrf.mxu0
    %870 = vmatprep.mubr.bf16.mxu0 %v375
    %871 = vmatmul.mubr.bf16.gmra.mxu0 %v374
    %v872 = vpop.f32.mrf.mxu0
    %v873 = vadd.f32 0.0, %v872
    %v874 = vpop.f32.mrf.mxu0
    %v875 = vpop.f32.mrf.mxu0
    %v876 = vadd.f32 0.0, %v875
    %v877 = vpop.f32.mrf.mxu0
    %878 = vmatprep.mubr.bf16.mxu0 %v379
    %879 = vmatmul.mubr.bf16.gmra.mxu0 %v378
    %v880 = vpop.f32.mrf.mxu0
    %v881 = vadd.f32 0.0, %v880
    %v882 = vpop.f32.mrf.mxu0
    %v883 = vpop.f32.mrf.mxu0
    %v884 = vadd.f32 0.0, %v883
    %v885 = vpop.f32.mrf.mxu0
    %886 = vmatprep.mubr.bf16.mxu0 %v383
    %887 = vmatmul.mubr.bf16.gmra.mxu0 %v382
    %v888 = vpop.f32.mrf.mxu0
    %v889 = vadd.f32 0.0, %v888
    %v890 = vpop.f32.mrf.mxu0
    %v891 = vpop.f32.mrf.mxu0
    %v892 = vadd.f32 0.0, %v891
    %v893 = vpop.f32.mrf.mxu0
    %894 = vmatprep.mubr.bf16.mxu0 %v387
    %895 = vmatmul.mubr.bf16.gmra.mxu0 %v386
    %v896 = vpop.f32.mrf.mxu0
    %v897 = vadd.f32 0.0, %v896
    %v898 = vpop.f32.mrf.mxu0
    %v899 = vpop.f32.mrf.mxu0
    %v900 = vadd.f32 0.0, %v899
    %v901 = vpop.f32.mrf.mxu0
    %902 = vmatprep.mubr.bf16.mxu0 %v391
    %903 = vmatmul.mubr.bf16.gmra.mxu0 %v390
    %v904 = vpop.f32.mrf.mxu0
    %v905 = vadd.f32 0.0, %v904
    %v906 = vpop.f32.mrf.mxu0
    %v907 = vpop.f32.mrf.mxu0
    %v908 = vadd.f32 0.0, %v907
    %v909 = vpop.f32.mrf.mxu0
    %910 = vmatprep.mubr.bf16.mxu0 %v395
    %911 = vmatmul.mubr.bf16.gmra.mxu0 %v394
    %v912 = vpop.f32.mrf.mxu0
    %v913 = vadd.f32 0.0, %v912
    %v914 = vpop.f32.mrf.mxu0
    %v915 = vpop.f32.mrf.mxu0
    %v916 = vadd.f32 0.0, %v915
    %v917 = vpop.f32.mrf.mxu0
    %918 = vmatprep.mubr.bf16.mxu0 %v399
    %919 = vmatmul.mubr.bf16.gmra.mxu0 %v398
    %v920 = vpop.f32.mrf.mxu0
    %v921 = vadd.f32 0.0, %v920
    %v922 = vpop.f32.mrf.mxu0
    %v923 = vpop.f32.mrf.mxu0
    %v924 = vadd.f32 0.0, %v923
    %v925 = vpop.f32.mrf.mxu0
    %926 = vmatprep.mubr.bf16.mxu0 %v403
    %927 = vmatmul.mubr.bf16.gmra.mxu0 %v402
    %v928 = vpop.f32.mrf.mxu0
    %v929 = vadd.f32 0.0, %v928
    %v930 = vpop.f32.mrf.mxu0
    %v931 = vpop.f32.mrf.mxu0
    %v932 = vadd.f32 0.0, %v931
    %v933 = vpop.f32.mrf.mxu0
    %934 = vdwg.mxu0
    %935 = vmatprep.subr.bf16.mxu0 0
    %936 = vmatpush1.bf16.msra.mxu0 %v621
    %937 = vmatprep.subr.bf16.mxu0 0
    %938 = vmatpush1.bf16.msra.mxu0 %v620
    %939 = vmatprep.subr.bf16.mxu0 0
    %940 = vmatpush1.bf16.msra.mxu0 %v619
    %941 = vmatprep.subr.bf16.mxu0 0
    %942 = vmatpush1.bf16.msra.mxu0 %v618
    %943 = vmatprep.subr.bf16.mxu0 0
    %944 = vmatpush1.bf16.msra.mxu0 %v617
    %945 = vmatprep.subr.bf16.mxu0 0
    %946 = vmatpush1.bf16.msra.mxu0 %v616
    %947 = vmatprep.subr.bf16.mxu0 0
    %948 = vmatpush1.bf16.msra.mxu0 %v615
    %949 = vmatprep.subr.bf16.mxu0 0
    %950 = vmatpush1.bf16.msra.mxu0 %v614
    %951 = vmatprep.subr.bf16.mxu0 0
    %952 = vmatpush2.bf16.msra.mxu0 %v629
    %953 = vmatprep.subr.bf16.mxu0 0
    %954 = vmatpush2.bf16.msra.mxu0 %v628
    %955 = vmatprep.subr.bf16.mxu0 0
    %956 = vmatpush2.bf16.msra.mxu0 %v627
    %957 = vmatprep.subr.bf16.mxu0 0
    %958 = vmatpush2.bf16.msra.mxu0 %v626
    %959 = vmatprep.subr.bf16.mxu0 0
    %960 = vmatpush2.bf16.msra.mxu0 %v625
    %961 = vmatprep.subr.bf16.mxu0 0
    %962 = vmatpush2.bf16.msra.mxu0 %v624
    %963 = vmatprep.subr.bf16.mxu0 0
    %964 = vmatpush2.bf16.msra.mxu0 %v623
    %965 = vmatprep.subr.bf16.mxu0 0
    %966 = vmatpush2.bf16.msra.mxu0 %v622
    %967 = vmatprep.mubr.bf16.mxu0 %v289
    %968 = vmatmul.mubr.bf16.gmra.mxu0 %v288
    %v969 = vpop.f32.mrf.mxu0
    %v970 = vadd.f32 %v697, %v969
    %v971 = vpop.f32.mrf.mxu0
    %v972 = vpop.f32.mrf.mxu0
    %v973 = vadd.f32 %v700, %v972
    %v974 = vpop.f32.mrf.mxu0
    %975 = vmatprep.mubr.bf16.mxu0 %v293
    %976 = vmatmul.mubr.bf16.gmra.mxu0 %v292
    %v977 = vpop.f32.mrf.mxu0
    %v978 = vadd.f32 %v705, %v977
    %v979 = vpop.f32.mrf.mxu0
    %v980 = vpop.f32.mrf.mxu0
    %v981 = vadd.f32 %v708, %v980
    %v982 = vpop.f32.mrf.mxu0
    %983 = vmatprep.mubr.bf16.mxu0 %v297
    %984 = vmatmul.mubr.bf16.gmra.mxu0 %v296
    %v985 = vpop.f32.mrf.mxu0
    %v986 = vadd.f32 %v713, %v985
    %v987 = vpop.f32.mrf.mxu0
    %v988 = vpop.f32.mrf.mxu0
    %v989 = vadd.f32 %v716, %v988
    %v990 = vpop.f32.mrf.mxu0
    %991 = vmatprep.mubr.bf16.mxu0 %v301
    %992 = vmatmul.mubr.bf16.gmra.mxu0 %v300
    %v993 = vpop.f32.mrf.mxu0
    %v994 = vadd.f32 %v721, %v993
    %v995 = vpop.f32.mrf.mxu0
    %v996 = vpop.f32.mrf.mxu0
    %v997 = vadd.f32 %v724, %v996
    %v998 = vpop.f32.mrf.mxu0
    %999 = vmatprep.mubr.bf16.mxu0 %v305
    %1000 = vmatmul.mubr.bf16.gmra.mxu0 %v304
    %v1001 = vpop.f32.mrf.mxu0
    %v1002 = vadd.f32 %v729, %v1001
    %v1003 = vpop.f32.mrf.mxu0
    %v1004 = vpop.f32.mrf.mxu0
    %v1005 = vadd.f32 %v732, %v1004
    %v1006 = vpop.f32.mrf.mxu0
    %1007 = vmatprep.mubr.bf16.mxu0 %v309
    %1008 = vmatmul.mubr.bf16.gmra.mxu0 %v308
    %v1009 = vpop.f32.mrf.mxu0
    %v1010 = vadd.f32 %v737, %v1009
    %v1011 = vpop.f32.mrf.mxu0
    %v1012 = vpop.f32.mrf.mxu0
    %v1013 = vadd.f32 %v740, %v1012
    %v1014 = vpop.f32.mrf.mxu0
    %1015 = vmatprep.mubr.bf16.mxu0 %v313
    %1016 = vmatmul.mubr.bf16.gmra.mxu0 %v312
    %v1017 = vpop.f32.mrf.mxu0
    %v1018 = vadd.f32 %v745, %v1017
    %v1019 = vpop.f32.mrf.mxu0
    %v1020 = vpop.f32.mrf.mxu0
    %v1021 = vadd.f32 %v748, %v1020
    %v1022 = vpop.f32.mrf.mxu0
    %1023 = vmatprep.mubr.bf16.mxu0 %v317
    %1024 = vmatmul.mubr.bf16.gmra.mxu0 %v316
    %v1025 = vpop.f32.mrf.mxu0
    %v1026 = vadd.f32 %v753, %v1025
    %v1027 = vpop.f32.mrf.mxu0
    %v1028 = vpop.f32.mrf.mxu0
    %v1029 = vadd.f32 %v756, %v1028
    %v1030 = vpop.f32.mrf.mxu0
    %1031 = vmatprep.mubr.bf16.mxu0 %v321
    %1032 = vmatmul.mubr.bf16.gmra.mxu0 %v320
    %v1033 = vpop.f32.mrf.mxu0
    %v1034 = vadd.f32 %v761, %v1033
    %v1035 = vpop.f32.mrf.mxu0
    %v1036 = vpop.f32.mrf.mxu0
    %v1037 = vadd.f32 %v764, %v1036
    %v1038 = vpop.f32.mrf.mxu0
    %1039 = vmatprep.mubr.bf16.mxu0 %v325
    %1040 = vmatmul.mubr.bf16.gmra.mxu0 %v324
    %v1041 = vpop.f32.mrf.mxu0
    %v1042 = vadd.f32 %v769, %v1041
    %v1043 = vpop.f32.mrf.mxu0
    %v1044 = vpop.f32.mrf.mxu0
    %v1045 = vadd.f32 %v772, %v1044
    %v1046 = vpop.f32.mrf.mxu0
    %1047 = vmatprep.mubr.bf16.mxu0 %v329
    %1048 = vmatmul.mubr.bf16.gmra.mxu0 %v328
    %v1049 = vpop.f32.mrf.mxu0
    %v1050 = vadd.f32 %v777, %v1049
    %v1051 = vpop.f32.mrf.mxu0
    %v1052 = vpop.f32.mrf.mxu0
    %v1053 = vadd.f32 %v780, %v1052
    %v1054 = vpop.f32.mrf.mxu0
    %1055 = vmatprep.mubr.bf16.mxu0 %v333
    %1056 = vmatmul.mubr.bf16.gmra.mxu0 %v332
    %v1057 = vpop.f32.mrf.mxu0
    %v1058 = vadd.f32 %v785, %v1057
    %v1059 = vpop.f32.mrf.mxu0
    %v1060 = vpop.f32.mrf.mxu0
    %v1061 = vadd.f32 %v788, %v1060
    %v1062 = vpop.f32.mrf.mxu0
    %1063 = vmatprep.mubr.bf16.mxu0 %v337
    %1064 = vmatmul.mubr.bf16.gmra.mxu0 %v336
    %v1065 = vpop.f32.mrf.mxu0
    %v1066 = vadd.f32 %v793, %v1065
    %v1067 = vpop.f32.mrf.mxu0
    %v1068 = vpop.f32.mrf.mxu0
    %v1069 = vadd.f32 %v796, %v1068
    %v1070 = vpop.f32.mrf.mxu0
    %1071 = vmatprep.mubr.bf16.mxu0 %v341
    %1072 = vmatmul.mubr.bf16.gmra.mxu0 %v340
    %v1073 = vpop.f32.mrf.mxu0
    %v1074 = vadd.f32 %v801, %v1073
    %v1075 = vpop.f32.mrf.mxu0
    %v1076 = vpop.f32.mrf.mxu0
    %v1077 = vadd.f32 %v804, %v1076
    %v1078 = vpop.f32.mrf.mxu0
    %1079 = vmatprep.mubr.bf16.mxu0 %v345
    %1080 = vmatmul.mubr.bf16.gmra.mxu0 %v344
    %v1081 = vpop.f32.mrf.mxu0
    %v1082 = vadd.f32 %v809, %v1081
    %v1083 = vpop.f32.mrf.mxu0
    %v1084 = vpop.f32.mrf.mxu0
    %v1085 = vadd.f32 %v812, %v1084
    %v1086 = vpop.f32.mrf.mxu0
    %1087 = vmatprep.mubr.bf16.mxu0 %v349
    %1088 = vmatmul.mubr.bf16.gmra.mxu0 %v348
    %v1089 = vpop.f32.mrf.mxu0
    %v1090 = vadd.f32 %v817, %v1089
    %v1091 = vpop.f32.mrf.mxu0
    %v1092 = vpop.f32.mrf.mxu0
    %v1093 = vadd.f32 %v820, %v1092
    %v1094 = vpop.f32.mrf.mxu0
    %1095 = vmatprep.mubr.bf16.mxu0 %v353
    %1096 = vmatmul.mubr.bf16.gmra.mxu0 %v352
    %v1097 = vpop.f32.mrf.mxu0
    %v1098 = vadd.f32 %v825, %v1097
    %v1099 = vpop.f32.mrf.mxu0
    %v1100 = vpop.f32.mrf.mxu0
    %v1101 = vadd.f32 %v828, %v1100
    %v1102 = vpop.f32.mrf.mxu0
    %1103 = vmatprep.mubr.bf16.mxu0 %v357
    %1104 = vmatmul.mubr.bf16.gmra.mxu0 %v356
    %v1105 = vpop.f32.mrf.mxu0
    %v1106 = vadd.f32 %v833, %v1105
    %v1107 = vpop.f32.mrf.mxu0
    %v1108 = vpop.f32.mrf.mxu0
    %v1109 = vadd.f32 %v836, %v1108
    %v1110 = vpop.f32.mrf.mxu0
    %1111 = vmatprep.mubr.bf16.mxu0 %v361
    %1112 = vmatmul.mubr.bf16.gmra.mxu0 %v360
    %v1113 = vpop.f32.mrf.mxu0
    %v1114 = vadd.f32 %v841, %v1113
    %v1115 = vpop.f32.mrf.mxu0
    %v1116 = vpop.f32.mrf.mxu0
    %v1117 = vadd.f32 %v844, %v1116
    %v1118 = vpop.f32.mrf.mxu0
    %1119 = vmatprep.mubr.bf16.mxu0 %v365
    %1120 = vmatmul.mubr.bf16.gmra.mxu0 %v364
    %v1121 = vpop.f32.mrf.mxu0
    %v1122 = vadd.f32 %v849, %v1121
    %v1123 = vpop.f32.mrf.mxu0
    %v1124 = vpop.f32.mrf.mxu0
    %v1125 = vadd.f32 %v852, %v1124
    %v1126 = vpop.f32.mrf.mxu0
    %1127 = vmatprep.mubr.bf16.mxu0 %v369
    %1128 = vmatmul.mubr.bf16.gmra.mxu0 %v368
    %v1129 = vpop.f32.mrf.mxu0
    %v1130 = vadd.f32 %v857, %v1129
    %v1131 = vpop.f32.mrf.mxu0
    %v1132 = vpop.f32.mrf.mxu0
    %v1133 = vadd.f32 %v860, %v1132
    %v1134 = vpop.f32.mrf.mxu0
    %1135 = vmatprep.mubr.bf16.mxu0 %v373
    %1136 = vmatmul.mubr.bf16.gmra.mxu0 %v372
    %v1137 = vpop.f32.mrf.mxu0
    %v1138 = vadd.f32 %v865, %v1137
    %v1139 = vpop.f32.mrf.mxu0
    %v1140 = vpop.f32.mrf.mxu0
    %v1141 = vadd.f32 %v868, %v1140
    %v1142 = vpop.f32.mrf.mxu0
    %1143 = vmatprep.mubr.bf16.mxu0 %v377
    %1144 = vmatmul.mubr.bf16.gmra.mxu0 %v376
    %v1145 = vpop.f32.mrf.mxu0
    %v1146 = vadd.f32 %v873, %v1145
    %v1147 = vpop.f32.mrf.mxu0
    %v1148 = vpop.f32.mrf.mxu0
    %v1149 = vadd.f32 %v876, %v1148
    %v1150 = vpop.f32.mrf.mxu0
    %1151 = vmatprep.mubr.bf16.mxu0 %v381
    %1152 = vmatmul.mubr.bf16.gmra.mxu0 %v380
    %v1153 = vpop.f32.mrf.mxu0
    %v1154 = vadd.f32 %v881, %v1153
    %v1155 = vpop.f32.mrf.mxu0
    %v1156 = vpop.f32.mrf.mxu0
    %v1157 = vadd.f32 %v884, %v1156
    %v1158 = vpop.f32.mrf.mxu0
    %1159 = vmatprep.mubr.bf16.mxu0 %v385
    %1160 = vmatmul.mubr.bf16.gmra.mxu0 %v384
    %v1161 = vpop.f32.mrf.mxu0
    %v1162 = vadd.f32 %v889, %v1161
    %v1163 = vpop.f32.mrf.mxu0
    %v1164 = vpop.f32.mrf.mxu0
    %v1165 = vadd.f32 %v892, %v1164
    %v1166 = vpop.f32.mrf.mxu0
    %1167 = vmatprep.mubr.bf16.mxu0 %v389
    %1168 = vmatmul.mubr.bf16.gmra.mxu0 %v388
    %v1169 = vpop.f32.mrf.mxu0
    %v1170 = vadd.f32 %v897, %v1169
    %v1171 = vpop.f32.mrf.mxu0
    %v1172 = vpop.f32.mrf.mxu0
    %v1173 = vadd.f32 %v900, %v1172
    %v1174 = vpop.f32.mrf.mxu0
    %1175 = vmatprep.mubr.bf16.mxu0 %v393
    %1176 = vmatmul.mubr.bf16.gmra.mxu0 %v392
    %v1177 = vpop.f32.mrf.mxu0
    %v1178 = vadd.f32 %v905, %v1177
    %v1179 = vpop.f32.mrf.mxu0
    %v1180 = vpop.f32.mrf.mxu0
    %v1181 = vadd.f32 %v908, %v1180
    %v1182 = vpop.f32.mrf.mxu0
    %1183 = vmatprep.mubr.bf16.mxu0 %v397
    %1184 = vmatmul.mubr.bf16.gmra.mxu0 %v396
    %v1185 = vpop.f32.mrf.mxu0
    %v1186 = vadd.f32 %v913, %v1185
    %v1187 = vpop.f32.mrf.mxu0
    %v1188 = vpop.f32.mrf.mxu0
    %v1189 = vadd.f32 %v916, %v1188
    %v1190 = vpop.f32.mrf.mxu0
    %1191 = vmatprep.mubr.bf16.mxu0 %v401
    %1192 = vmatmul.mubr.bf16.gmra.mxu0 %v400
    %v1193 = vpop.f32.mrf.mxu0
    %v1194 = vadd.f32 %v921, %v1193
    %v1195 = vpop.f32.mrf.mxu0
    %v1196 = vpop.f32.mrf.mxu0
    %v1197 = vadd.f32 %v924, %v1196
    %v1198 = vpop.f32.mrf.mxu0
    %1199 = vmatprep.mubr.bf16.mxu0 %v405
    %1200 = vmatmul.mubr.bf16.gmra.mxu0 %v404
    %v1201 = vpop.f32.mrf.mxu0
    %v1202 = vadd.f32 %v929, %v1201
    %v1203 = vpop.f32.mrf.mxu0
    %v1204 = vpop.f32.mrf.mxu0
    %v1205 = vadd.f32 %v932, %v1204
    %v1206 = vpop.f32.mrf.mxu0
    %1207 = vdwg.mxu0
    %v1208 = vmax.f32 %v970, %v1029
    %v1209 = vmax.f32 %v973, %v1034
    %v1210 = vmax.f32 %v978, %v1037
    %v1211 = vmax.f32 %v981, %v1042
    %v1212 = vmax.f32 %v986, %v1045
    %v1213 = vmax.f32 %v989, %v1050
    %v1214 = vmax.f32 %v994, %v1053
    %v1215 = vmax.f32 %v997, %v1058
    %v1216 = vmax.f32 %v1002, %v1061
    %v1217 = vmax.f32 %v1005, %v1066
    %v1218 = vmax.f32 %v1010, %v1069
    %v1219 = vmax.f32 %v1013, %v1074
    %v1220 = vmax.f32 %v1018, %v1077
    %v1221 = vmax.f32 %v1021, %v1082
    %v1222 = vmax.f32 %v1026, %v1085
    %v1223 = vmax.f32 %v1090, %v1149
    %v1224 = vmax.f32 %v1093, %v1154
    %v1225 = vmax.f32 %v1098, %v1157
    %v1226 = vmax.f32 %v1101, %v1162
    %v1227 = vmax.f32 %v1106, %v1165
    %v1228 = vmax.f32 %v1109, %v1170
    %v1229 = vmax.f32 %v1114, %v1173
    %v1230 = vmax.f32 %v1117, %v1178
    %v1231 = vmax.f32 %v1122, %v1181
    %v1232 = vmax.f32 %v1125, %v1186
    %v1233 = vmax.f32 %v1130, %v1189
    %v1234 = vmax.f32 %v1133, %v1194
    %v1235 = vmax.f32 %v1138, %v1197
    %v1236 = vmax.f32 %v1141, %v1202
    %v1237 = vmax.f32 %v1146, %v1205
    %v1238 = vmax.f32 %v1208, %v1223
    %v1239 = vmax.f32 %v1209, %v1224
    %v1240 = vmax.f32 %v1210, %v1225
    %v1241 = vmax.f32 %v1211, %v1226
    %v1242 = vmax.f32 %v1212, %v1227
    %v1243 = vmax.f32 %v1213, %v1228
    %v1244 = vmax.f32 %v1214, %v1229
    %v1245 = vmax.f32 %v1215, %v1230
    %v1246 = vmax.f32 %v1216, %v1231
    %v1247 = vmax.f32 %v1217, %v1232
    %v1248 = vmax.f32 %v1218, %v1233
    %v1249 = vmax.f32 %v1219, %v1234
    %v1250 = vmax.f32 %v1220, %v1235
    %v1251 = vmax.f32 %v1221, %v1236
    %v1252 = vmax.f32 %v1222, %v1237
    %v1253 = vld [vmem:[%s2] sm:$0x1]
    %v1255 = vlaneseq
    %v1256 = vshrl.u32 %v1255, 7
    %v1257 = vsub.s32 0, %v1256
    %v1258 = vrot.slane %v1253, %v1257
    %v1260 = vadd.f32 %v1238, %v1258
    %v1261 = vadd.f32 %v1239, %v1258
    %v1262 = vadd.f32 %v1240, %v1258
    %v1263 = vadd.f32 %v1241, %v1258
    %v1264 = vadd.f32 %v1242, %v1258
    %v1265 = vadd.f32 %v1243, %v1258
    %v1266 = vadd.f32 %v1244, %v1258
    %v1267 = vadd.f32 %v1245, %v1258
    %v1268 = vadd.f32 %v1246, %v1258
    %v1269 = vadd.f32 %v1247, %v1258
    %v1270 = vadd.f32 %v1248, %v1258
    %v1271 = vadd.f32 %v1249, %v1258
    %v1272 = vadd.f32 %v1250, %v1258
    %v1273 = vadd.f32 %v1251, %v1258
    %v1274 = vadd.f32 %v1252, %v1258
    %v1275 = vmax.f32 %v1260, 0.0
    %v1276 = vmax.f32 %v1261, 0.0
    %v1277 = vmax.f32 %v1262, 0.0
    %v1278 = vmax.f32 %v1263, 0.0
    %v1279 = vmax.f32 %v1264, 0.0
    %v1280 = vmax.f32 %v1265, 0.0
    %v1281 = vmax.f32 %v1266, 0.0
    %v1282 = vmax.f32 %v1267, 0.0
    %v1283 = vmax.f32 %v1268, 0.0
    %v1284 = vmax.f32 %v1269, 0.0
    %v1285 = vmax.f32 %v1270, 0.0
    %v1286 = vmax.f32 %v1271, 0.0
    %v1287 = vmax.f32 %v1272, 0.0
    %v1288 = vmax.f32 %v1273, 0.0
    %v1289 = vmax.f32 %v1274, 0.0
    %v1290 = vlaneseq
    %v1291 = vshrl.u32 %v1290, 7
    %v1292 = vadd.s32 %v1291, 8
    %v1293 = vadd.s32 %v1291, 16
    %v1294 = vadd.s32 %v1291, 24
    %v1295 = vadd.s32 %v1291, 32
    %v1296 = vadd.s32 %v1291, 40
    %v1297 = vadd.s32 %v1291, 48
    %v1298 = vadd.s32 %v1291, 56
    %v1299 = vadd.s32 %v1291, 64
    %v1300 = vadd.s32 %v1291, 72
    %v1301 = vadd.s32 %v1291, 80
    %v1302 = vadd.s32 %v1291, 88
    %v1303 = vadd.s32 %v1291, 96
    %v1304 = vadd.s32 %v1291, 104
    %v1305 = vadd.s32 %v1291, 112
    %v1306 = vlaneseq
    %v1307 = vand.u32 %v1306, 127
    %vm1308 = vcmp.lt.s32.totalorder %v1291, 0
    %v1309 = vsub.s32 0, %v1291
    %v1310 = vsel %vm1308, %v1309, %v1291
    %v1311 = vmul.u32.u64.compose %v1310, 2863311531
    %v1312 = vextract.low.u32 %v1311
    %v1313 = vextract.high.u32 %v1311
    %v1314 = vshrl.u32 %v1313, 2
    %v1315 = vmul.u32 %v1314, 6
    %v1316 = vsub.s32 %v1310, %v1315
    %v1317 = vsub.s32 0, %v1316
    %v1318 = vsel %vm1308, %v1317, %v1316
    %vm1319 = vcmp.lt.s32.totalorder %v1292, 0
    %v1320 = vsub.s32 0, %v1292
    %v1321 = vsel %vm1319, %v1320, %v1292
    %v1322 = vmul.u32.u64.compose %v1321, 2863311531
    %v1323 = vextract.low.u32 %v1322
    %v1324 = vextract.high.u32 %v1322
    %v1325 = vshrl.u32 %v1324, 2
    %v1326 = vmul.u32 %v1325, 6
    %v1327 = vsub.s32 %v1321, %v1326
    %v1328 = vsub.s32 0, %v1327
    %v1329 = vsel %vm1319, %v1328, %v1327
    %vm1330 = vcmp.lt.s32.totalorder %v1293, 0
    %v1331 = vsub.s32 0, %v1293
    %v1332 = vsel %vm1330, %v1331, %v1293
    %v1333 = vmul.u32.u64.compose %v1332, 2863311531
    %v1334 = vextract.low.u32 %v1333
    %v1335 = vextract.high.u32 %v1333
    %v1336 = vshrl.u32 %v1335, 2
    %v1337 = vmul.u32 %v1336, 6
    %v1338 = vsub.s32 %v1332, %v1337
    %v1339 = vsub.s32 0, %v1338
    %v1340 = vsel %vm1330, %v1339, %v1338
    %vm1341 = vcmp.lt.s32.totalorder %v1294, 0
    %v1342 = vsub.s32 0, %v1294
    %v1343 = vsel %vm1341, %v1342, %v1294
    %v1344 = vmul.u32.u64.compose %v1343, 2863311531
    %v1345 = vextract.low.u32 %v1344
    %v1346 = vextract.high.u32 %v1344
    %v1347 = vshrl.u32 %v1346, 2
    %v1348 = vmul.u32 %v1347, 6
    %v1349 = vsub.s32 %v1343, %v1348
    %v1350 = vsub.s32 0, %v1349
    %v1351 = vsel %vm1341, %v1350, %v1349
    %vm1352 = vcmp.lt.s32.totalorder %v1295, 0
    %v1353 = vsub.s32 0, %v1295
    %v1354 = vsel %vm1352, %v1353, %v1295
    %v1355 = vmul.u32.u64.compose %v1354, 2863311531
    %v1356 = vextract.low.u32 %v1355
    %v1357 = vextract.high.u32 %v1355
    %v1358 = vshrl.u32 %v1357, 2
    %v1359 = vmul.u32 %v1358, 6
    %v1360 = vsub.s32 %v1354, %v1359
    %v1361 = vsub.s32 0, %v1360
    %v1362 = vsel %vm1352, %v1361, %v1360
    %vm1363 = vcmp.lt.s32.totalorder %v1296, 0
    %v1364 = vsub.s32 0, %v1296
    %v1365 = vsel %vm1363, %v1364, %v1296
    %v1366 = vmul.u32.u64.compose %v1365, 2863311531
    %v1367 = vextract.low.u32 %v1366
    %v1368 = vextract.high.u32 %v1366
    %v1369 = vshrl.u32 %v1368, 2
    %v1370 = vmul.u32 %v1369, 6
    %v1371 = vsub.s32 %v1365, %v1370
    %v1372 = vsub.s32 0, %v1371
    %v1373 = vsel %vm1363, %v1372, %v1371
    %vm1374 = vcmp.lt.s32.totalorder %v1297, 0
    %v1375 = vsub.s32 0, %v1297
    %v1376 = vsel %vm1374, %v1375, %v1297
    %v1377 = vmul.u32.u64.compose %v1376, 2863311531
    %v1378 = vextract.low.u32 %v1377
    %v1379 = vextract.high.u32 %v1377
    %v1380 = vshrl.u32 %v1379, 2
    %v1381 = vmul.u32 %v1380, 6
    %v1382 = vsub.s32 %v1376, %v1381
    %v1383 = vsub.s32 0, %v1382
    %v1384 = vsel %vm1374, %v1383, %v1382
    %vm1385 = vcmp.lt.s32.totalorder %v1298, 0
    %v1386 = vsub.s32 0, %v1298
    %v1387 = vsel %vm1385, %v1386, %v1298
    %v1388 = vmul.u32.u64.compose %v1387, 2863311531
    %v1389 = vextract.low.u32 %v1388
    %v1390 = vextract.high.u32 %v1388
    %v1391 = vshrl.u32 %v1390, 2
    %v1392 = vmul.u32 %v1391, 6
    %v1393 = vsub.s32 %v1387, %v1392
    %v1394 = vsub.s32 0, %v1393
    %v1395 = vsel %vm1385, %v1394, %v1393
    %vm1396 = vcmp.lt.s32.totalorder %v1299, 0
    %v1397 = vsub.s32 0, %v1299
    %v1398 = vsel %vm1396, %v1397, %v1299
    %v1399 = vmul.u32.u64.compose %v1398, 2863311531
    %v1400 = vextract.low.u32 %v1399
    %v1401 = vextract.high.u32 %v1399
    %v1402 = vshrl.u32 %v1401, 2
    %v1403 = vmul.u32 %v1402, 6
    %v1404 = vsub.s32 %v1398, %v1403
    %v1405 = vsub.s32 0, %v1404
    %v1406 = vsel %vm1396, %v1405, %v1404
    %vm1407 = vcmp.lt.s32.totalorder %v1300, 0
    %v1408 = vsub.s32 0, %v1300
    %v1409 = vsel %vm1407, %v1408, %v1300
    %v1410 = vmul.u32.u64.compose %v1409, 2863311531
    %v1411 = vextract.low.u32 %v1410
    %v1412 = vextract.high.u32 %v1410
    %v1413 = vshrl.u32 %v1412, 2
    %v1414 = vmul.u32 %v1413, 6
    %v1415 = vsub.s32 %v1409, %v1414
    %v1416 = vsub.s32 0, %v1415
    %v1417 = vsel %vm1407, %v1416, %v1415
    %vm1418 = vcmp.lt.s32.totalorder %v1301, 0
    %v1419 = vsub.s32 0, %v1301
    %v1420 = vsel %vm1418, %v1419, %v1301
    %v1421 = vmul.u32.u64.compose %v1420, 2863311531
    %v1422 = vextract.low.u32 %v1421
    %v1423 = vextract.high.u32 %v1421
    %v1424 = vshrl.u32 %v1423, 2
    %v1425 = vmul.u32 %v1424, 6
    %v1426 = vsub.s32 %v1420, %v1425
    %v1427 = vsub.s32 0, %v1426
    %v1428 = vsel %vm1418, %v1427, %v1426
    %vm1429 = vcmp.lt.s32.totalorder %v1302, 0
    %v1430 = vsub.s32 0, %v1302
    %v1431 = vsel %vm1429, %v1430, %v1302
    %v1432 = vmul.u32.u64.compose %v1431, 2863311531
    %v1433 = vextract.low.u32 %v1432
    %v1434 = vextract.high.u32 %v1432
    %v1435 = vshrl.u32 %v1434, 2
    %v1436 = vmul.u32 %v1435, 6
    %v1437 = vsub.s32 %v1431, %v1436
    %v1438 = vsub.s32 0, %v1437
    %v1439 = vsel %vm1429, %v1438, %v1437
    %vm1440 = vcmp.lt.s32.totalorder %v1303, 0
    %v1441 = vsub.s32 0, %v1303
    %v1442 = vsel %vm1440, %v1441, %v1303
    %v1443 = vmul.u32.u64.compose %v1442, 2863311531
    %v1444 = vextract.low.u32 %v1443
    %v1445 = vextract.high.u32 %v1443
    %v1446 = vshrl.u32 %v1445, 2
    %v1447 = vmul.u32 %v1446, 6
    %v1448 = vsub.s32 %v1442, %v1447
    %v1449 = vsub.s32 0, %v1448
    %v1450 = vsel %vm1440, %v1449, %v1448
    %vm1451 = vcmp.lt.s32.totalorder %v1304, 0
    %v1452 = vsub.s32 0, %v1304
    %v1453 = vsel %vm1451, %v1452, %v1304
    %v1454 = vmul.u32.u64.compose %v1453, 2863311531
    %v1455 = vextract.low.u32 %v1454
    %v1456 = vextract.high.u32 %v1454
    %v1457 = vshrl.u32 %v1456, 2
    %v1458 = vmul.u32 %v1457, 6
    %v1459 = vsub.s32 %v1453, %v1458
    %v1460 = vsub.s32 0, %v1459
    %v1461 = vsel %vm1451, %v1460, %v1459
    %vm1462 = vcmp.lt.s32.totalorder %v1305, 0
    %v1463 = vsub.s32 0, %v1305
    %v1464 = vsel %vm1462, %v1463, %v1305
    %v1465 = vmul.u32.u64.compose %v1464, 2863311531
    %v1466 = vextract.low.u32 %v1465
    %v1467 = vextract.high.u32 %v1465
    %v1468 = vshrl.u32 %v1467, 2
    %v1469 = vmul.u32 %v1468, 6
    %v1470 = vsub.s32 %v1464, %v1469
    %v1471 = vsub.s32 0, %v1470
    %v1472 = vsel %vm1462, %v1471, %v1470
    %vm1473 = vcmp.ne.s32.totalorder %v1318, 0
    %vm1474 = vcmp.ne.s32.totalorder %v1329, 0
    %vm1475 = vcmp.ne.s32.totalorder %v1340, 0
    %vm1476 = vcmp.ne.s32.totalorder %v1351, 0
    %vm1477 = vcmp.ne.s32.totalorder %v1362, 0
    %vm1478 = vcmp.ne.s32.totalorder %v1373, 0
    %vm1479 = vcmp.ne.s32.totalorder %v1384, 0
    %vm1480 = vcmp.ne.s32.totalorder %v1395, 0
    %vm1481 = vcmp.ne.s32.totalorder %v1406, 0
    %vm1482 = vcmp.ne.s32.totalorder %v1417, 0
    %vm1483 = vcmp.ne.s32.totalorder %v1428, 0
    %vm1484 = vcmp.ne.s32.totalorder %v1439, 0
    %vm1485 = vcmp.ne.s32.totalorder %v1450, 0
    %vm1486 = vcmp.ne.s32.totalorder %v1461, 0
    %vm1487 = vcmp.ne.s32.totalorder %v1472, 0
    %vm1488 = vcmp.lt.s32.totalorder %v1318, 0
    %vm1489 = vcmp.lt.s32.totalorder %v1329, 0
    %vm1490 = vcmp.lt.s32.totalorder %v1340, 0
    %vm1491 = vcmp.lt.s32.totalorder %v1351, 0
    %vm1492 = vcmp.lt.s32.totalorder %v1362, 0
    %vm1493 = vcmp.lt.s32.totalorder %v1373, 0
    %vm1494 = vcmp.lt.s32.totalorder %v1384, 0
    %vm1495 = vcmp.lt.s32.totalorder %v1395, 0
    %vm1496 = vcmp.lt.s32.totalorder %v1406, 0
    %vm1497 = vcmp.lt.s32.totalorder %v1417, 0
    %vm1498 = vcmp.lt.s32.totalorder %v1428, 0
    %vm1499 = vcmp.lt.s32.totalorder %v1439, 0
    %vm1500 = vcmp.lt.s32.totalorder %v1450, 0
    %vm1501 = vcmp.lt.s32.totalorder %v1461, 0
    %vm1502 = vcmp.lt.s32.totalorder %v1472, 0
    %vm1503 = vmand %vm1488, %vm1473
    %vm1504 = vmand %vm1489, %vm1474
    %vm1505 = vmand %vm1490, %vm1475
    %vm1506 = vmand %vm1491, %vm1476
    %vm1507 = vmand %vm1492, %vm1477
    %vm1508 = vmand %vm1493, %vm1478
    %vm1509 = vmand %vm1494, %vm1479
    %vm1510 = vmand %vm1495, %vm1480
    %vm1511 = vmand %vm1496, %vm1481
    %vm1512 = vmand %vm1497, %vm1482
    %vm1513 = vmand %vm1498, %vm1483
    %vm1514 = vmand %vm1499, %vm1484
    %vm1515 = vmand %vm1500, %vm1485
    %vm1516 = vmand %vm1501, %vm1486
    %vm1517 = vmand %vm1502, %vm1487
    %v1518 = vadd.s32 %v1318, 6
    %v1519 = vadd.s32 %v1329, 6
    %v1520 = vadd.s32 %v1340, 6
    %v1521 = vadd.s32 %v1351, 6
    %v1522 = vadd.s32 %v1362, 6
    %v1523 = vadd.s32 %v1373, 6
    %v1524 = vadd.s32 %v1384, 6
    %v1525 = vadd.s32 %v1395, 6
    %v1526 = vadd.s32 %v1406, 6
    %v1527 = vadd.s32 %v1417, 6
    %v1528 = vadd.s32 %v1428, 6
    %v1529 = vadd.s32 %v1439, 6
    %v1530 = vadd.s32 %v1450, 6
    %v1531 = vadd.s32 %v1461, 6
    %v1532 = vadd.s32 %v1472, 6
    %v1533 = vsel %vm1503, %v1518, %v1318
    %v1534 = vsel %vm1504, %v1519, %v1329
    %v1535 = vsel %vm1505, %v1520, %v1340
    %v1536 = vsel %vm1506, %v1521, %v1351
    %v1537 = vsel %vm1507, %v1522, %v1362
    %v1538 = vsel %vm1508, %v1523, %v1373
    %v1539 = vsel %vm1509, %v1524, %v1384
    %v1540 = vsel %vm1510, %v1525, %v1395
    %v1541 = vsel %vm1511, %v1526, %v1406
    %v1542 = vsel %vm1512, %v1527, %v1417
    %v1543 = vsel %vm1513, %v1528, %v1428
    %v1544 = vsel %vm1514, %v1529, %v1439
    %v1545 = vsel %vm1515, %v1530, %v1450
    %v1546 = vsel %vm1516, %v1531, %v1461
    %v1547 = vsel %vm1517, %v1532, %v1472
    %vm1548 = vcmp.eq.s32.totalorder %v1533, 0
    %vm1549 = vcmp.eq.s32.totalorder %v1534, 0
    %vm1550 = vcmp.eq.s32.totalorder %v1535, 0
    %vm1551 = vcmp.eq.s32.totalorder %v1536, 0
    %vm1552 = vcmp.eq.s32.totalorder %v1537, 0
    %vm1553 = vcmp.eq.s32.totalorder %v1538, 0
    %vm1554 = vcmp.eq.s32.totalorder %v1539, 0
    %vm1555 = vcmp.eq.s32.totalorder %v1540, 0
    %vm1556 = vcmp.eq.s32.totalorder %v1541, 0
    %vm1557 = vcmp.eq.s32.totalorder %v1542, 0
    %vm1558 = vcmp.eq.s32.totalorder %v1543, 0
    %vm1559 = vcmp.eq.s32.totalorder %v1544, 0
    %vm1560 = vcmp.eq.s32.totalorder %v1545, 0
    %vm1561 = vcmp.eq.s32.totalorder %v1546, 0
    %vm1562 = vcmp.eq.s32.totalorder %v1547, 0
    %vm1563 = vcmp.lt.s32.totalorder %v1307, 64
    %vm1564 = vmand %vm1548, %vm1563
    %vm1565 = vmand %vm1549, %vm1563
    %vm1566 = vmand %vm1550, %vm1563
    %vm1567 = vmand %vm1551, %vm1563
    %vm1568 = vmand %vm1552, %vm1563
    %vm1569 = vmand %vm1553, %vm1563
    %vm1570 = vmand %vm1554, %vm1563
    %vm1571 = vmand %vm1555, %vm1563
    %vm1572 = vmand %vm1556, %vm1563
    %vm1573 = vmand %vm1557, %vm1563
    %vm1574 = vmand %vm1558, %vm1563
    %vm1575 = vmand %vm1559, %vm1563
    %vm1576 = vmand %vm1560, %vm1563
    %vm1577 = vmand %vm1561, %vm1563
    %vm1578 = vmand %vm1562, %vm1563
    %vm1579 = vcmp.eq.s32.totalorder %v1533, 5
    %vm1580 = vcmp.eq.s32.totalorder %v1534, 5
    %vm1581 = vcmp.eq.s32.totalorder %v1535, 5
    %vm1582 = vcmp.eq.s32.totalorder %v1536, 5
    %vm1583 = vcmp.eq.s32.totalorder %v1537, 5
    %vm1584 = vcmp.eq.s32.totalorder %v1538, 5
    %vm1585 = vcmp.eq.s32.totalorder %v1539, 5
    %vm1586 = vcmp.eq.s32.totalorder %v1540, 5
    %vm1587 = vcmp.eq.s32.totalorder %v1541, 5
    %vm1588 = vcmp.eq.s32.totalorder %v1542, 5
    %vm1589 = vcmp.eq.s32.totalorder %v1543, 5
    %vm1590 = vcmp.eq.s32.totalorder %v1544, 5
    %vm1591 = vcmp.eq.s32.totalorder %v1545, 5
    %vm1592 = vcmp.eq.s32.totalorder %v1546, 5
    %vm1593 = vcmp.eq.s32.totalorder %v1547, 5
    %vm1594 = vcmp.ge.s32.totalorder %v1307, 64
    %vm1595 = vmand %vm1579, %vm1594
    %vm1596 = vmand %vm1580, %vm1594
    %vm1597 = vmand %vm1581, %vm1594
    %vm1598 = vmand %vm1582, %vm1594
    %vm1599 = vmand %vm1583, %vm1594
    %vm1600 = vmand %vm1584, %vm1594
    %vm1601 = vmand %vm1585, %vm1594
    %vm1602 = vmand %vm1586, %vm1594
    %vm1603 = vmand %vm1587, %vm1594
    %vm1604 = vmand %vm1588, %vm1594
    %vm1605 = vmand %vm1589, %vm1594
    %vm1606 = vmand %vm1590, %vm1594
    %vm1607 = vmand %vm1591, %vm1594
    %vm1608 = vmand %vm1592, %vm1594
    %vm1609 = vmand %vm1593, %vm1594
    %vm1610 = vmor %vm1564, %vm1595
    %vm1611 = vmor %vm1565, %vm1596
    %vm1612 = vmor %vm1566, %vm1597
    %vm1613 = vmor %vm1567, %vm1598
    %vm1614 = vmor %vm1568, %vm1599
    %vm1615 = vmor %vm1569, %vm1600
    %vm1616 = vmor %vm1570, %vm1601
    %vm1617 = vmor %vm1571, %vm1602
    %vm1618 = vmor %vm1572, %vm1603
    %vm1619 = vmor %vm1573, %vm1604
    %vm1620 = vmor %vm1574, %vm1605
    %vm1621 = vmor %vm1575, %vm1606
    %vm1622 = vmor %vm1576, %vm1607
    %vm1623 = vmor %vm1577, %vm1608
    %vm1624 = vmor %vm1578, %vm1609
    %v1625 = vsel %vm1610, 0.0, %v1275
    %v1626 = vsel %vm1611, 0.0, %v1276
    %v1627 = vsel %vm1612, 0.0, %v1277
    %v1628 = vsel %vm1613, 0.0, %v1278
    %v1629 = vsel %vm1614, 0.0, %v1279
    %v1630 = vsel %vm1615, 0.0, %v1280
    %v1631 = vsel %vm1616, 0.0, %v1281
    %v1632 = vsel %vm1617, 0.0, %v1282
    %v1633 = vsel %vm1618, 0.0, %v1283
    %v1634 = vsel %vm1619, 0.0, %v1284
    %v1635 = vsel %vm1620, 0.0, %v1285
    %v1636 = vsel %vm1621, 0.0, %v1286
    %v1637 = vsel %vm1622, 0.0, %v1287
    %v1638 = vsel %vm1623, 0.0, %v1288
    %v1639 = vsel %vm1624, 0.0, %v1289
    %1640 = vst [vmem:[#allocation2] sm:$0xff] %v1625
    %1641 = vst [vmem:[#allocation2 + $0x8] sm:$0xff] %v1626
    %1642 = vst [vmem:[#allocation2 + $0x10] sm:$0xff] %v1627
    %1643 = vst [vmem:[#allocation2 + $0x18] sm:$0xff] %v1628
    %1644 = vst [vmem:[#allocation2 + $0x20] sm:$0xff] %v1629
    %1645 = vst [vmem:[#allocation2 + $0x28] sm:$0xff] %v1630
    %1646 = vst [vmem:[#allocation2 + $0x30] sm:$0xff] %v1631
    %1647 = vst [vmem:[#allocation2 + $0x38] sm:$0xff] %v1632
    %1648 = vst [vmem:[#allocation2 + $0x40] sm:$0xff] %v1633
    %1649 = vst [vmem:[#allocation2 + $0x48] sm:$0xff] %v1634
    %1650 = vst [vmem:[#allocation2 + $0x50] sm:$0xff] %v1635
    %1651 = vst [vmem:[#allocation2 + $0x58] sm:$0xff] %v1636
    %1652 = vst [vmem:[#allocation2 + $0x60] sm:$0xff] %v1637
    %1653 = vst [vmem:[#allocation2 + $0x68] sm:$0xff] %v1638
    %1654 = vst [vmem:[#allocation2 + $0x70] sm:$0xff] %v1639
    %1655 = vst [vmem:[#allocation3] sm:$0x3f] 0.0
    %1656 = vst [vmem:[#allocation3 + $0x8] sm:$0x3f] 0.0
    %1657 = vst [vmem:[#allocation3 + $0x10] sm:$0x3f] 0.0
    %1658 = vst [vmem:[#allocation3 + $0x18] sm:$0x3f] 0.0
    %1659 = vst [vmem:[#allocation3 + $0x20] sm:$0x3f] 0.0
    %1660 = vst [vmem:[#allocation3 + $0x28] sm:$0x3f] 0.0
    %1661 = vst [vmem:[#allocation3 + $0x30] sm:$0x3f] 0.0
    %1662 = vst [vmem:[#allocation3 + $0x38] sm:$0x3f] 0.0
    %1663 = vst [vmem:[#allocation3 + $0x40] sm:$0x3f] 0.0
    %1664 = vst [vmem:[#allocation3 + $0x48] sm:$0x3f] 0.0
    %1665 = vst [vmem:[#allocation3 + $0x50] sm:$0x3f] 0.0
    %1666 = vst [vmem:[#allocation3 + $0x58] sm:$0x3f] 0.0
    %1667 = vst [vmem:[#allocation3 + $0x60] sm:$0x3f] 0.0
    %1668 = vst [vmem:[#allocation3 + $0x68] sm:$0x3f] 0.0
    %1669 = vst [vmem:[#allocation3 + $0x70] sm:$0x3f] 0.0
    %1670 = vst [vmem:[#allocation3 + $0x78] sm:$0x3f] 0.0
    %1671 = vst [vmem:[#allocation3 + $0x80] sm:$0x3f] 0.0
    %1672 = vst [vmem:[#allocation3 + $0x88] sm:$0x3f] 0.0
    %1673 = vst [vmem:[#allocation3 + $0x90] sm:$0x3f] 0.0
    %1674 = vst [vmem:[#allocation3 + $0x98] sm:$0x3f] 0.0
    %1675 = vst [vmem:[#allocation3 + $0xa0] sm:$0x3f] 0.0
    %1676 = vst [vmem:[#allocation3 + $0xa8] sm:$0x3f] 0.0
    %1677 = vst [vmem:[#allocation3 + $0xb0] sm:$0x3f] 0.0
    %1678 = vst [vmem:[#allocation3 + $0xb8] sm:$0x3f] 0.0
    %v1679 = vld [vmem:[#allocation2] sm:$0x3f]
    %s1680 = scalar_lea.vmem [#allocation3], 16
    %1681 = vst [vmem:[%s1680] sm:$0x3f] %v1679
    %v1682 = vld [vmem:[#allocation2 + $0x1e] sm:$0x3f]
    %1683 = vst [vmem:[#allocation3 + $0x8] sm:$0x3f] %v1682
    %v1684 = vld [vmem:[#allocation2 + $0x6] sm:$0x3f]
    %s1685 = scalar_lea.vmem [#allocation3], 32
    %1686 = vst [vmem:[%s1685] sm:$0x3f] %v1684
    %v1687 = vld [vmem:[#allocation2 + $0x24] sm:$0x3f]
    %1688 = vst [vmem:[%s1680 + $0x8] sm:$0x3f] %v1687
    %v1689 = vld [vmem:[#allocation2 + $0xc] sm:$0x3f]
    %s1690 = scalar_lea.vmem [#allocation3], 48
    %1691 = vst [vmem:[%s1690] sm:$0x3f] %v1689
    %v1692 = vld [vmem:[#allocation2 + $0x2a] sm:$0x3f]
    %1693 = vst [vmem:[%s1685 + $0x8] sm:$0x3f] %v1692
    %v1694 = vld [vmem:[#allocation2 + $0x12] sm:$0x3f]
    %s1695 = scalar_lea.vmem [#allocation3], 64
    %1696 = vst [vmem:[%s1695] sm:$0x3f] %v1694
    %v1697 = vld [vmem:[#allocation2 + $0x30] sm:$0x3f]
    %1698 = vst [vmem:[%s1690 + $0x8] sm:$0x3f] %v1697
    %v1699 = vld [vmem:[#allocation2 + $0x18] sm:$0x3f]
    %s1700 = scalar_lea.vmem [#allocation3], 80
    %1701 = vst [vmem:[%s1700] sm:$0x3f] %v1699
    %v1702 = vld [vmem:[#allocation2 + $0x36] sm:$0x3f]
    %1703 = vst [vmem:[%s1695 + $0x8] sm:$0x3f] %v1702
    %v1704 = vld [vmem:[#allocation2 + $0x3c] sm:$0x3f]
    %s1705 = scalar_lea.vmem [#allocation3], 112
    %1706 = vst [vmem:[%s1705] sm:$0x3f] %v1704
    %v1707 = vld [vmem:[#allocation2 + $0x5a] sm:$0x3f]
    %s1708 = scalar_lea.vmem [#allocation3], 96
    %1709 = vst [vmem:[%s1708 + $0x8] sm:$0x3f] %v1707
    %v1710 = vld [vmem:[#allocation2 + $0x42] sm:$0x3f]
    %s1711 = scalar_lea.vmem [#allocation3], 128
    %1712 = vst [vmem:[%s1711] sm:$0x3f] %v1710
    %v1713 = vld [vmem:[#allocation2 + $0x60] sm:$0x3f]
    %1714 = vst [vmem:[%s1705 + $0x8] sm:$0x3f] %v1713
    %v1715 = vld [vmem:[#allocation2 + $0x48] sm:$0x3f]
    %s1716 = scalar_lea.vmem [#allocation3], 144
    %1717 = vst [vmem:[%s1716] sm:$0x3f] %v1715
    %v1718 = vld [vmem:[#allocation2 + $0x66] sm:$0x3f]
    %1719 = vst [vmem:[%s1711 + $0x8] sm:$0x3f] %v1718
    %v1720 = vld [vmem:[#allocation2 + $0x4e] sm:$0x3f]
    %s1721 = scalar_lea.vmem [#allocation3], 160
    %1722 = vst [vmem:[%s1721] sm:$0x3f] %v1720
    %v1723 = vld [vmem:[#allocation2 + $0x6c] sm:$0x3f]
    %1724 = vst [vmem:[%s1716 + $0x8] sm:$0x3f] %v1723
    %v1725 = vld [vmem:[#allocation2 + $0x54] sm:$0x3f]
    %s1726 = scalar_lea.vmem [#allocation3], 176
    %1727 = vst [vmem:[%s1726] sm:$0x3f] %v1725
    %v1728 = vld [vmem:[#allocation2 + $0x72] sm:$0x3f]
    %1729 = vst [vmem:[%s1721 + $0x8] sm:$0x3f] %v1728
    %v1730 = vld [vmem:[#allocation3] sm:$0x1f]
    %v1731 = vld [vmem:[#allocation3 + $0x8] sm:$0x1f]
    %1732 = vst [vmem:[#allocation4] sm:$0x1f] %v1730
    %1733 = vst [vmem:[#allocation4 + $0x8] sm:$0x1f] %v1731
    %v1734 = vld [vmem:[%s1680] sm:$0x1f]
    %v1735 = vld [vmem:[%s1680 + $0x8] sm:$0x1f]
    %v1738 = vrot.slane %v1734, 3
    %v1739 = vrot.slane %v1735, 3
    %1742 = vst [vmem:[#allocation4] sm:$0xe0] %v1738
    %1743 = vst [vmem:[#allocation4 + $0x8] sm:$0xe0] %v1739
    %1744 = vst [vmem:[#allocation4 + $0x40] sm:$0x3] %v1738
    %1745 = vst [vmem:[#allocation4 + $0x48] sm:$0x3] %v1739
    %v1746 = vld [vmem:[%s1685] sm:$0x1f]
    %v1747 = vld [vmem:[%s1685 + $0x8] sm:$0x1f]
    %v1750 = vrot.slane %v1746, 6
    %v1751 = vrot.slane %v1747, 6
    %1754 = vst [vmem:[#allocation4 + $0x40] sm:$0x7c] %v1750
    %1755 = vst [vmem:[#allocation4 + $0x48] sm:$0x7c] %v1751
    %v1756 = vld [vmem:[%s1690] sm:$0x1f]
    %v1757 = vld [vmem:[%s1690 + $0x8] sm:$0x1f]
    %v1760 = vrot.slane %v1756, 1
    %v1761 = vrot.slane %v1757, 1
    %1764 = vst [vmem:[#allocation4 + $0x40] sm:$0x80] %v1760
    %1765 = vst [vmem:[#allocation4 + $0x48] sm:$0x80] %v1761
    %1766 = vst [vmem:[#allocation4 + $0x80] sm:$0xf] %v1760
    %1767 = vst [vmem:[#allocation4 + $0x88] sm:$0xf] %v1761
    %v1768 = vld [vmem:[%s1695] sm:$0x1f]
    %v1769 = vld [vmem:[%s1695 + $0x8] sm:$0x1f]
    %v1772 = vrot.slane %v1768, 4
    %v1773 = vrot.slane %v1769, 4
    %1776 = vst [vmem:[#allocation4 + $0x80] sm:$0xf0] %v1772
    %1777 = vst [vmem:[#allocation4 + $0x88] sm:$0xf0] %v1773
    %1778 = vst [vmem:[#allocation4 + $0xc0] sm:$0x1] %v1772
    %1779 = vst [vmem:[#allocation4 + $0xc8] sm:$0x1] %v1773
    %v1780 = vld [vmem:[#allocation3] sm:$0x3e]
    %v1781 = vld [vmem:[#allocation3 + $0x8] sm:$0x3e]
    %v1784 = vrot.slane %v1780, 1
    %v1785 = vrot.slane %v1781, 1
    %1788 = vst [vmem:[#allocation4 + $0x10] sm:$0x1f] %v1784
    %1789 = vst [vmem:[#allocation4 + $0x18] sm:$0x1f] %v1785
    %v1790 = vld [vmem:[%s1680] sm:$0x3e]
    %v1791 = vld [vmem:[%s1680 + $0x8] sm:$0x3e]
    %v1794 = vrot.slane %v1790, 4
    %v1795 = vrot.slane %v1791, 4
    %1798 = vst [vmem:[#allocation4 + $0x10] sm:$0xe0] %v1794
    %1799 = vst [vmem:[#allocation4 + $0x18] sm:$0xe0] %v1795
    %1800 = vst [vmem:[#allocation4 + $0x50] sm:$0x3] %v1794
    %1801 = vst [vmem:[#allocation4 + $0x58] sm:$0x3] %v1795
    %v1802 = vld [vmem:[%s1685] sm:$0x3e]
    %v1803 = vld [vmem:[%s1685 + $0x8] sm:$0x3e]
    %v1806 = vrot.slane %v1802, 7
    %v1807 = vrot.slane %v1803, 7
    %1810 = vst [vmem:[#allocation4 + $0x50] sm:$0x7c] %v1806
    %1811 = vst [vmem:[#allocation4 + $0x58] sm:$0x7c] %v1807
    %v1812 = vld [vmem:[%s1690] sm:$0x3e]
    %v1813 = vld [vmem:[%s1690 + $0x8] sm:$0x3e]
    %v1816 = vrot.slane %v1812, 2
    %v1817 = vrot.slane %v1813, 2
    %1820 = vst [vmem:[#allocation4 + $0x50] sm:$0x80] %v1816
    %1821 = vst [vmem:[#allocation4 + $0x58] sm:$0x80] %v1817
    %1822 = vst [vmem:[#allocation4 + $0x90] sm:$0xf] %v1816
    %1823 = vst [vmem:[#allocation4 + $0x98] sm:$0xf] %v1817
    %v1824 = vld [vmem:[%s1695] sm:$0x3e]
    %v1825 = vld [vmem:[%s1695 + $0x8] sm:$0x3e]
    %v1828 = vrot.slane %v1824, 5
    %v1829 = vrot.slane %v1825, 5
    %1832 = vst [vmem:[#allocation4 + $0x90] sm:$0xf0] %v1828
    %1833 = vst [vmem:[#allocation4 + $0x98] sm:$0xf0] %v1829
    %1834 = vst [vmem:[#allocation4 + $0xd0] sm:$0x1] %v1828
    %1835 = vst [vmem:[#allocation4 + $0xd8] sm:$0x1] %v1829
    %v1836 = vld [vmem:[%s1680] sm:$0x1f]
    %v1837 = vld [vmem:[%s1680 + $0x8] sm:$0x1f]
    %1838 = vst [vmem:[#allocation4 + $0x20] sm:$0x1f] %v1836
    %1839 = vst [vmem:[#allocation4 + $0x28] sm:$0x1f] %v1837
    %v1840 = vld [vmem:[%s1685] sm:$0x1f]
    %v1841 = vld [vmem:[%s1685 + $0x8] sm:$0x1f]
    %v1844 = vrot.slane %v1840, 3
    %v1845 = vrot.slane %v1841, 3
    %1848 = vst [vmem:[#allocation4 + $0x20] sm:$0xe0] %v1844
    %1849 = vst [vmem:[#allocation4 + $0x28] sm:$0xe0] %v1845
    %1850 = vst [vmem:[#allocation4 + $0x60] sm:$0x3] %v1844
    %1851 = vst [vmem:[#allocation4 + $0x68] sm:$0x3] %v1845
    %v1852 = vld [vmem:[%s1690] sm:$0x1f]
    %v1853 = vld [vmem:[%s1690 + $0x8] sm:$0x1f]
    %v1856 = vrot.slane %v1852, 6
    %v1857 = vrot.slane %v1853, 6
    %1860 = vst [vmem:[#allocation4 + $0x60] sm:$0x7c] %v1856
    %1861 = vst [vmem:[#allocation4 + $0x68] sm:$0x7c] %v1857
    %v1862 = vld [vmem:[%s1695] sm:$0x1f]
    %v1863 = vld [vmem:[%s1695 + $0x8] sm:$0x1f]
    %v1866 = vrot.slane %v1862, 1
    %v1867 = vrot.slane %v1863, 1
    %1870 = vst [vmem:[#allocation4 + $0x60] sm:$0x80] %v1866
    %1871 = vst [vmem:[#allocation4 + $0x68] sm:$0x80] %v1867
    %1872 = vst [vmem:[#allocation4 + $0xa0] sm:$0xf] %v1866
    %1873 = vst [vmem:[#allocation4 + $0xa8] sm:$0xf] %v1867
    %v1874 = vld [vmem:[%s1700] sm:$0x1f]
    %v1875 = vld [vmem:[%s1700 + $0x8] sm:$0x1f]
    %v1878 = vrot.slane %v1874, 4
    %v1879 = vrot.slane %v1875, 4
    %1882 = vst [vmem:[#allocation4 + $0xa0] sm:$0xf0] %v1878
    %1883 = vst [vmem:[#allocation4 + $0xa8] sm:$0xf0] %v1879
    %1884 = vst [vmem:[#allocation4 + $0xe0] sm:$0x1] %v1878
    %1885 = vst [vmem:[#allocation4 + $0xe8] sm:$0x1] %v1879
    %v1886 = vld [vmem:[%s1680] sm:$0x3e]
    %v1887 = vld [vmem:[%s1680 + $0x8] sm:$0x3e]
    %v1890 = vrot.slane %v1886, 1
    %v1891 = vrot.slane %v1887, 1
    %1894 = vst [vmem:[#allocation4 + $0x30] sm:$0x1f] %v1890
    %1895 = vst [vmem:[#allocation4 + $0x38] sm:$0x1f] %v1891
    %v1896 = vld [vmem:[%s1685] sm:$0x3e]
    %v1897 = vld [vmem:[%s1685 + $0x8] sm:$0x3e]
    %v1900 = vrot.slane %v1896, 4
    %v1901 = vrot.slane %v1897, 4
    %1904 = vst [vmem:[#allocation4 + $0x30] sm:$0xe0] %v1900
    %1905 = vst [vmem:[#allocation4 + $0x38] sm:$0xe0] %v1901
    %1906 = vst [vmem:[#allocation4 + $0x70] sm:$0x3] %v1900
    %1907 = vst [vmem:[#allocation4 + $0x78] sm:$0x3] %v1901
    %v1908 = vld [vmem:[%s1690] sm:$0x3e]
    %v1909 = vld [vmem:[%s1690 + $0x8] sm:$0x3e]
    %v1912 = vrot.slane %v1908, 7
    %v1913 = vrot.slane %v1909, 7
    %1916 = vst [vmem:[#allocation4 + $0x70] sm:$0x7c] %v1912
    %1917 = vst [vmem:[#allocation4 + $0x78] sm:$0x7c] %v1913
    %v1918 = vld [vmem:[%s1695] sm:$0x3e]
    %v1919 = vld [vmem:[%s1695 + $0x8] sm:$0x3e]
    %v1922 = vrot.slane %v1918, 2
    %v1923 = vrot.slane %v1919, 2
    %1926 = vst [vmem:[#allocation4 + $0x70] sm:$0x80] %v1922
    %1927 = vst [vmem:[#allocation4 + $0x78] sm:$0x80] %v1923
    %1928 = vst [vmem:[#allocation4 + $0xb0] sm:$0xf] %v1922
    %1929 = vst [vmem:[#allocation4 + $0xb8] sm:$0xf] %v1923
    %v1930 = vld [vmem:[%s1700] sm:$0x3e]
    %v1931 = vld [vmem:[%s1700 + $0x8] sm:$0x3e]
    %v1934 = vrot.slane %v1930, 5
    %v1935 = vrot.slane %v1931, 5
    %1938 = vst [vmem:[#allocation4 + $0xb0] sm:$0xf0] %v1934
    %1939 = vst [vmem:[#allocation4 + $0xb8] sm:$0xf0] %v1935
    %1940 = vst [vmem:[#allocation4 + $0xf0] sm:$0x1] %v1934
    %1941 = vst [vmem:[#allocation4 + $0xf8] sm:$0x1] %v1935
    %v1942 = vld [vmem:[%s1708] sm:$0x1f]
    %v1943 = vld [vmem:[%s1708 + $0x8] sm:$0x1f]
    %v1946 = vrot.slane %v1942, 7
    %v1947 = vrot.slane %v1943, 7
    %1950 = vst [vmem:[#allocation4 + $0xc0] sm:$0x3e] %v1946
    %1951 = vst [vmem:[#allocation4 + $0xc8] sm:$0x3e] %v1947
    %v1952 = vld [vmem:[%s1705] sm:$0x1f]
    %v1953 = vld [vmem:[%s1705 + $0x8] sm:$0x1f]
    %v1956 = vrot.slane %v1952, 2
    %v1957 = vrot.slane %v1953, 2
    %1960 = vst [vmem:[#allocation4 + $0xc0] sm:$0xc0] %v1956
    %1961 = vst [vmem:[#allocation4 + $0xc8] sm:$0xc0] %v1957
    %1962 = vst [vmem:[#allocation4 + $0x100] sm:$0x7] %v1956
    %1963 = vst [vmem:[#allocation4 + $0x108] sm:$0x7] %v1957
    %v1964 = vld [vmem:[%s1711] sm:$0x1f]
    %v1965 = vld [vmem:[%s1711 + $0x8] sm:$0x1f]
    %v1968 = vrot.slane %v1964, 5
    %v1969 = vrot.slane %v1965, 5
    %1972 = vst [vmem:[#allocation4 + $0x100] sm:$0xf8] %v1968
    %1973 = vst [vmem:[#allocation4 + $0x108] sm:$0xf8] %v1969
    %v1974 = vld [vmem:[%s1716] sm:$0x1f]
    %v1975 = vld [vmem:[%s1716 + $0x8] sm:$0x1f]
    %1976 = vst [vmem:[#allocation4 + $0x140] sm:$0x1f] %v1974
    %1977 = vst [vmem:[#allocation4 + $0x148] sm:$0x1f] %v1975
    %v1978 = vld [vmem:[%s1721] sm:$0x1f]
    %v1979 = vld [vmem:[%s1721 + $0x8] sm:$0x1f]
    %v1982 = vrot.slane %v1978, 3
    %v1983 = vrot.slane %v1979, 3
    %1986 = vst [vmem:[#allocation4 + $0x140] sm:$0xe0] %v1982
    %1987 = vst [vmem:[#allocation4 + $0x148] sm:$0xe0] %v1983
    %1988 = vst [vmem:[#allocation4 + $0x180] sm:$0x3] %v1982
    %1989 = vst [vmem:[#allocation4 + $0x188] sm:$0x3] %v1983
    %v1990 = vld [vmem:[%s1708] sm:$0x3e]
    %v1991 = vld [vmem:[%s1708 + $0x8] sm:$0x3e]
    %1992 = vst [vmem:[#allocation4 + $0xd0] sm:$0x3e] %v1990
    %1993 = vst [vmem:[#allocation4 + $0xd8] sm:$0x3e] %v1991
    %v1994 = vld [vmem:[%s1705] sm:$0x3e]
    %v1995 = vld [vmem:[%s1705 + $0x8] sm:$0x3e]
    %v1998 = vrot.slane %v1994, 3
    %v1999 = vrot.slane %v1995, 3
    %2002 = vst [vmem:[#allocation4 + $0xd0] sm:$0xc0] %v1998
    %2003 = vst [vmem:[#allocation4 + $0xd8] sm:$0xc0] %v1999
    %2004 = vst [vmem:[#allocation4 + $0x110] sm:$0x7] %v1998
    %2005 = vst [vmem:[#allocation4 + $0x118] sm:$0x7] %v1999
    %v2006 = vld [vmem:[%s1711] sm:$0x3e]
    %v2007 = vld [vmem:[%s1711 + $0x8] sm:$0x3e]
    %v2010 = vrot.slane %v2006, 6
    %v2011 = vrot.slane %v2007, 6
    %2014 = vst [vmem:[#allocation4 + $0x110] sm:$0xf8] %v2010
    %2015 = vst [vmem:[#allocation4 + $0x118] sm:$0xf8] %v2011
    %v2016 = vld [vmem:[%s1716] sm:$0x3e]
    %v2017 = vld [vmem:[%s1716 + $0x8] sm:$0x3e]
    %v2020 = vrot.slane %v2016, 1
    %v2021 = vrot.slane %v2017, 1
    %2024 = vst [vmem:[#allocation4 + $0x150] sm:$0x1f] %v2020
    %2025 = vst [vmem:[#allocation4 + $0x158] sm:$0x1f] %v2021
    %v2026 = vld [vmem:[%s1721] sm:$0x3e]
    %v2027 = vld [vmem:[%s1721 + $0x8] sm:$0x3e]
    %v2030 = vrot.slane %v2026, 4
    %v2031 = vrot.slane %v2027, 4
    %2034 = vst [vmem:[#allocation4 + $0x150] sm:$0xe0] %v2030
    %2035 = vst [vmem:[#allocation4 + $0x158] sm:$0xe0] %v2031
    %2036 = vst [vmem:[#allocation4 + $0x190] sm:$0x3] %v2030
    %2037 = vst [vmem:[#allocation4 + $0x198] sm:$0x3] %v2031
    %v2038 = vld [vmem:[%s1705] sm:$0x1f]
    %v2039 = vld [vmem:[%s1705 + $0x8] sm:$0x1f]
    %v2042 = vrot.slane %v2038, 7
    %v2043 = vrot.slane %v2039, 7
    %2046 = vst [vmem:[#allocation4 + $0xe0] sm:$0x3e] %v2042
    %2047 = vst [vmem:[#allocation4 + $0xe8] sm:$0x3e] %v2043
    %v2048 = vld [vmem:[%s1711] sm:$0x1f]
    %v2049 = vld [vmem:[%s1711 + $0x8] sm:$0x1f]
    %v2052 = vrot.slane %v2048, 2
    %v2053 = vrot.slane %v2049, 2
    %2056 = vst [vmem:[#allocation4 + $0xe0] sm:$0xc0] %v2052
    %2057 = vst [vmem:[#allocation4 + $0xe8] sm:$0xc0] %v2053
    %2058 = vst [vmem:[#allocation4 + $0x120] sm:$0x7] %v2052
    %2059 = vst [vmem:[#allocation4 + $0x128] sm:$0x7] %v2053
    %v2060 = vld [vmem:[%s1716] sm:$0x1f]
    %v2061 = vld [vmem:[%s1716 + $0x8] sm:$0x1f]
    %v2064 = vrot.slane %v2060, 5
    %v2065 = vrot.slane %v2061, 5
    %2068 = vst [vmem:[#allocation4 + $0x120] sm:$0xf8] %v2064
    %2069 = vst [vmem:[#allocation4 + $0x128] sm:$0xf8] %v2065
    %v2070 = vld [vmem:[%s1721] sm:$0x1f]
    %v2071 = vld [vmem:[%s1721 + $0x8] sm:$0x1f]
    %2072 = vst [vmem:[#allocation4 + $0x160] sm:$0x1f] %v2070
    %2073 = vst [vmem:[#allocation4 + $0x168] sm:$0x1f] %v2071
    %v2074 = vld [vmem:[%s1726] sm:$0x1f]
    %v2075 = vld [vmem:[%s1726 + $0x8] sm:$0x1f]
    %v2078 = vrot.slane %v2074, 3
    %v2079 = vrot.slane %v2075, 3
    %2082 = vst [vmem:[#allocation4 + $0x160] sm:$0xe0] %v2078
    %2083 = vst [vmem:[#allocation4 + $0x168] sm:$0xe0] %v2079
    %2084 = vst [vmem:[#allocation4 + $0x1a0] sm:$0x3] %v2078
    %2085 = vst [vmem:[#allocation4 + $0x1a8] sm:$0x3] %v2079
    %v2086 = vld [vmem:[%s1705] sm:$0x3e]
    %v2087 = vld [vmem:[%s1705 + $0x8] sm:$0x3e]
    %2088 = vst [vmem:[#allocation4 + $0xf0] sm:$0x3e] %v2086
    %2089 = vst [vmem:[#allocation4 + $0xf8] sm:$0x3e] %v2087
    %v2090 = vld [vmem:[%s1711] sm:$0x3e]
    %v2091 = vld [vmem:[%s1711 + $0x8] sm:$0x3e]
    %v2094 = vrot.slane %v2090, 3
    %v2095 = vrot.slane %v2091, 3
    %2098 = vst [vmem:[#allocation4 + $0xf0] sm:$0xc0] %v2094
    %2099 = vst [vmem:[#allocation4 + $0xf8] sm:$0xc0] %v2095
    %2100 = vst [vmem:[#allocation4 + $0x130] sm:$0x7] %v2094
    %2101 = vst [vmem:[#allocation4 + $0x138] sm:$0x7] %v2095
    %v2102 = vld [vmem:[%s1716] sm:$0x3e]
    %v2103 = vld [vmem:[%s1716 + $0x8] sm:$0x3e]
    %v2106 = vrot.slane %v2102, 6
    %v2107 = vrot.slane %v2103, 6
    %2110 = vst [vmem:[#allocation4 + $0x130] sm:$0xf8] %v2106
    %2111 = vst [vmem:[#allocation4 + $0x138] sm:$0xf8] %v2107
    %v2112 = vld [vmem:[%s1721] sm:$0x3e]
    %v2113 = vld [vmem:[%s1721 + $0x8] sm:$0x3e]
    %v2116 = vrot.slane %v2112, 1
    %v2117 = vrot.slane %v2113, 1
    %2120 = vst [vmem:[#allocation4 + $0x170] sm:$0x1f] %v2116
    %2121 = vst [vmem:[#allocation4 + $0x178] sm:$0x1f] %v2117
    %v2122 = vld [vmem:[%s1726] sm:$0x3e]
    %v2123 = vld [vmem:[%s1726 + $0x8] sm:$0x3e]
    %v2126 = vrot.slane %v2122, 4
    %v2127 = vrot.slane %v2123, 4
    %2130 = vst [vmem:[#allocation4 + $0x170] sm:$0xe0] %v2126
    %2131 = vst [vmem:[#allocation4 + $0x178] sm:$0xe0] %v2127
    %2132 = vst [vmem:[#allocation4 + $0x1b0] sm:$0x3] %v2126
    %2133 = vst [vmem:[#allocation4 + $0x1b8] sm:$0x3] %v2127
    %v2134 = vld [vmem:[#allocation4] sm:$0xff]
    %v2135 = vld [vmem:[#allocation4 + $0x8] sm:$0xff]
    %v2136 = vld [vmem:[#allocation4 + $0x10] sm:$0xff]
    %v2137 = vld [vmem:[#allocation4 + $0x18] sm:$0xff]
    %v2138 = vld [vmem:[#allocation4 + $0x20] sm:$0xff]
    %v2139 = vld [vmem:[#allocation4 + $0x28] sm:$0xff]
    %v2140 = vld [vmem:[#allocation4 + $0x30] sm:$0xff]
    %v2141 = vld [vmem:[#allocation4 + $0x38] sm:$0xff]
    %v2142 = vld [vmem:[#allocation4 + $0x40] sm:$0xff]
    %v2143 = vld [vmem:[#allocation4 + $0x48] sm:$0xff]
    %v2144 = vld [vmem:[#allocation4 + $0x50] sm:$0xff]
    %v2145 = vld [vmem:[#allocation4 + $0x58] sm:$0xff]
    %v2146 = vld [vmem:[#allocation4 + $0x60] sm:$0xff]
    %v2147 = vld [vmem:[#allocation4 + $0x68] sm:$0xff]
    %v2148 = vld [vmem:[#allocation4 + $0x70] sm:$0xff]
    %v2149 = vld [vmem:[#allocation4 + $0x78] sm:$0xff]
    %v2150 = vld [vmem:[#allocation4 + $0x80] sm:$0xff]
    %v2151 = vld [vmem:[#allocation4 + $0x88] sm:$0xff]
    %v2152 = vld [vmem:[#allocation4 + $0x90] sm:$0xff]
    %v2153 = vld [vmem:[#allocation4 + $0x98] sm:$0xff]
    %v2154 = vld [vmem:[#allocation4 + $0xa0] sm:$0xff]
    %v2155 = vld [vmem:[#allocation4 + $0xa8] sm:$0xff]
    %v2156 = vld [vmem:[#allocation4 + $0xb0] sm:$0xff]
    %v2157 = vld [vmem:[#allocation4 + $0xb8] sm:$0xff]
    %v2158 = vld [vmem:[#allocation4 + $0xc0] sm:$0xff]
    %v2159 = vld [vmem:[#allocation4 + $0xc8] sm:$0xff]
    %v2160 = vld [vmem:[#allocation4 + $0xd0] sm:$0xff]
    %v2161 = vld [vmem:[#allocation4 + $0xd8] sm:$0xff]
    %v2162 = vld [vmem:[#allocation4 + $0xe0] sm:$0xff]
    %v2163 = vld [vmem:[#allocation4 + $0xe8] sm:$0xff]
    %v2164 = vld [vmem:[#allocation4 + $0xf0] sm:$0xff]
    %v2165 = vld [vmem:[#allocation4 + $0xf8] sm:$0xff]
    %v2166 = vld [vmem:[#allocation4 + $0x100] sm:$0xff]
    %v2167 = vld [vmem:[#allocation4 + $0x108] sm:$0xff]
    %v2168 = vld [vmem:[#allocation4 + $0x110] sm:$0xff]
    %v2169 = vld [vmem:[#allocation4 + $0x118] sm:$0xff]
    %v2170 = vld [vmem:[#allocation4 + $0x120] sm:$0xff]
    %v2171 = vld [vmem:[#allocation4 + $0x128] sm:$0xff]
    %v2172 = vld [vmem:[#allocation4 + $0x130] sm:$0xff]
    %v2173 = vld [vmem:[#allocation4 + $0x138] sm:$0xff]
    %v2174 = vld [vmem:[#allocation4 + $0x140] sm:$0xff]
    %v2175 = vld [vmem:[#allocation4 + $0x148] sm:$0xff]
    %v2176 = vld [vmem:[#allocation4 + $0x150] sm:$0xff]
    %v2177 = vld [vmem:[#allocation4 + $0x158] sm:$0xff]
    %v2178 = vld [vmem:[#allocation4 + $0x160] sm:$0xff]
    %v2179 = vld [vmem:[#allocation4 + $0x168] sm:$0xff]
    %v2180 = vld [vmem:[#allocation4 + $0x170] sm:$0xff]
    %v2181 = vld [vmem:[#allocation4 + $0x178] sm:$0xff]
    %v2182 = vld [vmem:[#allocation4 + $0x180] sm:$0x3]
    %v2183 = vld [vmem:[#allocation4 + $0x188] sm:$0x3]
    %v2184 = vld [vmem:[#allocation4 + $0x190] sm:$0x3]
    %v2185 = vld [vmem:[#allocation4 + $0x198] sm:$0x3]
    %v2186 = vld [vmem:[#allocation4 + $0x1a0] sm:$0x3]
    %v2187 = vld [vmem:[#allocation4 + $0x1a8] sm:$0x3]
    %v2188 = vld [vmem:[#allocation4 + $0x1b0] sm:$0x3]
    %v2189 = vld [vmem:[#allocation4 + $0x1b8] sm:$0x3]
    %v2190 = vpack.c.bf16 %v2142, %v2134
    %v2191 = vpack.c.bf16 %v2143, %v2135
    %v2192 = vpack.c.bf16 %v2144, %v2136
    %v2193 = vpack.c.bf16 %v2145, %v2137
    %v2194 = vpack.c.bf16 %v2146, %v2138
    %v2195 = vpack.c.bf16 %v2147, %v2139
    %v2196 = vpack.c.bf16 %v2148, %v2140
    %v2197 = vpack.c.bf16 %v2149, %v2141
    %v2198 = vpack.c.bf16 %v2158, %v2150
    %v2199 = vpack.c.bf16 %v2159, %v2151
    %v2200 = vpack.c.bf16 %v2160, %v2152
    %v2201 = vpack.c.bf16 %v2161, %v2153
    %v2202 = vpack.c.bf16 %v2162, %v2154
    %v2203 = vpack.c.bf16 %v2163, %v2155
    %v2204 = vpack.c.bf16 %v2164, %v2156
    %v2205 = vpack.c.bf16 %v2165, %v2157
    %v2206 = vpack.c.bf16 %v2174, %v2166
    %v2207 = vpack.c.bf16 %v2175, %v2167
    %v2208 = vpack.c.bf16 %v2176, %v2168
    %v2209 = vpack.c.bf16 %v2177, %v2169
    %v2210 = vpack.c.bf16 %v2178, %v2170
    %v2211 = vpack.c.bf16 %v2179, %v2171
    %v2212 = vpack.c.bf16 %v2180, %v2172
    %v2213 = vpack.c.bf16 %v2181, %v2173
    %v2214 = vpack.c.bf16 %v2182, %v2182
    %v2215 = vpack.c.bf16 %v2183, %v2183
    %v2216 = vpack.c.bf16 %v2184, %v2184
    %v2217 = vpack.c.bf16 %v2185, %v2185
    %v2218 = vpack.c.bf16 %v2186, %v2186
    %v2219 = vpack.c.bf16 %v2187, %v2187
    %v2220 = vpack.c.bf16 %v2188, %v2188
    %v2221 = vpack.c.bf16 %v2189, %v2189
    %v2222 = vld [vmem:[%s3] sm:$0xf]
    %v2223 = vld [vmem:[%s3 + $0x4] sm:$0xf]
    %v2224 = vld [vmem:[%s3 + $0x8] sm:$0xf]
    %v2225 = vld [vmem:[%s3 + $0xc] sm:$0xf]
    %v2226 = vld [vmem:[%s3 + $0x10] sm:$0xf]
    %v2227 = vld [vmem:[%s3 + $0x14] sm:$0xf]
    %v2228 = vld [vmem:[%s3 + $0x18] sm:$0xf]
    %v2229 = vld [vmem:[%s3 + $0x1c] sm:$0xf]
    %v2230 = vld [vmem:[%s3 + $0x20] sm:$0xf]
    %v2231 = vld [vmem:[%s3 + $0x24] sm:$0xf]
    %v2232 = vld [vmem:[%s3 + $0x28] sm:$0xf]
    %v2233 = vld [vmem:[%s3 + $0x2c] sm:$0xf]
    %v2234 = vld [vmem:[%s3 + $0x30] sm:$0xf]
    %v2235 = vld [vmem:[%s3 + $0x34] sm:$0xf]
    %v2236 = vld [vmem:[%s3 + $0x38] sm:$0xf]
    %v2237 = vld [vmem:[%s3 + $0x3c] sm:$0xf]
    %v2238 = vld [vmem:[%s3 + $0x40] sm:$0xf]
    %v2239 = vld [vmem:[%s3 + $0x44] sm:$0xf]
    %v2240 = vld [vmem:[%s3 + $0x48] sm:$0xf]
    %v2241 = vld [vmem:[%s3 + $0x4c] sm:$0xf]
    %v2242 = vld [vmem:[%s3 + $0x50] sm:$0xf]
    %v2243 = vld [vmem:[%s3 + $0x54] sm:$0xf]
    %v2244 = vld [vmem:[%s3 + $0x58] sm:$0xf]
    %v2245 = vld [vmem:[%s3 + $0x5c] sm:$0xf]
    %v2246 = vld [vmem:[%s3 + $0x60] sm:$0xf]
    %v2247 = vld [vmem:[%s3 + $0x64] sm:$0xf]
    %v2248 = vld [vmem:[%s3 + $0x68] sm:$0xf]
    %v2249 = vld [vmem:[%s3 + $0x6c] sm:$0xf]
    %v2250 = vld [vmem:[%s3 + $0x70] sm:$0xf]
    %v2251 = vld [vmem:[%s3 + $0x74] sm:$0xf]
    %v2252 = vld [vmem:[%s3 + $0x78] sm:$0xf]
    %v2253 = vld [vmem:[%s3 + $0x7c] sm:$0xf]
    %v2254 = vld [vmem:[%s3 + $0x80] sm:$0xf]
    %v2255 = vld [vmem:[%s3 + $0x84] sm:$0xf]
    %v2256 = vld [vmem:[%s3 + $0x88] sm:$0xf]
    %v2257 = vld [vmem:[%s3 + $0x8c] sm:$0xf]
    %v2258 = vld [vmem:[%s3 + $0x90] sm:$0xf]
    %v2259 = vld [vmem:[%s3 + $0x94] sm:$0xf]
    %v2260 = vld [vmem:[%s3 + $0x98] sm:$0xf]
    %v2261 = vld [vmem:[%s3 + $0x9c] sm:$0xf]
    %v2262 = vld [vmem:[%s3 + $0xa0] sm:$0xf]
    %v2263 = vld [vmem:[%s3 + $0xa4] sm:$0xf]
    %v2264 = vld [vmem:[%s3 + $0xa8] sm:$0xf]
    %v2265 = vld [vmem:[%s3 + $0xac] sm:$0xf]
    %v2266 = vld [vmem:[%s3 + $0xb0] sm:$0xf]
    %v2267 = vld [vmem:[%s3 + $0xb4] sm:$0xf]
    %v2268 = vld [vmem:[%s3 + $0xb8] sm:$0xf]
    %v2269 = vld [vmem:[%s3 + $0xbc] sm:$0xf]
    %v2270 = vld [vmem:[%s3 + $0xc0] sm:$0xf]
    %v2271 = vld [vmem:[%s3 + $0xc4] sm:$0xf]
    %v2272 = vld [vmem:[%s3 + $0xc8] sm:$0xf]
    %v2273 = vld [vmem:[%s3 + $0xcc] sm:$0xf]
    %v2274 = vld [vmem:[%s3 + $0xd0] sm:$0xf]
    %v2275 = vld [vmem:[%s3 + $0xd4] sm:$0xf]
    %v2276 = vld [vmem:[%s3 + $0xd8] sm:$0xf]
    %v2277 = vld [vmem:[%s3 + $0xdc] sm:$0xf]
    %v2278 = vld [vmem:[%s3 + $0xe0] sm:$0xf]
    %v2279 = vld [vmem:[%s3 + $0xe4] sm:$0xf]
    %v2280 = vld [vmem:[%s3 + $0xe8] sm:$0xf]
    %v2281 = vld [vmem:[%s3 + $0xec] sm:$0xf]
    %v2282 = vld [vmem:[%s3 + $0xf0] sm:$0xf]
    %v2283 = vld [vmem:[%s3 + $0xf4] sm:$0xf]
    %v2284 = vld [vmem:[%s3 + $0xf8] sm:$0xf]
    %v2285 = vld [vmem:[%s3 + $0xfc] sm:$0xf]
    %v2286 = vld [vmem:[%s3 + $0x100] sm:$0xf]
    %v2287 = vld [vmem:[%s3 + $0x104] sm:$0xf]
    %v2288 = vld [vmem:[%s3 + $0x108] sm:$0xf]
    %v2289 = vld [vmem:[%s3 + $0x10c] sm:$0xf]
    %v2290 = vld [vmem:[%s3 + $0x110] sm:$0xf]
    %v2291 = vld [vmem:[%s3 + $0x114] sm:$0xf]
    %v2292 = vld [vmem:[%s3 + $0x118] sm:$0xf]
    %v2293 = vld [vmem:[%s3 + $0x11c] sm:$0xf]
    %v2294 = vld [vmem:[%s3 + $0x120] sm:$0xf]
    %v2295 = vld [vmem:[%s3 + $0x124] sm:$0xf]
    %v2296 = vld [vmem:[%s3 + $0x128] sm:$0xf]
    %v2297 = vld [vmem:[%s3 + $0x12c] sm:$0xf]
    %v2298 = vld [vmem:[%s3 + $0x130] sm:$0xf]
    %v2299 = vld [vmem:[%s3 + $0x134] sm:$0xf]
    %v2300 = vld [vmem:[%s3 + $0x138] sm:$0xf]
    %v2301 = vld [vmem:[%s3 + $0x13c] sm:$0xf]
    %v2302 = vld [vmem:[%s3 + $0x140] sm:$0xf]
    %v2303 = vld [vmem:[%s3 + $0x144] sm:$0xf]
    %v2304 = vld [vmem:[%s3 + $0x148] sm:$0xf]
    %v2305 = vld [vmem:[%s3 + $0x14c] sm:$0xf]
    %v2306 = vld [vmem:[%s3 + $0x150] sm:$0xf]
    %v2307 = vld [vmem:[%s3 + $0x154] sm:$0xf]
    %v2308 = vld [vmem:[%s3 + $0x158] sm:$0xf]
    %v2309 = vld [vmem:[%s3 + $0x15c] sm:$0xf]
    %v2310 = vld [vmem:[%s3 + $0x160] sm:$0xf]
    %v2311 = vld [vmem:[%s3 + $0x164] sm:$0xf]
    %v2312 = vld [vmem:[%s3 + $0x168] sm:$0xf]
    %v2313 = vld [vmem:[%s3 + $0x16c] sm:$0xf]
    %v2314 = vld [vmem:[%s3 + $0x170] sm:$0xf]
    %v2315 = vld [vmem:[%s3 + $0x174] sm:$0xf]
    %v2316 = vld [vmem:[%s3 + $0x178] sm:$0xf]
    %v2317 = vld [vmem:[%s3 + $0x17c] sm:$0xf]
    %v2318 = vld [vmem:[%s3 + $0x180] sm:$0xf]
    %v2319 = vld [vmem:[%s3 + $0x184] sm:$0xf]
    %v2320 = vld [vmem:[%s3 + $0x188] sm:$0xf]
    %v2321 = vld [vmem:[%s3 + $0x18c] sm:$0xf]
    %v2322 = vld [vmem:[%s3 + $0x190] sm:$0xf]
    %v2323 = vld [vmem:[%s3 + $0x194] sm:$0xf]
    %v2324 = vld [vmem:[%s3 + $0x198] sm:$0xf]
    %v2325 = vld [vmem:[%s3 + $0x19c] sm:$0xf]
    %v2326 = vld [vmem:[%s3 + $0x1a0] sm:$0xf]
    %v2327 = vld [vmem:[%s3 + $0x1a4] sm:$0xf]
    %v2328 = vld [vmem:[%s3 + $0x1a8] sm:$0xf]
    %v2329 = vld [vmem:[%s3 + $0x1ac] sm:$0xf]
    %v2330 = vld [vmem:[%s3 + $0x1b0] sm:$0xf]
    %v2331 = vld [vmem:[%s3 + $0x1b4] sm:$0xf]
    %v2332 = vld [vmem:[%s3 + $0x1b8] sm:$0xf]
    %v2333 = vld [vmem:[%s3 + $0x1bc] sm:$0xf]
    %v2334 = vld [vmem:[%s3 + $0x1c0] sm:$0xf]
    %v2335 = vld [vmem:[%s3 + $0x1c4] sm:$0xf]
    %v2336 = vld [vmem:[%s3 + $0x1c8] sm:$0xf]
    %v2337 = vld [vmem:[%s3 + $0x1cc] sm:$0xf]
    %v2338 = vld [vmem:[%s3 + $0x1d0] sm:$0xf]
    %v2339 = vld [vmem:[%s3 + $0x1d4] sm:$0xf]
    %v2340 = vld [vmem:[%s3 + $0x1d8] sm:$0xf]
    %v2341 = vld [vmem:[%s3 + $0x1dc] sm:$0xf]
    %v2342 = vld [vmem:[%s3 + $0x1e0] sm:$0xf]
    %v2343 = vld [vmem:[%s3 + $0x1e4] sm:$0xf]
    %v2344 = vld [vmem:[%s3 + $0x1e8] sm:$0xf]
    %v2345 = vld [vmem:[%s3 + $0x1ec] sm:$0xf]
    %v2346 = vld [vmem:[%s3 + $0x1f0] sm:$0xf]
    %v2347 = vld [vmem:[%s3 + $0x1f4] sm:$0xf]
    %v2348 = vld [vmem:[%s3 + $0x1f8] sm:$0xf]
    %v2349 = vld [vmem:[%s3 + $0x1fc] sm:$0xf]
    %v2478 = vunpack.c.l.b16 %v2222
    %v2479 = vunpack.c.l.b16 %v2223
    %v2480 = vunpack.c.l.b16 %v2224
    %v2481 = vunpack.c.l.b16 %v2225
    %v2482 = vunpack.c.l.b16 %v2226
    %v2483 = vunpack.c.l.b16 %v2227
    %v2484 = vunpack.c.l.b16 %v2228
    %v2485 = vunpack.c.l.b16 %v2229
    %v2486 = vunpack.c.l.b16 %v2230
    %v2487 = vunpack.c.l.b16 %v2231
    %v2488 = vunpack.c.l.b16 %v2232
    %v2489 = vunpack.c.l.b16 %v2233
    %v2490 = vunpack.c.l.b16 %v2234
    %v2491 = vunpack.c.l.b16 %v2235
    %v2492 = vunpack.c.l.b16 %v2236
    %v2493 = vunpack.c.l.b16 %v2237
    %v2494 = vunpack.c.l.b16 %v2238
    %v2495 = vunpack.c.l.b16 %v2239
    %v2496 = vunpack.c.l.b16 %v2240
    %v2497 = vunpack.c.l.b16 %v2241
    %v2498 = vunpack.c.l.b16 %v2242
    %v2499 = vunpack.c.l.b16 %v2243
    %v2500 = vunpack.c.l.b16 %v2244
    %v2501 = vunpack.c.l.b16 %v2245
    %v2502 = vunpack.c.l.b16 %v2246
    %v2503 = vunpack.c.l.b16 %v2247
    %v2504 = vunpack.c.l.b16 %v2248
    %v2505 = vunpack.c.l.b16 %v2249
    %v2506 = vunpack.c.l.b16 %v2250
    %v2507 = vunpack.c.l.b16 %v2251
    %v2508 = vunpack.c.l.b16 %v2252
    %v2509 = vunpack.c.l.b16 %v2253
    %v2510 = vunpack.c.l.b16 %v2254
    %v2511 = vunpack.c.l.b16 %v2255
    %v2512 = vunpack.c.l.b16 %v2256
    %v2513 = vunpack.c.l.b16 %v2257
    %v2514 = vunpack.c.l.b16 %v2258
    %v2515 = vunpack.c.l.b16 %v2259
    %v2516 = vunpack.c.l.b16 %v2260
    %v2517 = vunpack.c.l.b16 %v2261
    %v2518 = vunpack.c.l.b16 %v2262
    %v2519 = vunpack.c.l.b16 %v2263
    %v2520 = vunpack.c.l.b16 %v2264
    %v2521 = vunpack.c.l.b16 %v2265
    %v2522 = vunpack.c.l.b16 %v2266
    %v2523 = vunpack.c.l.b16 %v2267
    %v2524 = vunpack.c.l.b16 %v2268
    %v2525 = vunpack.c.l.b16 %v2269
    %v2526 = vunpack.c.l.b16 %v2270
    %v2527 = vunpack.c.l.b16 %v2271
    %v2528 = vunpack.c.l.b16 %v2272
    %v2529 = vunpack.c.l.b16 %v2273
    %v2530 = vunpack.c.l.b16 %v2274
    %v2531 = vunpack.c.l.b16 %v2275
    %v2532 = vunpack.c.l.b16 %v2276
    %v2533 = vunpack.c.l.b16 %v2277
    %v2534 = vunpack.c.l.b16 %v2278
    %v2535 = vunpack.c.l.b16 %v2279
    %v2536 = vunpack.c.l.b16 %v2280
    %v2537 = vunpack.c.l.b16 %v2281
    %v2538 = vunpack.c.l.b16 %v2282
    %v2539 = vunpack.c.l.b16 %v2283
    %v2540 = vunpack.c.l.b16 %v2284
    %v2541 = vunpack.c.l.b16 %v2285
    %v2542 = vunpack.c.l.b16 %v2286
    %v2543 = vunpack.c.l.b16 %v2287
    %v2544 = vunpack.c.l.b16 %v2288
    %v2545 = vunpack.c.l.b16 %v2289
    %v2546 = vunpack.c.l.b16 %v2290
    %v2547 = vunpack.c.l.b16 %v2291
    %v2548 = vunpack.c.l.b16 %v2292
    %v2549 = vunpack.c.l.b16 %v2293
    %v2550 = vunpack.c.l.b16 %v2294
    %v2551 = vunpack.c.l.b16 %v2295
    %v2552 = vunpack.c.l.b16 %v2296
    %v2553 = vunpack.c.l.b16 %v2297
    %v2554 = vunpack.c.l.b16 %v2298
    %v2555 = vunpack.c.l.b16 %v2299
    %v2556 = vunpack.c.l.b16 %v2300
    %v2557 = vunpack.c.l.b16 %v2301
    %v2558 = vunpack.c.l.b16 %v2302
    %v2559 = vunpack.c.l.b16 %v2303
    %v2560 = vunpack.c.l.b16 %v2304
    %v2561 = vunpack.c.l.b16 %v2305
    %v2562 = vunpack.c.l.b16 %v2306
    %v2563 = vunpack.c.l.b16 %v2307
    %v2564 = vunpack.c.l.b16 %v2308
    %v2565 = vunpack.c.l.b16 %v2309
    %v2566 = vunpack.c.l.b16 %v2310
    %v2567 = vunpack.c.l.b16 %v2311
    %v2568 = vunpack.c.l.b16 %v2312
    %v2569 = vunpack.c.l.b16 %v2313
    %v2570 = vunpack.c.l.b16 %v2314
    %v2571 = vunpack.c.l.b16 %v2315
    %v2572 = vunpack.c.l.b16 %v2316
    %v2573 = vunpack.c.l.b16 %v2317
    %v2574 = vunpack.c.l.b16 %v2318
    %v2575 = vunpack.c.l.b16 %v2319
    %v2576 = vunpack.c.l.b16 %v2320
    %v2577 = vunpack.c.l.b16 %v2321
    %v2578 = vunpack.c.l.b16 %v2322
    %v2579 = vunpack.c.l.b16 %v2323
    %v2580 = vunpack.c.l.b16 %v2324
    %v2581 = vunpack.c.l.b16 %v2325
    %v2582 = vunpack.c.l.b16 %v2326
    %v2583 = vunpack.c.l.b16 %v2327
    %v2584 = vunpack.c.l.b16 %v2328
    %v2585 = vunpack.c.l.b16 %v2329
    %v2586 = vunpack.c.l.b16 %v2330
    %v2587 = vunpack.c.l.b16 %v2331
    %v2588 = vunpack.c.l.b16 %v2332
    %v2589 = vunpack.c.l.b16 %v2333
    %v2590 = vunpack.c.l.b16 %v2334
    %v2591 = vunpack.c.l.b16 %v2335
    %v2592 = vunpack.c.l.b16 %v2336
    %v2593 = vunpack.c.l.b16 %v2337
    %v2594 = vunpack.c.l.b16 %v2338
    %v2595 = vunpack.c.l.b16 %v2339
    %v2596 = vunpack.c.l.b16 %v2340
    %v2597 = vunpack.c.l.b16 %v2341
    %v2598 = vunpack.c.l.b16 %v2342
    %v2599 = vunpack.c.l.b16 %v2343
    %v2600 = vunpack.c.l.b16 %v2344
    %v2601 = vunpack.c.l.b16 %v2345
    %v2602 = vunpack.c.l.b16 %v2346
    %v2603 = vunpack.c.l.b16 %v2347
    %v2604 = vunpack.c.l.b16 %v2348
    %v2605 = vunpack.c.l.b16 %v2349
    %v2606 = vpack.c.b16 %v2479, %v2478
    %v2607 = vpack.c.b16 %v2481, %v2480
    %v2608 = vpack.c.b16 %v2483, %v2482
    %v2609 = vpack.c.b16 %v2485, %v2484
    %v2610 = vpack.c.b16 %v2487, %v2486
    %v2611 = vpack.c.b16 %v2489, %v2488
    %v2612 = vpack.c.b16 %v2491, %v2490
    %v2613 = vpack.c.b16 %v2493, %v2492
    %v2614 = vpack.c.b16 %v2495, %v2494
    %v2615 = vpack.c.b16 %v2497, %v2496
    %v2616 = vpack.c.b16 %v2499, %v2498
    %v2617 = vpack.c.b16 %v2501, %v2500
    %v2618 = vpack.c.b16 %v2503, %v2502
    %v2619 = vpack.c.b16 %v2505, %v2504
    %v2620 = vpack.c.b16 %v2507, %v2506
    %v2621 = vpack.c.b16 %v2509, %v2508
    %v2622 = vpack.c.b16 %v2511, %v2510
    %v2623 = vpack.c.b16 %v2513, %v2512
    %v2624 = vpack.c.b16 %v2515, %v2514
    %v2625 = vpack.c.b16 %v2517, %v2516
    %v2626 = vpack.c.b16 %v2519, %v2518
    %v2627 = vpack.c.b16 %v2521, %v2520
    %v2628 = vpack.c.b16 %v2523, %v2522
    %v2629 = vpack.c.b16 %v2525, %v2524
    %v2630 = vpack.c.b16 %v2527, %v2526
    %v2631 = vpack.c.b16 %v2529, %v2528
    %v2632 = vpack.c.b16 %v2531, %v2530
    %v2633 = vpack.c.b16 %v2533, %v2532
    %v2634 = vpack.c.b16 %v2535, %v2534
    %v2635 = vpack.c.b16 %v2537, %v2536
    %v2636 = vpack.c.b16 %v2539, %v2538
    %v2637 = vpack.c.b16 %v2541, %v2540
    %v2638 = vpack.c.b16 %v2543, %v2542
    %v2639 = vpack.c.b16 %v2545, %v2544
    %v2640 = vpack.c.b16 %v2547, %v2546
    %v2641 = vpack.c.b16 %v2549, %v2548
    %v2642 = vpack.c.b16 %v2551, %v2550
    %v2643 = vpack.c.b16 %v2553, %v2552
    %v2644 = vpack.c.b16 %v2555, %v2554
    %v2645 = vpack.c.b16 %v2557, %v2556
    %v2646 = vpack.c.b16 %v2559, %v2558
    %v2647 = vpack.c.b16 %v2561, %v2560
    %v2648 = vpack.c.b16 %v2563, %v2562
    %v2649 = vpack.c.b16 %v2565, %v2564
    %v2650 = vpack.c.b16 %v2567, %v2566
    %v2651 = vpack.c.b16 %v2569, %v2568
    %v2652 = vpack.c.b16 %v2571, %v2570
    %v2653 = vpack.c.b16 %v2573, %v2572
    %v2654 = vpack.c.b16 %v2575, %v2574
    %v2655 = vpack.c.b16 %v2577, %v2576
    %v2656 = vpack.c.b16 %v2579, %v2578
    %v2657 = vpack.c.b16 %v2581, %v2580
    %v2658 = vpack.c.b16 %v2583, %v2582
    %v2659 = vpack.c.b16 %v2585, %v2584
    %v2660 = vpack.c.b16 %v2587, %v2586
    %v2661 = vpack.c.b16 %v2589, %v2588
    %v2662 = vpack.c.b16 %v2591, %v2590
    %v2663 = vpack.c.b16 %v2593, %v2592
    %v2664 = vpack.c.b16 %v2595, %v2594
    %v2665 = vpack.c.b16 %v2597, %v2596
    %v2666 = vpack.c.b16 %v2599, %v2598
    %v2667 = vpack.c.b16 %v2601, %v2600
    %v2668 = vpack.c.b16 %v2603, %v2602
    %v2669 = vpack.c.b16 %v2605, %v2604
    %2734 = vmatprep.subr.bf16.mxu0 0
    %2735 = vmatpush1.bf16.msra.mxu0 %v2613
    %2736 = vmatprep.subr.bf16.mxu0 0
    %2737 = vmatpush1.bf16.msra.mxu0 %v2612
    %2738 = vmatprep.subr.bf16.mxu0 0
    %2739 = vmatpush1.bf16.msra.mxu0 %v2611
    %2740 = vmatprep.subr.bf16.mxu0 0
    %2741 = vmatpush1.bf16.msra.mxu0 %v2610
    %2742 = vmatprep.subr.bf16.mxu0 0
    %2743 = vmatpush1.bf16.msra.mxu0 %v2609
    %2744 = vmatprep.subr.bf16.mxu0 0
    %2745 = vmatpush1.bf16.msra.mxu0 %v2608
    %2746 = vmatprep.subr.bf16.mxu0 0
    %2747 = vmatpush1.bf16.msra.mxu0 %v2607
    %2748 = vmatprep.subr.bf16.mxu0 0
    %2749 = vmatpush1.bf16.msra.mxu0 %v2606
    %2750 = vmatprep.subr.bf16.mxu0 0
    %2751 = vmatpush2.bf16.msra.mxu0 %v2621
    %2752 = vmatprep.subr.bf16.mxu0 0
    %2753 = vmatpush2.bf16.msra.mxu0 %v2620
    %2754 = vmatprep.subr.bf16.mxu0 0
    %2755 = vmatpush2.bf16.msra.mxu0 %v2619
    %2756 = vmatprep.subr.bf16.mxu0 0
    %2757 = vmatpush2.bf16.msra.mxu0 %v2618
    %2758 = vmatprep.subr.bf16.mxu0 0
    %2759 = vmatpush2.bf16.msra.mxu0 %v2617
    %2760 = vmatprep.subr.bf16.mxu0 0
    %2761 = vmatpush2.bf16.msra.mxu0 %v2616
    %2762 = vmatprep.subr.bf16.mxu0 0
    %2763 = vmatpush2.bf16.msra.mxu0 %v2615
    %2764 = vmatprep.subr.bf16.mxu0 0
    %2765 = vmatpush2.bf16.msra.mxu0 %v2614
    %2766 = vmatprep.mubr.bf16.mxu0 %v2191
    %2767 = vmatmul.mubr.bf16.gmra.mxu0 %v2190
    %v2768 = vpop.f32.mrf.mxu0
    %v2769 = vadd.f32 0.0, %v2768
    %v2770 = vpop.f32.mrf.mxu0
    %v2771 = vpop.f32.mrf.mxu0
    %v2772 = vadd.f32 0.0, %v2771
    %v2773 = vpop.f32.mrf.mxu0
    %2774 = vmatprep.mubr.bf16.mxu0 %v2199
    %2775 = vmatmul.mubr.bf16.gmra.mxu0 %v2198
    %v2776 = vpop.f32.mrf.mxu0
    %v2777 = vadd.f32 0.0, %v2776
    %v2778 = vpop.f32.mrf.mxu0
    %v2779 = vpop.f32.mrf.mxu0
    %v2780 = vadd.f32 0.0, %v2779
    %v2781 = vpop.f32.mrf.mxu0
    %2782 = vmatprep.mubr.bf16.mxu0 %v2207
    %2783 = vmatmul.mubr.bf16.gmra.mxu0 %v2206
    %v2784 = vpop.f32.mrf.mxu0
    %v2785 = vadd.f32 0.0, %v2784
    %v2786 = vpop.f32.mrf.mxu0
    %v2787 = vpop.f32.mrf.mxu0
    %v2788 = vadd.f32 0.0, %v2787
    %v2789 = vpop.f32.mrf.mxu0
    %2790 = vmatprep.mubr.bf16.mxu0 %v2215
    %2791 = vmatmul.mubr.bf16.gmra.mxu0 %v2214
    %v2792 = vpop.f32.mrf.mxu0
    %v2793 = vadd.f32 0.0, %v2792
    %v2794 = vpop.f32.mrf.mxu0
    %v2795 = vpop.f32.mrf.mxu0
    %v2796 = vpop.f32.mrf.mxu0
    %2797 = vdwg.mxu0
    %2798 = vmatprep.subr.bf16.mxu0 0
    %2799 = vmatpush1.bf16.msra.mxu0 %v2629
    %2800 = vmatprep.subr.bf16.mxu0 0
    %2801 = vmatpush1.bf16.msra.mxu0 %v2628
    %2802 = vmatprep.subr.bf16.mxu0 0
    %2803 = vmatpush1.bf16.msra.mxu0 %v2627
    %2804 = vmatprep.subr.bf16.mxu0 0
    %2805 = vmatpush1.bf16.msra.mxu0 %v2626
    %2806 = vmatprep.subr.bf16.mxu0 0
    %2807 = vmatpush1.bf16.msra.mxu0 %v2625
    %2808 = vmatprep.subr.bf16.mxu0 0
    %2809 = vmatpush1.bf16.msra.mxu0 %v2624
    %2810 = vmatprep.subr.bf16.mxu0 0
    %2811 = vmatpush1.bf16.msra.mxu0 %v2623
    %2812 = vmatprep.subr.bf16.mxu0 0
    %2813 = vmatpush1.bf16.msra.mxu0 %v2622
    %2814 = vmatprep.subr.bf16.mxu0 0
    %2815 = vmatpush2.bf16.msra.mxu0 %v2637
    %2816 = vmatprep.subr.bf16.mxu0 0
    %2817 = vmatpush2.bf16.msra.mxu0 %v2636
    %2818 = vmatprep.subr.bf16.mxu0 0
    %2819 = vmatpush2.bf16.msra.mxu0 %v2635
    %2820 = vmatprep.subr.bf16.mxu0 0
    %2821 = vmatpush2.bf16.msra.mxu0 %v2634
    %2822 = vmatprep.subr.bf16.mxu0 0
    %2823 = vmatpush2.bf16.msra.mxu0 %v2633
    %2824 = vmatprep.subr.bf16.mxu0 0
    %2825 = vmatpush2.bf16.msra.mxu0 %v2632
    %2826 = vmatprep.subr.bf16.mxu0 0
    %2827 = vmatpush2.bf16.msra.mxu0 %v2631
    %2828 = vmatprep.subr.bf16.mxu0 0
    %2829 = vmatpush2.bf16.msra.mxu0 %v2630
    %2830 = vmatprep.mubr.bf16.mxu0 %v2193
    %2831 = vmatmul.mubr.bf16.gmra.mxu0 %v2192
    %v2832 = vpop.f32.mrf.mxu0
    %v2833 = vadd.f32 %v2769, %v2832
    %v2834 = vpop.f32.mrf.mxu0
    %v2835 = vpop.f32.mrf.mxu0
    %v2836 = vadd.f32 %v2772, %v2835
    %v2837 = vpop.f32.mrf.mxu0
    %2838 = vmatprep.mubr.bf16.mxu0 %v2201
    %2839 = vmatmul.mubr.bf16.gmra.mxu0 %v2200
    %v2840 = vpop.f32.mrf.mxu0
    %v2841 = vadd.f32 %v2777, %v2840
    %v2842 = vpop.f32.mrf.mxu0
    %v2843 = vpop.f32.mrf.mxu0
    %v2844 = vadd.f32 %v2780, %v2843
    %v2845 = vpop.f32.mrf.mxu0
    %2846 = vmatprep.mubr.bf16.mxu0 %v2209
    %2847 = vmatmul.mubr.bf16.gmra.mxu0 %v2208
    %v2848 = vpop.f32.mrf.mxu0
    %v2849 = vadd.f32 %v2785, %v2848
    %v2850 = vpop.f32.mrf.mxu0
    %v2851 = vpop.f32.mrf.mxu0
    %v2852 = vadd.f32 %v2788, %v2851
    %v2853 = vpop.f32.mrf.mxu0
    %2854 = vmatprep.mubr.bf16.mxu0 %v2217
    %2855 = vmatmul.mubr.bf16.gmra.mxu0 %v2216
    %v2856 = vpop.f32.mrf.mxu0
    %v2857 = vadd.f32 %v2793, %v2856
    %v2858 = vpop.f32.mrf.mxu0
    %v2859 = vpop.f32.mrf.mxu0
    %v2860 = vpop.f32.mrf.mxu0
    %2861 = vdwg.mxu0
    %2862 = vmatprep.subr.bf16.mxu0 0
    %2863 = vmatpush1.bf16.msra.mxu0 %v2645
    %2864 = vmatprep.subr.bf16.mxu0 0
    %2865 = vmatpush1.bf16.msra.mxu0 %v2644
    %2866 = vmatprep.subr.bf16.mxu0 0
    %2867 = vmatpush1.bf16.msra.mxu0 %v2643
    %2868 = vmatprep.subr.bf16.mxu0 0
    %2869 = vmatpush1.bf16.msra.mxu0 %v2642
    %2870 = vmatprep.subr.bf16.mxu0 0
    %2871 = vmatpush1.bf16.msra.mxu0 %v2641
    %2872 = vmatprep.subr.bf16.mxu0 0
    %2873 = vmatpush1.bf16.msra.mxu0 %v2640
    %2874 = vmatprep.subr.bf16.mxu0 0
    %2875 = vmatpush1.bf16.msra.mxu0 %v2639
    %2876 = vmatprep.subr.bf16.mxu0 0
    %2877 = vmatpush1.bf16.msra.mxu0 %v2638
    %2878 = vmatprep.subr.bf16.mxu0 0
    %2879 = vmatpush2.bf16.msra.mxu0 %v2653
    %2880 = vmatprep.subr.bf16.mxu0 0
    %2881 = vmatpush2.bf16.msra.mxu0 %v2652
    %2882 = vmatprep.subr.bf16.mxu0 0
    %2883 = vmatpush2.bf16.msra.mxu0 %v2651
    %2884 = vmatprep.subr.bf16.mxu0 0
    %2885 = vmatpush2.bf16.msra.mxu0 %v2650
    %2886 = vmatprep.subr.bf16.mxu0 0
    %2887 = vmatpush2.bf16.msra.mxu0 %v2649
    %2888 = vmatprep.subr.bf16.mxu0 0
    %2889 = vmatpush2.bf16.msra.mxu0 %v2648
    %2890 = vmatprep.subr.bf16.mxu0 0
    %2891 = vmatpush2.bf16.msra.mxu0 %v2647
    %2892 = vmatprep.subr.bf16.mxu0 0
    %2893 = vmatpush2.bf16.msra.mxu0 %v2646
    %2894 = vmatprep.mubr.bf16.mxu0 %v2195
    %2895 = vmatmul.mubr.bf16.gmra.mxu0 %v2194
    %v2896 = vpop.f32.mrf.mxu0
    %v2897 = vadd.f32 %v2833, %v2896
    %v2898 = vpop.f32.mrf.mxu0
    %v2899 = vpop.f32.mrf.mxu0
    %v2900 = vadd.f32 %v2836, %v2899
    %v2901 = vpop.f32.mrf.mxu0
    %2902 = vmatprep.mubr.bf16.mxu0 %v2203
    %2903 = vmatmul.mubr.bf16.gmra.mxu0 %v2202
    %v2904 = vpop.f32.mrf.mxu0
    %v2905 = vadd.f32 %v2841, %v2904
    %v2906 = vpop.f32.mrf.mxu0
    %v2907 = vpop.f32.mrf.mxu0
    %v2908 = vadd.f32 %v2844, %v2907
    %v2909 = vpop.f32.mrf.mxu0
    %2910 = vmatprep.mubr.bf16.mxu0 %v2211
    %2911 = vmatmul.mubr.bf16.gmra.mxu0 %v2210
    %v2912 = vpop.f32.mrf.mxu0
    %v2913 = vadd.f32 %v2849, %v2912
    %v2914 = vpop.f32.mrf.mxu0
    %v2915 = vpop.f32.mrf.mxu0
    %v2916 = vadd.f32 %v2852, %v2915
    %v2917 = vpop.f32.mrf.mxu0
    %2918 = vmatprep.mubr.bf16.mxu0 %v2219
    %2919 = vmatmul.mubr.bf16.gmra.mxu0 %v2218
    %v2920 = vpop.f32.mrf.mxu0
    %v2921 = vadd.f32 %v2857, %v2920
    %v2922 = vpop.f32.mrf.mxu0
    %v2923 = vpop.f32.mrf.mxu0
    %v2924 = vpop.f32.mrf.mxu0
    %2925 = vdwg.mxu0
    %2926 = vmatprep.subr.bf16.mxu0 0
    %2927 = vmatpush1.bf16.msra.mxu0 %v2661
    %2928 = vmatprep.subr.bf16.mxu0 0
    %2929 = vmatpush1.bf16.msra.mxu0 %v2660
    %2930 = vmatprep.subr.bf16.mxu0 0
    %2931 = vmatpush1.bf16.msra.mxu0 %v2659
    %2932 = vmatprep.subr.bf16.mxu0 0
    %2933 = vmatpush1.bf16.msra.mxu0 %v2658
    %2934 = vmatprep.subr.bf16.mxu0 0
    %2935 = vmatpush1.bf16.msra.mxu0 %v2657
    %2936 = vmatprep.subr.bf16.mxu0 0
    %2937 = vmatpush1.bf16.msra.mxu0 %v2656
    %2938 = vmatprep.subr.bf16.mxu0 0
    %2939 = vmatpush1.bf16.msra.mxu0 %v2655
    %2940 = vmatprep.subr.bf16.mxu0 0
    %2941 = vmatpush1.bf16.msra.mxu0 %v2654
    %2942 = vmatprep.subr.bf16.mxu0 0
    %2943 = vmatpush2.bf16.msra.mxu0 %v2669
    %2944 = vmatprep.subr.bf16.mxu0 0
    %2945 = vmatpush2.bf16.msra.mxu0 %v2668
    %2946 = vmatprep.subr.bf16.mxu0 0
    %2947 = vmatpush2.bf16.msra.mxu0 %v2667
    %2948 = vmatprep.subr.bf16.mxu0 0
    %2949 = vmatpush2.bf16.msra.mxu0 %v2666
    %2950 = vmatprep.subr.bf16.mxu0 0
    %2951 = vmatpush2.bf16.msra.mxu0 %v2665
    %2952 = vmatprep.subr.bf16.mxu0 0
    %2953 = vmatpush2.bf16.msra.mxu0 %v2664
    %2954 = vmatprep.subr.bf16.mxu0 0
    %2955 = vmatpush2.bf16.msra.mxu0 %v2663
    %2956 = vmatprep.subr.bf16.mxu0 0
    %2957 = vmatpush2.bf16.msra.mxu0 %v2662
    %2958 = vmatprep.mubr.bf16.mxu0 %v2197
    %2959 = vmatmul.mubr.bf16.gmra.mxu0 %v2196
    %v2960 = vpop.f32.mrf.mxu0
    %v2961 = vadd.f32 %v2897, %v2960
    %v2962 = vpop.f32.mrf.mxu0
    %v2963 = vpop.f32.mrf.mxu0
    %v2964 = vadd.f32 %v2900, %v2963
    %v2965 = vpop.f32.mrf.mxu0
    %2966 = vmatprep.mubr.bf16.mxu0 %v2205
    %2967 = vmatmul.mubr.bf16.gmra.mxu0 %v2204
    %v2968 = vpop.f32.mrf.mxu0
    %v2969 = vadd.f32 %v2905, %v2968
    %v2970 = vpop.f32.mrf.mxu0
    %v2971 = vpop.f32.mrf.mxu0
    %v2972 = vadd.f32 %v2908, %v2971
    %v2973 = vpop.f32.mrf.mxu0
    %2974 = vmatprep.mubr.bf16.mxu0 %v2213
    %2975 = vmatmul.mubr.bf16.gmra.mxu0 %v2212
    %v2976 = vpop.f32.mrf.mxu0
    %v2977 = vadd.f32 %v2913, %v2976
    %v2978 = vpop.f32.mrf.mxu0
    %v2979 = vpop.f32.mrf.mxu0
    %v2980 = vadd.f32 %v2916, %v2979
    %v2981 = vpop.f32.mrf.mxu0
    %2982 = vmatprep.mubr.bf16.mxu0 %v2221
    %2983 = vmatmul.mubr.bf16.gmra.mxu0 %v2220
    %v2984 = vpop.f32.mrf.mxu0
    %v2985 = vadd.f32 %v2921, %v2984
    %v2986 = vpop.f32.mrf.mxu0
    %v2987 = vpop.f32.mrf.mxu0
    %v2988 = vpop.f32.mrf.mxu0
    %2989 = vdwg.mxu0
    %v2990 = vld [vmem:[%s4] sm:$0x1]
    %vm2995 = vcmask 1042432
    %v2996 = vrot.slane %v2961, 5
    %v2997 = vrot.slane %v2964, 5
    %v2998 = vsel %vm2995, %v2996, %v2997
    %v2999 = vrot.slane %v2969, 5
    %v3000 = vsel %vm2995, %v2997, %v2999
    %v3001 = vrot.slane %v2972, 5
    %v3002 = vsel %vm2995, %v2999, %v3001
    %v3006 = vmax.f32 %v2961, %v2998
    %v3007 = vmax.f32 %v2964, %v3000
    %v3008 = vmax.f32 %v2969, %v3002
    %v3010 = vrot.slane %v3006, 1
    %v3012 = vmax.f32 %v3006, %v3010
    %v3014 = vlaneseq
    %v3015 = vshrl.u32 %v3014, 7
    %v3016 = vsub.s32 0, %v3015
    %v3017 = vrot.slane %v2990, %v3016
    %v3019 = vadd.f32 %v3012, %v3017
    %v3020 = vmax.f32 %v3019, 0.0
    %3021 = vst [vmem:[#allocation5] sm:$0x1] %v3020
    %v3023 = vrot.slane %v3020, 1
    %3025 = vst [vmem:[#allocation5 + $0x8] sm:$0x1] %v3023
    %v3026 = vrot.slane %v3020, 2
    %3028 = vst [vmem:[#allocation5 + $0x2] sm:$0x1] %v3026
    %v3029 = vrot.slane %v3020, 3
    %3031 = vst [vmem:[#allocation5 + $0xa] sm:$0x1] %v3029
    %vm3033 = vcmask 1046528
    %v3034 = vrot.slane %v3007, 1
    %v3035 = vsel %vm3033, %v3010, %v3034
    %v3038 = vmax.f32 %v3006, %v3035
    %v3039 = vmax.f32 %v3007, %v3034
    %v3040 = vadd.f32 %v3038, %v3017
    %v3041 = vadd.f32 %v3039, %v3017
    %v3042 = vmax.f32 %v3040, 0.0
    %v3043 = vmax.f32 %v3041, 0.0
    %v3045 = vrot.slane %v3042, 5
    %3047 = vst [vmem:[#allocation5 + $0x10] sm:$0x1] %v3045
    %v3048 = vrot.slane %v3042, 6
    %3050 = vst [vmem:[#allocation5 + $0x18] sm:$0x1] %v3048
    %v3051 = vrot.slane %v3042, 7
    %3053 = vst [vmem:[#allocation5 + $0x12] sm:$0x1] %v3051
    %3054 = vst [vmem:[#allocation5 + $0x1a] sm:$0x1] %v3043
    %v3056 = vrot.slane %v3043, 2
    %3058 = vst [vmem:[#allocation5 + $0x4] sm:$0x1] %v3056
    %v3059 = vrot.slane %v3043, 3
    %3061 = vst [vmem:[#allocation5 + $0xc] sm:$0x1] %v3059
    %v3062 = vrot.slane %v3043, 4
    %3064 = vst [vmem:[#allocation5 + $0x6] sm:$0x1] %v3062
    %v3065 = vrot.slane %v3043, 5
    %3067 = vst [vmem:[#allocation5 + $0xe] sm:$0x1] %v3065
    %v3069 = vrot.slane %v3008, 1
    %v3071 = vmax.f32 %v3007, %v3069
    %v3072 = vmax.f32 %v3008, %v3069
    %v3073 = vadd.f32 %v3071, %v3017
    %v3074 = vadd.f32 %v3072, %v3017
    %v3075 = vmax.f32 %v3073, 0.0
    %v3076 = vmax.f32 %v3074, 0.0
    %v3078 = vrot.slane %v3075, 7
    %3080 = vst [vmem:[#allocation5 + $0x14] sm:$0x1] %v3078
    %3081 = vst [vmem:[#allocation5 + $0x1c] sm:$0x1] %v3076
    %v3083 = vrot.slane %v3076, 1
    %3085 = vst [vmem:[#allocation5 + $0x16] sm:$0x1] %v3083
    %v3086 = vrot.slane %v3076, 2
    %3088 = vst [vmem:[#allocation5 + $0x1e] sm:$0x1] %v3086
    %v3092 = vrot.slane %v2977, 5
    %v3093 = vsel %vm2995, %v3001, %v3092
    %v3094 = vrot.slane %v2980, 5
    %v3095 = vsel %vm2995, %v3092, %v3094
    %v3096 = vrot.slane %v2985, 5
    %v3097 = vsel %vm2995, %v3094, %v3096
    %v3101 = vmax.f32 %v2972, %v3093
    %v3102 = vmax.f32 %v2977, %v3095
    %v3103 = vmax.f32 %v2980, %v3097
    %v3105 = vrot.slane %v3101, 1
    %v3107 = vmax.f32 %v3101, %v3105
    %v3108 = vadd.f32 %v3107, %v3017
    %v3109 = vmax.f32 %v3108, 0.0
    %v3111 = vrot.slane %v3109, 1
    %3113 = vst [vmem:[#allocation5 + $0x1] sm:$0x1] %v3111
    %v3114 = vrot.slane %v3109, 2
    %3116 = vst [vmem:[#allocation5 + $0x9] sm:$0x1] %v3114
    %v3117 = vrot.slane %v3109, 3
    %3119 = vst [vmem:[#allocation5 + $0x3] sm:$0x1] %v3117
    %v3120 = vrot.slane %v3109, 4
    %3122 = vst [vmem:[#allocation5 + $0xb] sm:$0x1] %v3120
    %v3124 = vrot.slane %v3102, 1
    %v3125 = vsel %vm3033, %v3105, %v3124
    %v3128 = vmax.f32 %v3101, %v3125
    %v3129 = vmax.f32 %v3102, %v3124
    %v3130 = vadd.f32 %v3128, %v3017
    %v3131 = vadd.f32 %v3129, %v3017
    %v3132 = vmax.f32 %v3130, 0.0
    %v3133 = vmax.f32 %v3131, 0.0
    %v3135 = vrot.slane %v3132, 6
    %3137 = vst [vmem:[#allocation5 + $0x11] sm:$0x1] %v3135
    %v3138 = vrot.slane %v3132, 7
    %3140 = vst [vmem:[#allocation5 + $0x19] sm:$0x1] %v3138
    %3141 = vst [vmem:[#allocation5 + $0x13] sm:$0x1] %v3133
    %v3143 = vrot.slane %v3133, 1
    %3145 = vst [vmem:[#allocation5 + $0x1b] sm:$0x1] %v3143
    %v3146 = vrot.slane %v3133, 3
    %3148 = vst [vmem:[#allocation5 + $0x5] sm:$0x1] %v3146
    %v3149 = vrot.slane %v3133, 4
    %3151 = vst [vmem:[#allocation5 + $0xd] sm:$0x1] %v3149
    %v3152 = vrot.slane %v3133, 5
    %3154 = vst [vmem:[#allocation5 + $0x7] sm:$0x1] %v3152
    %v3155 = vrot.slane %v3133, 6
    %3157 = vst [vmem:[#allocation5 + $0xf] sm:$0x1] %v3155
    %v3159 = vrot.slane %v3103, 1
    %v3161 = vmax.f32 %v3103, %v3159
    %v3162 = vadd.f32 %v3161, %v3017
    %v3163 = vmax.f32 %v3162, 0.0
    %3164 = vst [vmem:[#allocation5 + $0x15] sm:$0x1] %v3163
    %v3166 = vrot.slane %v3163, 1
    %3168 = vst [vmem:[#allocation5 + $0x1d] sm:$0x1] %v3166
    %v3169 = vrot.slane %v3163, 2
    %3171 = vst [vmem:[#allocation5 + $0x17] sm:$0x1] %v3169
    %v3172 = vrot.slane %v3163, 3
    %3174 = vst [vmem:[#allocation5 + $0x1f] sm:$0x1] %v3172
    %v3175 = vld [vmem:[#allocation5] sm:$0xff]
    %v3176 = vld [vmem:[#allocation5 + $0x8] sm:$0xff]
    %v3177 = vld [vmem:[#allocation5 + $0x10] sm:$0xff]
    %v3178 = vld [vmem:[#allocation5 + $0x18] sm:$0xff]
    %v3179 = vld [vmem:[%s5] sm:$0xff]
    %v3180 = vld [vmem:[%s5 + $0x8] sm:$0xff]
    %v3181 = vld [vmem:[%s5 + $0x10] sm:$0xff]
    %v3182 = vld [vmem:[%s5 + $0x18] sm:$0xff]
    %v3183 = vld [vmem:[%s5 + $0x20] sm:$0xff]
    %v3184 = vld [vmem:[%s5 + $0x28] sm:$0xff]
    %v3185 = vld [vmem:[%s5 + $0x30] sm:$0xff]
    %v3186 = vld [vmem:[%s5 + $0x38] sm:$0xff]
    %v3187 = vld [vmem:[%s5 + $0x40] sm:$0xff]
    %v3188 = vld [vmem:[%s5 + $0x48] sm:$0xff]
    %v3189 = vld [vmem:[%s5 + $0x50] sm:$0xff]
    %v3190 = vld [vmem:[%s5 + $0x58] sm:$0xff]
    %v3191 = vld [vmem:[%s5 + $0x60] sm:$0xff]
    %v3192 = vld [vmem:[%s5 + $0x68] sm:$0xff]
    %v3193 = vld [vmem:[%s5 + $0x70] sm:$0xff]
    %v3194 = vld [vmem:[%s5 + $0x78] sm:$0xff]
    %v3195 = vld [vmem:[%s5 + $0x80] sm:$0xff]
    %v3196 = vld [vmem:[%s5 + $0x88] sm:$0xff]
    %v3197 = vld [vmem:[%s5 + $0x90] sm:$0xff]
    %v3198 = vld [vmem:[%s5 + $0x98] sm:$0xff]
    %v3199 = vld [vmem:[%s5 + $0xa0] sm:$0xff]
    %v3200 = vld [vmem:[%s5 + $0xa8] sm:$0xff]
    %v3201 = vld [vmem:[%s5 + $0xb0] sm:$0xff]
    %v3202 = vld [vmem:[%s5 + $0xb8] sm:$0xff]
    %v3203 = vld [vmem:[%s5 + $0xc0] sm:$0xff]
    %v3204 = vld [vmem:[%s5 + $0xc8] sm:$0xff]
    %v3205 = vld [vmem:[%s5 + $0xd0] sm:$0xff]
    %v3206 = vld [vmem:[%s5 + $0xd8] sm:$0xff]
    %v3207 = vld [vmem:[%s5 + $0xe0] sm:$0xff]
    %v3208 = vld [vmem:[%s5 + $0xe8] sm:$0xff]
    %v3209 = vld [vmem:[%s5 + $0xf0] sm:$0xff]
    %v3210 = vld [vmem:[%s5 + $0xf8] sm:$0xff]
    %v3211 = vld [vmem:[%s5 + $0x100] sm:$0xff]
    %v3212 = vld [vmem:[%s5 + $0x108] sm:$0xff]
    %v3213 = vld [vmem:[%s5 + $0x110] sm:$0xff]
    %v3214 = vld [vmem:[%s5 + $0x118] sm:$0xff]
    %v3215 = vld [vmem:[%s5 + $0x120] sm:$0xff]
    %v3216 = vld [vmem:[%s5 + $0x128] sm:$0xff]
    %v3217 = vld [vmem:[%s5 + $0x130] sm:$0xff]
    %v3218 = vld [vmem:[%s5 + $0x138] sm:$0xff]
    %v3219 = vld [vmem:[%s5 + $0x140] sm:$0xff]
    %v3220 = vld [vmem:[%s5 + $0x148] sm:$0xff]
    %v3221 = vld [vmem:[%s5 + $0x150] sm:$0xff]
    %v3222 = vld [vmem:[%s5 + $0x158] sm:$0xff]
    %v3223 = vld [vmem:[%s5 + $0x160] sm:$0xff]
    %v3224 = vld [vmem:[%s5 + $0x168] sm:$0xff]
    %v3225 = vld [vmem:[%s5 + $0x170] sm:$0xff]
    %v3226 = vld [vmem:[%s5 + $0x178] sm:$0xff]
    %v3227 = vld [vmem:[%s5 + $0x180] sm:$0xff]
    %v3228 = vld [vmem:[%s5 + $0x188] sm:$0xff]
    %v3229 = vld [vmem:[%s5 + $0x190] sm:$0xff]
    %v3230 = vld [vmem:[%s5 + $0x198] sm:$0xff]
    %v3231 = vld [vmem:[%s5 + $0x1a0] sm:$0xff]
    %v3232 = vld [vmem:[%s5 + $0x1a8] sm:$0xff]
    %v3233 = vld [vmem:[%s5 + $0x1b0] sm:$0xff]
    %v3234 = vld [vmem:[%s5 + $0x1b8] sm:$0xff]
    %v3235 = vld [vmem:[%s5 + $0x1c0] sm:$0xff]
    %v3236 = vld [vmem:[%s5 + $0x1c8] sm:$0xff]
    %v3237 = vld [vmem:[%s5 + $0x1d0] sm:$0xff]
    %v3238 = vld [vmem:[%s5 + $0x1d8] sm:$0xff]
    %v3239 = vld [vmem:[%s5 + $0x1e0] sm:$0xff]
    %v3240 = vld [vmem:[%s5 + $0x1e8] sm:$0xff]
    %v3241 = vld [vmem:[%s5 + $0x1f0] sm:$0xff]
    %v3242 = vld [vmem:[%s5 + $0x1f8] sm:$0xff]
    %v3243 = vld [vmem:[%s6] sm:$0x1]
    %v3245 = vlaneseq
    %v3246 = vshrl.u32 %v3245, 7
    %v3247 = vsub.s32 0, %v3246
    %v3248 = vrot.slane %v3243, %v3247
    %3250 = vmatprep.subr.mxu0 0.0
    %3251 = vmatpush1.msra.mxu0 %v3194
    %3252 = vmatprep.subr.mxu0 0.0
    %3253 = vmatpush1.msra.mxu0 %v3193
    %3254 = vmatprep.subr.mxu0 0.0
    %3255 = vmatpush1.msra.mxu0 %v3192
    %3256 = vmatprep.subr.mxu0 0.0
    %3257 = vmatpush1.msra.mxu0 %v3191
    %3258 = vmatprep.subr.mxu0 0.0
    %3259 = vmatpush1.msra.mxu0 %v3190
    %3260 = vmatprep.subr.mxu0 0.0
    %3261 = vmatpush1.msra.mxu0 %v3189
    %3262 = vmatprep.subr.mxu0 0.0
    %3263 = vmatpush1.msra.mxu0 %v3188
    %3264 = vmatprep.subr.mxu0 0.0
    %3265 = vmatpush1.msra.mxu0 %v3187
    %3266 = vmatprep.subr.mxu0 0.0
    %3267 = vmatpush1.msra.mxu0 %v3186
    %3268 = vmatprep.subr.mxu0 0.0
    %3269 = vmatpush1.msra.mxu0 %v3185
    %3270 = vmatprep.subr.mxu0 0.0
    %3271 = vmatpush1.msra.mxu0 %v3184
    %3272 = vmatprep.subr.mxu0 0.0
    %3273 = vmatpush1.msra.mxu0 %v3183
    %3274 = vmatprep.subr.mxu0 0.0
    %3275 = vmatpush1.msra.mxu0 %v3182
    %3276 = vmatprep.subr.mxu0 0.0
    %3277 = vmatpush1.msra.mxu0 %v3181
    %3278 = vmatprep.subr.mxu0 0.0
    %3279 = vmatpush1.msra.mxu0 %v3180
    %3280 = vmatprep.subr.mxu0 0.0
    %3281 = vmatpush1.msra.mxu0 %v3179
    %3282 = vmatprep.subr.mxu0 0.0
    %3283 = vmatpush2.msra.mxu0 %v3210
    %3284 = vmatprep.subr.mxu0 0.0
    %3285 = vmatpush2.msra.mxu0 %v3209
    %3286 = vmatprep.subr.mxu0 0.0
    %3287 = vmatpush2.msra.mxu0 %v3208
    %3288 = vmatprep.subr.mxu0 0.0
    %3289 = vmatpush2.msra.mxu0 %v3207
    %3290 = vmatprep.subr.mxu0 0.0
    %3291 = vmatpush2.msra.mxu0 %v3206
    %3292 = vmatprep.subr.mxu0 0.0
    %3293 = vmatpush2.msra.mxu0 %v3205
    %3294 = vmatprep.subr.mxu0 0.0
    %3295 = vmatpush2.msra.mxu0 %v3204
    %3296 = vmatprep.subr.mxu0 0.0
    %3297 = vmatpush2.msra.mxu0 %v3203
    %3298 = vmatprep.subr.mxu0 0.0
    %3299 = vmatpush2.msra.mxu0 %v3202
    %3300 = vmatprep.subr.mxu0 0.0
    %3301 = vmatpush2.msra.mxu0 %v3201
    %3302 = vmatprep.subr.mxu0 0.0
    %3303 = vmatpush2.msra.mxu0 %v3200
    %3304 = vmatprep.subr.mxu0 0.0
    %3305 = vmatpush2.msra.mxu0 %v3199
    %3306 = vmatprep.subr.mxu0 0.0
    %3307 = vmatpush2.msra.mxu0 %v3198
    %3308 = vmatprep.subr.mxu0 0.0
    %3309 = vmatpush2.msra.mxu0 %v3197
    %3310 = vmatprep.subr.mxu0 0.0
    %3311 = vmatpush2.msra.mxu0 %v3196
    %3312 = vmatprep.subr.mxu0 0.0
    %3313 = vmatpush2.msra.mxu0 %v3195
    %3314 = vmatprep.mubr.f32.mxu0 %v3176
    %3315 = vmatmul.mubr.f32.gmra.mxu0 %v3175
    %v3316 = vpop.f32.mrf.mxu0
    %v3317 = vadd.f32 %v3248, %v3316
    %v3318 = vpop.f32.mrf.mxu0
    %3319 = vdwg.mxu0
    %3320 = vmatprep.subr.mxu0 0.0
    %3321 = vmatpush1.msra.mxu0 %v3226
    %3322 = vmatprep.subr.mxu0 0.0
    %3323 = vmatpush1.msra.mxu0 %v3225
    %3324 = vmatprep.subr.mxu0 0.0
    %3325 = vmatpush1.msra.mxu0 %v3224
    %3326 = vmatprep.subr.mxu0 0.0
    %3327 = vmatpush1.msra.mxu0 %v3223
    %3328 = vmatprep.subr.mxu0 0.0
    %3329 = vmatpush1.msra.mxu0 %v3222
    %3330 = vmatprep.subr.mxu0 0.0
    %3331 = vmatpush1.msra.mxu0 %v3221
    %3332 = vmatprep.subr.mxu0 0.0
    %3333 = vmatpush1.msra.mxu0 %v3220
    %3334 = vmatprep.subr.mxu0 0.0
    %3335 = vmatpush1.msra.mxu0 %v3219
    %3336 = vmatprep.subr.mxu0 0.0
    %3337 = vmatpush1.msra.mxu0 %v3218
    %3338 = vmatprep.subr.mxu0 0.0
    %3339 = vmatpush1.msra.mxu0 %v3217
    %3340 = vmatprep.subr.mxu0 0.0
    %3341 = vmatpush1.msra.mxu0 %v3216
    %3342 = vmatprep.subr.mxu0 0.0
    %3343 = vmatpush1.msra.mxu0 %v3215
    %3344 = vmatprep.subr.mxu0 0.0
    %3345 = vmatpush1.msra.mxu0 %v3214
    %3346 = vmatprep.subr.mxu0 0.0
    %3347 = vmatpush1.msra.mxu0 %v3213
    %3348 = vmatprep.subr.mxu0 0.0
    %3349 = vmatpush1.msra.mxu0 %v3212
    %3350 = vmatprep.subr.mxu0 0.0
    %3351 = vmatpush1.msra.mxu0 %v3211
    %3352 = vmatprep.subr.mxu0 0.0
    %3353 = vmatpush2.msra.mxu0 %v3242
    %3354 = vmatprep.subr.mxu0 0.0
    %3355 = vmatpush2.msra.mxu0 %v3241
    %3356 = vmatprep.subr.mxu0 0.0
    %3357 = vmatpush2.msra.mxu0 %v3240
    %3358 = vmatprep.subr.mxu0 0.0
    %3359 = vmatpush2.msra.mxu0 %v3239
    %3360 = vmatprep.subr.mxu0 0.0
    %3361 = vmatpush2.msra.mxu0 %v3238
    %3362 = vmatprep.subr.mxu0 0.0
    %3363 = vmatpush2.msra.mxu0 %v3237
    %3364 = vmatprep.subr.mxu0 0.0
    %3365 = vmatpush2.msra.mxu0 %v3236
    %3366 = vmatprep.subr.mxu0 0.0
    %3367 = vmatpush2.msra.mxu0 %v3235
    %3368 = vmatprep.subr.mxu0 0.0
    %3369 = vmatpush2.msra.mxu0 %v3234
    %3370 = vmatprep.subr.mxu0 0.0
    %3371 = vmatpush2.msra.mxu0 %v3233
    %3372 = vmatprep.subr.mxu0 0.0
    %3373 = vmatpush2.msra.mxu0 %v3232
    %3374 = vmatprep.subr.mxu0 0.0
    %3375 = vmatpush2.msra.mxu0 %v3231
    %3376 = vmatprep.subr.mxu0 0.0
    %3377 = vmatpush2.msra.mxu0 %v3230
    %3378 = vmatprep.subr.mxu0 0.0
    %3379 = vmatpush2.msra.mxu0 %v3229
    %3380 = vmatprep.subr.mxu0 0.0
    %3381 = vmatpush2.msra.mxu0 %v3228
    %3382 = vmatprep.subr.mxu0 0.0
    %3383 = vmatpush2.msra.mxu0 %v3227
    %3384 = vmatprep.mubr.f32.mxu0 %v3178
    %3385 = vmatmul.mubr.f32.gmra.mxu0 %v3177
    %v3386 = vpop.f32.mrf.mxu0
    %v3387 = vadd.f32 %v3317, %v3386
    %v3388 = vpop.f32.mrf.mxu0
    %3389 = vdwg.mxu0
    %v3390 = vmax.f32 %v3387, 0.0
    %3391 = vst [vmem:[#allocation6] sm:$0x3] %v3390
    %v3394 = vunpack.c.l.s4 1983009808
    %v3395 = vunpack.c.0.s8 %v3394
    %v3396 = vlaneseq
    %v3397 = vshrl.u32 %v3396, 7
    %v3398 = vsub.s32 %v3395, %v3397
    %v3399 = vrot.slane %v3390, %v3398
    %v3400 = vcombine.high %v3399, %v3399
    %3402 = vst [vmem:[#allocation6 + $0x2] sm:$0x3] %v3400
    %v3403 = vcombine.high %v3390, %v3390
    %v3405 = vunpack.c.l.s4 1983009808
    %v3406 = vunpack.c.0.s8 %v3405
    %v3407 = vlaneseq
    %v3408 = vshrl.u32 %v3407, 7
    %v3409 = vsub.s32 %v3406, %v3408
    %v3410 = vrot.slane %v3403, %v3409
    %3412 = vst [vmem:[#allocation6 + $0x4] sm:$0x3] %v3410
    %v3413 = vcombine.high %v3410, %v3410
    %3415 = vst [vmem:[#allocation6 + $0x6] sm:$0x3] %v3413
    %v3416 = vld [vmem:[#allocation6] sm:$0xff]
    %v3417 = vld [vmem:[%s7] sm:$0xff]
    %v3418 = vld [vmem:[%s7 + $0x8] sm:$0xff]
    %v3419 = vld [vmem:[%s7 + $0x10] sm:$0xff]
    %v3420 = vld [vmem:[%s7 + $0x18] sm:$0xff]
    %v3421 = vld [vmem:[%s7 + $0x20] sm:$0xff]
    %v3422 = vld [vmem:[%s7 + $0x28] sm:$0xff]
    %v3423 = vld [vmem:[%s7 + $0x30] sm:$0xff]
    %v3424 = vld [vmem:[%s7 + $0x38] sm:$0xff]
    %v3425 = vld [vmem:[%s7 + $0x40] sm:$0xff]
    %v3426 = vld [vmem:[%s7 + $0x48] sm:$0xff]
    %v3427 = vld [vmem:[%s7 + $0x50] sm:$0xff]
    %v3428 = vld [vmem:[%s7 + $0x58] sm:$0xff]
    %v3429 = vld [vmem:[%s7 + $0x60] sm:$0xff]
    %v3430 = vld [vmem:[%s7 + $0x68] sm:$0xff]
    %v3431 = vld [vmem:[%s7 + $0x70] sm:$0xff]
    %v3432 = vld [vmem:[%s7 + $0x78] sm:$0xff]
    %v3433 = vld [vmem:[%s7 + $0x80] sm:$0xff]
    %v3434 = vld [vmem:[%s7 + $0x88] sm:$0xff]
    %v3435 = vld [vmem:[%s7 + $0x90] sm:$0xff]
    %v3436 = vld [vmem:[%s7 + $0x98] sm:$0xff]
    %v3437 = vld [vmem:[%s7 + $0xa0] sm:$0xff]
    %v3438 = vld [vmem:[%s7 + $0xa8] sm:$0xff]
    %v3439 = vld [vmem:[%s7 + $0xb0] sm:$0xff]
    %v3440 = vld [vmem:[%s7 + $0xb8] sm:$0xff]
    %v3441 = vld [vmem:[%s7 + $0xc0] sm:$0xff]
    %v3442 = vld [vmem:[%s7 + $0xc8] sm:$0xff]
    %v3443 = vld [vmem:[%s7 + $0xd0] sm:$0xff]
    %v3444 = vld [vmem:[%s7 + $0xd8] sm:$0xff]
    %v3445 = vld [vmem:[%s7 + $0xe0] sm:$0xff]
    %v3446 = vld [vmem:[%s7 + $0xe8] sm:$0xff]
    %v3447 = vld [vmem:[%s7 + $0xf0] sm:$0xff]
    %v3448 = vld [vmem:[%s7 + $0xf8] sm:$0xff]
    %v3449 = vld [vmem:[%s7 + $0x100] sm:$0xff]
    %v3450 = vld [vmem:[%s7 + $0x108] sm:$0xff]
    %v3451 = vld [vmem:[%s7 + $0x110] sm:$0xff]
    %v3452 = vld [vmem:[%s7 + $0x118] sm:$0xff]
    %v3453 = vld [vmem:[%s7 + $0x120] sm:$0xff]
    %v3454 = vld [vmem:[%s7 + $0x128] sm:$0xff]
    %v3455 = vld [vmem:[%s7 + $0x130] sm:$0xff]
    %v3456 = vld [vmem:[%s7 + $0x138] sm:$0xff]
    %v3457 = vld [vmem:[%s7 + $0x140] sm:$0xff]
    %v3458 = vld [vmem:[%s7 + $0x148] sm:$0xff]
    %v3459 = vld [vmem:[%s7 + $0x150] sm:$0xff]
    %v3460 = vld [vmem:[%s7 + $0x158] sm:$0xff]
    %v3461 = vld [vmem:[%s7 + $0x160] sm:$0xff]
    %v3462 = vld [vmem:[%s7 + $0x168] sm:$0xff]
    %v3463 = vld [vmem:[%s7 + $0x170] sm:$0xff]
    %v3464 = vld [vmem:[%s7 + $0x178] sm:$0xff]
    %v3465 = vld [vmem:[%s7 + $0x180] sm:$0xff]
    %v3466 = vld [vmem:[%s7 + $0x188] sm:$0xff]
    %v3467 = vld [vmem:[%s7 + $0x190] sm:$0xff]
    %v3468 = vld [vmem:[%s7 + $0x198] sm:$0xff]
    %v3469 = vld [vmem:[%s7 + $0x1a0] sm:$0xff]
    %v3470 = vld [vmem:[%s7 + $0x1a8] sm:$0xff]
    %v3471 = vld [vmem:[%s7 + $0x1b0] sm:$0xff]
    %v3472 = vld [vmem:[%s7 + $0x1b8] sm:$0xff]
    %v3473 = vld [vmem:[%s7 + $0x1c0] sm:$0xff]
    %v3474 = vld [vmem:[%s7 + $0x1c8] sm:$0xff]
    %v3475 = vld [vmem:[%s7 + $0x1d0] sm:$0xff]
    %v3476 = vld [vmem:[%s7 + $0x1d8] sm:$0xff]
    %v3477 = vld [vmem:[%s7 + $0x1e0] sm:$0xff]
    %v3478 = vld [vmem:[%s7 + $0x1e8] sm:$0xff]
    %v3479 = vld [vmem:[%s7 + $0x1f0] sm:$0xff]
    %v3480 = vld [vmem:[%s7 + $0x1f8] sm:$0xff]
    %v3481 = vld [vmem:[%s7 + $0x200] sm:$0xff]
    %v3482 = vld [vmem:[%s7 + $0x208] sm:$0xff]
    %v3483 = vld [vmem:[%s7 + $0x210] sm:$0xff]
    %v3484 = vld [vmem:[%s7 + $0x218] sm:$0xff]
    %v3485 = vld [vmem:[%s7 + $0x220] sm:$0xff]
    %v3486 = vld [vmem:[%s7 + $0x228] sm:$0xff]
    %v3487 = vld [vmem:[%s7 + $0x230] sm:$0xff]
    %v3488 = vld [vmem:[%s7 + $0x238] sm:$0xff]
    %v3489 = vld [vmem:[%s7 + $0x240] sm:$0xff]
    %v3490 = vld [vmem:[%s7 + $0x248] sm:$0xff]
    %v3491 = vld [vmem:[%s7 + $0x250] sm:$0xff]
    %v3492 = vld [vmem:[%s7 + $0x258] sm:$0xff]
    %v3493 = vld [vmem:[%s7 + $0x260] sm:$0xff]
    %v3494 = vld [vmem:[%s7 + $0x268] sm:$0xff]
    %v3495 = vld [vmem:[%s7 + $0x270] sm:$0xff]
    %v3496 = vld [vmem:[%s7 + $0x278] sm:$0xff]
    %v3497 = vld [vmem:[%s7 + $0x280] sm:$0xff]
    %v3498 = vld [vmem:[%s7 + $0x288] sm:$0xff]
    %v3499 = vld [vmem:[%s7 + $0x290] sm:$0xff]
    %v3500 = vld [vmem:[%s7 + $0x298] sm:$0xff]
    %v3501 = vld [vmem:[%s7 + $0x2a0] sm:$0xff]
    %v3502 = vld [vmem:[%s7 + $0x2a8] sm:$0xff]
    %v3503 = vld [vmem:[%s7 + $0x2b0] sm:$0xff]
    %v3504 = vld [vmem:[%s7 + $0x2b8] sm:$0xff]
    %v3505 = vld [vmem:[%s7 + $0x2c0] sm:$0xff]
    %v3506 = vld [vmem:[%s7 + $0x2c8] sm:$0xff]
    %v3507 = vld [vmem:[%s7 + $0x2d0] sm:$0xff]
    %v3508 = vld [vmem:[%s7 + $0x2d8] sm:$0xff]
    %v3509 = vld [vmem:[%s7 + $0x2e0] sm:$0xff]
    %v3510 = vld [vmem:[%s7 + $0x2e8] sm:$0xff]
    %v3511 = vld [vmem:[%s7 + $0x2f0] sm:$0xff]
    %v3512 = vld [vmem:[%s7 + $0x2f8] sm:$0xff]
    %v3513 = vld [vmem:[%s7 + $0x300] sm:$0xff]
    %v3514 = vld [vmem:[%s7 + $0x308] sm:$0xff]
    %v3515 = vld [vmem:[%s7 + $0x310] sm:$0xff]
    %v3516 = vld [vmem:[%s7 + $0x318] sm:$0xff]
    %v3517 = vld [vmem:[%s7 + $0x320] sm:$0xff]
    %v3518 = vld [vmem:[%s7 + $0x328] sm:$0xff]
    %v3519 = vld [vmem:[%s7 + $0x330] sm:$0xff]
    %v3520 = vld [vmem:[%s7 + $0x338] sm:$0xff]
    %v3521 = vld [vmem:[%s7 + $0x340] sm:$0xff]
    %v3522 = vld [vmem:[%s7 + $0x348] sm:$0xff]
    %v3523 = vld [vmem:[%s7 + $0x350] sm:$0xff]
    %v3524 = vld [vmem:[%s7 + $0x358] sm:$0xff]
    %v3525 = vld [vmem:[%s7 + $0x360] sm:$0xff]
    %v3526 = vld [vmem:[%s7 + $0x368] sm:$0xff]
    %v3527 = vld [vmem:[%s7 + $0x370] sm:$0xff]
    %v3528 = vld [vmem:[%s7 + $0x378] sm:$0xff]
    %v3529 = vld [vmem:[%s7 + $0x380] sm:$0xff]
    %v3530 = vld [vmem:[%s7 + $0x388] sm:$0xff]
    %v3531 = vld [vmem:[%s7 + $0x390] sm:$0xff]
    %v3532 = vld [vmem:[%s7 + $0x398] sm:$0xff]
    %v3533 = vld [vmem:[%s7 + $0x3a0] sm:$0xff]
    %v3534 = vld [vmem:[%s7 + $0x3a8] sm:$0xff]
    %v3535 = vld [vmem:[%s7 + $0x3b0] sm:$0xff]
    %v3536 = vld [vmem:[%s7 + $0x3b8] sm:$0xff]
    %v3537 = vld [vmem:[%s7 + $0x3c0] sm:$0xff]
    %v3538 = vld [vmem:[%s7 + $0x3c8] sm:$0xff]
    %v3539 = vld [vmem:[%s7 + $0x3d0] sm:$0xff]
    %v3540 = vld [vmem:[%s7 + $0x3d8] sm:$0xff]
    %v3541 = vld [vmem:[%s7 + $0x3e0] sm:$0xff]
    %v3542 = vld [vmem:[%s7 + $0x3e8] sm:$0xff]
    %v3543 = vld [vmem:[%s7 + $0x3f0] sm:$0xff]
    %v3544 = vld [vmem:[%s7 + $0x3f8] sm:$0xff]
    %v3545 = vld [vmem:[%s7 + $0x400] sm:$0xff]
    %v3546 = vld [vmem:[%s7 + $0x408] sm:$0xff]
    %v3547 = vld [vmem:[%s7 + $0x410] sm:$0xff]
    %v3548 = vld [vmem:[%s7 + $0x418] sm:$0xff]
    %v3549 = vld [vmem:[%s7 + $0x420] sm:$0xff]
    %v3550 = vld [vmem:[%s7 + $0x428] sm:$0xff]
    %v3551 = vld [vmem:[%s7 + $0x430] sm:$0xff]
    %v3552 = vld [vmem:[%s7 + $0x438] sm:$0xff]
    %v3553 = vld [vmem:[%s7 + $0x440] sm:$0xff]
    %v3554 = vld [vmem:[%s7 + $0x448] sm:$0xff]
    %v3555 = vld [vmem:[%s7 + $0x450] sm:$0xff]
    %v3556 = vld [vmem:[%s7 + $0x458] sm:$0xff]
    %v3557 = vld [vmem:[%s7 + $0x460] sm:$0xff]
    %v3558 = vld [vmem:[%s7 + $0x468] sm:$0xff]
    %v3559 = vld [vmem:[%s7 + $0x470] sm:$0xff]
    %v3560 = vld [vmem:[%s7 + $0x478] sm:$0xff]
    %v3561 = vld [vmem:[%s7 + $0x480] sm:$0xff]
    %v3562 = vld [vmem:[%s7 + $0x488] sm:$0xff]
    %v3563 = vld [vmem:[%s7 + $0x490] sm:$0xff]
    %v3564 = vld [vmem:[%s7 + $0x498] sm:$0xff]
    %v3565 = vld [vmem:[%s7 + $0x4a0] sm:$0xff]
    %v3566 = vld [vmem:[%s7 + $0x4a8] sm:$0xff]
    %v3567 = vld [vmem:[%s7 + $0x4b0] sm:$0xff]
    %v3568 = vld [vmem:[%s7 + $0x4b8] sm:$0xff]
    %v3569 = vld [vmem:[%s7 + $0x4c0] sm:$0xff]
    %v3570 = vld [vmem:[%s7 + $0x4c8] sm:$0xff]
    %v3571 = vld [vmem:[%s7 + $0x4d0] sm:$0xff]
    %v3572 = vld [vmem:[%s7 + $0x4d8] sm:$0xff]
    %v3573 = vld [vmem:[%s7 + $0x4e0] sm:$0xff]
    %v3574 = vld [vmem:[%s7 + $0x4e8] sm:$0xff]
    %v3575 = vld [vmem:[%s7 + $0x4f0] sm:$0xff]
    %v3576 = vld [vmem:[%s7 + $0x4f8] sm:$0xff]
    %v3577 = vld [vmem:[%s7 + $0x500] sm:$0xff]
    %v3578 = vld [vmem:[%s7 + $0x508] sm:$0xff]
    %v3579 = vld [vmem:[%s7 + $0x510] sm:$0xff]
    %v3580 = vld [vmem:[%s7 + $0x518] sm:$0xff]
    %v3581 = vld [vmem:[%s7 + $0x520] sm:$0xff]
    %v3582 = vld [vmem:[%s7 + $0x528] sm:$0xff]
    %v3583 = vld [vmem:[%s7 + $0x530] sm:$0xff]
    %v3584 = vld [vmem:[%s7 + $0x538] sm:$0xff]
    %v3585 = vld [vmem:[%s7 + $0x540] sm:$0xff]
    %v3586 = vld [vmem:[%s7 + $0x548] sm:$0xff]
    %v3587 = vld [vmem:[%s7 + $0x550] sm:$0xff]
    %v3588 = vld [vmem:[%s7 + $0x558] sm:$0xff]
    %v3589 = vld [vmem:[%s7 + $0x560] sm:$0xff]
    %v3590 = vld [vmem:[%s7 + $0x568] sm:$0xff]
    %v3591 = vld [vmem:[%s7 + $0x570] sm:$0xff]
    %v3592 = vld [vmem:[%s7 + $0x578] sm:$0xff]
    %v3593 = vld [vmem:[%s7 + $0x580] sm:$0xff]
    %v3594 = vld [vmem:[%s7 + $0x588] sm:$0xff]
    %v3595 = vld [vmem:[%s7 + $0x590] sm:$0xff]
    %v3596 = vld [vmem:[%s7 + $0x598] sm:$0xff]
    %v3597 = vld [vmem:[%s7 + $0x5a0] sm:$0xff]
    %v3598 = vld [vmem:[%s7 + $0x5a8] sm:$0xff]
    %v3599 = vld [vmem:[%s7 + $0x5b0] sm:$0xff]
    %v3600 = vld [vmem:[%s7 + $0x5b8] sm:$0xff]
    %v3601 = vld [vmem:[%s7 + $0x5c0] sm:$0xff]
    %v3602 = vld [vmem:[%s7 + $0x5c8] sm:$0xff]
    %v3603 = vld [vmem:[%s7 + $0x5d0] sm:$0xff]
    %v3604 = vld [vmem:[%s7 + $0x5d8] sm:$0xff]
    %v3605 = vld [vmem:[%s7 + $0x5e0] sm:$0xff]
    %v3606 = vld [vmem:[%s7 + $0x5e8] sm:$0xff]
    %v3607 = vld [vmem:[%s7 + $0x5f0] sm:$0xff]
    %v3608 = vld [vmem:[%s7 + $0x5f8] sm:$0xff]
    %v3609 = vld [vmem:[%s7 + $0x600] sm:$0xff]
    %v3610 = vld [vmem:[%s7 + $0x608] sm:$0xff]
    %v3611 = vld [vmem:[%s7 + $0x610] sm:$0xff]
    %v3612 = vld [vmem:[%s7 + $0x618] sm:$0xff]
    %v3613 = vld [vmem:[%s7 + $0x620] sm:$0xff]
    %v3614 = vld [vmem:[%s7 + $0x628] sm:$0xff]
    %v3615 = vld [vmem:[%s7 + $0x630] sm:$0xff]
    %v3616 = vld [vmem:[%s7 + $0x638] sm:$0xff]
    %v3617 = vld [vmem:[%s7 + $0x640] sm:$0xff]
    %v3618 = vld [vmem:[%s7 + $0x648] sm:$0xff]
    %v3619 = vld [vmem:[%s7 + $0x650] sm:$0xff]
    %v3620 = vld [vmem:[%s7 + $0x658] sm:$0xff]
    %v3621 = vld [vmem:[%s7 + $0x660] sm:$0xff]
    %v3622 = vld [vmem:[%s7 + $0x668] sm:$0xff]
    %v3623 = vld [vmem:[%s7 + $0x670] sm:$0xff]
    %v3624 = vld [vmem:[%s7 + $0x678] sm:$0xff]
    %v3625 = vld [vmem:[%s7 + $0x680] sm:$0xff]
    %v3626 = vld [vmem:[%s7 + $0x688] sm:$0xff]
    %v3627 = vld [vmem:[%s7 + $0x690] sm:$0xff]
    %v3628 = vld [vmem:[%s7 + $0x698] sm:$0xff]
    %v3629 = vld [vmem:[%s7 + $0x6a0] sm:$0xff]
    %v3630 = vld [vmem:[%s7 + $0x6a8] sm:$0xff]
    %v3631 = vld [vmem:[%s7 + $0x6b0] sm:$0xff]
    %v3632 = vld [vmem:[%s7 + $0x6b8] sm:$0xff]
    %v3633 = vld [vmem:[%s7 + $0x6c0] sm:$0xff]
    %v3634 = vld [vmem:[%s7 + $0x6c8] sm:$0xff]
    %v3635 = vld [vmem:[%s7 + $0x6d0] sm:$0xff]
    %v3636 = vld [vmem:[%s7 + $0x6d8] sm:$0xff]
    %v3637 = vld [vmem:[%s7 + $0x6e0] sm:$0xff]
    %v3638 = vld [vmem:[%s7 + $0x6e8] sm:$0xff]
    %v3639 = vld [vmem:[%s7 + $0x6f0] sm:$0xff]
    %v3640 = vld [vmem:[%s7 + $0x6f8] sm:$0xff]
    %v3641 = vld [vmem:[%s7 + $0x700] sm:$0xff]
    %v3642 = vld [vmem:[%s7 + $0x708] sm:$0xff]
    %v3643 = vld [vmem:[%s7 + $0x710] sm:$0xff]
    %v3644 = vld [vmem:[%s7 + $0x718] sm:$0xff]
    %v3645 = vld [vmem:[%s7 + $0x720] sm:$0xff]
    %v3646 = vld [vmem:[%s7 + $0x728] sm:$0xff]
    %v3647 = vld [vmem:[%s7 + $0x730] sm:$0xff]
    %v3648 = vld [vmem:[%s7 + $0x738] sm:$0xff]
    %v3649 = vld [vmem:[%s7 + $0x740] sm:$0xff]
    %v3650 = vld [vmem:[%s7 + $0x748] sm:$0xff]
    %v3651 = vld [vmem:[%s7 + $0x750] sm:$0xff]
    %v3652 = vld [vmem:[%s7 + $0x758] sm:$0xff]
    %v3653 = vld [vmem:[%s7 + $0x760] sm:$0xff]
    %v3654 = vld [vmem:[%s7 + $0x768] sm:$0xff]
    %v3655 = vld [vmem:[%s7 + $0x770] sm:$0xff]
    %v3656 = vld [vmem:[%s7 + $0x778] sm:$0xff]
    %v3657 = vld [vmem:[%s7 + $0x780] sm:$0xff]
    %v3658 = vld [vmem:[%s7 + $0x788] sm:$0xff]
    %v3659 = vld [vmem:[%s7 + $0x790] sm:$0xff]
    %v3660 = vld [vmem:[%s7 + $0x798] sm:$0xff]
    %v3661 = vld [vmem:[%s7 + $0x7a0] sm:$0xff]
    %v3662 = vld [vmem:[%s7 + $0x7a8] sm:$0xff]
    %v3663 = vld [vmem:[%s7 + $0x7b0] sm:$0xff]
    %v3664 = vld [vmem:[%s7 + $0x7b8] sm:$0xff]
    %v3665 = vld [vmem:[%s7 + $0x7c0] sm:$0xff]
    %v3666 = vld [vmem:[%s7 + $0x7c8] sm:$0xff]
    %v3667 = vld [vmem:[%s7 + $0x7d0] sm:$0xff]
    %v3668 = vld [vmem:[%s7 + $0x7d8] sm:$0xff]
    %v3669 = vld [vmem:[%s7 + $0x7e0] sm:$0xff]
    %v3670 = vld [vmem:[%s7 + $0x7e8] sm:$0xff]
    %v3671 = vld [vmem:[%s7 + $0x7f0] sm:$0xff]
    %v3672 = vld [vmem:[%s7 + $0x7f8] sm:$0xff]
    %v3673 = vld [vmem:[%s7 + $0x800] sm:$0xff]
    %v3674 = vld [vmem:[%s7 + $0x808] sm:$0xff]
    %v3675 = vld [vmem:[%s7 + $0x810] sm:$0xff]
    %v3676 = vld [vmem:[%s7 + $0x818] sm:$0xff]
    %v3677 = vld [vmem:[%s7 + $0x820] sm:$0xff]
    %v3678 = vld [vmem:[%s7 + $0x828] sm:$0xff]
    %v3679 = vld [vmem:[%s7 + $0x830] sm:$0xff]
    %v3680 = vld [vmem:[%s7 + $0x838] sm:$0xff]
    %v3681 = vld [vmem:[%s7 + $0x840] sm:$0xff]
    %v3682 = vld [vmem:[%s7 + $0x848] sm:$0xff]
    %v3683 = vld [vmem:[%s7 + $0x850] sm:$0xff]
    %v3684 = vld [vmem:[%s7 + $0x858] sm:$0xff]
    %v3685 = vld [vmem:[%s7 + $0x860] sm:$0xff]
    %v3686 = vld [vmem:[%s7 + $0x868] sm:$0xff]
    %v3687 = vld [vmem:[%s7 + $0x870] sm:$0xff]
    %v3688 = vld [vmem:[%s7 + $0x878] sm:$0xff]
    %v3689 = vld [vmem:[%s7 + $0x880] sm:$0xff]
    %v3690 = vld [vmem:[%s7 + $0x888] sm:$0xff]
    %v3691 = vld [vmem:[%s7 + $0x890] sm:$0xff]
    %v3692 = vld [vmem:[%s7 + $0x898] sm:$0xff]
    %v3693 = vld [vmem:[%s7 + $0x8a0] sm:$0xff]
    %v3694 = vld [vmem:[%s7 + $0x8a8] sm:$0xff]
    %v3695 = vld [vmem:[%s7 + $0x8b0] sm:$0xff]
    %v3696 = vld [vmem:[%s7 + $0x8b8] sm:$0xff]
    %v3697 = vld [vmem:[%s7 + $0x8c0] sm:$0xff]
    %v3698 = vld [vmem:[%s7 + $0x8c8] sm:$0xff]
    %v3699 = vld [vmem:[%s7 + $0x8d0] sm:$0xff]
    %v3700 = vld [vmem:[%s7 + $0x8d8] sm:$0xff]
    %v3701 = vld [vmem:[%s7 + $0x8e0] sm:$0xff]
    %v3702 = vld [vmem:[%s7 + $0x8e8] sm:$0xff]
    %v3703 = vld [vmem:[%s7 + $0x8f0] sm:$0xff]
    %v3704 = vld [vmem:[%s7 + $0x8f8] sm:$0xff]
    %v3705 = vld [vmem:[%s7 + $0x900] sm:$0xff]
    %v3706 = vld [vmem:[%s7 + $0x908] sm:$0xff]
    %v3707 = vld [vmem:[%s7 + $0x910] sm:$0xff]
    %v3708 = vld [vmem:[%s7 + $0x918] sm:$0xff]
    %v3709 = vld [vmem:[%s7 + $0x920] sm:$0xff]
    %v3710 = vld [vmem:[%s7 + $0x928] sm:$0xff]
    %v3711 = vld [vmem:[%s7 + $0x930] sm:$0xff]
    %v3712 = vld [vmem:[%s7 + $0x938] sm:$0xff]
    %v3713 = vld [vmem:[%s7 + $0x940] sm:$0xff]
    %v3714 = vld [vmem:[%s7 + $0x948] sm:$0xff]
    %v3715 = vld [vmem:[%s7 + $0x950] sm:$0xff]
    %v3716 = vld [vmem:[%s7 + $0x958] sm:$0xff]
    %v3717 = vld [vmem:[%s7 + $0x960] sm:$0xff]
    %v3718 = vld [vmem:[%s7 + $0x968] sm:$0xff]
    %v3719 = vld [vmem:[%s7 + $0x970] sm:$0xff]
    %v3720 = vld [vmem:[%s7 + $0x978] sm:$0xff]
    %v3721 = vld [vmem:[%s7 + $0x980] sm:$0xff]
    %v3722 = vld [vmem:[%s7 + $0x988] sm:$0xff]
    %v3723 = vld [vmem:[%s7 + $0x990] sm:$0xff]
    %v3724 = vld [vmem:[%s7 + $0x998] sm:$0xff]
    %v3725 = vld [vmem:[%s7 + $0x9a0] sm:$0xff]
    %v3726 = vld [vmem:[%s7 + $0x9a8] sm:$0xff]
    %v3727 = vld [vmem:[%s7 + $0x9b0] sm:$0xff]
    %v3728 = vld [vmem:[%s7 + $0x9b8] sm:$0xff]
    %v3729 = vld [vmem:[%s7 + $0x9c0] sm:$0xff]
    %v3730 = vld [vmem:[%s7 + $0x9c8] sm:$0xff]
    %v3731 = vld [vmem:[%s7 + $0x9d0] sm:$0xff]
    %v3732 = vld [vmem:[%s7 + $0x9d8] sm:$0xff]
    %v3733 = vld [vmem:[%s7 + $0x9e0] sm:$0xff]
    %v3734 = vld [vmem:[%s7 + $0x9e8] sm:$0xff]
    %v3735 = vld [vmem:[%s7 + $0x9f0] sm:$0xff]
    %v3736 = vld [vmem:[%s7 + $0x9f8] sm:$0xff]
    %v3737 = vld [vmem:[%s7 + $0xa00] sm:$0xff]
    %v3738 = vld [vmem:[%s7 + $0xa08] sm:$0xff]
    %v3739 = vld [vmem:[%s7 + $0xa10] sm:$0xff]
    %v3740 = vld [vmem:[%s7 + $0xa18] sm:$0xff]
    %v3741 = vld [vmem:[%s7 + $0xa20] sm:$0xff]
    %v3742 = vld [vmem:[%s7 + $0xa28] sm:$0xff]
    %v3743 = vld [vmem:[%s7 + $0xa30] sm:$0xff]
    %v3744 = vld [vmem:[%s7 + $0xa38] sm:$0xff]
    %v3745 = vld [vmem:[%s7 + $0xa40] sm:$0xff]
    %v3746 = vld [vmem:[%s7 + $0xa48] sm:$0xff]
    %v3747 = vld [vmem:[%s7 + $0xa50] sm:$0xff]
    %v3748 = vld [vmem:[%s7 + $0xa58] sm:$0xff]
    %v3749 = vld [vmem:[%s7 + $0xa60] sm:$0xff]
    %v3750 = vld [vmem:[%s7 + $0xa68] sm:$0xff]
    %v3751 = vld [vmem:[%s7 + $0xa70] sm:$0xff]
    %v3752 = vld [vmem:[%s7 + $0xa78] sm:$0xff]
    %v3753 = vld [vmem:[%s7 + $0xa80] sm:$0xff]
    %v3754 = vld [vmem:[%s7 + $0xa88] sm:$0xff]
    %v3755 = vld [vmem:[%s7 + $0xa90] sm:$0xff]
    %v3756 = vld [vmem:[%s7 + $0xa98] sm:$0xff]
    %v3757 = vld [vmem:[%s7 + $0xaa0] sm:$0xff]
    %v3758 = vld [vmem:[%s7 + $0xaa8] sm:$0xff]
    %v3759 = vld [vmem:[%s7 + $0xab0] sm:$0xff]
    %v3760 = vld [vmem:[%s7 + $0xab8] sm:$0xff]
    %v3761 = vld [vmem:[%s7 + $0xac0] sm:$0xff]
    %v3762 = vld [vmem:[%s7 + $0xac8] sm:$0xff]
    %v3763 = vld [vmem:[%s7 + $0xad0] sm:$0xff]
    %v3764 = vld [vmem:[%s7 + $0xad8] sm:$0xff]
    %v3765 = vld [vmem:[%s7 + $0xae0] sm:$0xff]
    %v3766 = vld [vmem:[%s7 + $0xae8] sm:$0xff]
    %v3767 = vld [vmem:[%s7 + $0xaf0] sm:$0xff]
    %v3768 = vld [vmem:[%s7 + $0xaf8] sm:$0xff]
    %v3769 = vld [vmem:[%s7 + $0xb00] sm:$0xff]
    %v3770 = vld [vmem:[%s7 + $0xb08] sm:$0xff]
    %v3771 = vld [vmem:[%s7 + $0xb10] sm:$0xff]
    %v3772 = vld [vmem:[%s7 + $0xb18] sm:$0xff]
    %v3773 = vld [vmem:[%s7 + $0xb20] sm:$0xff]
    %v3774 = vld [vmem:[%s7 + $0xb28] sm:$0xff]
    %v3775 = vld [vmem:[%s7 + $0xb30] sm:$0xff]
    %v3776 = vld [vmem:[%s7 + $0xb38] sm:$0xff]
    %v3777 = vld [vmem:[%s7 + $0xb40] sm:$0xff]
    %v3778 = vld [vmem:[%s7 + $0xb48] sm:$0xff]
    %v3779 = vld [vmem:[%s7 + $0xb50] sm:$0xff]
    %v3780 = vld [vmem:[%s7 + $0xb58] sm:$0xff]
    %v3781 = vld [vmem:[%s7 + $0xb60] sm:$0xff]
    %v3782 = vld [vmem:[%s7 + $0xb68] sm:$0xff]
    %v3783 = vld [vmem:[%s7 + $0xb70] sm:$0xff]
    %v3784 = vld [vmem:[%s7 + $0xb78] sm:$0xff]
    %v3785 = vld [vmem:[%s7 + $0xb80] sm:$0xff]
    %v3786 = vld [vmem:[%s7 + $0xb88] sm:$0xff]
    %v3787 = vld [vmem:[%s7 + $0xb90] sm:$0xff]
    %v3788 = vld [vmem:[%s7 + $0xb98] sm:$0xff]
    %v3789 = vld [vmem:[%s7 + $0xba0] sm:$0xff]
    %v3790 = vld [vmem:[%s7 + $0xba8] sm:$0xff]
    %v3791 = vld [vmem:[%s7 + $0xbb0] sm:$0xff]
    %v3792 = vld [vmem:[%s7 + $0xbb8] sm:$0xff]
    %v3793 = vld [vmem:[%s7 + $0xbc0] sm:$0xff]
    %v3794 = vld [vmem:[%s7 + $0xbc8] sm:$0xff]
    %v3795 = vld [vmem:[%s7 + $0xbd0] sm:$0xff]
    %v3796 = vld [vmem:[%s7 + $0xbd8] sm:$0xff]
    %v3797 = vld [vmem:[%s7 + $0xbe0] sm:$0xff]
    %v3798 = vld [vmem:[%s7 + $0xbe8] sm:$0xff]
    %v3799 = vld [vmem:[%s7 + $0xbf0] sm:$0xff]
    %v3800 = vld [vmem:[%s7 + $0xbf8] sm:$0xff]
    %v3801 = vld [vmem:[%s8] sm:$0x3f]
    %v3803 = vlaneseq
    %v3804 = vshrl.u32 %v3803, 7
    %v3805 = vsub.s32 0, %v3804
    %v3806 = vrot.slane %v3801, %v3805
    %v3807 = vlaneseq
    %v3808 = vshrl.u32 %v3807, 7
    %v3809 = vsub.s32 1, %v3808
    %v3810 = vrot.slane %v3801, %v3809
    %v3811 = vlaneseq
    %v3812 = vshrl.u32 %v3811, 7
    %v3813 = vsub.s32 2, %v3812
    %v3814 = vrot.slane %v3801, %v3813
    %v3815 = vlaneseq
    %v3816 = vshrl.u32 %v3815, 7
    %v3817 = vsub.s32 3, %v3816
    %v3818 = vrot.slane %v3801, %v3817
    %v3819 = vlaneseq
    %v3820 = vshrl.u32 %v3819, 7
    %v3821 = vsub.s32 4, %v3820
    %v3822 = vrot.slane %v3801, %v3821
    %v3823 = vlaneseq
    %v3824 = vshrl.u32 %v3823, 7
    %v3825 = vsub.s32 5, %v3824
    %v3826 = vrot.slane %v3801, %v3825
    %v3834 = vcombine.high %v3416, %v3416
    %v3836 = vunpack.c.l.s4 1983009808
    %v3837 = vunpack.c.0.s8 %v3836
    %v3838 = vlaneseq
    %v3839 = vshrl.u32 %v3838, 7
    %v3840 = vsub.s32 %v3837, %v3839
    %v3841 = vrot.slane %v3416, %v3840
    %v3843 = vunpack.c.l.s4 1983009808
    %v3844 = vunpack.c.0.s8 %v3843
    %v3845 = vlaneseq
    %v3846 = vshrl.u32 %v3845, 7
    %v3847 = vsub.s32 %v3844, %v3846
    %v3848 = vrot.slane %v3834, %v3847
    %v3849 = vcombine.high %v3841, %v3841
    %v3850 = vcombine.high %v3848, %v3848
    %3855 = vmatprep.subr.mxu0 %v3508
    %3856 = vmatpush1.msra.mxu0 %v3507
    %3857 = vmatprep.subr.mxu0 %v3502
    %3858 = vmatpush1.msra.mxu0 %v3501
    %3859 = vmatprep.subr.mxu0 %v3496
    %3860 = vmatpush1.msra.mxu0 %v3495
    %3861 = vmatprep.subr.mxu0 %v3490
    %3862 = vmatpush1.msra.mxu0 %v3489
    %3863 = vmatprep.subr.mxu0 %v3484
    %3864 = vmatpush1.msra.mxu0 %v3483
    %3865 = vmatprep.subr.mxu0 %v3478
    %3866 = vmatpush1.msra.mxu0 %v3477
    %3867 = vmatprep.subr.mxu0 %v3472
    %3868 = vmatpush1.msra.mxu0 %v3471
    %3869 = vmatprep.subr.mxu0 %v3466
    %3870 = vmatpush1.msra.mxu0 %v3465
    %3871 = vmatprep.subr.mxu0 %v3460
    %3872 = vmatpush1.msra.mxu0 %v3459
    %3873 = vmatprep.subr.mxu0 %v3454
    %3874 = vmatpush1.msra.mxu0 %v3453
    %3875 = vmatprep.subr.mxu0 %v3448
    %3876 = vmatpush1.msra.mxu0 %v3447
    %3877 = vmatprep.subr.mxu0 %v3442
    %3878 = vmatpush1.msra.mxu0 %v3441
    %3879 = vmatprep.subr.mxu0 %v3436
    %3880 = vmatpush1.msra.mxu0 %v3435
    %3881 = vmatprep.subr.mxu0 %v3430
    %3882 = vmatpush1.msra.mxu0 %v3429
    %3883 = vmatprep.subr.mxu0 %v3424
    %3884 = vmatpush1.msra.mxu0 %v3423
    %3885 = vmatprep.subr.mxu0 %v3418
    %3886 = vmatpush1.msra.mxu0 %v3417
    %3887 = vmatprep.subr.mxu0 %v3604
    %3888 = vmatpush2.msra.mxu0 %v3603
    %3889 = vmatprep.subr.mxu0 %v3598
    %3890 = vmatpush2.msra.mxu0 %v3597
    %3891 = vmatprep.subr.mxu0 %v3592
    %3892 = vmatpush2.msra.mxu0 %v3591
    %3893 = vmatprep.subr.mxu0 %v3586
    %3894 = vmatpush2.msra.mxu0 %v3585
    %3895 = vmatprep.subr.mxu0 %v3580
    %3896 = vmatpush2.msra.mxu0 %v3579
    %3897 = vmatprep.subr.mxu0 %v3574
    %3898 = vmatpush2.msra.mxu0 %v3573
    %3899 = vmatprep.subr.mxu0 %v3568
    %3900 = vmatpush2.msra.mxu0 %v3567
    %3901 = vmatprep.subr.mxu0 %v3562
    %3902 = vmatpush2.msra.mxu0 %v3561
    %3903 = vmatprep.subr.mxu0 %v3556
    %3904 = vmatpush2.msra.mxu0 %v3555
    %3905 = vmatprep.subr.mxu0 %v3550
    %3906 = vmatpush2.msra.mxu0 %v3549
    %3907 = vmatprep.subr.mxu0 %v3544
    %3908 = vmatpush2.msra.mxu0 %v3543
    %3909 = vmatprep.subr.mxu0 %v3538
    %3910 = vmatpush2.msra.mxu0 %v3537
    %3911 = vmatprep.subr.mxu0 %v3532
    %3912 = vmatpush2.msra.mxu0 %v3531
    %3913 = vmatprep.subr.mxu0 %v3526
    %3914 = vmatpush2.msra.mxu0 %v3525
    %3915 = vmatprep.subr.mxu0 %v3520
    %3916 = vmatpush2.msra.mxu0 %v3519
    %3917 = vmatprep.subr.mxu0 %v3514
    %3918 = vmatpush2.msra.mxu0 %v3513
    %3919 = vmatprep.mubr.f32.mxu0 %v3849
    %3920 = vmatmul.mubr.f32.gmra.mxu0 %v3841
    %v3921 = vpop.f32.mrf.mxu0
    %v3922 = vadd.f32 %v3806, %v3921
    %v3923 = vpop.f32.mrf.mxu0
    %v3924 = vadd.f32 %v3810, %v3923
    %3925 = vdwg.mxu0
    %3926 = vmatprep.subr.mxu0 %v3700
    %3927 = vmatpush1.msra.mxu0 %v3699
    %3928 = vmatprep.subr.mxu0 %v3694
    %3929 = vmatpush1.msra.mxu0 %v3693
    %3930 = vmatprep.subr.mxu0 %v3688
    %3931 = vmatpush1.msra.mxu0 %v3687
    %3932 = vmatprep.subr.mxu0 %v3682
    %3933 = vmatpush1.msra.mxu0 %v3681
    %3934 = vmatprep.subr.mxu0 %v3676
    %3935 = vmatpush1.msra.mxu0 %v3675
    %3936 = vmatprep.subr.mxu0 %v3670
    %3937 = vmatpush1.msra.mxu0 %v3669
    %3938 = vmatprep.subr.mxu0 %v3664
    %3939 = vmatpush1.msra.mxu0 %v3663
    %3940 = vmatprep.subr.mxu0 %v3658
    %3941 = vmatpush1.msra.mxu0 %v3657
    %3942 = vmatprep.subr.mxu0 %v3652
    %3943 = vmatpush1.msra.mxu0 %v3651
    %3944 = vmatprep.subr.mxu0 %v3646
    %3945 = vmatpush1.msra.mxu0 %v3645
    %3946 = vmatprep.subr.mxu0 %v3640
    %3947 = vmatpush1.msra.mxu0 %v3639
    %3948 = vmatprep.subr.mxu0 %v3634
    %3949 = vmatpush1.msra.mxu0 %v3633
    %3950 = vmatprep.subr.mxu0 %v3628
    %3951 = vmatpush1.msra.mxu0 %v3627
    %3952 = vmatprep.subr.mxu0 %v3622
    %3953 = vmatpush1.msra.mxu0 %v3621
    %3954 = vmatprep.subr.mxu0 %v3616
    %3955 = vmatpush1.msra.mxu0 %v3615
    %3956 = vmatprep.subr.mxu0 %v3610
    %3957 = vmatpush1.msra.mxu0 %v3609
    %3958 = vmatprep.subr.mxu0 %v3796
    %3959 = vmatpush2.msra.mxu0 %v3795
    %3960 = vmatprep.subr.mxu0 %v3790
    %3961 = vmatpush2.msra.mxu0 %v3789
    %3962 = vmatprep.subr.mxu0 %v3784
    %3963 = vmatpush2.msra.mxu0 %v3783
    %3964 = vmatprep.subr.mxu0 %v3778
    %3965 = vmatpush2.msra.mxu0 %v3777
    %3966 = vmatprep.subr.mxu0 %v3772
    %3967 = vmatpush2.msra.mxu0 %v3771
    %3968 = vmatprep.subr.mxu0 %v3766
    %3969 = vmatpush2.msra.mxu0 %v3765
    %3970 = vmatprep.subr.mxu0 %v3760
    %3971 = vmatpush2.msra.mxu0 %v3759
    %3972 = vmatprep.subr.mxu0 %v3754
    %3973 = vmatpush2.msra.mxu0 %v3753
    %3974 = vmatprep.subr.mxu0 %v3748
    %3975 = vmatpush2.msra.mxu0 %v3747
    %3976 = vmatprep.subr.mxu0 %v3742
    %3977 = vmatpush2.msra.mxu0 %v3741
    %3978 = vmatprep.subr.mxu0 %v3736
    %3979 = vmatpush2.msra.mxu0 %v3735
    %3980 = vmatprep.subr.mxu0 %v3730
    %3981 = vmatpush2.msra.mxu0 %v3729
    %3982 = vmatprep.subr.mxu0 %v3724
    %3983 = vmatpush2.msra.mxu0 %v3723
    %3984 = vmatprep.subr.mxu0 %v3718
    %3985 = vmatpush2.msra.mxu0 %v3717
    %3986 = vmatprep.subr.mxu0 %v3712
    %3987 = vmatpush2.msra.mxu0 %v3711
    %3988 = vmatprep.subr.mxu0 %v3706
    %3989 = vmatpush2.msra.mxu0 %v3705
    %3990 = vmatprep.mubr.f32.mxu0 %v3850
    %3991 = vmatmul.mubr.f32.gmra.mxu0 %v3848
    %v3992 = vpop.f32.mrf.mxu0
    %v3993 = vadd.f32 %v3922, %v3992
    %v3994 = vpop.f32.mrf.mxu0
    %v3995 = vadd.f32 %v3924, %v3994
    %3996 = vdwg.mxu0
    %3997 = vmatprep.subr.mxu0 %v3510
    %3998 = vmatpush1.msra.mxu0 %v3509
    %3999 = vmatprep.subr.mxu0 %v3504
    %4000 = vmatpush1.msra.mxu0 %v3503
    %4001 = vmatprep.subr.mxu0 %v3498
    %4002 = vmatpush1.msra.mxu0 %v3497
    %4003 = vmatprep.subr.mxu0 %v3492
    %4004 = vmatpush1.msra.mxu0 %v3491
    %4005 = vmatprep.subr.mxu0 %v3486
    %4006 = vmatpush1.msra.mxu0 %v3485
    %4007 = vmatprep.subr.mxu0 %v3480
    %4008 = vmatpush1.msra.mxu0 %v3479
    %4009 = vmatprep.subr.mxu0 %v3474
    %4010 = vmatpush1.msra.mxu0 %v3473
    %4011 = vmatprep.subr.mxu0 %v3468
    %4012 = vmatpush1.msra.mxu0 %v3467
    %4013 = vmatprep.subr.mxu0 %v3462
    %4014 = vmatpush1.msra.mxu0 %v3461
    %4015 = vmatprep.subr.mxu0 %v3456
    %4016 = vmatpush1.msra.mxu0 %v3455
    %4017 = vmatprep.subr.mxu0 %v3450
    %4018 = vmatpush1.msra.mxu0 %v3449
    %4019 = vmatprep.subr.mxu0 %v3444
    %4020 = vmatpush1.msra.mxu0 %v3443
    %4021 = vmatprep.subr.mxu0 %v3438
    %4022 = vmatpush1.msra.mxu0 %v3437
    %4023 = vmatprep.subr.mxu0 %v3432
    %4024 = vmatpush1.msra.mxu0 %v3431
    %4025 = vmatprep.subr.mxu0 %v3426
    %4026 = vmatpush1.msra.mxu0 %v3425
    %4027 = vmatprep.subr.mxu0 %v3420
    %4028 = vmatpush1.msra.mxu0 %v3419
    %4029 = vmatprep.subr.mxu0 %v3606
    %4030 = vmatpush2.msra.mxu0 %v3605
    %4031 = vmatprep.subr.mxu0 %v3600
    %4032 = vmatpush2.msra.mxu0 %v3599
    %4033 = vmatprep.subr.mxu0 %v3594
    %4034 = vmatpush2.msra.mxu0 %v3593
    %4035 = vmatprep.subr.mxu0 %v3588
    %4036 = vmatpush2.msra.mxu0 %v3587
    %4037 = vmatprep.subr.mxu0 %v3582
    %4038 = vmatpush2.msra.mxu0 %v3581
    %4039 = vmatprep.subr.mxu0 %v3576
    %4040 = vmatpush2.msra.mxu0 %v3575
    %4041 = vmatprep.subr.mxu0 %v3570
    %4042 = vmatpush2.msra.mxu0 %v3569
    %4043 = vmatprep.subr.mxu0 %v3564
    %4044 = vmatpush2.msra.mxu0 %v3563
    %4045 = vmatprep.subr.mxu0 %v3558
    %4046 = vmatpush2.msra.mxu0 %v3557
    %4047 = vmatprep.subr.mxu0 %v3552
    %4048 = vmatpush2.msra.mxu0 %v3551
    %4049 = vmatprep.subr.mxu0 %v3546
    %4050 = vmatpush2.msra.mxu0 %v3545
    %4051 = vmatprep.subr.mxu0 %v3540
    %4052 = vmatpush2.msra.mxu0 %v3539
    %4053 = vmatprep.subr.mxu0 %v3534
    %4054 = vmatpush2.msra.mxu0 %v3533
    %4055 = vmatprep.subr.mxu0 %v3528
    %4056 = vmatpush2.msra.mxu0 %v3527
    %4057 = vmatprep.subr.mxu0 %v3522
    %4058 = vmatpush2.msra.mxu0 %v3521
    %4059 = vmatprep.subr.mxu0 %v3516
    %4060 = vmatpush2.msra.mxu0 %v3515
    %4061 = vmatprep.mubr.f32.mxu0 %v3849
    %4062 = vmatmul.mubr.f32.gmra.mxu0 %v3841
    %v4063 = vpop.f32.mrf.mxu0
    %v4064 = vadd.f32 %v3814, %v4063
    %v4065 = vpop.f32.mrf.mxu0
    %v4066 = vadd.f32 %v3818, %v4065
    %4067 = vdwg.mxu0
    %4068 = vmatprep.subr.mxu0 %v3702
    %4069 = vmatpush1.msra.mxu0 %v3701
    %4070 = vmatprep.subr.mxu0 %v3696
    %4071 = vmatpush1.msra.mxu0 %v3695
    %4072 = vmatprep.subr.mxu0 %v3690
    %4073 = vmatpush1.msra.mxu0 %v3689
    %4074 = vmatprep.subr.mxu0 %v3684
    %4075 = vmatpush1.msra.mxu0 %v3683
    %4076 = vmatprep.subr.mxu0 %v3678
    %4077 = vmatpush1.msra.mxu0 %v3677
    %4078 = vmatprep.subr.mxu0 %v3672
    %4079 = vmatpush1.msra.mxu0 %v3671
    %4080 = vmatprep.subr.mxu0 %v3666
    %4081 = vmatpush1.msra.mxu0 %v3665
    %4082 = vmatprep.subr.mxu0 %v3660
    %4083 = vmatpush1.msra.mxu0 %v3659
    %4084 = vmatprep.subr.mxu0 %v3654
    %4085 = vmatpush1.msra.mxu0 %v3653
    %4086 = vmatprep.subr.mxu0 %v3648
    %4087 = vmatpush1.msra.mxu0 %v3647
    %4088 = vmatprep.subr.mxu0 %v3642
    %4089 = vmatpush1.msra.mxu0 %v3641
    %4090 = vmatprep.subr.mxu0 %v3636
    %4091 = vmatpush1.msra.mxu0 %v3635
    %4092 = vmatprep.subr.mxu0 %v3630
    %4093 = vmatpush1.msra.mxu0 %v3629
    %4094 = vmatprep.subr.mxu0 %v3624
    %4095 = vmatpush1.msra.mxu0 %v3623
    %4096 = vmatprep.subr.mxu0 %v3618
    %4097 = vmatpush1.msra.mxu0 %v3617
    %4098 = vmatprep.subr.mxu0 %v3612
    %4099 = vmatpush1.msra.mxu0 %v3611
    %4100 = vmatprep.subr.mxu0 %v3798
    %4101 = vmatpush2.msra.mxu0 %v3797
    %4102 = vmatprep.subr.mxu0 %v3792
    %4103 = vmatpush2.msra.mxu0 %v3791
    %4104 = vmatprep.subr.mxu0 %v3786
    %4105 = vmatpush2.msra.mxu0 %v3785
    %4106 = vmatprep.subr.mxu0 %v3780
    %4107 = vmatpush2.msra.mxu0 %v3779
    %4108 = vmatprep.subr.mxu0 %v3774
    %4109 = vmatpush2.msra.mxu0 %v3773
    %4110 = vmatprep.subr.mxu0 %v3768
    %4111 = vmatpush2.msra.mxu0 %v3767
    %4112 = vmatprep.subr.mxu0 %v3762
    %4113 = vmatpush2.msra.mxu0 %v3761
    %4114 = vmatprep.subr.mxu0 %v3756
    %4115 = vmatpush2.msra.mxu0 %v3755
    %4116 = vmatprep.subr.mxu0 %v3750
    %4117 = vmatpush2.msra.mxu0 %v3749
    %4118 = vmatprep.subr.mxu0 %v3744
    %4119 = vmatpush2.msra.mxu0 %v3743
    %4120 = vmatprep.subr.mxu0 %v3738
    %4121 = vmatpush2.msra.mxu0 %v3737
    %4122 = vmatprep.subr.mxu0 %v3732
    %4123 = vmatpush2.msra.mxu0 %v3731
    %4124 = vmatprep.subr.mxu0 %v3726
    %4125 = vmatpush2.msra.mxu0 %v3725
    %4126 = vmatprep.subr.mxu0 %v3720
    %4127 = vmatpush2.msra.mxu0 %v3719
    %4128 = vmatprep.subr.mxu0 %v3714
    %4129 = vmatpush2.msra.mxu0 %v3713
    %4130 = vmatprep.subr.mxu0 %v3708
    %4131 = vmatpush2.msra.mxu0 %v3707
    %4132 = vmatprep.mubr.f32.mxu0 %v3850
    %4133 = vmatmul.mubr.f32.gmra.mxu0 %v3848
    %v4134 = vpop.f32.mrf.mxu0
    %v4135 = vadd.f32 %v4064, %v4134
    %v4136 = vpop.f32.mrf.mxu0
    %v4137 = vadd.f32 %v4066, %v4136
    %4138 = vdwg.mxu0
    %4139 = vmatprep.subr.mxu0 %v3512
    %4140 = vmatpush1.msra.mxu0 %v3511
    %4141 = vmatprep.subr.mxu0 %v3506
    %4142 = vmatpush1.msra.mxu0 %v3505
    %4143 = vmatprep.subr.mxu0 %v3500
    %4144 = vmatpush1.msra.mxu0 %v3499
    %4145 = vmatprep.subr.mxu0 %v3494
    %4146 = vmatpush1.msra.mxu0 %v3493
    %4147 = vmatprep.subr.mxu0 %v3488
    %4148 = vmatpush1.msra.mxu0 %v3487
    %4149 = vmatprep.subr.mxu0 %v3482
    %4150 = vmatpush1.msra.mxu0 %v3481
    %4151 = vmatprep.subr.mxu0 %v3476
    %4152 = vmatpush1.msra.mxu0 %v3475
    %4153 = vmatprep.subr.mxu0 %v3470
    %4154 = vmatpush1.msra.mxu0 %v3469
    %4155 = vmatprep.subr.mxu0 %v3464
    %4156 = vmatpush1.msra.mxu0 %v3463
    %4157 = vmatprep.subr.mxu0 %v3458
    %4158 = vmatpush1.msra.mxu0 %v3457
    %4159 = vmatprep.subr.mxu0 %v3452
    %4160 = vmatpush1.msra.mxu0 %v3451
    %4161 = vmatprep.subr.mxu0 %v3446
    %4162 = vmatpush1.msra.mxu0 %v3445
    %4163 = vmatprep.subr.mxu0 %v3440
    %4164 = vmatpush1.msra.mxu0 %v3439
    %4165 = vmatprep.subr.mxu0 %v3434
    %4166 = vmatpush1.msra.mxu0 %v3433
    %4167 = vmatprep.subr.mxu0 %v3428
    %4168 = vmatpush1.msra.mxu0 %v3427
    %4169 = vmatprep.subr.mxu0 %v3422
    %4170 = vmatpush1.msra.mxu0 %v3421
    %4171 = vmatprep.subr.mxu0 %v3608
    %4172 = vmatpush2.msra.mxu0 %v3607
    %4173 = vmatprep.subr.mxu0 %v3602
    %4174 = vmatpush2.msra.mxu0 %v3601
    %4175 = vmatprep.subr.mxu0 %v3596
    %4176 = vmatpush2.msra.mxu0 %v3595
    %4177 = vmatprep.subr.mxu0 %v3590
    %4178 = vmatpush2.msra.mxu0 %v3589
    %4179 = vmatprep.subr.mxu0 %v3584
    %4180 = vmatpush2.msra.mxu0 %v3583
    %4181 = vmatprep.subr.mxu0 %v3578
    %4182 = vmatpush2.msra.mxu0 %v3577
    %4183 = vmatprep.subr.mxu0 %v3572
    %4184 = vmatpush2.msra.mxu0 %v3571
    %4185 = vmatprep.subr.mxu0 %v3566
    %4186 = vmatpush2.msra.mxu0 %v3565
    %4187 = vmatprep.subr.mxu0 %v3560
    %4188 = vmatpush2.msra.mxu0 %v3559
    %4189 = vmatprep.subr.mxu0 %v3554
    %4190 = vmatpush2.msra.mxu0 %v3553
    %4191 = vmatprep.subr.mxu0 %v3548
    %4192 = vmatpush2.msra.mxu0 %v3547
    %4193 = vmatprep.subr.mxu0 %v3542
    %4194 = vmatpush2.msra.mxu0 %v3541
    %4195 = vmatprep.subr.mxu0 %v3536
    %4196 = vmatpush2.msra.mxu0 %v3535
    %4197 = vmatprep.subr.mxu0 %v3530
    %4198 = vmatpush2.msra.mxu0 %v3529
    %4199 = vmatprep.subr.mxu0 %v3524
    %4200 = vmatpush2.msra.mxu0 %v3523
    %4201 = vmatprep.subr.mxu0 %v3518
    %4202 = vmatpush2.msra.mxu0 %v3517
    %4203 = vmatprep.mubr.f32.mxu0 %v3849
    %4204 = vmatmul.mubr.f32.gmra.mxu0 %v3841
    %v4205 = vpop.f32.mrf.mxu0
    %v4206 = vadd.f32 %v3822, %v4205
    %v4207 = vpop.f32.mrf.mxu0
    %v4208 = vadd.f32 %v3826, %v4207
    %4209 = vdwg.mxu0
    %4210 = vmatprep.subr.mxu0 %v3704
    %4211 = vmatpush1.msra.mxu0 %v3703
    %4212 = vmatprep.subr.mxu0 %v3698
    %4213 = vmatpush1.msra.mxu0 %v3697
    %4214 = vmatprep.subr.mxu0 %v3692
    %4215 = vmatpush1.msra.mxu0 %v3691
    %4216 = vmatprep.subr.mxu0 %v3686
    %4217 = vmatpush1.msra.mxu0 %v3685
    %4218 = vmatprep.subr.mxu0 %v3680
    %4219 = vmatpush1.msra.mxu0 %v3679
    %4220 = vmatprep.subr.mxu0 %v3674
    %4221 = vmatpush1.msra.mxu0 %v3673
    %4222 = vmatprep.subr.mxu0 %v3668
    %4223 = vmatpush1.msra.mxu0 %v3667
    %4224 = vmatprep.subr.mxu0 %v3662
    %4225 = vmatpush1.msra.mxu0 %v3661
    %4226 = vmatprep.subr.mxu0 %v3656
    %4227 = vmatpush1.msra.mxu0 %v3655
    %4228 = vmatprep.subr.mxu0 %v3650
    %4229 = vmatpush1.msra.mxu0 %v3649
    %4230 = vmatprep.subr.mxu0 %v3644
    %4231 = vmatpush1.msra.mxu0 %v3643
    %4232 = vmatprep.subr.mxu0 %v3638
    %4233 = vmatpush1.msra.mxu0 %v3637
    %4234 = vmatprep.subr.mxu0 %v3632
    %4235 = vmatpush1.msra.mxu0 %v3631
    %4236 = vmatprep.subr.mxu0 %v3626
    %4237 = vmatpush1.msra.mxu0 %v3625
    %4238 = vmatprep.subr.mxu0 %v3620
    %4239 = vmatpush1.msra.mxu0 %v3619
    %4240 = vmatprep.subr.mxu0 %v3614
    %4241 = vmatpush1.msra.mxu0 %v3613
    %4242 = vmatprep.subr.mxu0 %v3800
    %4243 = vmatpush2.msra.mxu0 %v3799
    %4244 = vmatprep.subr.mxu0 %v3794
    %4245 = vmatpush2.msra.mxu0 %v3793
    %4246 = vmatprep.subr.mxu0 %v3788
    %4247 = vmatpush2.msra.mxu0 %v3787
    %4248 = vmatprep.subr.mxu0 %v3782
    %4249 = vmatpush2.msra.mxu0 %v3781
    %4250 = vmatprep.subr.mxu0 %v3776
    %4251 = vmatpush2.msra.mxu0 %v3775
    %4252 = vmatprep.subr.mxu0 %v3770
    %4253 = vmatpush2.msra.mxu0 %v3769
    %4254 = vmatprep.subr.mxu0 %v3764
    %4255 = vmatpush2.msra.mxu0 %v3763
    %4256 = vmatprep.subr.mxu0 %v3758
    %4257 = vmatpush2.msra.mxu0 %v3757
    %4258 = vmatprep.subr.mxu0 %v3752
    %4259 = vmatpush2.msra.mxu0 %v3751
    %4260 = vmatprep.subr.mxu0 %v3746
    %4261 = vmatpush2.msra.mxu0 %v3745
    %4262 = vmatprep.subr.mxu0 %v3740
    %4263 = vmatpush2.msra.mxu0 %v3739
    %4264 = vmatprep.subr.mxu0 %v3734
    %4265 = vmatpush2.msra.mxu0 %v3733
    %4266 = vmatprep.subr.mxu0 %v3728
    %4267 = vmatpush2.msra.mxu0 %v3727
    %4268 = vmatprep.subr.mxu0 %v3722
    %4269 = vmatpush2.msra.mxu0 %v3721
    %4270 = vmatprep.subr.mxu0 %v3716
    %4271 = vmatpush2.msra.mxu0 %v3715
    %4272 = vmatprep.subr.mxu0 %v3710
    %4273 = vmatpush2.msra.mxu0 %v3709
    %4274 = vmatprep.mubr.f32.mxu0 %v3850
    %4275 = vmatmul.mubr.f32.gmra.mxu0 %v3848
    %v4276 = vpop.f32.mrf.mxu0
    %v4277 = vadd.f32 %v4206, %v4276
    %v4278 = vpop.f32.mrf.mxu0
    %v4279 = vadd.f32 %v4208, %v4278
    %4280 = vdwg.mxu0
    %v4281 = vmax.f32 %v3993, 0.0
    %v4282 = vmax.f32 %v3995, 0.0
    %v4283 = vmax.f32 %v4135, 0.0
    %v4284 = vmax.f32 %v4137, 0.0
    %v4285 = vmax.f32 %v4277, 0.0
    %v4286 = vmax.f32 %v4279, 0.0
    %v4287 = vld [vmem:[%s9] sm:$0xff]
    %v4288 = vld [vmem:[%s9 + $0x8] sm:$0xff]
    %v4289 = vld [vmem:[%s9 + $0x10] sm:$0xff]
    %v4290 = vld [vmem:[%s9 + $0x18] sm:$0xff]
    %v4291 = vld [vmem:[%s9 + $0x20] sm:$0xff]
    %v4292 = vld [vmem:[%s9 + $0x28] sm:$0xff]
    %v4293 = vld [vmem:[%s9 + $0x30] sm:$0xff]
    %v4294 = vld [vmem:[%s9 + $0x38] sm:$0xff]
    %v4295 = vld [vmem:[%s9 + $0x40] sm:$0xff]
    %v4296 = vld [vmem:[%s9 + $0x48] sm:$0xff]
    %v4297 = vld [vmem:[%s9 + $0x50] sm:$0xff]
    %v4298 = vld [vmem:[%s9 + $0x58] sm:$0xff]
    %v4299 = vld [vmem:[%s9 + $0x60] sm:$0xff]
    %v4300 = vld [vmem:[%s9 + $0x68] sm:$0xff]
    %v4301 = vld [vmem:[%s9 + $0x70] sm:$0xff]
    %v4302 = vld [vmem:[%s9 + $0x78] sm:$0xff]
    %v4303 = vld [vmem:[%s9 + $0x80] sm:$0xff]
    %v4304 = vld [vmem:[%s9 + $0x88] sm:$0xff]
    %v4305 = vld [vmem:[%s9 + $0x90] sm:$0xff]
    %v4306 = vld [vmem:[%s9 + $0x98] sm:$0xff]
    %v4307 = vld [vmem:[%s9 + $0xa0] sm:$0xff]
    %v4308 = vld [vmem:[%s9 + $0xa8] sm:$0xff]
    %v4309 = vld [vmem:[%s9 + $0xb0] sm:$0xff]
    %v4310 = vld [vmem:[%s9 + $0xb8] sm:$0xff]
    %v4311 = vld [vmem:[%s9 + $0xc0] sm:$0xff]
    %v4312 = vld [vmem:[%s9 + $0xc8] sm:$0xff]
    %v4313 = vld [vmem:[%s9 + $0xd0] sm:$0xff]
    %v4314 = vld [vmem:[%s9 + $0xd8] sm:$0xff]
    %v4315 = vld [vmem:[%s9 + $0xe0] sm:$0xff]
    %v4316 = vld [vmem:[%s9 + $0xe8] sm:$0xff]
    %v4317 = vld [vmem:[%s9 + $0xf0] sm:$0xff]
    %v4318 = vld [vmem:[%s9 + $0xf8] sm:$0xff]
    %v4319 = vld [vmem:[%s9 + $0x100] sm:$0xff]
    %v4320 = vld [vmem:[%s9 + $0x108] sm:$0xff]
    %v4321 = vld [vmem:[%s9 + $0x110] sm:$0xff]
    %v4322 = vld [vmem:[%s9 + $0x118] sm:$0xff]
    %v4323 = vld [vmem:[%s9 + $0x120] sm:$0xff]
    %v4324 = vld [vmem:[%s9 + $0x128] sm:$0xff]
    %v4325 = vld [vmem:[%s9 + $0x130] sm:$0xff]
    %v4326 = vld [vmem:[%s9 + $0x138] sm:$0xff]
    %v4327 = vld [vmem:[%s9 + $0x140] sm:$0xff]
    %v4328 = vld [vmem:[%s9 + $0x148] sm:$0xff]
    %v4329 = vld [vmem:[%s9 + $0x150] sm:$0xff]
    %v4330 = vld [vmem:[%s9 + $0x158] sm:$0xff]
    %v4331 = vld [vmem:[%s9 + $0x160] sm:$0xff]
    %v4332 = vld [vmem:[%s9 + $0x168] sm:$0xff]
    %v4333 = vld [vmem:[%s9 + $0x170] sm:$0xff]
    %v4334 = vld [vmem:[%s9 + $0x178] sm:$0xff]
    %v4335 = vld [vmem:[%s9 + $0x180] sm:$0xff]
    %v4336 = vld [vmem:[%s9 + $0x188] sm:$0xff]
    %v4337 = vld [vmem:[%s9 + $0x190] sm:$0xff]
    %v4338 = vld [vmem:[%s9 + $0x198] sm:$0xff]
    %v4339 = vld [vmem:[%s9 + $0x1a0] sm:$0xff]
    %v4340 = vld [vmem:[%s9 + $0x1a8] sm:$0xff]
    %v4341 = vld [vmem:[%s9 + $0x1b0] sm:$0xff]
    %v4342 = vld [vmem:[%s9 + $0x1b8] sm:$0xff]
    %v4343 = vld [vmem:[%s9 + $0x1c0] sm:$0xff]
    %v4344 = vld [vmem:[%s9 + $0x1c8] sm:$0xff]
    %v4345 = vld [vmem:[%s9 + $0x1d0] sm:$0xff]
    %v4346 = vld [vmem:[%s9 + $0x1d8] sm:$0xff]
    %v4347 = vld [vmem:[%s9 + $0x1e0] sm:$0xff]
    %v4348 = vld [vmem:[%s9 + $0x1e8] sm:$0xff]
    %v4349 = vld [vmem:[%s9 + $0x1f0] sm:$0xff]
    %v4350 = vld [vmem:[%s9 + $0x1f8] sm:$0xff]
    %v4351 = vld [vmem:[%s9 + $0x200] sm:$0xff]
    %v4352 = vld [vmem:[%s9 + $0x208] sm:$0xff]
    %v4353 = vld [vmem:[%s9 + $0x210] sm:$0xff]
    %v4354 = vld [vmem:[%s9 + $0x218] sm:$0xff]
    %v4355 = vld [vmem:[%s9 + $0x220] sm:$0xff]
    %v4356 = vld [vmem:[%s9 + $0x228] sm:$0xff]
    %v4357 = vld [vmem:[%s9 + $0x230] sm:$0xff]
    %v4358 = vld [vmem:[%s9 + $0x238] sm:$0xff]
    %v4359 = vld [vmem:[%s9 + $0x240] sm:$0xff]
    %v4360 = vld [vmem:[%s9 + $0x248] sm:$0xff]
    %v4361 = vld [vmem:[%s9 + $0x250] sm:$0xff]
    %v4362 = vld [vmem:[%s9 + $0x258] sm:$0xff]
    %v4363 = vld [vmem:[%s9 + $0x260] sm:$0xff]
    %v4364 = vld [vmem:[%s9 + $0x268] sm:$0xff]
    %v4365 = vld [vmem:[%s9 + $0x270] sm:$0xff]
    %v4366 = vld [vmem:[%s9 + $0x278] sm:$0xff]
    %v4367 = vld [vmem:[%s9 + $0x280] sm:$0xff]
    %v4368 = vld [vmem:[%s9 + $0x288] sm:$0xff]
    %v4369 = vld [vmem:[%s9 + $0x290] sm:$0xff]
    %v4370 = vld [vmem:[%s9 + $0x298] sm:$0xff]
    %v4371 = vld [vmem:[%s9 + $0x2a0] sm:$0xff]
    %v4372 = vld [vmem:[%s9 + $0x2a8] sm:$0xff]
    %v4373 = vld [vmem:[%s9 + $0x2b0] sm:$0xff]
    %v4374 = vld [vmem:[%s9 + $0x2b8] sm:$0xff]
    %v4375 = vld [vmem:[%s9 + $0x2c0] sm:$0xff]
    %v4376 = vld [vmem:[%s9 + $0x2c8] sm:$0xff]
    %v4377 = vld [vmem:[%s9 + $0x2d0] sm:$0xff]
    %v4378 = vld [vmem:[%s9 + $0x2d8] sm:$0xff]
    %v4379 = vld [vmem:[%s9 + $0x2e0] sm:$0xff]
    %v4380 = vld [vmem:[%s9 + $0x2e8] sm:$0xff]
    %v4381 = vld [vmem:[%s9 + $0x2f0] sm:$0xff]
    %v4382 = vld [vmem:[%s9 + $0x2f8] sm:$0xff]
    %v4383 = vld [vmem:[%s10] sm:$0x1]
    %v4385 = vlaneseq
    %v4386 = vshrl.u32 %v4385, 7
    %v4387 = vsub.s32 0, %v4386
    %v4388 = vrot.slane %v4383, %v4387
    %4390 = vmatprep.subr.mxu0 0.0
    %4391 = vmatpush1.msra.mxu0 %v4302
    %4392 = vmatprep.subr.mxu0 0.0
    %4393 = vmatpush1.msra.mxu0 %v4301
    %4394 = vmatprep.subr.mxu0 0.0
    %4395 = vmatpush1.msra.mxu0 %v4300
    %4396 = vmatprep.subr.mxu0 0.0
    %4397 = vmatpush1.msra.mxu0 %v4299
    %4398 = vmatprep.subr.mxu0 0.0
    %4399 = vmatpush1.msra.mxu0 %v4298
    %4400 = vmatprep.subr.mxu0 0.0
    %4401 = vmatpush1.msra.mxu0 %v4297
    %4402 = vmatprep.subr.mxu0 0.0
    %4403 = vmatpush1.msra.mxu0 %v4296
    %4404 = vmatprep.subr.mxu0 0.0
    %4405 = vmatpush1.msra.mxu0 %v4295
    %4406 = vmatprep.subr.mxu0 0.0
    %4407 = vmatpush1.msra.mxu0 %v4294
    %4408 = vmatprep.subr.mxu0 0.0
    %4409 = vmatpush1.msra.mxu0 %v4293
    %4410 = vmatprep.subr.mxu0 0.0
    %4411 = vmatpush1.msra.mxu0 %v4292
    %4412 = vmatprep.subr.mxu0 0.0
    %4413 = vmatpush1.msra.mxu0 %v4291
    %4414 = vmatprep.subr.mxu0 0.0
    %4415 = vmatpush1.msra.mxu0 %v4290
    %4416 = vmatprep.subr.mxu0 0.0
    %4417 = vmatpush1.msra.mxu0 %v4289
    %4418 = vmatprep.subr.mxu0 0.0
    %4419 = vmatpush1.msra.mxu0 %v4288
    %4420 = vmatprep.subr.mxu0 0.0
    %4421 = vmatpush1.msra.mxu0 %v4287
    %4422 = vmatprep.subr.mxu0 0.0
    %4423 = vmatpush2.msra.mxu0 %v4318
    %4424 = vmatprep.subr.mxu0 0.0
    %4425 = vmatpush2.msra.mxu0 %v4317
    %4426 = vmatprep.subr.mxu0 0.0
    %4427 = vmatpush2.msra.mxu0 %v4316
    %4428 = vmatprep.subr.mxu0 0.0
    %4429 = vmatpush2.msra.mxu0 %v4315
    %4430 = vmatprep.subr.mxu0 0.0
    %4431 = vmatpush2.msra.mxu0 %v4314
    %4432 = vmatprep.subr.mxu0 0.0
    %4433 = vmatpush2.msra.mxu0 %v4313
    %4434 = vmatprep.subr.mxu0 0.0
    %4435 = vmatpush2.msra.mxu0 %v4312
    %4436 = vmatprep.subr.mxu0 0.0
    %4437 = vmatpush2.msra.mxu0 %v4311
    %4438 = vmatprep.subr.mxu0 0.0
    %4439 = vmatpush2.msra.mxu0 %v4310
    %4440 = vmatprep.subr.mxu0 0.0
    %4441 = vmatpush2.msra.mxu0 %v4309
    %4442 = vmatprep.subr.mxu0 0.0
    %4443 = vmatpush2.msra.mxu0 %v4308
    %4444 = vmatprep.subr.mxu0 0.0
    %4445 = vmatpush2.msra.mxu0 %v4307
    %4446 = vmatprep.subr.mxu0 0.0
    %4447 = vmatpush2.msra.mxu0 %v4306
    %4448 = vmatprep.subr.mxu0 0.0
    %4449 = vmatpush2.msra.mxu0 %v4305
    %4450 = vmatprep.subr.mxu0 0.0
    %4451 = vmatpush2.msra.mxu0 %v4304
    %4452 = vmatprep.subr.mxu0 0.0
    %4453 = vmatpush2.msra.mxu0 %v4303
    %4454 = vmatprep.mubr.f32.mxu0 %v4282
    %4455 = vmatmul.mubr.f32.gmra.mxu0 %v4281
    %v4456 = vpop.f32.mrf.mxu0
    %v4457 = vadd.f32 %v4388, %v4456
    %v4458 = vpop.f32.mrf.mxu0
    %4459 = vdwg.mxu0
    %4460 = vmatprep.subr.mxu0 0.0
    %4461 = vmatpush1.msra.mxu0 %v4334
    %4462 = vmatprep.subr.mxu0 0.0
    %4463 = vmatpush1.msra.mxu0 %v4333
    %4464 = vmatprep.subr.mxu0 0.0
    %4465 = vmatpush1.msra.mxu0 %v4332
    %4466 = vmatprep.subr.mxu0 0.0
    %4467 = vmatpush1.msra.mxu0 %v4331
    %4468 = vmatprep.subr.mxu0 0.0
    %4469 = vmatpush1.msra.mxu0 %v4330
    %4470 = vmatprep.subr.mxu0 0.0
    %4471 = vmatpush1.msra.mxu0 %v4329
    %4472 = vmatprep.subr.mxu0 0.0
    %4473 = vmatpush1.msra.mxu0 %v4328
    %4474 = vmatprep.subr.mxu0 0.0
    %4475 = vmatpush1.msra.mxu0 %v4327
    %4476 = vmatprep.subr.mxu0 0.0
    %4477 = vmatpush1.msra.mxu0 %v4326
    %4478 = vmatprep.subr.mxu0 0.0
    %4479 = vmatpush1.msra.mxu0 %v4325
    %4480 = vmatprep.subr.mxu0 0.0
    %4481 = vmatpush1.msra.mxu0 %v4324
    %4482 = vmatprep.subr.mxu0 0.0
    %4483 = vmatpush1.msra.mxu0 %v4323
    %4484 = vmatprep.subr.mxu0 0.0
    %4485 = vmatpush1.msra.mxu0 %v4322
    %4486 = vmatprep.subr.mxu0 0.0
    %4487 = vmatpush1.msra.mxu0 %v4321
    %4488 = vmatprep.subr.mxu0 0.0
    %4489 = vmatpush1.msra.mxu0 %v4320
    %4490 = vmatprep.subr.mxu0 0.0
    %4491 = vmatpush1.msra.mxu0 %v4319
    %4492 = vmatprep.subr.mxu0 0.0
    %4493 = vmatpush2.msra.mxu0 %v4350
    %4494 = vmatprep.subr.mxu0 0.0
    %4495 = vmatpush2.msra.mxu0 %v4349
    %4496 = vmatprep.subr.mxu0 0.0
    %4497 = vmatpush2.msra.mxu0 %v4348
    %4498 = vmatprep.subr.mxu0 0.0
    %4499 = vmatpush2.msra.mxu0 %v4347
    %4500 = vmatprep.subr.mxu0 0.0
    %4501 = vmatpush2.msra.mxu0 %v4346
    %4502 = vmatprep.subr.mxu0 0.0
    %4503 = vmatpush2.msra.mxu0 %v4345
    %4504 = vmatprep.subr.mxu0 0.0
    %4505 = vmatpush2.msra.mxu0 %v4344
    %4506 = vmatprep.subr.mxu0 0.0
    %4507 = vmatpush2.msra.mxu0 %v4343
    %4508 = vmatprep.subr.mxu0 0.0
    %4509 = vmatpush2.msra.mxu0 %v4342
    %4510 = vmatprep.subr.mxu0 0.0
    %4511 = vmatpush2.msra.mxu0 %v4341
    %4512 = vmatprep.subr.mxu0 0.0
    %4513 = vmatpush2.msra.mxu0 %v4340
    %4514 = vmatprep.subr.mxu0 0.0
    %4515 = vmatpush2.msra.mxu0 %v4339
    %4516 = vmatprep.subr.mxu0 0.0
    %4517 = vmatpush2.msra.mxu0 %v4338
    %4518 = vmatprep.subr.mxu0 0.0
    %4519 = vmatpush2.msra.mxu0 %v4337
    %4520 = vmatprep.subr.mxu0 0.0
    %4521 = vmatpush2.msra.mxu0 %v4336
    %4522 = vmatprep.subr.mxu0 0.0
    %4523 = vmatpush2.msra.mxu0 %v4335
    %4524 = vmatprep.mubr.f32.mxu0 %v4284
    %4525 = vmatmul.mubr.f32.gmra.mxu0 %v4283
    %v4526 = vpop.f32.mrf.mxu0
    %v4527 = vadd.f32 %v4457, %v4526
    %v4528 = vpop.f32.mrf.mxu0
    %4529 = vdwg.mxu0
    %4530 = vmatprep.subr.mxu0 0.0
    %4531 = vmatpush1.msra.mxu0 %v4366
    %4532 = vmatprep.subr.mxu0 0.0
    %4533 = vmatpush1.msra.mxu0 %v4365
    %4534 = vmatprep.subr.mxu0 0.0
    %4535 = vmatpush1.msra.mxu0 %v4364
    %4536 = vmatprep.subr.mxu0 0.0
    %4537 = vmatpush1.msra.mxu0 %v4363
    %4538 = vmatprep.subr.mxu0 0.0
    %4539 = vmatpush1.msra.mxu0 %v4362
    %4540 = vmatprep.subr.mxu0 0.0
    %4541 = vmatpush1.msra.mxu0 %v4361
    %4542 = vmatprep.subr.mxu0 0.0
    %4543 = vmatpush1.msra.mxu0 %v4360
    %4544 = vmatprep.subr.mxu0 0.0
    %4545 = vmatpush1.msra.mxu0 %v4359
    %4546 = vmatprep.subr.mxu0 0.0
    %4547 = vmatpush1.msra.mxu0 %v4358
    %4548 = vmatprep.subr.mxu0 0.0
    %4549 = vmatpush1.msra.mxu0 %v4357
    %4550 = vmatprep.subr.mxu0 0.0
    %4551 = vmatpush1.msra.mxu0 %v4356
    %4552 = vmatprep.subr.mxu0 0.0
    %4553 = vmatpush1.msra.mxu0 %v4355
    %4554 = vmatprep.subr.mxu0 0.0
    %4555 = vmatpush1.msra.mxu0 %v4354
    %4556 = vmatprep.subr.mxu0 0.0
    %4557 = vmatpush1.msra.mxu0 %v4353
    %4558 = vmatprep.subr.mxu0 0.0
    %4559 = vmatpush1.msra.mxu0 %v4352
    %4560 = vmatprep.subr.mxu0 0.0
    %4561 = vmatpush1.msra.mxu0 %v4351
    %4562 = vmatprep.subr.mxu0 0.0
    %4563 = vmatpush2.msra.mxu0 %v4382
    %4564 = vmatprep.subr.mxu0 0.0
    %4565 = vmatpush2.msra.mxu0 %v4381
    %4566 = vmatprep.subr.mxu0 0.0
    %4567 = vmatpush2.msra.mxu0 %v4380
    %4568 = vmatprep.subr.mxu0 0.0
    %4569 = vmatpush2.msra.mxu0 %v4379
    %4570 = vmatprep.subr.mxu0 0.0
    %4571 = vmatpush2.msra.mxu0 %v4378
    %4572 = vmatprep.subr.mxu0 0.0
    %4573 = vmatpush2.msra.mxu0 %v4377
    %4574 = vmatprep.subr.mxu0 0.0
    %4575 = vmatpush2.msra.mxu0 %v4376
    %4576 = vmatprep.subr.mxu0 0.0
    %4577 = vmatpush2.msra.mxu0 %v4375
    %4578 = vmatprep.subr.mxu0 0.0
    %4579 = vmatpush2.msra.mxu0 %v4374
    %4580 = vmatprep.subr.mxu0 0.0
    %4581 = vmatpush2.msra.mxu0 %v4373
    %4582 = vmatprep.subr.mxu0 0.0
    %4583 = vmatpush2.msra.mxu0 %v4372
    %4584 = vmatprep.subr.mxu0 0.0
    %4585 = vmatpush2.msra.mxu0 %v4371
    %4586 = vmatprep.subr.mxu0 0.0
    %4587 = vmatpush2.msra.mxu0 %v4370
    %4588 = vmatprep.subr.mxu0 0.0
    %4589 = vmatpush2.msra.mxu0 %v4369
    %4590 = vmatprep.subr.mxu0 0.0
    %4591 = vmatpush2.msra.mxu0 %v4368
    %4592 = vmatprep.subr.mxu0 0.0
    %4593 = vmatpush2.msra.mxu0 %v4367
    %4594 = vmatprep.mubr.f32.mxu0 %v4286
    %4595 = vmatmul.mubr.f32.gmra.mxu0 %v4285
    %v4596 = vpop.f32.mrf.mxu0
    %v4597 = vadd.f32 %v4527, %v4596
    %v4598 = vpop.f32.mrf.mxu0
    %4599 = vdwg.mxu0
    %v4600 = vmax.f32 %v4597, 0.0
    %v4601 = vld [vmem:[%s11] sm:$0xff]
    %v4602 = vld [vmem:[%s11 + $0x8] sm:$0xff]
    %v4603 = vld [vmem:[%s11 + $0x10] sm:$0xff]
    %v4604 = vld [vmem:[%s11 + $0x18] sm:$0xff]
    %v4605 = vld [vmem:[%s12] sm:$0x1]
    %v4607 = vlaneseq
    %v4608 = vshrl.u32 %v4607, 7
    %v4609 = vsub.s32 0, %v4608
    %v4610 = vrot.slane %v4605, %v4609
    %vm4612 = vcmask 261120
    %v4614 = vsel %vm4612, %v4600, 0
    %4616 = vmatprep.subr.mxu0 0.0
    %4617 = vmatpush1.msra.mxu0 0.0
    %4618 = vmatprep.subr.mxu0 0.0
    %4619 = vmatpush1.msra.mxu0 0.0
    %4620 = vmatprep.subr.mxu0 0.0
    %4621 = vmatpush1.msra.mxu0 0.0
    %4622 = vmatprep.subr.mxu0 0.0
    %4623 = vmatpush1.msra.mxu0 0.0
    %4624 = vmatprep.subr.mxu0 0.0
    %4625 = vmatpush1.msra.mxu0 0.0
    %4626 = vmatprep.subr.mxu0 0.0
    %4627 = vmatpush1.msra.mxu0 0.0
    %4628 = vmatprep.subr.mxu0 0.0
    %4629 = vmatpush1.msra.mxu0 0.0
    %4630 = vmatprep.subr.mxu0 0.0
    %4631 = vmatpush1.msra.mxu0 0.0
    %4632 = vmatprep.subr.mxu0 0.0
    %4633 = vmatpush1.msra.mxu0 0.0
    %4634 = vmatprep.subr.mxu0 0.0
    %4635 = vmatpush1.msra.mxu0 0.0
    %4636 = vmatprep.subr.mxu0 0.0
    %4637 = vmatpush1.msra.mxu0 0.0
    %4638 = vmatprep.subr.mxu0 0.0
    %4639 = vmatpush1.msra.mxu0 0.0
    %4640 = vmatprep.subr.mxu0 0.0
    %4641 = vmatpush1.msra.mxu0 %v4604
    %4642 = vmatprep.subr.mxu0 0.0
    %4643 = vmatpush1.msra.mxu0 %v4603
    %4644 = vmatprep.subr.mxu0 0.0
    %4645 = vmatpush1.msra.mxu0 %v4602
    %4646 = vmatprep.subr.mxu0 0.0
    %4647 = vmatpush1.msra.mxu0 %v4601
    %4648 = vmatprep.subr.mxu0 0.0
    %4649 = vmatpush2.msra.mxu0 0.0
    %4650 = vmatprep.subr.mxu0 0.0
    %4651 = vmatpush2.msra.mxu0 0.0
    %4652 = vmatprep.subr.mxu0 0.0
    %4653 = vmatpush2.msra.mxu0 0.0
    %4654 = vmatprep.subr.mxu0 0.0
    %4655 = vmatpush2.msra.mxu0 0.0
    %4656 = vmatprep.subr.mxu0 0.0
    %4657 = vmatpush2.msra.mxu0 0.0
    %4658 = vmatprep.subr.mxu0 0.0
    %4659 = vmatpush2.msra.mxu0 0.0
    %4660 = vmatprep.subr.mxu0 0.0
    %4661 = vmatpush2.msra.mxu0 0.0
    %4662 = vmatprep.subr.mxu0 0.0
    %4663 = vmatpush2.msra.mxu0 0.0
    %4664 = vmatprep.subr.mxu0 0.0
    %4665 = vmatpush2.msra.mxu0 0.0
    %4666 = vmatprep.subr.mxu0 0.0
    %4667 = vmatpush2.msra.mxu0 0.0
    %4668 = vmatprep.subr.mxu0 0.0
    %4669 = vmatpush2.msra.mxu0 0.0
    %4670 = vmatprep.subr.mxu0 0.0
    %4671 = vmatpush2.msra.mxu0 0.0
    %4672 = vmatprep.subr.mxu0 0.0
    %4673 = vmatpush2.msra.mxu0 0.0
    %4674 = vmatprep.subr.mxu0 0.0
    %4675 = vmatpush2.msra.mxu0 0.0
    %4676 = vmatprep.subr.mxu0 0.0
    %4677 = vmatpush2.msra.mxu0 0.0
    %4678 = vmatprep.subr.mxu0 0.0
    %4679 = vmatpush2.msra.mxu0 0.0
    %4680 = vmatprep.mubr.f32.mxu0 0.0
    %4681 = vmatmul.mubr.f32.gmra.mxu0 %v4614
    %v4682 = vpop.f32.mrf.mxu0
    %v4683 = vadd.f32 %v4610, %v4682
    %v4684 = vpop.f32.mrf.mxu0
    %4685 = vdwg.mxu0
    %vm4686 = vcmask 41984
    %4687 = vst.msk [vmem:[#allocation7] sm:$0x3] %vm4686, %v4683
    // Predicated region
    $region54: #{dqn_forward.1} parent=1 // pred_check
      _
    $region55: #{dqn_forward.1} parent=1 // pred_check_branch
      %4689 = sbr.rel (0) target = $region57
    $region56: #{dqn_forward.1} parent=1 // pred_region
      %s4691 = ssub.s32 32, 32
      %4692 = vsyncadd [#allocation8], %s4691
      %s4694 = sshll.u32 [#allocation7], 4
      %s4695 = int_to_ptr.vmem [resolvable:$true] %s4694
      %4697 = dma.vmem_to_hbm [thread:$0]  %s4695, 32, %s13, [#allocation8]
    $region57: #{dqn_forward.1} parent=1 // pred_fallthru
      _
    // Predicated region
    $region58: #{dqn_forward.1} parent=1 // pred_check
      _
    $region59: #{dqn_forward.1} parent=1 // pred_check_branch
      %4699 = sbr.rel (0) target = $region61
    $region60: #{dqn_forward.1} parent=1 // pred_region
      %4700 = dma.done [#allocation8], 32
    $region61: #{dqn_forward.1} parent=1 // pred_fallthru
      _
    %4701 = vsyncpa [#allocation8], 1

</llo_original>
